<compile_context>
chip_gen: v7x
topology: tpu7x:2x2x1
jax: 0.10.0
libtpu: 0.0.40
codegen_flags: <defaults>
</compile_context>

<pallas_src>
import jax
import jax.numpy as jnp
import numpy as np
from jax.experimental import pallas as pl
from jax.experimental.pallas import tpu as pltpu

# Fixed geometry implied by the PyTorch module (fc1 expects 90 flat features).
N_BATCH = 2
CIN, H, W = 4, 128, 32                     # input (NCHW)
C1, KH1, KW1, SH1, SW1, P1 = 30, 7, 3, 6, 2, 10
H1, W1 = 24, 25                            # conv1 output spatial
PH1, PW1 = 6, 6                            # after maxpool1 (4x4 / 4)
C2 = 10
H2, W2 = 6, 6                              # conv2 output spatial (3x3, pad 1)
PH2, PW2 = 3, 3                            # after maxpool2 (2x2 / 2)
NCLASS = 3
KPATCH = CIN * KH1 * W                     # 896: in-VMEM conv1 patch width


# ---------------------------------------------------------------------------
# The fused kernel (one grid step == one image)
# ---------------------------------------------------------------------------
def _freq_cnn_kernel(x_ref, t_ref, b1_ref, c1b_ref, b2_ref, c2b_ref,
                     wf1_ref, fc1b_ref, w3_ref, fc3b_ref,
                     o_ref, patch_ref, x2p_ref):
    f32 = jnp.float32

    # ---- conv1: strided/padded im2col via T (rows) + expanded weights B1 ----
    t = t_ref[...]                                              # (168, 128) 0/1
    for cin in range(CIN):
        a = jnp.dot(t, x_ref[0, cin], preferred_element_type=f32)   # (168, 32)
        for i in range(KH1):
            k = cin * KH1 + i
            patch_ref[:, k * W:(k + 1) * W] = a[i * H1:(i + 1) * H1, :]
    acc1 = jnp.dot(patch_ref[...].astype(jnp.bfloat16), b1_ref[...],
                   preferred_element_type=f32)                  # (24, 750)
    y1 = jnp.maximum(acc1 + c1b_ref[...], 0.0)                  # lanes = c*30+co

    # ---- maxpool1 (4x4 stride 4), stored as conv2's zero-padded input ------
    x2p_ref[...] = jnp.zeros((PH1 + 2, PW1 * C1), f32)          # (8, 180)
    for gr in range(PH1):
        rb = y1[4 * gr:4 * gr + 4, :]
        rmax = jnp.maximum(jnp.maximum(rb[0:1], rb[1:2]),
                           jnp.maximum(rb[2:3], rb[3:4]))       # (1, 750)
        for gc in range(PW1):
            m = rmax[:, (4 * gc) * C1:(4 * gc) * C1 + C1]
            for dc in range(1, 4):
                m = jnp.maximum(
                    m, rmax[:, (4 * gc + dc) * C1:(4 * gc + dc) * C1 + C1])
            x2p_ref[gr + 1:gr + 2, gc * C1:(gc + 1) * C1] = m

    # ---- conv2 (3x3, pad 1): 3 matmuls against expanded weights B2 ---------
    x2p = x2p_ref[...]                                          # (8, 180)
    acc2 = jnp.zeros((H2, W2 * C2), f32)                        # (6, 60)
    for dk in range(3):
        acc2 = acc2 + jnp.dot(x2p[dk:dk + H2, :], b2_ref[dk],
                              preferred_element_type=f32)
    y2 = jnp.maximum(acc2 + c2b_ref[...], 0.0)                  # lanes = c*10+co

    # ---- maxpool2 (2x2 stride 2) + fc1 + fc3 + log_softmax -----------------
    h = fc1b_ref[...]                                           # (1, 4)
    for gr in range(PH2):
        rm = jnp.maximum(y2[2 * gr:2 * gr + 1, :], y2[2 * gr + 1:2 * gr + 2, :])
        wgr = wf1_ref[gr]                                       # (30, 4)
        for gc in range(PW2):
            p = jnp.maximum(rm[:, (2 * gc) * C2:(2 * gc) * C2 + C2],
                            rm[:, (2 * gc + 1) * C2:(2 * gc + 1) * C2 + C2])
            h = h + jnp.dot(p, wgr[gc * C2:(gc + 1) * C2, :],
                            preferred_element_type=f32)         # (1, 4)
    logits = jnp.dot(h, w3_ref[...], preferred_element_type=f32) + fc3b_ref[...]
    m = jnp.max(logits, axis=-1, keepdims=True)
    lse = m + jnp.log(jnp.sum(jnp.exp(logits - m), axis=-1, keepdims=True))
    o_ref[0] = logits - lse


# ---------------------------------------------------------------------------
# Host-side (numpy) parameter re-packing -- runs once at init
# ---------------------------------------------------------------------------
def prepare_operands(params):
    w1 = np.asarray(params["conv1_w"], np.float32)   # (30, 4, 7, 3)
    b1 = np.asarray(params["conv1_b"], np.float32)
    w2 = np.asarray(params["conv2_w"], np.float32)   # (10, 30, 3, 3)
    b2 = np.asarray(params["conv2_b"], np.float32)
    wf1 = np.asarray(params["fc1_w"], np.float32)    # (4, 90)   torch layout
    bf1 = np.asarray(params["fc1_b"], np.float32)
    wf3 = np.asarray(params["fc3_w"], np.float32)    # (3, 4)
    bf3 = np.asarray(params["fc3_b"], np.float32)

    # T: 0/1 row gather; row (i*24 + r) selects raw input row 6*r + i - 10
    # (rows outside [0, 128) stay all-zero -> H zero-padding comes free).
    T = np.zeros((KH1 * H1, H), np.float32)
    for i in range(KH1):
        for r in range(H1):
            hh = SH1 * r + i - P1
            if 0 <= hh < H:
                T[i * H1 + r, hh] = 1.0

    # B1: conv1 weights expanded over output columns.  Row (cin, i, w) /
    # column (c, cout) holds w1[cout, cin, i, j] with 2*c + j - 10 == w;
    # missing rows implement the W zero-padding.
    B1 = np.zeros((CIN, KH1, W, W1, C1), np.float32)
    for j in range(KW1):
        for c in range(W1):
            ww = SW1 * c + j - P1
            if 0 <= ww < W:
                B1[:, :, ww, c, :] = np.transpose(w1[:, :, :, j], (1, 2, 0))
    B1 = B1.reshape(KPATCH, W1 * C1)
    bias1 = np.tile(b1, W1).reshape(1, W1 * C1)

    # B2: conv2 weights expanded over output columns, one matrix per kernel
    # row dk; missing entries implement the W padding of conv2.
    B2 = np.zeros((3, PW1, C1, W2, C2), np.float32)
    for dk in range(3):
        for dj in range(3):
            for c in range(W2):
                cp = c + dj - 1
                if 0 <= cp < PW1:
                    B2[dk, cp, :, c, :] = w2[:, :, dk, dj].T
    B2 = B2.reshape(3, PW1 * C1, W2 * C2)
    bias2 = np.tile(b2, W2).reshape(1, W2 * C2)

    # fc1 weights permuted so the kernel's (row=gr, lane=gc*10+ch) layout
    # feeds it directly (absorbs the PyTorch NCHW flatten order).
    Wf1 = np.transpose(wf1.reshape(4, C2, PH2, PW2), (2, 3, 1, 0))
    Wf1 = Wf1.reshape(PH2, PW2 * C2, 4)

    return {
        "T": jnp.asarray(T),
        "B1": jnp.asarray(B1, jnp.bfloat16),
        "bias1": jnp.asarray(bias1),
        "B2": jnp.asarray(B2),
        "bias2": jnp.asarray(bias2),
        "Wf1": jnp.asarray(Wf1),
        "fc1_b": jnp.asarray(bf1.reshape(1, 4)),
        "W3": jnp.asarray(wf3.T.copy()),            # (4, 3)
        "fc3_b": jnp.asarray(bf3.reshape(1, NCLASS)),
    }


# ---------------------------------------------------------------------------
# Wrapper: one pallas_call for the whole forward pass
# ---------------------------------------------------------------------------
def freq_cnn_forward(x, ops):
    n = x.shape[0]
    out = pl.pallas_call(
        _freq_cnn_kernel,
        grid=(n,),
        in_specs=[
            pl.BlockSpec((1, CIN, H, W), lambda b: (b, 0, 0, 0)),
            pl.BlockSpec((KH1 * H1, H), lambda b: (0, 0)),
            pl.BlockSpec((KPATCH, W1 * C1), lambda b: (0, 0)),
            pl.BlockSpec((1, W1 * C1), lambda b: (0, 0)),
            pl.BlockSpec((3, PW1 * C1, W2 * C2), lambda b: (0, 0, 0)),
            pl.BlockSpec((1, W2 * C2), lambda b: (0, 0)),
            pl.BlockSpec((PH2, PW2 * C2, 4), lambda b: (0, 0, 0)),
            pl.BlockSpec((1, 4), lambda b: (0, 0)),
            pl.BlockSpec((4, NCLASS), lambda b: (0, 0)),
            pl.BlockSpec((1, NCLASS), lambda b: (0, 0)),
        ],
        out_specs=pl.BlockSpec((1, 1, NCLASS), lambda b: (b, 0, 0)),
        out_shape=jax.ShapeDtypeStruct((n, 1, NCLASS), jnp.float32),
        scratch_shapes=[
            pltpu.VMEM((H1, KPATCH), jnp.float32),        # conv1 patch matrix
            pltpu.VMEM((PH1 + 2, PW1 * C1), jnp.float32),  # padded conv2 input
        ],
        compiler_params=pltpu.CompilerParams(
            dimension_semantics=("parallel",)),   # batch axis shards on v7x
    )(x, ops["T"], ops["B1"], ops["bias1"], ops["B2"], ops["bias2"],
      ops["Wf1"], ops["fc1_b"], ops["W3"], ops["fc3_b"])
    return out[:, 0, :]


# ---------------------------------------------------------------------------
# Plain-JAX reference of the PyTorch forward (golden check)
# ---------------------------------------------------------------------------
def _maxpool_ref(x, k, s):
    n, c, hh, ww = x.shape
    ho = (hh - k) // s + 1
    wo = (ww - k) // s + 1
    wins = [x[:, :, i:i + s * ho:s, j:j + s * wo:s]
            for i in range(k) for j in range(k)]
    return jnp.max(jnp.stack(wins, axis=0), axis=0)


def reference_forward(x, params):
    dn = ("NCHW", "OIHW", "NCHW")
    hp = jax.lax.Precision.HIGHEST
    y = jax.lax.conv_general_dilated(x, params["conv1_w"], (SH1, SW1),
                                     ((P1, P1), (P1, P1)),
                                     dimension_numbers=dn, precision=hp)
    y = jax.nn.relu(y + params["conv1_b"][None, :, None, None])
    y = _maxpool_ref(y, 4, 4)
    y = jax.lax.conv_general_dilated(y, params["conv2_w"], (1, 1),
                                     ((1, 1), (1, 1)),
                                     dimension_numbers=dn, precision=hp)
    y = jax.nn.relu(y + params["conv2_b"][None, :, None, None])
    y = _maxpool_ref(y, 2, 2)
    y = y.reshape(y.shape[0], -1)
    y = y @ params["fc1_w"].T + params["fc1_b"]
    y = y @ params["fc3_w"].T + params["fc3_b"]
    return jax.nn.log_softmax(y, axis=-1)


# ---------------------------------------------------------------------------
# Driver
# ---------------------------------------------------------------------------
if __name__ == "__main__":
    num_channels = CIN
    classes = NCLASS
    key = jax.random.PRNGKey(0)
    keys = jax.random.split(key, 9)

    def _uinit(k, shape, fan_in):
        bound = 1.0 / float(fan_in) ** 0.5
        return jax.random.uniform(k, shape, jnp.float32, -bound, bound)

    params = {
        "conv1_w": _uinit(keys[0], (C1, num_channels, KH1, KW1),
                          num_channels * KH1 * KW1),
        "conv1_b": _uinit(keys[1], (C1,), num_channels * KH1 * KW1),
        "conv2_w": _uinit(keys[2], (C2, C1, 3, 3), C1 * 9),
        "conv2_b": _uinit(keys[3], (C2,), C1 * 9),
        "fc1_w": _uinit(keys[4], (4, 90), 90),          # torch Linear layout
        "fc1_b": _uinit(keys[5], (4,), 90),
        "fc3_w": _uinit(keys[6], (classes, 4), 4),
        "fc3_b": _uinit(keys[7], (classes,), 4),
    }
    # (2, 4, 128, 32) is the smallest "nice" input giving the 90 flat features
    # fc1 expects: conv1 (2,30,24,25) -> pool1 (2,30,6,6) -> conv2 (2,10,6,6)
    # -> pool2 (2,10,3,3) -> flatten (2,90).
    x = jax.random.normal(keys[8], (N_BATCH, num_channels, H, W), jnp.float32)

    ops = prepare_operands(params)
    fwd = jax.jit(freq_cnn_forward)
    out = jax.block_until_ready(fwd(x, ops))

    assert out.shape == (N_BATCH, classes)
    assert bool(jnp.all(jnp.isfinite(out)))
    # log-softmax rows exponentiate-and-sum to 1
    assert jnp.allclose(jnp.sum(jnp.exp(out), axis=1), 1.0, atol=1e-4)
    # golden check vs a plain-JAX rendering of the PyTorch forward
    ref = jax.block_until_ready(reference_forward(x, params))
    err = float(jnp.max(jnp.abs(out - ref)))
    assert jnp.allclose(out, ref, atol=5e-2, rtol=5e-2), f"max|err|={err}"
    print("KERNEL_OK")
</pallas_src>

<mosaic_0001>
module attributes {stable_mosaic.version = 11 : i64} {
  func.func @_freq_cnn_kernel(%arg0: i32, %arg1: memref<1x4x128x32xf32, #tpu.memory_space<vmem>>, %arg2: memref<168x128xf32, #tpu.memory_space<vmem>>, %arg3: memref<896x750xbf16, #tpu.memory_space<vmem>>, %arg4: memref<1x750xf32, #tpu.memory_space<vmem>>, %arg5: memref<3x180x60xf32, #tpu.memory_space<vmem>>, %arg6: memref<1x60xf32, #tpu.memory_space<vmem>>, %arg7: memref<3x30x4xf32, #tpu.memory_space<vmem>>, %arg8: memref<1x4xf32, #tpu.memory_space<vmem>>, %arg9: memref<4x3xf32, #tpu.memory_space<vmem>>, %arg10: memref<1x3xf32, #tpu.memory_space<vmem>>, %arg11: memref<1x1x3xf32, #tpu.memory_space<vmem>>, %arg12: memref<24x896xf32, #tpu.memory_space<vmem>>, %arg13: memref<8x180xf32, #tpu.memory_space<vmem>>) attributes {dimension_semantics = [#tpu.dimension_semantics<parallel>], iteration_bounds = array<i64: 2>, scalar_prefetch = 0 : i64, scratch_operands = 2 : i64, tpu.core_type = #tpu.core_type<tc>, window_params = [{transform_indices = @transform_0, window_bounds = array<i64: 1, 4, 128, 32>}, {pipeline_mode = #tpu.pipeline_mode<synchronous>, transform_indices = @transform_1, window_bounds = array<i64: 168, 128>}, {pipeline_mode = #tpu.pipeline_mode<synchronous>, transform_indices = @transform_2, window_bounds = array<i64: 896, 750>}, {pipeline_mode = #tpu.pipeline_mode<synchronous>, transform_indices = @transform_3, window_bounds = array<i64: 1, 750>}, {pipeline_mode = #tpu.pipeline_mode<synchronous>, transform_indices = @transform_4, window_bounds = array<i64: 3, 180, 60>}, {pipeline_mode = #tpu.pipeline_mode<synchronous>, transform_indices = @transform_5, window_bounds = array<i64: 1, 60>}, {pipeline_mode = #tpu.pipeline_mode<synchronous>, transform_indices = @transform_6, window_bounds = array<i64: 3, 30, 4>}, {pipeline_mode = #tpu.pipeline_mode<synchronous>, transform_indices = @transform_7, window_bounds = array<i64: 1, 4>}, {pipeline_mode = #tpu.pipeline_mode<synchronous>, transform_indices = @transform_8, window_bounds = array<i64: 4, 3>}, {pipeline_mode = #tpu.pipeline_mode<synchronous>, transform_indices = @transform_9, window_bounds = array<i64: 1, 3>}, {transform_indices = @transform_10, window_bounds = array<i64: 1, 1, 3>}]} {
    %c0 = arith.constant 0 : index
    %c0_0 = arith.constant 0 : index
    %0 = vector.load %arg2[%c0, %c0_0] : memref<168x128xf32, #tpu.memory_space<vmem>>, vector<168x128xf32>
    %c0_1 = arith.constant 0 : index
    %c0_2 = arith.constant 0 : index
    %c0_3 = arith.constant 0 : index
    %c0_4 = arith.constant 0 : index
    %1 = vector.load %arg1[%c0_1, %c0_2, %c0_3, %c0_4] : memref<1x4x128x32xf32, #tpu.memory_space<vmem>>, vector<1x1x128x32xf32>
    %2 = vector.shape_cast %1 : vector<1x1x128x32xf32> to vector<128x32xf32>
    %cst = arith.constant dense<0.000000e+00> : vector<168x32xf32>
    %3 = tpu.matmul %0, %2, %cst {dimension_numbers = #tpu.dot_dimension_numbers<[1], [0], [0], [1], [0, 0, 1, 1], [], []>} : vector<168x128xf32>, vector<128x32xf32>, vector<168x32xf32> -> vector<168x32xf32>
    %4 = vector.extract_strided_slice %3 {offsets = [0, 0], sizes = [24, 32], strides = [1, 1]} : vector<168x32xf32> to vector<24x32xf32>
    %c0_5 = arith.constant 0 : index
    %c0_6 = arith.constant 0 : index
    %5 = vector.load %arg12[%c0_5, %c0_6] : memref<24x896xf32, #tpu.memory_space<vmem>>, vector<24x32xf32>
    tpu.vector_store %arg12[%c0_5, %c0_6], %4 {strides = array<i32>} : memref<24x896xf32, #tpu.memory_space<vmem>>, vector<24x32xf32>,
    %6 = vector.extract_strided_slice %3 {offsets = [24, 0], sizes = [24, 32], strides = [1, 1]} : vector<168x32xf32> to vector<24x32xf32>
    %c0_7 = arith.constant 0 : index
    %c32 = arith.constant 32 : index
    %7 = vector.load %arg12[%c0_7, %c32] : memref<24x896xf32, #tpu.memory_space<vmem>>, vector<24x32xf32>
    tpu.vector_store %arg12[%c0_7, %c32], %6 {strides = array<i32>} : memref<24x896xf32, #tpu.memory_space<vmem>>, vector<24x32xf32>,
    %8 = vector.extract_strided_slice %3 {offsets = [48, 0], sizes = [24, 32], strides = [1, 1]} : vector<168x32xf32> to vector<24x32xf32>
    %c0_8 = arith.constant 0 : index
    %c64 = arith.constant 64 : index
    %9 = vector.load %arg12[%c0_8, %c64] : memref<24x896xf32, #tpu.memory_space<vmem>>, vector<24x32xf32>
    tpu.vector_store %arg12[%c0_8, %c64], %8 {strides = array<i32>} : memref<24x896xf32, #tpu.memory_space<vmem>>, vector<24x32xf32>,
    %10 = vector.extract_strided_slice %3 {offsets = [72, 0], sizes = [24, 32], strides = [1, 1]} : vector<168x32xf32> to vector<24x32xf32>
    %c0_9 = arith.constant 0 : index
    %c96 = arith.constant 96 : index
    %11 = vector.load %arg12[%c0_9, %c96] : memref<24x896xf32, #tpu.memory_space<vmem>>, vector<24x32xf32>
    tpu.vector_store %arg12[%c0_9, %c96], %10 {strides = array<i32>} : memref<24x896xf32, #tpu.memory_space<vmem>>, vector<24x32xf32>,
    %12 = vector.extract_strided_slice %3 {offsets = [96, 0], sizes = [24, 32], strides = [1, 1]} : vector<168x32xf32> to vector<24x32xf32>
    %c0_10 = arith.constant 0 : index
    %c128 = arith.constant 128 : index
    %13 = vector.load %arg12[%c0_10, %c128] : memref<24x896xf32, #tpu.memory_space<vmem>>, vector<24x32xf32>
    tpu.vector_store %arg12[%c0_10, %c128], %12 {strides = array<i32>} : memref<24x896xf32, #tpu.memory_space<vmem>>, vector<24x32xf32>,
    %14 = vector.extract_strided_slice %3 {offsets = [120, 0], sizes = [24, 32], strides = [1, 1]} : vector<168x32xf32> to vector<24x32xf32>
    %c0_11 = arith.constant 0 : index
    %c160 = arith.constant 160 : index
    %15 = vector.load %arg12[%c0_11, %c160] : memref<24x896xf32, #tpu.memory_space<vmem>>, vector<24x32xf32>
    tpu.vector_store %arg12[%c0_11, %c160], %14 {strides = array<i32>} : memref<24x896xf32, #tpu.memory_space<vmem>>, vector<24x32xf32>,
    %16 = vector.extract_strided_slice %3 {offsets = [144, 0], sizes = [24, 32], strides = [1, 1]} : vector<168x32xf32> to vector<24x32xf32>
    %c0_12 = arith.constant 0 : index
    %c192 = arith.constant 192 : index
    %17 = vector.load %arg12[%c0_12, %c192] : memref<24x896xf32, #tpu.memory_space<vmem>>, vector<24x32xf32>
    tpu.vector_store %arg12[%c0_12, %c192], %16 {strides = array<i32>} : memref<24x896xf32, #tpu.memory_space<vmem>>, vector<24x32xf32>,
    %c0_13 = arith.constant 0 : index
    %c1 = arith.constant 1 : index
    %c0_14 = arith.constant 0 : index
    %c0_15 = arith.constant 0 : index
    %18 = vector.load %arg1[%c0_13, %c1, %c0_14, %c0_15] : memref<1x4x128x32xf32, #tpu.memory_space<vmem>>, vector<1x1x128x32xf32>
    %19 = vector.shape_cast %18 : vector<1x1x128x32xf32> to vector<128x32xf32>
    %cst_16 = arith.constant dense<0.000000e+00> : vector<168x32xf32>
    %20 = tpu.matmul %0, %19, %cst_16 {dimension_numbers = #tpu.dot_dimension_numbers<[1], [0], [0], [1], [0, 0, 1, 1], [], []>} : vector<168x128xf32>, vector<128x32xf32>, vector<168x32xf32> -> vector<168x32xf32>
    %21 = vector.extract_strided_slice %20 {offsets = [0, 0], sizes = [24, 32], strides = [1, 1]} : vector<168x32xf32> to vector<24x32xf32>
    %c0_17 = arith.constant 0 : index
    %c224 = arith.constant 224 : index
    %22 = vector.load %arg12[%c0_17, %c224] : memref<24x896xf32, #tpu.memory_space<vmem>>, vector<24x32xf32>
    tpu.vector_store %arg12[%c0_17, %c224], %21 {strides = array<i32>} : memref<24x896xf32, #tpu.memory_space<vmem>>, vector<24x32xf32>,
    %23 = vector.extract_strided_slice %20 {offsets = [24, 0], sizes = [24, 32], strides = [1, 1]} : vector<168x32xf32> to vector<24x32xf32>
    %c0_18 = arith.constant 0 : index
    %c256 = arith.constant 256 : index
    %24 = vector.load %arg12[%c0_18, %c256] : memref<24x896xf32, #tpu.memory_space<vmem>>, vector<24x32xf32>
    tpu.vector_store %arg12[%c0_18, %c256], %23 {strides = array<i32>} : memref<24x896xf32, #tpu.memory_space<vmem>>, vector<24x32xf32>,
    %25 = vector.extract_strided_slice %20 {offsets = [48, 0], sizes = [24, 32], strides = [1, 1]} : vector<168x32xf32> to vector<24x32xf32>
    %c0_19 = arith.constant 0 : index
    %c288 = arith.constant 288 : index
    %26 = vector.load %arg12[%c0_19, %c288] : memref<24x896xf32, #tpu.memory_space<vmem>>, vector<24x32xf32>
    tpu.vector_store %arg12[%c0_19, %c288], %25 {strides = array<i32>} : memref<24x896xf32, #tpu.memory_space<vmem>>, vector<24x32xf32>,
    %27 = vector.extract_strided_slice %20 {offsets = [72, 0], sizes = [24, 32], strides = [1, 1]} : vector<168x32xf32> to vector<24x32xf32>
    %c0_20 = arith.constant 0 : index
    %c320 = arith.constant 320 : index
    %28 = vector.load %arg12[%c0_20, %c320] : memref<24x896xf32, #tpu.memory_space<vmem>>, vector<24x32xf32>
    tpu.vector_store %arg12[%c0_20, %c320], %27 {strides = array<i32>} : memref<24x896xf32, #tpu.memory_space<vmem>>, vector<24x32xf32>,
    %29 = vector.extract_strided_slice %20 {offsets = [96, 0], sizes = [24, 32], strides = [1, 1]} : vector<168x32xf32> to vector<24x32xf32>
    %c0_21 = arith.constant 0 : index
    %c352 = arith.constant 352 : index
    %30 = vector.load %arg12[%c0_21, %c352] : memref<24x896xf32, #tpu.memory_space<vmem>>, vector<24x32xf32>
    tpu.vector_store %arg12[%c0_21, %c352], %29 {strides = array<i32>} : memref<24x896xf32, #tpu.memory_space<vmem>>, vector<24x32xf32>,
    %31 = vector.extract_strided_slice %20 {offsets = [120, 0], sizes = [24, 32], strides = [1, 1]} : vector<168x32xf32> to vector<24x32xf32>
    %c0_22 = arith.constant 0 : index
    %c384 = arith.constant 384 : index
    %32 = vector.load %arg12[%c0_22, %c384] : memref<24x896xf32, #tpu.memory_space<vmem>>, vector<24x32xf32>
    tpu.vector_store %arg12[%c0_22, %c384], %31 {strides = array<i32>} : memref<24x896xf32, #tpu.memory_space<vmem>>, vector<24x32xf32>,
    %33 = vector.extract_strided_slice %20 {offsets = [144, 0], sizes = [24, 32], strides = [1, 1]} : vector<168x32xf32> to vector<24x32xf32>
    %c0_23 = arith.constant 0 : index
    %c416 = arith.constant 416 : index
    %34 = vector.load %arg12[%c0_23, %c416] : memref<24x896xf32, #tpu.memory_space<vmem>>, vector<24x32xf32>
    tpu.vector_store %arg12[%c0_23, %c416], %33 {strides = array<i32>} : memref<24x896xf32, #tpu.memory_space<vmem>>, vector<24x32xf32>,
    %c0_24 = arith.constant 0 : index
    %c2 = arith.constant 2 : index
    %c0_25 = arith.constant 0 : index
    %c0_26 = arith.constant 0 : index
    %35 = vector.load %arg1[%c0_24, %c2, %c0_25, %c0_26] : memref<1x4x128x32xf32, #tpu.memory_space<vmem>>, vector<1x1x128x32xf32>
    %36 = vector.shape_cast %35 : vector<1x1x128x32xf32> to vector<128x32xf32>
    %cst_27 = arith.constant dense<0.000000e+00> : vector<168x32xf32>
    %37 = tpu.matmul %0, %36, %cst_27 {dimension_numbers = #tpu.dot_dimension_numbers<[1], [0], [0], [1], [0, 0, 1, 1], [], []>} : vector<168x128xf32>, vector<128x32xf32>, vector<168x32xf32> -> vector<168x32xf32>
    %38 = vector.extract_strided_slice %37 {offsets = [0, 0], sizes = [24, 32], strides = [1, 1]} : vector<168x32xf32> to vector<24x32xf32>
    %c0_28 = arith.constant 0 : index
    %c448 = arith.constant 448 : index
    %39 = vector.load %arg12[%c0_28, %c448] : memref<24x896xf32, #tpu.memory_space<vmem>>, vector<24x32xf32>
    tpu.vector_store %arg12[%c0_28, %c448], %38 {strides = array<i32>} : memref<24x896xf32, #tpu.memory_space<vmem>>, vector<24x32xf32>,
    %40 = vector.extract_strided_slice %37 {offsets = [24, 0], sizes = [24, 32], strides = [1, 1]} : vector<168x32xf32> to vector<24x32xf32>
    %c0_29 = arith.constant 0 : index
    %c480 = arith.constant 480 : index
    %41 = vector.load %arg12[%c0_29, %c480] : memref<24x896xf32, #tpu.memory_space<vmem>>, vector<24x32xf32>
    tpu.vector_store %arg12[%c0_29, %c480], %40 {strides = array<i32>} : memref<24x896xf32, #tpu.memory_space<vmem>>, vector<24x32xf32>,
    %42 = vector.extract_strided_slice %37 {offsets = [48, 0], sizes = [24, 32], strides = [1, 1]} : vector<168x32xf32> to vector<24x32xf32>
    %c0_30 = arith.constant 0 : index
    %c512 = arith.constant 512 : index
    %43 = vector.load %arg12[%c0_30, %c512] : memref<24x896xf32, #tpu.memory_space<vmem>>, vector<24x32xf32>
    tpu.vector_store %arg12[%c0_30, %c512], %42 {strides = array<i32>} : memref<24x896xf32, #tpu.memory_space<vmem>>, vector<24x32xf32>,
    %44 = vector.extract_strided_slice %37 {offsets = [72, 0], sizes = [24, 32], strides = [1, 1]} : vector<168x32xf32> to vector<24x32xf32>
    %c0_31 = arith.constant 0 : index
    %c544 = arith.constant 544 : index
    %45 = vector.load %arg12[%c0_31, %c544] : memref<24x896xf32, #tpu.memory_space<vmem>>, vector<24x32xf32>
    tpu.vector_store %arg12[%c0_31, %c544], %44 {strides = array<i32>} : memref<24x896xf32, #tpu.memory_space<vmem>>, vector<24x32xf32>,
    %46 = vector.extract_strided_slice %37 {offsets = [96, 0], sizes = [24, 32], strides = [1, 1]} : vector<168x32xf32> to vector<24x32xf32>
    %c0_32 = arith.constant 0 : index
    %c576 = arith.constant 576 : index
    %47 = vector.load %arg12[%c0_32, %c576] : memref<24x896xf32, #tpu.memory_space<vmem>>, vector<24x32xf32>
    tpu.vector_store %arg12[%c0_32, %c576], %46 {strides = array<i32>} : memref<24x896xf32, #tpu.memory_space<vmem>>, vector<24x32xf32>,
    %48 = vector.extract_strided_slice %37 {offsets = [120, 0], sizes = [24, 32], strides = [1, 1]} : vector<168x32xf32> to vector<24x32xf32>
    %c0_33 = arith.constant 0 : index
    %c608 = arith.constant 608 : index
    %49 = vector.load %arg12[%c0_33, %c608] : memref<24x896xf32, #tpu.memory_space<vmem>>, vector<24x32xf32>
    tpu.vector_store %arg12[%c0_33, %c608], %48 {strides = array<i32>} : memref<24x896xf32, #tpu.memory_space<vmem>>, vector<24x32xf32>,
    %50 = vector.extract_strided_slice %37 {offsets = [144, 0], sizes = [24, 32], strides = [1, 1]} : vector<168x32xf32> to vector<24x32xf32>
    %c0_34 = arith.constant 0 : index
    %c640 = arith.constant 640 : index
    %51 = vector.load %arg12[%c0_34, %c640] : memref<24x896xf32, #tpu.memory_space<vmem>>, vector<24x32xf32>
    tpu.vector_store %arg12[%c0_34, %c640], %50 {strides = array<i32>} : memref<24x896xf32, #tpu.memory_space<vmem>>, vector<24x32xf32>,
    %c0_35 = arith.constant 0 : index
    %c3 = arith.constant 3 : index
    %c0_36 = arith.constant 0 : index
    %c0_37 = arith.constant 0 : index
    %52 = vector.load %arg1[%c0_35, %c3, %c0_36, %c0_37] : memref<1x4x128x32xf32, #tpu.memory_space<vmem>>, vector<1x1x128x32xf32>
    %53 = vector.shape_cast %52 : vector<1x1x128x32xf32> to vector<128x32xf32>
    %cst_38 = arith.constant dense<0.000000e+00> : vector<168x32xf32>
    %54 = tpu.matmul %0, %53, %cst_38 {dimension_numbers = #tpu.dot_dimension_numbers<[1], [0], [0], [1], [0, 0, 1, 1], [], []>} : vector<168x128xf32>, vector<128x32xf32>, vector<168x32xf32> -> vector<168x32xf32>
    %55 = vector.extract_strided_slice %54 {offsets = [0, 0], sizes = [24, 32], strides = [1, 1]} : vector<168x32xf32> to vector<24x32xf32>
    %c0_39 = arith.constant 0 : index
    %c672 = arith.constant 672 : index
    %56 = vector.load %arg12[%c0_39, %c672] : memref<24x896xf32, #tpu.memory_space<vmem>>, vector<24x32xf32>
    tpu.vector_store %arg12[%c0_39, %c672], %55 {strides = array<i32>} : memref<24x896xf32, #tpu.memory_space<vmem>>, vector<24x32xf32>,
    %57 = vector.extract_strided_slice %54 {offsets = [24, 0], sizes = [24, 32], strides = [1, 1]} : vector<168x32xf32> to vector<24x32xf32>
    %c0_40 = arith.constant 0 : index
    %c704 = arith.constant 704 : index
    %58 = vector.load %arg12[%c0_40, %c704] : memref<24x896xf32, #tpu.memory_space<vmem>>, vector<24x32xf32>
    tpu.vector_store %arg12[%c0_40, %c704], %57 {strides = array<i32>} : memref<24x896xf32, #tpu.memory_space<vmem>>, vector<24x32xf32>,
    %59 = vector.extract_strided_slice %54 {offsets = [48, 0], sizes = [24, 32], strides = [1, 1]} : vector<168x32xf32> to vector<24x32xf32>
    %c0_41 = arith.constant 0 : index
    %c736 = arith.constant 736 : index
    %60 = vector.load %arg12[%c0_41, %c736] : memref<24x896xf32, #tpu.memory_space<vmem>>, vector<24x32xf32>
    tpu.vector_store %arg12[%c0_41, %c736], %59 {strides = array<i32>} : memref<24x896xf32, #tpu.memory_space<vmem>>, vector<24x32xf32>,
    %61 = vector.extract_strided_slice %54 {offsets = [72, 0], sizes = [24, 32], strides = [1, 1]} : vector<168x32xf32> to vector<24x32xf32>
    %c0_42 = arith.constant 0 : index
    %c768 = arith.constant 768 : index
    %62 = vector.load %arg12[%c0_42, %c768] : memref<24x896xf32, #tpu.memory_space<vmem>>, vector<24x32xf32>
    tpu.vector_store %arg12[%c0_42, %c768], %61 {strides = array<i32>} : memref<24x896xf32, #tpu.memory_space<vmem>>, vector<24x32xf32>,
    %63 = vector.extract_strided_slice %54 {offsets = [96, 0], sizes = [24, 32], strides = [1, 1]} : vector<168x32xf32> to vector<24x32xf32>
    %c0_43 = arith.constant 0 : index
    %c800 = arith.constant 800 : index
    %64 = vector.load %arg12[%c0_43, %c800] : memref<24x896xf32, #tpu.memory_space<vmem>>, vector<24x32xf32>
    tpu.vector_store %arg12[%c0_43, %c800], %63 {strides = array<i32>} : memref<24x896xf32, #tpu.memory_space<vmem>>, vector<24x32xf32>,
    %65 = vector.extract_strided_slice %54 {offsets = [120, 0], sizes = [24, 32], strides = [1, 1]} : vector<168x32xf32> to vector<24x32xf32>
    %c0_44 = arith.constant 0 : index
    %c832 = arith.constant 832 : index
    %66 = vector.load %arg12[%c0_44, %c832] : memref<24x896xf32, #tpu.memory_space<vmem>>, vector<24x32xf32>
    tpu.vector_store %arg12[%c0_44, %c832], %65 {strides = array<i32>} : memref<24x896xf32, #tpu.memory_space<vmem>>, vector<24x32xf32>,
    %67 = vector.extract_strided_slice %54 {offsets = [144, 0], sizes = [24, 32], strides = [1, 1]} : vector<168x32xf32> to vector<24x32xf32>
    %c0_45 = arith.constant 0 : index
    %c864 = arith.constant 864 : index
    %68 = vector.load %arg12[%c0_45, %c864] : memref<24x896xf32, #tpu.memory_space<vmem>>, vector<24x32xf32>
    tpu.vector_store %arg12[%c0_45, %c864], %67 {strides = array<i32>} : memref<24x896xf32, #tpu.memory_space<vmem>>, vector<24x32xf32>,
    %c0_46 = arith.constant 0 : index
    %c0_47 = arith.constant 0 : index
    %69 = vector.load %arg12[%c0_46, %c0_47] : memref<24x896xf32, #tpu.memory_space<vmem>>, vector<24x896xf32>
    %70 = arith.truncf %69 : vector<24x896xf32> to vector<24x896xbf16>
    %c0_48 = arith.constant 0 : index
    %c0_49 = arith.constant 0 : index
    %71 = vector.load %arg3[%c0_48, %c0_49] : memref<896x750xbf16, #tpu.memory_space<vmem>>, vector<896x750xbf16>
    %cst_50 = arith.constant dense<0.000000e+00> : vector<24x750xf32>
    %72 = tpu.matmul %70, %71, %cst_50 {dimension_numbers = #tpu.dot_dimension_numbers<[1], [0], [0], [1], [0, 0, 1, 1], [], []>} : vector<24x896xbf16>, vector<896x750xbf16>, vector<24x750xf32> -> vector<24x750xf32>
    %c0_51 = arith.constant 0 : index
    %c0_52 = arith.constant 0 : index
    %73 = vector.load %arg4[%c0_51, %c0_52] : memref<1x750xf32, #tpu.memory_space<vmem>>, vector<1x750xf32>
    %74 = vector.broadcast %73 : vector<1x750xf32> to vector<24x750xf32>
    %75 = arith.addf %72, %74 : vector<24x750xf32>
    %cst_53 = arith.constant 0.000000e+00 : f32
    %76 = vector.broadcast %cst_53 : f32 to vector<24x750xf32>
    %77 = arith.maximumf %75, %76 : vector<24x750xf32>
    %cst_54 = arith.constant 0.000000e+00 : f32
    %78 = vector.broadcast %cst_54 : f32 to vector<8x180xf32>
    %c0_55 = arith.constant 0 : index
    %c0_56 = arith.constant 0 : index
    %79 = vector.load %arg13[%c0_55, %c0_56] : memref<8x180xf32, #tpu.memory_space<vmem>>, vector<8x180xf32>
    tpu.vector_store %arg13[%c0_55, %c0_56], %78 {strides = array<i32>} : memref<8x180xf32, #tpu.memory_space<vmem>>, vector<8x180xf32>,
    %80 = vector.extract_strided_slice %77 {offsets = [0, 0], sizes = [4, 750], strides = [1, 1]} : vector<24x750xf32> to vector<4x750xf32>
    %81 = vector.extract_strided_slice %80 {offsets = [0, 0], sizes = [1, 750], strides = [1, 1]} : vector<4x750xf32> to vector<1x750xf32>
    %82 = vector.extract_strided_slice %80 {offsets = [1, 0], sizes = [1, 750], strides = [1, 1]} : vector<4x750xf32> to vector<1x750xf32>
    %83 = arith.maximumf %81, %82 : vector<1x750xf32>
    %84 = vector.extract_strided_slice %80 {offsets = [2, 0], sizes = [1, 750], strides = [1, 1]} : vector<4x750xf32> to vector<1x750xf32>
    %85 = vector.extract_strided_slice %80 {offsets = [3, 0], sizes = [1, 750], strides = [1, 1]} : vector<4x750xf32> to vector<1x750xf32>
    %86 = arith.maximumf %84, %85 : vector<1x750xf32>
    %87 = arith.maximumf %83, %86 : vector<1x750xf32>
    %88 = vector.extract_strided_slice %87 {offsets = [0, 0], sizes = [1, 30], strides = [1, 1]} : vector<1x750xf32> to vector<1x30xf32>
    %89 = vector.extract_strided_slice %87 {offsets = [0, 30], sizes = [1, 30], strides = [1, 1]} : vector<1x750xf32> to vector<1x30xf32>
    %90 = arith.maximumf %88, %89 : vector<1x30xf32>
    %91 = vector.extract_strided_slice %87 {offsets = [0, 60], sizes = [1, 30], strides = [1, 1]} : vector<1x750xf32> to vector<1x30xf32>
    %92 = arith.maximumf %90, %91 : vector<1x30xf32>
    %93 = vector.extract_strided_slice %87 {offsets = [0, 90], sizes = [1, 30], strides = [1, 1]} : vector<1x750xf32> to vector<1x30xf32>
    %94 = arith.maximumf %92, %93 : vector<1x30xf32>
    %c1_57 = arith.constant 1 : index
    %c0_58 = arith.constant 0 : index
    %95 = vector.load %arg13[%c1_57, %c0_58] : memref<8x180xf32, #tpu.memory_space<vmem>>, vector<1x30xf32>
    tpu.vector_store %arg13[%c1_57, %c0_58], %94 {strides = array<i32>} : memref<8x180xf32, #tpu.memory_space<vmem>>, vector<1x30xf32>,
    %96 = vector.extract_strided_slice %87 {offsets = [0, 120], sizes = [1, 30], strides = [1, 1]} : vector<1x750xf32> to vector<1x30xf32>
    %97 = vector.extract_strided_slice %87 {offsets = [0, 150], sizes = [1, 30], strides = [1, 1]} : vector<1x750xf32> to vector<1x30xf32>
    %98 = arith.maximumf %96, %97 : vector<1x30xf32>
    %99 = vector.extract_strided_slice %87 {offsets = [0, 180], sizes = [1, 30], strides = [1, 1]} : vector<1x750xf32> to vector<1x30xf32>
    %100 = arith.maximumf %98, %99 : vector<1x30xf32>
    %101 = vector.extract_strided_slice %87 {offsets = [0, 210], sizes = [1, 30], strides = [1, 1]} : vector<1x750xf32> to vector<1x30xf32>
    %102 = arith.maximumf %100, %101 : vector<1x30xf32>
    %c1_59 = arith.constant 1 : index
    %c30 = arith.constant 30 : index
    %103 = vector.load %arg13[%c1_59, %c30] : memref<8x180xf32, #tpu.memory_space<vmem>>, vector<1x30xf32>
    tpu.vector_store %arg13[%c1_59, %c30], %102 {strides = array<i32>} : memref<8x180xf32, #tpu.memory_space<vmem>>, vector<1x30xf32>,
    %104 = vector.extract_strided_slice %87 {offsets = [0, 240], sizes = [1, 30], strides = [1, 1]} : vector<1x750xf32> to vector<1x30xf32>
    %105 = vector.extract_strided_slice %87 {offsets = [0, 270], sizes = [1, 30], strides = [1, 1]} : vector<1x750xf32> to vector<1x30xf32>
    %106 = arith.maximumf %104, %105 : vector<1x30xf32>
    %107 = vector.extract_strided_slice %87 {offsets = [0, 300], sizes = [1, 30], strides = [1, 1]} : vector<1x750xf32> to vector<1x30xf32>
    %108 = arith.maximumf %106, %107 : vector<1x30xf32>
    %109 = vector.extract_strided_slice %87 {offsets = [0, 330], sizes = [1, 30], strides = [1, 1]} : vector<1x750xf32> to vector<1x30xf32>
    %110 = arith.maximumf %108, %109 : vector<1x30xf32>
    %c1_60 = arith.constant 1 : index
    %c60 = arith.constant 60 : index
    %111 = vector.load %arg13[%c1_60, %c60] : memref<8x180xf32, #tpu.memory_space<vmem>>, vector<1x30xf32>
    tpu.vector_store %arg13[%c1_60, %c60], %110 {strides = array<i32>} : memref<8x180xf32, #tpu.memory_space<vmem>>, vector<1x30xf32>,
    %112 = vector.extract_strided_slice %87 {offsets = [0, 360], sizes = [1, 30], strides = [1, 1]} : vector<1x750xf32> to vector<1x30xf32>
    %113 = vector.extract_strided_slice %87 {offsets = [0, 390], sizes = [1, 30], strides = [1, 1]} : vector<1x750xf32> to vector<1x30xf32>
    %114 = arith.maximumf %112, %113 : vector<1x30xf32>
    %115 = vector.extract_strided_slice %87 {offsets = [0, 420], sizes = [1, 30], strides = [1, 1]} : vector<1x750xf32> to vector<1x30xf32>
    %116 = arith.maximumf %114, %115 : vector<1x30xf32>
    %117 = vector.extract_strided_slice %87 {offsets = [0, 450], sizes = [1, 30], strides = [1, 1]} : vector<1x750xf32> to vector<1x30xf32>
    %118 = arith.maximumf %116, %117 : vector<1x30xf32>
    %c1_61 = arith.constant 1 : index
    %c90 = arith.constant 90 : index
    %119 = vector.load %arg13[%c1_61, %c90] : memref<8x180xf32, #tpu.memory_space<vmem>>, vector<1x30xf32>
    tpu.vector_store %arg13[%c1_61, %c90], %118 {strides = array<i32>} : memref<8x180xf32, #tpu.memory_space<vmem>>, vector<1x30xf32>,
    %120 = vector.extract_strided_slice %87 {offsets = [0, 480], sizes = [1, 30], strides = [1, 1]} : vector<1x750xf32> to vector<1x30xf32>
    %121 = vector.extract_strided_slice %87 {offsets = [0, 510], sizes = [1, 30], strides = [1, 1]} : vector<1x750xf32> to vector<1x30xf32>
    %122 = arith.maximumf %120, %121 : vector<1x30xf32>
    %123 = vector.extract_strided_slice %87 {offsets = [0, 540], sizes = [1, 30], strides = [1, 1]} : vector<1x750xf32> to vector<1x30xf32>
    %124 = arith.maximumf %122, %123 : vector<1x30xf32>
    %125 = vector.extract_strided_slice %87 {offsets = [0, 570], sizes = [1, 30], strides = [1, 1]} : vector<1x750xf32> to vector<1x30xf32>
    %126 = arith.maximumf %124, %125 : vector<1x30xf32>
    %c1_62 = arith.constant 1 : index
    %c120 = arith.constant 120 : index
    %127 = vector.load %arg13[%c1_62, %c120] : memref<8x180xf32, #tpu.memory_space<vmem>>, vector<1x30xf32>
    tpu.vector_store %arg13[%c1_62, %c120], %126 {strides = array<i32>} : memref<8x180xf32, #tpu.memory_space<vmem>>, vector<1x30xf32>,
    %128 = vector.extract_strided_slice %87 {offsets = [0, 600], sizes = [1, 30], strides = [1, 1]} : vector<1x750xf32> to vector<1x30xf32>
    %129 = vector.extract_strided_slice %87 {offsets = [0, 630], sizes = [1, 30], strides = [1, 1]} : vector<1x750xf32> to vector<1x30xf32>
    %130 = arith.maximumf %128, %129 : vector<1x30xf32>
    %131 = vector.extract_strided_slice %87 {offsets = [0, 660], sizes = [1, 30], strides = [1, 1]} : vector<1x750xf32> to vector<1x30xf32>
    %132 = arith.maximumf %130, %131 : vector<1x30xf32>
    %133 = vector.extract_strided_slice %87 {offsets = [0, 690], sizes = [1, 30], strides = [1, 1]} : vector<1x750xf32> to vector<1x30xf32>
    %134 = arith.maximumf %132, %133 : vector<1x30xf32>
    %c1_63 = arith.constant 1 : index
    %c150 = arith.constant 150 : index
    %135 = vector.load %arg13[%c1_63, %c150] : memref<8x180xf32, #tpu.memory_space<vmem>>, vector<1x30xf32>
    tpu.vector_store %arg13[%c1_63, %c150], %134 {strides = array<i32>} : memref<8x180xf32, #tpu.memory_space<vmem>>, vector<1x30xf32>,
    %136 = vector.extract_strided_slice %77 {offsets = [4, 0], sizes = [4, 750], strides = [1, 1]} : vector<24x750xf32> to vector<4x750xf32>
    %137 = vector.extract_strided_slice %136 {offsets = [0, 0], sizes = [1, 750], strides = [1, 1]} : vector<4x750xf32> to vector<1x750xf32>
    %138 = vector.extract_strided_slice %136 {offsets = [1, 0], sizes = [1, 750], strides = [1, 1]} : vector<4x750xf32> to vector<1x750xf32>
    %139 = arith.maximumf %137, %138 : vector<1x750xf32>
    %140 = vector.extract_strided_slice %136 {offsets = [2, 0], sizes = [1, 750], strides = [1, 1]} : vector<4x750xf32> to vector<1x750xf32>
    %141 = vector.extract_strided_slice %136 {offsets = [3, 0], sizes = [1, 750], strides = [1, 1]} : vector<4x750xf32> to vector<1x750xf32>
    %142 = arith.maximumf %140, %141 : vector<1x750xf32>
    %143 = arith.maximumf %139, %142 : vector<1x750xf32>
    %144 = vector.extract_strided_slice %143 {offsets = [0, 0], sizes = [1, 30], strides = [1, 1]} : vector<1x750xf32> to vector<1x30xf32>
    %145 = vector.extract_strided_slice %143 {offsets = [0, 30], sizes = [1, 30], strides = [1, 1]} : vector<1x750xf32> to vector<1x30xf32>
    %146 = arith.maximumf %144, %145 : vector<1x30xf32>
    %147 = vector.extract_strided_slice %143 {offsets = [0, 60], sizes = [1, 30], strides = [1, 1]} : vector<1x750xf32> to vector<1x30xf32>
    %148 = arith.maximumf %146, %147 : vector<1x30xf32>
    %149 = vector.extract_strided_slice %143 {offsets = [0, 90], sizes = [1, 30], strides = [1, 1]} : vector<1x750xf32> to vector<1x30xf32>
    %150 = arith.maximumf %148, %149 : vector<1x30xf32>
    %c2_64 = arith.constant 2 : index
    %c0_65 = arith.constant 0 : index
    %151 = vector.load %arg13[%c2_64, %c0_65] : memref<8x180xf32, #tpu.memory_space<vmem>>, vector<1x30xf32>
    tpu.vector_store %arg13[%c2_64, %c0_65], %150 {strides = array<i32>} : memref<8x180xf32, #tpu.memory_space<vmem>>, vector<1x30xf32>,
    %152 = vector.extract_strided_slice %143 {offsets = [0, 120], sizes = [1, 30], strides = [1, 1]} : vector<1x750xf32> to vector<1x30xf32>
    %153 = vector.extract_strided_slice %143 {offsets = [0, 150], sizes = [1, 30], strides = [1, 1]} : vector<1x750xf32> to vector<1x30xf32>
    %154 = arith.maximumf %152, %153 : vector<1x30xf32>
    %155 = vector.extract_strided_slice %143 {offsets = [0, 180], sizes = [1, 30], strides = [1, 1]} : vector<1x750xf32> to vector<1x30xf32>
    %156 = arith.maximumf %154, %155 : vector<1x30xf32>
    %157 = vector.extract_strided_slice %143 {offsets = [0, 210], sizes = [1, 30], strides = [1, 1]} : vector<1x750xf32> to vector<1x30xf32>
    %158 = arith.maximumf %156, %157 : vector<1x30xf32>
    %c2_66 = arith.constant 2 : index
    %c30_67 = arith.constant 30 : index
    %159 = vector.load %arg13[%c2_66, %c30_67] : memref<8x180xf32, #tpu.memory_space<vmem>>, vector<1x30xf32>
    tpu.vector_store %arg13[%c2_66, %c30_67], %158 {strides = array<i32>} : memref<8x180xf32, #tpu.memory_space<vmem>>, vector<1x30xf32>,
    %160 = vector.extract_strided_slice %143 {offsets = [0, 240], sizes = [1, 30], strides = [1, 1]} : vector<1x750xf32> to vector<1x30xf32>
    %161 = vector.extract_strided_slice %143 {offsets = [0, 270], sizes = [1, 30], strides = [1, 1]} : vector<1x750xf32> to vector<1x30xf32>
    %162 = arith.maximumf %160, %161 : vector<1x30xf32>
    %163 = vector.extract_strided_slice %143 {offsets = [0, 300], sizes = [1, 30], strides = [1, 1]} : vector<1x750xf32> to vector<1x30xf32>
    %164 = arith.maximumf %162, %163 : vector<1x30xf32>
    %165 = vector.extract_strided_slice %143 {offsets = [0, 330], sizes = [1, 30], strides = [1, 1]} : vector<1x750xf32> to vector<1x30xf32>
    %166 = arith.maximumf %164, %165 : vector<1x30xf32>
    %c2_68 = arith.constant 2 : index
    %c60_69 = arith.constant 60 : index
    %167 = vector.load %arg13[%c2_68, %c60_69] : memref<8x180xf32, #tpu.memory_space<vmem>>, vector<1x30xf32>
    tpu.vector_store %arg13[%c2_68, %c60_69], %166 {strides = array<i32>} : memref<8x180xf32, #tpu.memory_space<vmem>>, vector<1x30xf32>,
    %168 = vector.extract_strided_slice %143 {offsets = [0, 360], sizes = [1, 30], strides = [1, 1]} : vector<1x750xf32> to vector<1x30xf32>
    %169 = vector.extract_strided_slice %143 {offsets = [0, 390], sizes = [1, 30], strides = [1, 1]} : vector<1x750xf32> to vector<1x30xf32>
    %170 = arith.maximumf %168, %169 : vector<1x30xf32>
    %171 = vector.extract_strided_slice %143 {offsets = [0, 420], sizes = [1, 30], strides = [1, 1]} : vector<1x750xf32> to vector<1x30xf32>
    %172 = arith.maximumf %170, %171 : vector<1x30xf32>
    %173 = vector.extract_strided_slice %143 {offsets = [0, 450], sizes = [1, 30], strides = [1, 1]} : vector<1x750xf32> to vector<1x30xf32>
    %174 = arith.maximumf %172, %173 : vector<1x30xf32>
    %c2_70 = arith.constant 2 : index
    %c90_71 = arith.constant 90 : index
    %175 = vector.load %arg13[%c2_70, %c90_71] : memref<8x180xf32, #tpu.memory_space<vmem>>, vector<1x30xf32>
    tpu.vector_store %arg13[%c2_70, %c90_71], %174 {strides = array<i32>} : memref<8x180xf32, #tpu.memory_space<vmem>>, vector<1x30xf32>,
    %176 = vector.extract_strided_slice %143 {offsets = [0, 480], sizes = [1, 30], strides = [1, 1]} : vector<1x750xf32> to vector<1x30xf32>
    %177 = vector.extract_strided_slice %143 {offsets = [0, 510], sizes = [1, 30], strides = [1, 1]} : vector<1x750xf32> to vector<1x30xf32>
    %178 = arith.maximumf %176, %177 : vector<1x30xf32>
    %179 = vector.extract_strided_slice %143 {offsets = [0, 540], sizes = [1, 30], strides = [1, 1]} : vector<1x750xf32> to vector<1x30xf32>
    %180 = arith.maximumf %178, %179 : vector<1x30xf32>
    %181 = vector.extract_strided_slice %143 {offsets = [0, 570], sizes = [1, 30], strides = [1, 1]} : vector<1x750xf32> to vector<1x30xf32>
    %182 = arith.maximumf %180, %181 : vector<1x30xf32>
    %c2_72 = arith.constant 2 : index
    %c120_73 = arith.constant 120 : index
    %183 = vector.load %arg13[%c2_72, %c120_73] : memref<8x180xf32, #tpu.memory_space<vmem>>, vector<1x30xf32>
    tpu.vector_store %arg13[%c2_72, %c120_73], %182 {strides = array<i32>} : memref<8x180xf32, #tpu.memory_space<vmem>>, vector<1x30xf32>,
    %184 = vector.extract_strided_slice %143 {offsets = [0, 600], sizes = [1, 30], strides = [1, 1]} : vector<1x750xf32> to vector<1x30xf32>
    %185 = vector.extract_strided_slice %143 {offsets = [0, 630], sizes = [1, 30], strides = [1, 1]} : vector<1x750xf32> to vector<1x30xf32>
    %186 = arith.maximumf %184, %185 : vector<1x30xf32>
    %187 = vector.extract_strided_slice %143 {offsets = [0, 660], sizes = [1, 30], strides = [1, 1]} : vector<1x750xf32> to vector<1x30xf32>
    %188 = arith.maximumf %186, %187 : vector<1x30xf32>
    %189 = vector.extract_strided_slice %143 {offsets = [0, 690], sizes = [1, 30], strides = [1, 1]} : vector<1x750xf32> to vector<1x30xf32>
    %190 = arith.maximumf %188, %189 : vector<1x30xf32>
    %c2_74 = arith.constant 2 : index
    %c150_75 = arith.constant 150 : index
    %191 = vector.load %arg13[%c2_74, %c150_75] : memref<8x180xf32, #tpu.memory_space<vmem>>, vector<1x30xf32>
    tpu.vector_store %arg13[%c2_74, %c150_75], %190 {strides = array<i32>} : memref<8x180xf32, #tpu.memory_space<vmem>>, vector<1x30xf32>,
    %192 = vector.extract_strided_slice %77 {offsets = [8, 0], sizes = [4, 750], strides = [1, 1]} : vector<24x750xf32> to vector<4x750xf32>
    %193 = vector.extract_strided_slice %192 {offsets = [0, 0], sizes = [1, 750], strides = [1, 1]} : vector<4x750xf32> to vector<1x750xf32>
    %194 = vector.extract_strided_slice %192 {offsets = [1, 0], sizes = [1, 750], strides = [1, 1]} : vector<4x750xf32> to vector<1x750xf32>
    %195 = arith.maximumf %193, %194 : vector<1x750xf32>
    %196 = vector.extract_strided_slice %192 {offsets = [2, 0], sizes = [1, 750], strides = [1, 1]} : vector<4x750xf32> to vector<1x750xf32>
    %197 = vector.extract_strided_slice %192 {offsets = [3, 0], sizes = [1, 750], strides = [1, 1]} : vector<4x750xf32> to vector<1x750xf32>
    %198 = arith.maximumf %196, %197 : vector<1x750xf32>
    %199 = arith.maximumf %195, %198 : vector<1x750xf32>
    %200 = vector.extract_strided_slice %199 {offsets = [0, 0], sizes = [1, 30], strides = [1, 1]} : vector<1x750xf32> to vector<1x30xf32>
    %201 = vector.extract_strided_slice %199 {offsets = [0, 30], sizes = [1, 30], strides = [1, 1]} : vector<1x750xf32> to vector<1x30xf32>
    %202 = arith.maximumf %200, %201 : vector<1x30xf32>
    %203 = vector.extract_strided_slice %199 {offsets = [0, 60], sizes = [1, 30], strides = [1, 1]} : vector<1x750xf32> to vector<1x30xf32>
    %204 = arith.maximumf %202, %203 : vector<1x30xf32>
    %205 = vector.extract_strided_slice %199 {offsets = [0, 90], sizes = [1, 30], strides = [1, 1]} : vector<1x750xf32> to vector<1x30xf32>
    %206 = arith.maximumf %204, %205 : vector<1x30xf32>
    %c3_76 = arith.constant 3 : index
    %c0_77 = arith.constant 0 : index
    %207 = vector.load %arg13[%c3_76, %c0_77] : memref<8x180xf32, #tpu.memory_space<vmem>>, vector<1x30xf32>
    tpu.vector_store %arg13[%c3_76, %c0_77], %206 {strides = array<i32>} : memref<8x180xf32, #tpu.memory_space<vmem>>, vector<1x30xf32>,
    %208 = vector.extract_strided_slice %199 {offsets = [0, 120], sizes = [1, 30], strides = [1, 1]} : vector<1x750xf32> to vector<1x30xf32>
    %209 = vector.extract_strided_slice %199 {offsets = [0, 150], sizes = [1, 30], strides = [1, 1]} : vector<1x750xf32> to vector<1x30xf32>
    %210 = arith.maximumf %208, %209 : vector<1x30xf32>
    %211 = vector.extract_strided_slice %199 {offsets = [0, 180], sizes = [1, 30], strides = [1, 1]} : vector<1x750xf32> to vector<1x30xf32>
    %212 = arith.maximumf %210, %211 : vector<1x30xf32>
    %213 = vector.extract_strided_slice %199 {offsets = [0, 210], sizes = [1, 30], strides = [1, 1]} : vector<1x750xf32> to vector<1x30xf32>
    %214 = arith.maximumf %212, %213 : vector<1x30xf32>
    %c3_78 = arith.constant 3 : index
    %c30_79 = arith.constant 30 : index
    %215 = vector.load %arg13[%c3_78, %c30_79] : memref<8x180xf32, #tpu.memory_space<vmem>>, vector<1x30xf32>
    tpu.vector_store %arg13[%c3_78, %c30_79], %214 {strides = array<i32>} : memref<8x180xf32, #tpu.memory_space<vmem>>, vector<1x30xf32>,
    %216 = vector.extract_strided_slice %199 {offsets = [0, 240], sizes = [1, 30], strides = [1, 1]} : vector<1x750xf32> to vector<1x30xf32>
    %217 = vector.extract_strided_slice %199 {offsets = [0, 270], sizes = [1, 30], strides = [1, 1]} : vector<1x750xf32> to vector<1x30xf32>
    %218 = arith.maximumf %216, %217 : vector<1x30xf32>
    %219 = vector.extract_strided_slice %199 {offsets = [0, 300], sizes = [1, 30], strides = [1, 1]} : vector<1x750xf32> to vector<1x30xf32>
    %220 = arith.maximumf %218, %219 : vector<1x30xf32>
    %221 = vector.extract_strided_slice %199 {offsets = [0, 330], sizes = [1, 30], strides = [1, 1]} : vector<1x750xf32> to vector<1x30xf32>
    %222 = arith.maximumf %220, %221 : vector<1x30xf32>
    %c3_80 = arith.constant 3 : index
    %c60_81 = arith.constant 60 : index
    %223 = vector.load %arg13[%c3_80, %c60_81] : memref<8x180xf32, #tpu.memory_space<vmem>>, vector<1x30xf32>
    tpu.vector_store %arg13[%c3_80, %c60_81], %222 {strides = array<i32>} : memref<8x180xf32, #tpu.memory_space<vmem>>, vector<1x30xf32>,
    %224 = vector.extract_strided_slice %199 {offsets = [0, 360], sizes = [1, 30], strides = [1, 1]} : vector<1x750xf32> to vector<1x30xf32>
    %225 = vector.extract_strided_slice %199 {offsets = [0, 390], sizes = [1, 30], strides = [1, 1]} : vector<1x750xf32> to vector<1x30xf32>
    %226 = arith.maximumf %224, %225 : vector<1x30xf32>
    %227 = vector.extract_strided_slice %199 {offsets = [0, 420], sizes = [1, 30], strides = [1, 1]} : vector<1x750xf32> to vector<1x30xf32>
    %228 = arith.maximumf %226, %227 : vector<1x30xf32>
    %229 = vector.extract_strided_slice %199 {offsets = [0, 450], sizes = [1, 30], strides = [1, 1]} : vector<1x750xf32> to vector<1x30xf32>
    %230 = arith.maximumf %228, %229 : vector<1x30xf32>
    %c3_82 = arith.constant 3 : index
    %c90_83 = arith.constant 90 : index
    %231 = vector.load %arg13[%c3_82, %c90_83] : memref<8x180xf32, #tpu.memory_space<vmem>>, vector<1x30xf32>
    tpu.vector_store %arg13[%c3_82, %c90_83], %230 {strides = array<i32>} : memref<8x180xf32, #tpu.memory_space<vmem>>, vector<1x30xf32>,
    %232 = vector.extract_strided_slice %199 {offsets = [0, 480], sizes = [1, 30], strides = [1, 1]} : vector<1x750xf32> to vector<1x30xf32>
    %233 = vector.extract_strided_slice %199 {offsets = [0, 510], sizes = [1, 30], strides = [1, 1]} : vector<1x750xf32> to vector<1x30xf32>
    %234 = arith.maximumf %232, %233 : vector<1x30xf32>
    %235 = vector.extract_strided_slice %199 {offsets = [0, 540], sizes = [1, 30], strides = [1, 1]} : vector<1x750xf32> to vector<1x30xf32>
    %236 = arith.maximumf %234, %235 : vector<1x30xf32>
    %237 = vector.extract_strided_slice %199 {offsets = [0, 570], sizes = [1, 30], strides = [1, 1]} : vector<1x750xf32> to vector<1x30xf32>
    %238 = arith.maximumf %236, %237 : vector<1x30xf32>
    %c3_84 = arith.constant 3 : index
    %c120_85 = arith.constant 120 : index
    %239 = vector.load %arg13[%c3_84, %c120_85] : memref<8x180xf32, #tpu.memory_space<vmem>>, vector<1x30xf32>
    tpu.vector_store %arg13[%c3_84, %c120_85], %238 {strides = array<i32>} : memref<8x180xf32, #tpu.memory_space<vmem>>, vector<1x30xf32>,
    %240 = vector.extract_strided_slice %199 {offsets = [0, 600], sizes = [1, 30], strides = [1, 1]} : vector<1x750xf32> to vector<1x30xf32>
    %241 = vector.extract_strided_slice %199 {offsets = [0, 630], sizes = [1, 30], strides = [1, 1]} : vector<1x750xf32> to vector<1x30xf32>
    %242 = arith.maximumf %240, %241 : vector<1x30xf32>
    %243 = vector.extract_strided_slice %199 {offsets = [0, 660], sizes = [1, 30], strides = [1, 1]} : vector<1x750xf32> to vector<1x30xf32>
    %244 = arith.maximumf %242, %243 : vector<1x30xf32>
    %245 = vector.extract_strided_slice %199 {offsets = [0, 690], sizes = [1, 30], strides = [1, 1]} : vector<1x750xf32> to vector<1x30xf32>
    %246 = arith.maximumf %244, %245 : vector<1x30xf32>
    %c3_86 = arith.constant 3 : index
    %c150_87 = arith.constant 150 : index
    %247 = vector.load %arg13[%c3_86, %c150_87] : memref<8x180xf32, #tpu.memory_space<vmem>>, vector<1x30xf32>
    tpu.vector_store %arg13[%c3_86, %c150_87], %246 {strides = array<i32>} : memref<8x180xf32, #tpu.memory_space<vmem>>, vector<1x30xf32>,
    %248 = vector.extract_strided_slice %77 {offsets = [12, 0], sizes = [4, 750], strides = [1, 1]} : vector<24x750xf32> to vector<4x750xf32>
    %249 = vector.extract_strided_slice %248 {offsets = [0, 0], sizes = [1, 750], strides = [1, 1]} : vector<4x750xf32> to vector<1x750xf32>
    %250 = vector.extract_strided_slice %248 {offsets = [1, 0], sizes = [1, 750], strides = [1, 1]} : vector<4x750xf32> to vector<1x750xf32>
    %251 = arith.maximumf %249, %250 : vector<1x750xf32>
    %252 = vector.extract_strided_slice %248 {offsets = [2, 0], sizes = [1, 750], strides = [1, 1]} : vector<4x750xf32> to vector<1x750xf32>
    %253 = vector.extract_strided_slice %248 {offsets = [3, 0], sizes = [1, 750], strides = [1, 1]} : vector<4x750xf32> to vector<1x750xf32>
    %254 = arith.maximumf %252, %253 : vector<1x750xf32>
    %255 = arith.maximumf %251, %254 : vector<1x750xf32>
    %256 = vector.extract_strided_slice %255 {offsets = [0, 0], sizes = [1, 30], strides = [1, 1]} : vector<1x750xf32> to vector<1x30xf32>
    %257 = vector.extract_strided_slice %255 {offsets = [0, 30], sizes = [1, 30], strides = [1, 1]} : vector<1x750xf32> to vector<1x30xf32>
    %258 = arith.maximumf %256, %257 : vector<1x30xf32>
    %259 = vector.extract_strided_slice %255 {offsets = [0, 60], sizes = [1, 30], strides = [1, 1]} : vector<1x750xf32> to vector<1x30xf32>
    %260 = arith.maximumf %258, %259 : vector<1x30xf32>
    %261 = vector.extract_strided_slice %255 {offsets = [0, 90], sizes = [1, 30], strides = [1, 1]} : vector<1x750xf32> to vector<1x30xf32>
    %262 = arith.maximumf %260, %261 : vector<1x30xf32>
    %c4 = arith.constant 4 : index
    %c0_88 = arith.constant 0 : index
    %263 = vector.load %arg13[%c4, %c0_88] : memref<8x180xf32, #tpu.memory_space<vmem>>, vector<1x30xf32>
    tpu.vector_store %arg13[%c4, %c0_88], %262 {strides = array<i32>} : memref<8x180xf32, #tpu.memory_space<vmem>>, vector<1x30xf32>,
    %264 = vector.extract_strided_slice %255 {offsets = [0, 120], sizes = [1, 30], strides = [1, 1]} : vector<1x750xf32> to vector<1x30xf32>
    %265 = vector.extract_strided_slice %255 {offsets = [0, 150], sizes = [1, 30], strides = [1, 1]} : vector<1x750xf32> to vector<1x30xf32>
    %266 = arith.maximumf %264, %265 : vector<1x30xf32>
    %267 = vector.extract_strided_slice %255 {offsets = [0, 180], sizes = [1, 30], strides = [1, 1]} : vector<1x750xf32> to vector<1x30xf32>
    %268 = arith.maximumf %266, %267 : vector<1x30xf32>
    %269 = vector.extract_strided_slice %255 {offsets = [0, 210], sizes = [1, 30], strides = [1, 1]} : vector<1x750xf32> to vector<1x30xf32>
    %270 = arith.maximumf %268, %269 : vector<1x30xf32>
    %c4_89 = arith.constant 4 : index
    %c30_90 = arith.constant 30 : index
    %271 = vector.load %arg13[%c4_89, %c30_90] : memref<8x180xf32, #tpu.memory_space<vmem>>, vector<1x30xf32>
    tpu.vector_store %arg13[%c4_89, %c30_90], %270 {strides = array<i32>} : memref<8x180xf32, #tpu.memory_space<vmem>>, vector<1x30xf32>,
    %272 = vector.extract_strided_slice %255 {offsets = [0, 240], sizes = [1, 30], strides = [1, 1]} : vector<1x750xf32> to vector<1x30xf32>
    %273 = vector.extract_strided_slice %255 {offsets = [0, 270], sizes = [1, 30], strides = [1, 1]} : vector<1x750xf32> to vector<1x30xf32>
    %274 = arith.maximumf %272, %273 : vector<1x30xf32>
    %275 = vector.extract_strided_slice %255 {offsets = [0, 300], sizes = [1, 30], strides = [1, 1]} : vector<1x750xf32> to vector<1x30xf32>
    %276 = arith.maximumf %274, %275 : vector<1x30xf32>
    %277 = vector.extract_strided_slice %255 {offsets = [0, 330], sizes = [1, 30], strides = [1, 1]} : vector<1x750xf32> to vector<1x30xf32>
    %278 = arith.maximumf %276, %277 : vector<1x30xf32>
    %c4_91 = arith.constant 4 : index
    %c60_92 = arith.constant 60 : index
    %279 = vector.load %arg13[%c4_91, %c60_92] : memref<8x180xf32, #tpu.memory_space<vmem>>, vector<1x30xf32>
    tpu.vector_store %arg13[%c4_91, %c60_92], %278 {strides = array<i32>} : memref<8x180xf32, #tpu.memory_space<vmem>>, vector<1x30xf32>,
    %280 = vector.extract_strided_slice %255 {offsets = [0, 360], sizes = [1, 30], strides = [1, 1]} : vector<1x750xf32> to vector<1x30xf32>
    %281 = vector.extract_strided_slice %255 {offsets = [0, 390], sizes = [1, 30], strides = [1, 1]} : vector<1x750xf32> to vector<1x30xf32>
    %282 = arith.maximumf %280, %281 : vector<1x30xf32>
    %283 = vector.extract_strided_slice %255 {offsets = [0, 420], sizes = [1, 30], strides = [1, 1]} : vector<1x750xf32> to vector<1x30xf32>
    %284 = arith.maximumf %282, %283 : vector<1x30xf32>
    %285 = vector.extract_strided_slice %255 {offsets = [0, 450], sizes = [1, 30], strides = [1, 1]} : vector<1x750xf32> to vector<1x30xf32>
    %286 = arith.maximumf %284, %285 : vector<1x30xf32>
    %c4_93 = arith.constant 4 : index
    %c90_94 = arith.constant 90 : index
    %287 = vector.load %arg13[%c4_93, %c90_94] : memref<8x180xf32, #tpu.memory_space<vmem>>, vector<1x30xf32>
    tpu.vector_store %arg13[%c4_93, %c90_94], %286 {strides = array<i32>} : memref<8x180xf32, #tpu.memory_space<vmem>>, vector<1x30xf32>,
    %288 = vector.extract_strided_slice %255 {offsets = [0, 480], sizes = [1, 30], strides = [1, 1]} : vector<1x750xf32> to vector<1x30xf32>
    %289 = vector.extract_strided_slice %255 {offsets = [0, 510], sizes = [1, 30], strides = [1, 1]} : vector<1x750xf32> to vector<1x30xf32>
    %290 = arith.maximumf %288, %289 : vector<1x30xf32>
    %291 = vector.extract_strided_slice %255 {offsets = [0, 540], sizes = [1, 30], strides = [1, 1]} : vector<1x750xf32> to vector<1x30xf32>
    %292 = arith.maximumf %290, %291 : vector<1x30xf32>
    %293 = vector.extract_strided_slice %255 {offsets = [0, 570], sizes = [1, 30], strides = [1, 1]} : vector<1x750xf32> to vector<1x30xf32>
    %294 = arith.maximumf %292, %293 : vector<1x30xf32>
    %c4_95 = arith.constant 4 : index
    %c120_96 = arith.constant 120 : index
    %295 = vector.load %arg13[%c4_95, %c120_96] : memref<8x180xf32, #tpu.memory_space<vmem>>, vector<1x30xf32>
    tpu.vector_store %arg13[%c4_95, %c120_96], %294 {strides = array<i32>} : memref<8x180xf32, #tpu.memory_space<vmem>>, vector<1x30xf32>,
    %296 = vector.extract_strided_slice %255 {offsets = [0, 600], sizes = [1, 30], strides = [1, 1]} : vector<1x750xf32> to vector<1x30xf32>
    %297 = vector.extract_strided_slice %255 {offsets = [0, 630], sizes = [1, 30], strides = [1, 1]} : vector<1x750xf32> to vector<1x30xf32>
    %298 = arith.maximumf %296, %297 : vector<1x30xf32>
    %299 = vector.extract_strided_slice %255 {offsets = [0, 660], sizes = [1, 30], strides = [1, 1]} : vector<1x750xf32> to vector<1x30xf32>
    %300 = arith.maximumf %298, %299 : vector<1x30xf32>
    %301 = vector.extract_strided_slice %255 {offsets = [0, 690], sizes = [1, 30], strides = [1, 1]} : vector<1x750xf32> to vector<1x30xf32>
    %302 = arith.maximumf %300, %301 : vector<1x30xf32>
    %c4_97 = arith.constant 4 : index
    %c150_98 = arith.constant 150 : index
    %303 = vector.load %arg13[%c4_97, %c150_98] : memref<8x180xf32, #tpu.memory_space<vmem>>, vector<1x30xf32>
    tpu.vector_store %arg13[%c4_97, %c150_98], %302 {strides = array<i32>} : memref<8x180xf32, #tpu.memory_space<vmem>>, vector<1x30xf32>,
    %304 = vector.extract_strided_slice %77 {offsets = [16, 0], sizes = [4, 750], strides = [1, 1]} : vector<24x750xf32> to vector<4x750xf32>
    %305 = vector.extract_strided_slice %304 {offsets = [0, 0], sizes = [1, 750], strides = [1, 1]} : vector<4x750xf32> to vector<1x750xf32>
    %306 = vector.extract_strided_slice %304 {offsets = [1, 0], sizes = [1, 750], strides = [1, 1]} : vector<4x750xf32> to vector<1x750xf32>
    %307 = arith.maximumf %305, %306 : vector<1x750xf32>
    %308 = vector.extract_strided_slice %304 {offsets = [2, 0], sizes = [1, 750], strides = [1, 1]} : vector<4x750xf32> to vector<1x750xf32>
    %309 = vector.extract_strided_slice %304 {offsets = [3, 0], sizes = [1, 750], strides = [1, 1]} : vector<4x750xf32> to vector<1x750xf32>
    %310 = arith.maximumf %308, %309 : vector<1x750xf32>
    %311 = arith.maximumf %307, %310 : vector<1x750xf32>
    %312 = vector.extract_strided_slice %311 {offsets = [0, 0], sizes = [1, 30], strides = [1, 1]} : vector<1x750xf32> to vector<1x30xf32>
    %313 = vector.extract_strided_slice %311 {offsets = [0, 30], sizes = [1, 30], strides = [1, 1]} : vector<1x750xf32> to vector<1x30xf32>
    %314 = arith.maximumf %312, %313 : vector<1x30xf32>
    %315 = vector.extract_strided_slice %311 {offsets = [0, 60], sizes = [1, 30], strides = [1, 1]} : vector<1x750xf32> to vector<1x30xf32>
    %316 = arith.maximumf %314, %315 : vector<1x30xf32>
    %317 = vector.extract_strided_slice %311 {offsets = [0, 90], sizes = [1, 30], strides = [1, 1]} : vector<1x750xf32> to vector<1x30xf32>
    %318 = arith.maximumf %316, %317 : vector<1x30xf32>
    %c5 = arith.constant 5 : index
    %c0_99 = arith.constant 0 : index
    %319 = vector.load %arg13[%c5, %c0_99] : memref<8x180xf32, #tpu.memory_space<vmem>>, vector<1x30xf32>
    tpu.vector_store %arg13[%c5, %c0_99], %318 {strides = array<i32>} : memref<8x180xf32, #tpu.memory_space<vmem>>, vector<1x30xf32>,
    %320 = vector.extract_strided_slice %311 {offsets = [0, 120], sizes = [1, 30], strides = [1, 1]} : vector<1x750xf32> to vector<1x30xf32>
    %321 = vector.extract_strided_slice %311 {offsets = [0, 150], sizes = [1, 30], strides = [1, 1]} : vector<1x750xf32> to vector<1x30xf32>
    %322 = arith.maximumf %320, %321 : vector<1x30xf32>
    %323 = vector.extract_strided_slice %311 {offsets = [0, 180], sizes = [1, 30], strides = [1, 1]} : vector<1x750xf32> to vector<1x30xf32>
    %324 = arith.maximumf %322, %323 : vector<1x30xf32>
    %325 = vector.extract_strided_slice %311 {offsets = [0, 210], sizes = [1, 30], strides = [1, 1]} : vector<1x750xf32> to vector<1x30xf32>
    %326 = arith.maximumf %324, %325 : vector<1x30xf32>
    %c5_100 = arith.constant 5 : index
    %c30_101 = arith.constant 30 : index
    %327 = vector.load %arg13[%c5_100, %c30_101] : memref<8x180xf32, #tpu.memory_space<vmem>>, vector<1x30xf32>
    tpu.vector_store %arg13[%c5_100, %c30_101], %326 {strides = array<i32>} : memref<8x180xf32, #tpu.memory_space<vmem>>, vector<1x30xf32>,
    %328 = vector.extract_strided_slice %311 {offsets = [0, 240], sizes = [1, 30], strides = [1, 1]} : vector<1x750xf32> to vector<1x30xf32>
    %329 = vector.extract_strided_slice %311 {offsets = [0, 270], sizes = [1, 30], strides = [1, 1]} : vector<1x750xf32> to vector<1x30xf32>
    %330 = arith.maximumf %328, %329 : vector<1x30xf32>
    %331 = vector.extract_strided_slice %311 {offsets = [0, 300], sizes = [1, 30], strides = [1, 1]} : vector<1x750xf32> to vector<1x30xf32>
    %332 = arith.maximumf %330, %331 : vector<1x30xf32>
    %333 = vector.extract_strided_slice %311 {offsets = [0, 330], sizes = [1, 30], strides = [1, 1]} : vector<1x750xf32> to vector<1x30xf32>
    %334 = arith.maximumf %332, %333 : vector<1x30xf32>
    %c5_102 = arith.constant 5 : index
    %c60_103 = arith.constant 60 : index
    %335 = vector.load %arg13[%c5_102, %c60_103] : memref<8x180xf32, #tpu.memory_space<vmem>>, vector<1x30xf32>
    tpu.vector_store %arg13[%c5_102, %c60_103], %334 {strides = array<i32>} : memref<8x180xf32, #tpu.memory_space<vmem>>, vector<1x30xf32>,
    %336 = vector.extract_strided_slice %311 {offsets = [0, 360], sizes = [1, 30], strides = [1, 1]} : vector<1x750xf32> to vector<1x30xf32>
    %337 = vector.extract_strided_slice %311 {offsets = [0, 390], sizes = [1, 30], strides = [1, 1]} : vector<1x750xf32> to vector<1x30xf32>
    %338 = arith.maximumf %336, %337 : vector<1x30xf32>
    %339 = vector.extract_strided_slice %311 {offsets = [0, 420], sizes = [1, 30], strides = [1, 1]} : vector<1x750xf32> to vector<1x30xf32>
    %340 = arith.maximumf %338, %339 : vector<1x30xf32>
    %341 = vector.extract_strided_slice %311 {offsets = [0, 450], sizes = [1, 30], strides = [1, 1]} : vector<1x750xf32> to vector<1x30xf32>
    %342 = arith.maximumf %340, %341 : vector<1x30xf32>
    %c5_104 = arith.constant 5 : index
    %c90_105 = arith.constant 90 : index
    %343 = vector.load %arg13[%c5_104, %c90_105] : memref<8x180xf32, #tpu.memory_space<vmem>>, vector<1x30xf32>
    tpu.vector_store %arg13[%c5_104, %c90_105], %342 {strides = array<i32>} : memref<8x180xf32, #tpu.memory_space<vmem>>, vector<1x30xf32>,
    %344 = vector.extract_strided_slice %311 {offsets = [0, 480], sizes = [1, 30], strides = [1, 1]} : vector<1x750xf32> to vector<1x30xf32>
    %345 = vector.extract_strided_slice %311 {offsets = [0, 510], sizes = [1, 30], strides = [1, 1]} : vector<1x750xf32> to vector<1x30xf32>
    %346 = arith.maximumf %344, %345 : vector<1x30xf32>
    %347 = vector.extract_strided_slice %311 {offsets = [0, 540], sizes = [1, 30], strides = [1, 1]} : vector<1x750xf32> to vector<1x30xf32>
    %348 = arith.maximumf %346, %347 : vector<1x30xf32>
    %349 = vector.extract_strided_slice %311 {offsets = [0, 570], sizes = [1, 30], strides = [1, 1]} : vector<1x750xf32> to vector<1x30xf32>
    %350 = arith.maximumf %348, %349 : vector<1x30xf32>
    %c5_106 = arith.constant 5 : index
    %c120_107 = arith.constant 120 : index
    %351 = vector.load %arg13[%c5_106, %c120_107] : memref<8x180xf32, #tpu.memory_space<vmem>>, vector<1x30xf32>
    tpu.vector_store %arg13[%c5_106, %c120_107], %350 {strides = array<i32>} : memref<8x180xf32, #tpu.memory_space<vmem>>, vector<1x30xf32>,
    %352 = vector.extract_strided_slice %311 {offsets = [0, 600], sizes = [1, 30], strides = [1, 1]} : vector<1x750xf32> to vector<1x30xf32>
    %353 = vector.extract_strided_slice %311 {offsets = [0, 630], sizes = [1, 30], strides = [1, 1]} : vector<1x750xf32> to vector<1x30xf32>
    %354 = arith.maximumf %352, %353 : vector<1x30xf32>
    %355 = vector.extract_strided_slice %311 {offsets = [0, 660], sizes = [1, 30], strides = [1, 1]} : vector<1x750xf32> to vector<1x30xf32>
    %356 = arith.maximumf %354, %355 : vector<1x30xf32>
    %357 = vector.extract_strided_slice %311 {offsets = [0, 690], sizes = [1, 30], strides = [1, 1]} : vector<1x750xf32> to vector<1x30xf32>
    %358 = arith.maximumf %356, %357 : vector<1x30xf32>
    %c5_108 = arith.constant 5 : index
    %c150_109 = arith.constant 150 : index
    %359 = vector.load %arg13[%c5_108, %c150_109] : memref<8x180xf32, #tpu.memory_space<vmem>>, vector<1x30xf32>
    tpu.vector_store %arg13[%c5_108, %c150_109], %358 {strides = array<i32>} : memref<8x180xf32, #tpu.memory_space<vmem>>, vector<1x30xf32>,
    %360 = vector.extract_strided_slice %77 {offsets = [20, 0], sizes = [4, 750], strides = [1, 1]} : vector<24x750xf32> to vector<4x750xf32>
    %361 = vector.extract_strided_slice %360 {offsets = [0, 0], sizes = [1, 750], strides = [1, 1]} : vector<4x750xf32> to vector<1x750xf32>
    %362 = vector.extract_strided_slice %360 {offsets = [1, 0], sizes = [1, 750], strides = [1, 1]} : vector<4x750xf32> to vector<1x750xf32>
    %363 = arith.maximumf %361, %362 : vector<1x750xf32>
    %364 = vector.extract_strided_slice %360 {offsets = [2, 0], sizes = [1, 750], strides = [1, 1]} : vector<4x750xf32> to vector<1x750xf32>
    %365 = vector.extract_strided_slice %360 {offsets = [3, 0], sizes = [1, 750], strides = [1, 1]} : vector<4x750xf32> to vector<1x750xf32>
    %366 = arith.maximumf %364, %365 : vector<1x750xf32>
    %367 = arith.maximumf %363, %366 : vector<1x750xf32>
    %368 = vector.extract_strided_slice %367 {offsets = [0, 0], sizes = [1, 30], strides = [1, 1]} : vector<1x750xf32> to vector<1x30xf32>
    %369 = vector.extract_strided_slice %367 {offsets = [0, 30], sizes = [1, 30], strides = [1, 1]} : vector<1x750xf32> to vector<1x30xf32>
    %370 = arith.maximumf %368, %369 : vector<1x30xf32>
    %371 = vector.extract_strided_slice %367 {offsets = [0, 60], sizes = [1, 30], strides = [1, 1]} : vector<1x750xf32> to vector<1x30xf32>
    %372 = arith.maximumf %370, %371 : vector<1x30xf32>
    %373 = vector.extract_strided_slice %367 {offsets = [0, 90], sizes = [1, 30], strides = [1, 1]} : vector<1x750xf32> to vector<1x30xf32>
    %374 = arith.maximumf %372, %373 : vector<1x30xf32>
    %c6 = arith.constant 6 : index
    %c0_110 = arith.constant 0 : index
    %375 = vector.load %arg13[%c6, %c0_110] : memref<8x180xf32, #tpu.memory_space<vmem>>, vector<1x30xf32>
    tpu.vector_store %arg13[%c6, %c0_110], %374 {strides = array<i32>} : memref<8x180xf32, #tpu.memory_space<vmem>>, vector<1x30xf32>,
    %376 = vector.extract_strided_slice %367 {offsets = [0, 120], sizes = [1, 30], strides = [1, 1]} : vector<1x750xf32> to vector<1x30xf32>
    %377 = vector.extract_strided_slice %367 {offsets = [0, 150], sizes = [1, 30], strides = [1, 1]} : vector<1x750xf32> to vector<1x30xf32>
    %378 = arith.maximumf %376, %377 : vector<1x30xf32>
    %379 = vector.extract_strided_slice %367 {offsets = [0, 180], sizes = [1, 30], strides = [1, 1]} : vector<1x750xf32> to vector<1x30xf32>
    %380 = arith.maximumf %378, %379 : vector<1x30xf32>
    %381 = vector.extract_strided_slice %367 {offsets = [0, 210], sizes = [1, 30], strides = [1, 1]} : vector<1x750xf32> to vector<1x30xf32>
    %382 = arith.maximumf %380, %381 : vector<1x30xf32>
    %c6_111 = arith.constant 6 : index
    %c30_112 = arith.constant 30 : index
    %383 = vector.load %arg13[%c6_111, %c30_112] : memref<8x180xf32, #tpu.memory_space<vmem>>, vector<1x30xf32>
    tpu.vector_store %arg13[%c6_111, %c30_112], %382 {strides = array<i32>} : memref<8x180xf32, #tpu.memory_space<vmem>>, vector<1x30xf32>,
    %384 = vector.extract_strided_slice %367 {offsets = [0, 240], sizes = [1, 30], strides = [1, 1]} : vector<1x750xf32> to vector<1x30xf32>
    %385 = vector.extract_strided_slice %367 {offsets = [0, 270], sizes = [1, 30], strides = [1, 1]} : vector<1x750xf32> to vector<1x30xf32>
    %386 = arith.maximumf %384, %385 : vector<1x30xf32>
    %387 = vector.extract_strided_slice %367 {offsets = [0, 300], sizes = [1, 30], strides = [1, 1]} : vector<1x750xf32> to vector<1x30xf32>
    %388 = arith.maximumf %386, %387 : vector<1x30xf32>
    %389 = vector.extract_strided_slice %367 {offsets = [0, 330], sizes = [1, 30], strides = [1, 1]} : vector<1x750xf32> to vector<1x30xf32>
    %390 = arith.maximumf %388, %389 : vector<1x30xf32>
    %c6_113 = arith.constant 6 : index
    %c60_114 = arith.constant 60 : index
    %391 = vector.load %arg13[%c6_113, %c60_114] : memref<8x180xf32, #tpu.memory_space<vmem>>, vector<1x30xf32>
    tpu.vector_store %arg13[%c6_113, %c60_114], %390 {strides = array<i32>} : memref<8x180xf32, #tpu.memory_space<vmem>>, vector<1x30xf32>,
    %392 = vector.extract_strided_slice %367 {offsets = [0, 360], sizes = [1, 30], strides = [1, 1]} : vector<1x750xf32> to vector<1x30xf32>
    %393 = vector.extract_strided_slice %367 {offsets = [0, 390], sizes = [1, 30], strides = [1, 1]} : vector<1x750xf32> to vector<1x30xf32>
    %394 = arith.maximumf %392, %393 : vector<1x30xf32>
    %395 = vector.extract_strided_slice %367 {offsets = [0, 420], sizes = [1, 30], strides = [1, 1]} : vector<1x750xf32> to vector<1x30xf32>
    %396 = arith.maximumf %394, %395 : vector<1x30xf32>
    %397 = vector.extract_strided_slice %367 {offsets = [0, 450], sizes = [1, 30], strides = [1, 1]} : vector<1x750xf32> to vector<1x30xf32>
    %398 = arith.maximumf %396, %397 : vector<1x30xf32>
    %c6_115 = arith.constant 6 : index
    %c90_116 = arith.constant 90 : index
    %399 = vector.load %arg13[%c6_115, %c90_116] : memref<8x180xf32, #tpu.memory_space<vmem>>, vector<1x30xf32>
    tpu.vector_store %arg13[%c6_115, %c90_116], %398 {strides = array<i32>} : memref<8x180xf32, #tpu.memory_space<vmem>>, vector<1x30xf32>,
    %400 = vector.extract_strided_slice %367 {offsets = [0, 480], sizes = [1, 30], strides = [1, 1]} : vector<1x750xf32> to vector<1x30xf32>
    %401 = vector.extract_strided_slice %367 {offsets = [0, 510], sizes = [1, 30], strides = [1, 1]} : vector<1x750xf32> to vector<1x30xf32>
    %402 = arith.maximumf %400, %401 : vector<1x30xf32>
    %403 = vector.extract_strided_slice %367 {offsets = [0, 540], sizes = [1, 30], strides = [1, 1]} : vector<1x750xf32> to vector<1x30xf32>
    %404 = arith.maximumf %402, %403 : vector<1x30xf32>
    %405 = vector.extract_strided_slice %367 {offsets = [0, 570], sizes = [1, 30], strides = [1, 1]} : vector<1x750xf32> to vector<1x30xf32>
    %406 = arith.maximumf %404, %405 : vector<1x30xf32>
    %c6_117 = arith.constant 6 : index
    %c120_118 = arith.constant 120 : index
    %407 = vector.load %arg13[%c6_117, %c120_118] : memref<8x180xf32, #tpu.memory_space<vmem>>, vector<1x30xf32>
    tpu.vector_store %arg13[%c6_117, %c120_118], %406 {strides = array<i32>} : memref<8x180xf32, #tpu.memory_space<vmem>>, vector<1x30xf32>,
    %408 = vector.extract_strided_slice %367 {offsets = [0, 600], sizes = [1, 30], strides = [1, 1]} : vector<1x750xf32> to vector<1x30xf32>
    %409 = vector.extract_strided_slice %367 {offsets = [0, 630], sizes = [1, 30], strides = [1, 1]} : vector<1x750xf32> to vector<1x30xf32>
    %410 = arith.maximumf %408, %409 : vector<1x30xf32>
    %411 = vector.extract_strided_slice %367 {offsets = [0, 660], sizes = [1, 30], strides = [1, 1]} : vector<1x750xf32> to vector<1x30xf32>
    %412 = arith.maximumf %410, %411 : vector<1x30xf32>
    %413 = vector.extract_strided_slice %367 {offsets = [0, 690], sizes = [1, 30], strides = [1, 1]} : vector<1x750xf32> to vector<1x30xf32>
    %414 = arith.maximumf %412, %413 : vector<1x30xf32>
    %c6_119 = arith.constant 6 : index
    %c150_120 = arith.constant 150 : index
    %415 = vector.load %arg13[%c6_119, %c150_120] : memref<8x180xf32, #tpu.memory_space<vmem>>, vector<1x30xf32>
    tpu.vector_store %arg13[%c6_119, %c150_120], %414 {strides = array<i32>} : memref<8x180xf32, #tpu.memory_space<vmem>>, vector<1x30xf32>,
    %c0_121 = arith.constant 0 : index
    %c0_122 = arith.constant 0 : index
    %416 = vector.load %arg13[%c0_121, %c0_122] : memref<8x180xf32, #tpu.memory_space<vmem>>, vector<8x180xf32>
    %cst_123 = arith.constant 0.000000e+00 : f32
    %417 = vector.broadcast %cst_123 : f32 to vector<6x60xf32>
    %418 = vector.extract_strided_slice %416 {offsets = [0, 0], sizes = [6, 180], strides = [1, 1]} : vector<8x180xf32> to vector<6x180xf32>
    %c0_124 = arith.constant 0 : index
    %c0_125 = arith.constant 0 : index
    %c0_126 = arith.constant 0 : index
    %419 = vector.load %arg5[%c0_124, %c0_125, %c0_126] : memref<3x180x60xf32, #tpu.memory_space<vmem>>, vector<1x180x60xf32>
    %420 = vector.shape_cast %419 : vector<1x180x60xf32> to vector<180x60xf32>
    %cst_127 = arith.constant dense<0.000000e+00> : vector<6x60xf32>
    %421 = tpu.matmul %418, %420, %cst_127 {dimension_numbers = #tpu.dot_dimension_numbers<[1], [0], [0], [1], [0, 0, 1, 1], [], []>} : vector<6x180xf32>, vector<180x60xf32>, vector<6x60xf32> -> vector<6x60xf32>
    %422 = arith.addf %417, %421 : vector<6x60xf32>
    %423 = vector.extract_strided_slice %416 {offsets = [1, 0], sizes = [6, 180], strides = [1, 1]} : vector<8x180xf32> to vector<6x180xf32>
    %c1_128 = arith.constant 1 : index
    %c0_129 = arith.constant 0 : index
    %c0_130 = arith.constant 0 : index
    %424 = vector.load %arg5[%c1_128, %c0_129, %c0_130] : memref<3x180x60xf32, #tpu.memory_space<vmem>>, vector<1x180x60xf32>
    %425 = vector.shape_cast %424 : vector<1x180x60xf32> to vector<180x60xf32>
    %cst_131 = arith.constant dense<0.000000e+00> : vector<6x60xf32>
    %426 = tpu.matmul %423, %425, %cst_131 {dimension_numbers = #tpu.dot_dimension_numbers<[1], [0], [0], [1], [0, 0, 1, 1], [], []>} : vector<6x180xf32>, vector<180x60xf32>, vector<6x60xf32> -> vector<6x60xf32>
    %427 = arith.addf %422, %426 : vector<6x60xf32>
    %428 = vector.extract_strided_slice %416 {offsets = [2, 0], sizes = [6, 180], strides = [1, 1]} : vector<8x180xf32> to vector<6x180xf32>
    %c2_132 = arith.constant 2 : index
    %c0_133 = arith.constant 0 : index
    %c0_134 = arith.constant 0 : index
    %429 = vector.load %arg5[%c2_132, %c0_133, %c0_134] : memref<3x180x60xf32, #tpu.memory_space<vmem>>, vector<1x180x60xf32>
    %430 = vector.shape_cast %429 : vector<1x180x60xf32> to vector<180x60xf32>
    %cst_135 = arith.constant dense<0.000000e+00> : vector<6x60xf32>
    %431 = tpu.matmul %428, %430, %cst_135 {dimension_numbers = #tpu.dot_dimension_numbers<[1], [0], [0], [1], [0, 0, 1, 1], [], []>} : vector<6x180xf32>, vector<180x60xf32>, vector<6x60xf32> -> vector<6x60xf32>
    %432 = arith.addf %427, %431 : vector<6x60xf32>
    %c0_136 = arith.constant 0 : index
    %c0_137 = arith.constant 0 : index
    %433 = vector.load %arg6[%c0_136, %c0_137] : memref<1x60xf32, #tpu.memory_space<vmem>>, vector<1x60xf32>
    %434 = vector.broadcast %433 : vector<1x60xf32> to vector<6x60xf32>
    %435 = arith.addf %432, %434 : vector<6x60xf32>
    %cst_138 = arith.constant 0.000000e+00 : f32
    %436 = vector.broadcast %cst_138 : f32 to vector<6x60xf32>
    %437 = arith.maximumf %435, %436 : vector<6x60xf32>
    %c0_139 = arith.constant 0 : index
    %c0_140 = arith.constant 0 : index
    %438 = vector.load %arg8[%c0_139, %c0_140] : memref<1x4xf32, #tpu.memory_space<vmem>>, vector<1x4xf32>
    %439 = vector.extract_strided_slice %437 {offsets = [0, 0], sizes = [1, 60], strides = [1, 1]} : vector<6x60xf32> to vector<1x60xf32>
    %440 = vector.extract_strided_slice %437 {offsets = [1, 0], sizes = [1, 60], strides = [1, 1]} : vector<6x60xf32> to vector<1x60xf32>
    %441 = arith.maximumf %439, %440 : vector<1x60xf32>
    %c0_141 = arith.constant 0 : index
    %c0_142 = arith.constant 0 : index
    %c0_143 = arith.constant 0 : index
    %442 = vector.load %arg7[%c0_141, %c0_142, %c0_143] : memref<3x30x4xf32, #tpu.memory_space<vmem>>, vector<1x30x4xf32>
    %443 = vector.shape_cast %442 : vector<1x30x4xf32> to vector<30x4xf32>
    %444 = vector.extract_strided_slice %441 {offsets = [0, 0], sizes = [1, 10], strides = [1, 1]} : vector<1x60xf32> to vector<1x10xf32>
    %445 = vector.extract_strided_slice %441 {offsets = [0, 10], sizes = [1, 10], strides = [1, 1]} : vector<1x60xf32> to vector<1x10xf32>
    %446 = arith.maximumf %444, %445 : vector<1x10xf32>
    %447 = vector.extract_strided_slice %443 {offsets = [0, 0], sizes = [10, 4], strides = [1, 1]} : vector<30x4xf32> to vector<10x4xf32>
    %cst_144 = arith.constant dense<0.000000e+00> : vector<1x4xf32>
    %448 = tpu.matmul %446, %447, %cst_144 {dimension_numbers = #tpu.dot_dimension_numbers<[1], [0], [0], [1], [0, 0, 1, 1], [], []>} : vector<1x10xf32>, vector<10x4xf32>, vector<1x4xf32> -> vector<1x4xf32>
    %449 = arith.addf %438, %448 : vector<1x4xf32>
    %450 = vector.extract_strided_slice %441 {offsets = [0, 20], sizes = [1, 10], strides = [1, 1]} : vector<1x60xf32> to vector<1x10xf32>
    %451 = vector.extract_strided_slice %441 {offsets = [0, 30], sizes = [1, 10], strides = [1, 1]} : vector<1x60xf32> to vector<1x10xf32>
    %452 = arith.maximumf %450, %451 : vector<1x10xf32>
    %453 = vector.extract_strided_slice %443 {offsets = [10, 0], sizes = [10, 4], strides = [1, 1]} : vector<30x4xf32> to vector<10x4xf32>
    %cst_145 = arith.constant dense<0.000000e+00> : vector<1x4xf32>
    %454 = tpu.matmul %452, %453, %cst_145 {dimension_numbers = #tpu.dot_dimension_numbers<[1], [0], [0], [1], [0, 0, 1, 1], [], []>} : vector<1x10xf32>, vector<10x4xf32>, vector<1x4xf32> -> vector<1x4xf32>
    %455 = arith.addf %449, %454 : vector<1x4xf32>
    %456 = vector.extract_strided_slice %441 {offsets = [0, 40], sizes = [1, 10], strides = [1, 1]} : vector<1x60xf32> to vector<1x10xf32>
    %457 = vector.extract_strided_slice %441 {offsets = [0, 50], sizes = [1, 10], strides = [1, 1]} : vector<1x60xf32> to vector<1x10xf32>
    %458 = arith.maximumf %456, %457 : vector<1x10xf32>
    %459 = vector.extract_strided_slice %443 {offsets = [20, 0], sizes = [10, 4], strides = [1, 1]} : vector<30x4xf32> to vector<10x4xf32>
    %cst_146 = arith.constant dense<0.000000e+00> : vector<1x4xf32>
    %460 = tpu.matmul %458, %459, %cst_146 {dimension_numbers = #tpu.dot_dimension_numbers<[1], [0], [0], [1], [0, 0, 1, 1], [], []>} : vector<1x10xf32>, vector<10x4xf32>, vector<1x4xf32> -> vector<1x4xf32>
    %461 = arith.addf %455, %460 : vector<1x4xf32>
    %462 = vector.extract_strided_slice %437 {offsets = [2, 0], sizes = [1, 60], strides = [1, 1]} : vector<6x60xf32> to vector<1x60xf32>
    %463 = vector.extract_strided_slice %437 {offsets = [3, 0], sizes = [1, 60], strides = [1, 1]} : vector<6x60xf32> to vector<1x60xf32>
    %464 = arith.maximumf %462, %463 : vector<1x60xf32>
    %c1_147 = arith.constant 1 : index
    %c0_148 = arith.constant 0 : index
    %c0_149 = arith.constant 0 : index
    %465 = vector.load %arg7[%c1_147, %c0_148, %c0_149] : memref<3x30x4xf32, #tpu.memory_space<vmem>>, vector<1x30x4xf32>
    %466 = vector.shape_cast %465 : vector<1x30x4xf32> to vector<30x4xf32>
    %467 = vector.extract_strided_slice %464 {offsets = [0, 0], sizes = [1, 10], strides = [1, 1]} : vector<1x60xf32> to vector<1x10xf32>
    %468 = vector.extract_strided_slice %464 {offsets = [0, 10], sizes = [1, 10], strides = [1, 1]} : vector<1x60xf32> to vector<1x10xf32>
    %469 = arith.maximumf %467, %468 : vector<1x10xf32>
    %470 = vector.extract_strided_slice %466 {offsets = [0, 0], sizes = [10, 4], strides = [1, 1]} : vector<30x4xf32> to vector<10x4xf32>
    %cst_150 = arith.constant dense<0.000000e+00> : vector<1x4xf32>
    %471 = tpu.matmul %469, %470, %cst_150 {dimension_numbers = #tpu.dot_dimension_numbers<[1], [0], [0], [1], [0, 0, 1, 1], [], []>} : vector<1x10xf32>, vector<10x4xf32>, vector<1x4xf32> -> vector<1x4xf32>
    %472 = arith.addf %461, %471 : vector<1x4xf32>
    %473 = vector.extract_strided_slice %464 {offsets = [0, 20], sizes = [1, 10], strides = [1, 1]} : vector<1x60xf32> to vector<1x10xf32>
    %474 = vector.extract_strided_slice %464 {offsets = [0, 30], sizes = [1, 10], strides = [1, 1]} : vector<1x60xf32> to vector<1x10xf32>
    %475 = arith.maximumf %473, %474 : vector<1x10xf32>
    %476 = vector.extract_strided_slice %466 {offsets = [10, 0], sizes = [10, 4], strides = [1, 1]} : vector<30x4xf32> to vector<10x4xf32>
    %cst_151 = arith.constant dense<0.000000e+00> : vector<1x4xf32>
    %477 = tpu.matmul %475, %476, %cst_151 {dimension_numbers = #tpu.dot_dimension_numbers<[1], [0], [0], [1], [0, 0, 1, 1], [], []>} : vector<1x10xf32>, vector<10x4xf32>, vector<1x4xf32> -> vector<1x4xf32>
    %478 = arith.addf %472, %477 : vector<1x4xf32>
    %479 = vector.extract_strided_slice %464 {offsets = [0, 40], sizes = [1, 10], strides = [1, 1]} : vector<1x60xf32> to vector<1x10xf32>
    %480 = vector.extract_strided_slice %464 {offsets = [0, 50], sizes = [1, 10], strides = [1, 1]} : vector<1x60xf32> to vector<1x10xf32>
    %481 = arith.maximumf %479, %480 : vector<1x10xf32>
    %482 = vector.extract_strided_slice %466 {offsets = [20, 0], sizes = [10, 4], strides = [1, 1]} : vector<30x4xf32> to vector<10x4xf32>
    %cst_152 = arith.constant dense<0.000000e+00> : vector<1x4xf32>
    %483 = tpu.matmul %481, %482, %cst_152 {dimension_numbers = #tpu.dot_dimension_numbers<[1], [0], [0], [1], [0, 0, 1, 1], [], []>} : vector<1x10xf32>, vector<10x4xf32>, vector<1x4xf32> -> vector<1x4xf32>
    %484 = arith.addf %478, %483 : vector<1x4xf32>
    %485 = vector.extract_strided_slice %437 {offsets = [4, 0], sizes = [1, 60], strides = [1, 1]} : vector<6x60xf32> to vector<1x60xf32>
    %486 = vector.extract_strided_slice %437 {offsets = [5, 0], sizes = [1, 60], strides = [1, 1]} : vector<6x60xf32> to vector<1x60xf32>
    %487 = arith.maximumf %485, %486 : vector<1x60xf32>
    %c2_153 = arith.constant 2 : index
    %c0_154 = arith.constant 0 : index
    %c0_155 = arith.constant 0 : index
    %488 = vector.load %arg7[%c2_153, %c0_154, %c0_155] : memref<3x30x4xf32, #tpu.memory_space<vmem>>, vector<1x30x4xf32>
    %489 = vector.shape_cast %488 : vector<1x30x4xf32> to vector<30x4xf32>
    %490 = vector.extract_strided_slice %487 {offsets = [0, 0], sizes = [1, 10], strides = [1, 1]} : vector<1x60xf32> to vector<1x10xf32>
    %491 = vector.extract_strided_slice %487 {offsets = [0, 10], sizes = [1, 10], strides = [1, 1]} : vector<1x60xf32> to vector<1x10xf32>
    %492 = arith.maximumf %490, %491 : vector<1x10xf32>
    %493 = vector.extract_strided_slice %489 {offsets = [0, 0], sizes = [10, 4], strides = [1, 1]} : vector<30x4xf32> to vector<10x4xf32>
    %cst_156 = arith.constant dense<0.000000e+00> : vector<1x4xf32>
    %494 = tpu.matmul %492, %493, %cst_156 {dimension_numbers = #tpu.dot_dimension_numbers<[1], [0], [0], [1], [0, 0, 1, 1], [], []>} : vector<1x10xf32>, vector<10x4xf32>, vector<1x4xf32> -> vector<1x4xf32>
    %495 = arith.addf %484, %494 : vector<1x4xf32>
    %496 = vector.extract_strided_slice %487 {offsets = [0, 20], sizes = [1, 10], strides = [1, 1]} : vector<1x60xf32> to vector<1x10xf32>
    %497 = vector.extract_strided_slice %487 {offsets = [0, 30], sizes = [1, 10], strides = [1, 1]} : vector<1x60xf32> to vector<1x10xf32>
    %498 = arith.maximumf %496, %497 : vector<1x10xf32>
    %499 = vector.extract_strided_slice %489 {offsets = [10, 0], sizes = [10, 4], strides = [1, 1]} : vector<30x4xf32> to vector<10x4xf32>
    %cst_157 = arith.constant dense<0.000000e+00> : vector<1x4xf32>
    %500 = tpu.matmul %498, %499, %cst_157 {dimension_numbers = #tpu.dot_dimension_numbers<[1], [0], [0], [1], [0, 0, 1, 1], [], []>} : vector<1x10xf32>, vector<10x4xf32>, vector<1x4xf32> -> vector<1x4xf32>
    %501 = arith.addf %495, %500 : vector<1x4xf32>
    %502 = vector.extract_strided_slice %487 {offsets = [0, 40], sizes = [1, 10], strides = [1, 1]} : vector<1x60xf32> to vector<1x10xf32>
    %503 = vector.extract_strided_slice %487 {offsets = [0, 50], sizes = [1, 10], strides = [1, 1]} : vector<1x60xf32> to vector<1x10xf32>
    %504 = arith.maximumf %502, %503 : vector<1x10xf32>
    %505 = vector.extract_strided_slice %489 {offsets = [20, 0], sizes = [10, 4], strides = [1, 1]} : vector<30x4xf32> to vector<10x4xf32>
    %cst_158 = arith.constant dense<0.000000e+00> : vector<1x4xf32>
    %506 = tpu.matmul %504, %505, %cst_158 {dimension_numbers = #tpu.dot_dimension_numbers<[1], [0], [0], [1], [0, 0, 1, 1], [], []>} : vector<1x10xf32>, vector<10x4xf32>, vector<1x4xf32> -> vector<1x4xf32>
    %507 = arith.addf %501, %506 : vector<1x4xf32>
    %c0_159 = arith.constant 0 : index
    %c0_160 = arith.constant 0 : index
    %508 = vector.load %arg9[%c0_159, %c0_160] : memref<4x3xf32, #tpu.memory_space<vmem>>, vector<4x3xf32>
    %cst_161 = arith.constant dense<0.000000e+00> : vector<1x3xf32>
    %509 = tpu.matmul %507, %508, %cst_161 {dimension_numbers = #tpu.dot_dimension_numbers<[1], [0], [0], [1], [0, 0, 1, 1], [], []>} : vector<1x4xf32>, vector<4x3xf32>, vector<1x3xf32> -> vector<1x3xf32>
    %c0_162 = arith.constant 0 : index
    %c0_163 = arith.constant 0 : index
    %510 = vector.load %arg10[%c0_162, %c0_163] : memref<1x3xf32, #tpu.memory_space<vmem>>, vector<1x3xf32>
    %511 = arith.addf %509, %510 : vector<1x3xf32>
    %cst_164 = arith.constant dense<0xFF800000> : vector<1xf32>
    %512 = vector.multi_reduction <maximumf>, %511, %cst_164 [1] : vector<1x3xf32> to vector<1xf32>
    %513 = vector.shape_cast %512 : vector<1xf32> to vector<1x1xf32>
    %514 = vector.broadcast %513 : vector<1x1xf32> to vector<1x3xf32>
    %515 = arith.subf %511, %514 : vector<1x3xf32>
    %516 = math.exp %515 : vector<1x3xf32>
    %cst_165 = arith.constant dense<0.000000e+00> : vector<1xf32>
    %517 = vector.multi_reduction <add>, %516, %cst_165 [1] : vector<1x3xf32> to vector<1xf32>
    %518 = vector.shape_cast %517 : vector<1xf32> to vector<1x1xf32>
    %519 = math.log %518 : vector<1x1xf32>
    %520 = arith.addf %513, %519 : vector<1x1xf32>
    %521 = vector.broadcast %520 : vector<1x1xf32> to vector<1x3xf32>
    %522 = arith.subf %511, %521 : vector<1x3xf32>
    %c0_166 = arith.constant 0 : index
    %c0_167 = arith.constant 0 : index
    %c0_168 = arith.constant 0 : index
    %523 = vector.load %arg11[%c0_166, %c0_167, %c0_168] : memref<1x1x3xf32, #tpu.memory_space<vmem>>, vector<1x1x3xf32>
    %524 = vector.shape_cast %523 : vector<1x1x3xf32> to vector<1x3xf32>
    %525 = vector.shape_cast %522 : vector<1x3xf32> to vector<1x1x3xf32>
    tpu.vector_store %arg11[%c0_166, %c0_167, %c0_168], %525 {strides = array<i32>} : memref<1x1x3xf32, #tpu.memory_space<vmem>>, vector<1x1x3xf32>,
    return
  }
  func.func @transform_0(%arg0: i32) -> (i32, i32, i32, i32) {
    %c0_i32 = arith.constant 0 : i32
    %c0_i32_0 = arith.constant 0 : i32
    %c0_i32_1 = arith.constant 0 : i32
    %c0_i32_2 = arith.constant 0 : i32
    return %arg0, %c0_i32, %c0_i32_0, %c0_i32_1 : i32, i32, i32, i32
  }
  func.func @transform_1(%arg0: i32) -> (i32, i32) {
    %c0_i32 = arith.constant 0 : i32
    %c0_i32_0 = arith.constant 0 : i32
    %c0_i32_1 = arith.constant 0 : i32
    return %c0_i32, %c0_i32_0 : i32, i32
  }
  func.func @transform_2(%arg0: i32) -> (i32, i32) {
    %c0_i32 = arith.constant 0 : i32
    %c0_i32_0 = arith.constant 0 : i32
    %c0_i32_1 = arith.constant 0 : i32
    return %c0_i32, %c0_i32_0 : i32, i32
  }
  func.func @transform_3(%arg0: i32) -> (i32, i32) {
    %c0_i32 = arith.constant 0 : i32
    %c0_i32_0 = arith.constant 0 : i32
    %c0_i32_1 = arith.constant 0 : i32
    return %c0_i32, %c0_i32_0 : i32, i32
  }
  func.func @transform_4(%arg0: i32) -> (i32, i32, i32) {
    %c0_i32 = arith.constant 0 : i32
    %c0_i32_0 = arith.constant 0 : i32
    %c0_i32_1 = arith.constant 0 : i32
    %c0_i32_2 = arith.constant 0 : i32
    return %c0_i32, %c0_i32_0, %c0_i32_1 : i32, i32, i32
  }
  func.func @transform_5(%arg0: i32) -> (i32, i32) {
    %c0_i32 = arith.constant 0 : i32
    %c0_i32_0 = arith.constant 0 : i32
    %c0_i32_1 = arith.constant 0 : i32
    return %c0_i32, %c0_i32_0 : i32, i32
  }
  func.func @transform_6(%arg0: i32) -> (i32, i32, i32) {
    %c0_i32 = arith.constant 0 : i32
    %c0_i32_0 = arith.constant 0 : i32
    %c0_i32_1 = arith.constant 0 : i32
    %c0_i32_2 = arith.constant 0 : i32
    return %c0_i32, %c0_i32_0, %c0_i32_1 : i32, i32, i32
  }
  func.func @transform_7(%arg0: i32) -> (i32, i32) {
    %c0_i32 = arith.constant 0 : i32
    %c0_i32_0 = arith.constant 0 : i32
    %c0_i32_1 = arith.constant 0 : i32
    return %c0_i32, %c0_i32_0 : i32, i32
  }
  func.func @transform_8(%arg0: i32) -> (i32, i32) {
    %c0_i32 = arith.constant 0 : i32
    %c0_i32_0 = arith.constant 0 : i32
    %c0_i32_1 = arith.constant 0 : i32
    return %c0_i32, %c0_i32_0 : i32, i32
  }
  func.func @transform_9(%arg0: i32) -> (i32, i32) {
    %c0_i32 = arith.constant 0 : i32
    %c0_i32_0 = arith.constant 0 : i32
    %c0_i32_1 = arith.constant 0 : i32
    return %c0_i32, %c0_i32_0 : i32, i32
  }
  func.func @transform_10(%arg0: i32) -> (i32, i32, i32) {
    %c0_i32 = arith.constant 0 : i32
    %c0_i32_0 = arith.constant 0 : i32
    %c0_i32_1 = arith.constant 0 : i32
    return %arg0, %c0_i32, %c0_i32_0 : i32, i32, i32
  }
}

</mosaic_0001>

<llo_original>
// kernel: freq_cnn_forward.1
$region0: #{freq_cnn_forward.1}
  #allocation0 [shape = 'u32[]', space=smem, size = 0x4, offset = 0x4, fixed_abs, tag = 'smem constant byte address 0x4 - core index']
  #allocation1 [shape = 'u32[144,128]{1,0:T(1,128)}', space=vmem, size = 0x12000, scoped, tag = 'internal scratch']
  #allocation2 [shape = 'f32[24,896]{1,0:T(8,128)}', space=vmem, size = 0x15000, scoped, tag = 'scratch operand']
  #allocation3 [shape = 'f32[8,180]{1,0:T(8,128)}', space=vmem, size = 0x2000, scoped, tag = 'scratch operand']
  %s0 = inlined_call_operand.vmem [shape: f32[2,4,128,32], index: 0, kind: input, shape index: {}]
  %s1 = inlined_call_operand.vmem [shape: f32[168,128], index: 1, kind: input, shape index: {}]
  %s2 = inlined_call_operand.vmem [shape: bf16[896,750], index: 2, kind: input, shape index: {}]
  %s3 = inlined_call_operand.vmem [shape: f32[1,750], index: 3, kind: input, shape index: {}]
  %s4 = inlined_call_operand.vmem [shape: f32[3,180,60], index: 4, kind: input, shape index: {}]
  %s5 = inlined_call_operand.vmem [shape: f32[1,60], index: 5, kind: input, shape index: {}]
  %s6 = inlined_call_operand.vmem [shape: f32[3,30,4], index: 6, kind: input, shape index: {}]
  %s7 = inlined_call_operand.vmem [shape: f32[1,4], index: 7, kind: input, shape index: {}]
  %s8 = inlined_call_operand.vmem [shape: f32[4,3], index: 8, kind: input, shape index: {}]
  %s9 = inlined_call_operand.vmem [shape: f32[1,3], index: 9, kind: input, shape index: {}]
  %s10 = inlined_call_operand.hbm [shape: f32[2,1,3], index: 10, kind: output, shape index: {}]
  %s11 = sld [smem:[#allocation0]]
  $region73: #{freq_cnn_forward.1} parent=0
    _
  %s13 = ssub.s32 1, %s11
  %s14 = scalar_select 0, %s13, %s11
  $region1: #{freq_cnn_forward.1} parent=0
    #allocation4 [shape = 'u8[1024]{0}', space=vmem, size = 0x400, scoped, tag = 'output window, operand 0']
    #allocation5 [shape = 's32[2]{0}', space=sflag, size = 0x8, scoped, tag = 'scoped memory for freq_cnn_forward.1']
    %15 = vsyncpa [#allocation5], 0
    %s16 = scalar_lea.sflag [#allocation5], 1
    %17 = vsyncpa %s16, 0
    loop: start=0, step=1, limit=4
    $region2: #{freq_cnn_forward.1} parent=1 // loop_pre_header
      _
    $region3: #{freq_cnn_forward.1} parent=1 // loop_header
      %s19 = sphi 0, %s23
      %p20 = scmp.ge.s32.totalorder %s19, 4
      %s29 = sphi 0, %s31
      %s32 = sphi 0, %s29
      %s33 = sphi 0, %s32
      %s49 = sphi 0, %s33
      %s53 = sphi 0, %s53
      %s55 = sphi 0, %s53
      %s56 = sphi 0, %s55
      %s70 = sphi 0, %s56
      %s74 = sphi 0, %s74
      %s76 = sphi 0, %s74
      %s77 = sphi 0, %s76
      %s91 = sphi 0, %s77
      %s95 = sphi 0, %s95
      %s97 = sphi 0, %s95
      %s98 = sphi 0, %s97
      %s112 = sphi 0, %s98
      %s116 = sphi 0, %s116
      %s118 = sphi 0, %s116
      %s119 = sphi 0, %s118
      %s133 = sphi 0, %s119
      %s137 = sphi 0, %s137
      %s139 = sphi 0, %s137
      %s140 = sphi 0, %s139
      %s154 = sphi 0, %s140
      %s158 = sphi 0, %s158
      %s160 = sphi 0, %s158
      %s161 = sphi 0, %s160
      %s175 = sphi 0, %s161
      %s179 = sphi 0, %s179
      %s181 = sphi 0, %s179
      %s182 = sphi 0, %s181
      %s196 = sphi 0, %s182
      %s200 = sphi 0, %s200
      %s202 = sphi 0, %s200
      %s203 = sphi 0, %s202
      %s217 = sphi 0, %s203
      %s221 = sphi 0, %s221
      %s223 = sphi 0, %s221
      %s224 = sphi 0, %s223
      %s238 = sphi 0, %s224
      %s244 = sphi 0, %s246
      %s247 = sphi 0, %s244
      %s248 = sphi 0, %s247
      %s264 = sphi 0, %s248
    $region4: #{freq_cnn_forward.1} parent=1 // loop_header_branch
      %22 = sbr.rel (%p20) target = $region8
    $region5: #{freq_cnn_forward.1} parent=1 // loop_body
      %s24 = ssub.s32 %s19, 1
      %s25 = ssub.s32 %s19, 2
      %s26 = sadd.s32 %s19, 1
      %s27 = ssub.s32 %s19, %s26
      %p28 = scmp.eq.s32.totalorder %s27, 0
      %s30 = sadd.s32 %s29, 1
      %s31 = scalar_select %p28, %s29, %s30
      %p34 = pneg %p28
      %p35 = scmp.eq.s32.totalorder %s19, 1
      %p36 = por %p34, %p35
      %p37 = scmp.ne.s32.totalorder %s29, %s32
      %p38 = scmp.eq.s32.totalorder %s19, 0
      %p39 = por %p37, %p38
      %p40 = scmp.ne.s32.totalorder %s29, %s32
      %p41 = scmp.eq.s32.totalorder %s24, 1
      %p42 = por %p40, %p41
      %p43 = scmp.ne.s32.totalorder %s32, %s33
      %p44 = scmp.eq.s32.totalorder %s24, 0
      %p45 = por %p43, %p44
      %p46 = scmp.ne.s32.totalorder %s32, %s33
      %p47 = scmp.eq.s32.totalorder %s25, 1
      %p48 = por %p46, %p47
      %p50 = scmp.ne.s32.totalorder %s33, %s49
      %p51 = scmp.eq.s32.totalorder %s25, 0
      %p52 = por %p50, %p51
      %s54 = sadd.s32 %s53, 1
      %p57 = scmp.eq.s32.totalorder %s19, 1
      %p58 = scmp.ne.s32.totalorder %s53, %s55
      %p59 = scmp.eq.s32.totalorder %s19, 0
      %p60 = por %p58, %p59
      %p61 = scmp.ne.s32.totalorder %s53, %s55
      %p62 = scmp.eq.s32.totalorder %s24, 1
      %p63 = por %p61, %p62
      %p64 = scmp.ne.s32.totalorder %s55, %s56
      %p65 = scmp.eq.s32.totalorder %s24, 0
      %p66 = por %p64, %p65
      %p67 = scmp.ne.s32.totalorder %s55, %s56
      %p68 = scmp.eq.s32.totalorder %s25, 1
      %p69 = por %p67, %p68
      %p71 = scmp.ne.s32.totalorder %s56, %s70
      %p72 = scmp.eq.s32.totalorder %s25, 0
      %p73 = por %p71, %p72
      %s75 = sadd.s32 %s74, 1
      %p78 = scmp.eq.s32.totalorder %s19, 1
      %p79 = scmp.ne.s32.totalorder %s74, %s76
      %p80 = scmp.eq.s32.totalorder %s19, 0
      %p81 = por %p79, %p80
      %p82 = scmp.ne.s32.totalorder %s74, %s76
      %p83 = scmp.eq.s32.totalorder %s24, 1
      %p84 = por %p82, %p83
      %p85 = scmp.ne.s32.totalorder %s76, %s77
      %p86 = scmp.eq.s32.totalorder %s24, 0
      %p87 = por %p85, %p86
      %p88 = scmp.ne.s32.totalorder %s76, %s77
      %p89 = scmp.eq.s32.totalorder %s25, 1
      %p90 = por %p88, %p89
      %p92 = scmp.ne.s32.totalorder %s77, %s91
      %p93 = scmp.eq.s32.totalorder %s25, 0
      %p94 = por %p92, %p93
      %s96 = sadd.s32 %s95, 1
      %p99 = scmp.eq.s32.totalorder %s19, 1
      %p100 = scmp.ne.s32.totalorder %s95, %s97
      %p101 = scmp.eq.s32.totalorder %s19, 0
      %p102 = por %p100, %p101
      %p103 = scmp.ne.s32.totalorder %s95, %s97
      %p104 = scmp.eq.s32.totalorder %s24, 1
      %p105 = por %p103, %p104
      %p106 = scmp.ne.s32.totalorder %s97, %s98
      %p107 = scmp.eq.s32.totalorder %s24, 0
      %p108 = por %p106, %p107
      %p109 = scmp.ne.s32.totalorder %s97, %s98
      %p110 = scmp.eq.s32.totalorder %s25, 1
      %p111 = por %p109, %p110
      %p113 = scmp.ne.s32.totalorder %s98, %s112
      %p114 = scmp.eq.s32.totalorder %s25, 0
      %p115 = por %p113, %p114
      %s117 = sadd.s32 %s116, 1
      %p120 = scmp.eq.s32.totalorder %s19, 1
      %p121 = scmp.ne.s32.totalorder %s116, %s118
      %p122 = scmp.eq.s32.totalorder %s19, 0
      %p123 = por %p121, %p122
      %p124 = scmp.ne.s32.totalorder %s116, %s118
      %p125 = scmp.eq.s32.totalorder %s24, 1
      %p126 = por %p124, %p125
      %p127 = scmp.ne.s32.totalorder %s118, %s119
      %p128 = scmp.eq.s32.totalorder %s24, 0
      %p129 = por %p127, %p128
      %p130 = scmp.ne.s32.totalorder %s118, %s119
      %p131 = scmp.eq.s32.totalorder %s25, 1
      %p132 = por %p130, %p131
      %p134 = scmp.ne.s32.totalorder %s119, %s133
      %p135 = scmp.eq.s32.totalorder %s25, 0
      %p136 = por %p134, %p135
      %s138 = sadd.s32 %s137, 1
      %p141 = scmp.eq.s32.totalorder %s19, 1
      %p142 = scmp.ne.s32.totalorder %s137, %s139
      %p143 = scmp.eq.s32.totalorder %s19, 0
      %p144 = por %p142, %p143
      %p145 = scmp.ne.s32.totalorder %s137, %s139
      %p146 = scmp.eq.s32.totalorder %s24, 1
      %p147 = por %p145, %p146
      %p148 = scmp.ne.s32.totalorder %s139, %s140
      %p149 = scmp.eq.s32.totalorder %s24, 0
      %p150 = por %p148, %p149
      %p151 = scmp.ne.s32.totalorder %s139, %s140
      %p152 = scmp.eq.s32.totalorder %s25, 1
      %p153 = por %p151, %p152
      %p155 = scmp.ne.s32.totalorder %s140, %s154
      %p156 = scmp.eq.s32.totalorder %s25, 0
      %p157 = por %p155, %p156
      %s159 = sadd.s32 %s158, 1
      %p162 = scmp.eq.s32.totalorder %s19, 1
      %p163 = scmp.ne.s32.totalorder %s158, %s160
      %p164 = scmp.eq.s32.totalorder %s19, 0
      %p165 = por %p163, %p164
      %p166 = scmp.ne.s32.totalorder %s158, %s160
      %p167 = scmp.eq.s32.totalorder %s24, 1
      %p168 = por %p166, %p167
      %p169 = scmp.ne.s32.totalorder %s160, %s161
      %p170 = scmp.eq.s32.totalorder %s24, 0
      %p171 = por %p169, %p170
      %p172 = scmp.ne.s32.totalorder %s160, %s161
      %p173 = scmp.eq.s32.totalorder %s25, 1
      %p174 = por %p172, %p173
      %p176 = scmp.ne.s32.totalorder %s161, %s175
      %p177 = scmp.eq.s32.totalorder %s25, 0
      %p178 = por %p176, %p177
      %s180 = sadd.s32 %s179, 1
      %p183 = scmp.eq.s32.totalorder %s19, 1
      %p184 = scmp.ne.s32.totalorder %s179, %s181
      %p185 = scmp.eq.s32.totalorder %s19, 0
      %p186 = por %p184, %p185
      %p187 = scmp.ne.s32.totalorder %s179, %s181
      %p188 = scmp.eq.s32.totalorder %s24, 1
      %p189 = por %p187, %p188
      %p190 = scmp.ne.s32.totalorder %s181, %s182
      %p191 = scmp.eq.s32.totalorder %s24, 0
      %p192 = por %p190, %p191
      %p193 = scmp.ne.s32.totalorder %s181, %s182
      %p194 = scmp.eq.s32.totalorder %s25, 1
      %p195 = por %p193, %p194
      %p197 = scmp.ne.s32.totalorder %s182, %s196
      %p198 = scmp.eq.s32.totalorder %s25, 0
      %p199 = por %p197, %p198
      %s201 = sadd.s32 %s200, 1
      %p204 = scmp.eq.s32.totalorder %s19, 1
      %p205 = scmp.ne.s32.totalorder %s200, %s202
      %p206 = scmp.eq.s32.totalorder %s19, 0
      %p207 = por %p205, %p206
      %p208 = scmp.ne.s32.totalorder %s200, %s202
      %p209 = scmp.eq.s32.totalorder %s24, 1
      %p210 = por %p208, %p209
      %p211 = scmp.ne.s32.totalorder %s202, %s203
      %p212 = scmp.eq.s32.totalorder %s24, 0
      %p213 = por %p211, %p212
      %p214 = scmp.ne.s32.totalorder %s202, %s203
      %p215 = scmp.eq.s32.totalorder %s25, 1
      %p216 = por %p214, %p215
      %p218 = scmp.ne.s32.totalorder %s203, %s217
      %p219 = scmp.eq.s32.totalorder %s25, 0
      %p220 = por %p218, %p219
      %s222 = sadd.s32 %s221, 1
      %p225 = scmp.eq.s32.totalorder %s19, 1
      %p226 = scmp.ne.s32.totalorder %s221, %s223
      %p227 = scmp.eq.s32.totalorder %s19, 0
      %p228 = por %p226, %p227
      %p229 = scmp.ne.s32.totalorder %s221, %s223
      %p230 = scmp.eq.s32.totalorder %s24, 1
      %p231 = por %p229, %p230
      %p232 = scmp.ne.s32.totalorder %s223, %s224
      %p233 = scmp.eq.s32.totalorder %s24, 0
      %p234 = por %p232, %p233
      %p235 = scmp.ne.s32.totalorder %s223, %s224
      %p236 = scmp.eq.s32.totalorder %s25, 1
      %p237 = por %p235, %p236
      %p239 = scmp.ne.s32.totalorder %s224, %s238
      %p240 = scmp.eq.s32.totalorder %s25, 0
      %p241 = por %p239, %p240
      %s242 = ssub.s32 %s19, %s26
      %p243 = scmp.eq.s32.totalorder %s242, 0
      %s245 = sadd.s32 %s244, 1
      %s246 = scalar_select %p243, %s244, %s245
      %p249 = pneg %p243
      %p250 = scmp.eq.s32.totalorder %s19, 1
      %p251 = por %p249, %p250
      %p252 = scmp.ne.s32.totalorder %s244, %s247
      %p253 = scmp.eq.s32.totalorder %s19, 0
      %p254 = por %p252, %p253
      %p255 = scmp.ne.s32.totalorder %s244, %s247
      %p256 = scmp.eq.s32.totalorder %s24, 1
      %p257 = por %p255, %p256
      %p258 = scmp.ne.s32.totalorder %s247, %s248
      %p259 = scmp.eq.s32.totalorder %s24, 0
      %p260 = por %p258, %p259
      %p261 = scmp.ne.s32.totalorder %s247, %s248
      %p262 = scmp.eq.s32.totalorder %s25, 1
      %p263 = por %p261, %p262
      %p265 = scmp.ne.s32.totalorder %s248, %s264
      %p266 = scmp.eq.s32.totalorder %s25, 0
      %p267 = por %p265, %p266
      %p268 = scmp.le.s32.totalorder 1, %s19
      %p269 = scmp.lt.s32.totalorder %s19, 3
      %p270 = pnand %p268, %p269
      %p271 = pneg %p270
      // Predicated region
      $region9: #{freq_cnn_forward.1} parent=5 // pred_check
        _
      $region10: #{freq_cnn_forward.1} parent=5 // pred_check_branch
        %273 = sbr.rel (%p270) target = $region12
      $region11: #{freq_cnn_forward.1} parent=5 // pred_region
        %s274 = ssub.s32 %s19, 1
        // Predicated region
        $region13: #{freq_cnn_forward.1} parent=11 // pred_check
          %p275 = pneg %p66
        $region14: #{freq_cnn_forward.1} parent=11 // pred_check_branch
          %277 = sbr.rel (%p275) target = $region16
        $region15: #{freq_cnn_forward.1} parent=11 // pred_region
          _
        $region16: #{freq_cnn_forward.1} parent=11 // pred_fallthru
          _
        // Predicated region
        $region17: #{freq_cnn_forward.1} parent=11 // pred_check
          %p278 = pneg %p87
        $region18: #{freq_cnn_forward.1} parent=11 // pred_check_branch
          %280 = sbr.rel (%p278) target = $region20
        $region19: #{freq_cnn_forward.1} parent=11 // pred_region
          _
        $region20: #{freq_cnn_forward.1} parent=11 // pred_fallthru
          _
        // Predicated region
        $region21: #{freq_cnn_forward.1} parent=11 // pred_check
          %p281 = pneg %p108
        $region22: #{freq_cnn_forward.1} parent=11 // pred_check_branch
          %283 = sbr.rel (%p281) target = $region24
        $region23: #{freq_cnn_forward.1} parent=11 // pred_region
          _
        $region24: #{freq_cnn_forward.1} parent=11 // pred_fallthru
          _
        // Predicated region
        $region25: #{freq_cnn_forward.1} parent=11 // pred_check
          %p284 = pneg %p129
        $region26: #{freq_cnn_forward.1} parent=11 // pred_check_branch
          %286 = sbr.rel (%p284) target = $region28
        $region27: #{freq_cnn_forward.1} parent=11 // pred_region
          _
        $region28: #{freq_cnn_forward.1} parent=11 // pred_fallthru
          _
        // Predicated region
        $region29: #{freq_cnn_forward.1} parent=11 // pred_check
          %p287 = pneg %p150
        $region30: #{freq_cnn_forward.1} parent=11 // pred_check_branch
          %289 = sbr.rel (%p287) target = $region32
        $region31: #{freq_cnn_forward.1} parent=11 // pred_region
          _
        $region32: #{freq_cnn_forward.1} parent=11 // pred_fallthru
          _
        // Predicated region
        $region33: #{freq_cnn_forward.1} parent=11 // pred_check
          %p290 = pneg %p171
        $region34: #{freq_cnn_forward.1} parent=11 // pred_check_branch
          %292 = sbr.rel (%p290) target = $region36
        $region35: #{freq_cnn_forward.1} parent=11 // pred_region
          _
        $region36: #{freq_cnn_forward.1} parent=11 // pred_fallthru
          _
        // Predicated region
        $region37: #{freq_cnn_forward.1} parent=11 // pred_check
          %p293 = pneg %p192
        $region38: #{freq_cnn_forward.1} parent=11 // pred_check_branch
          %295 = sbr.rel (%p293) target = $region40
        $region39: #{freq_cnn_forward.1} parent=11 // pred_region
          _
        $region40: #{freq_cnn_forward.1} parent=11 // pred_fallthru
          _
        // Predicated region
        $region41: #{freq_cnn_forward.1} parent=11 // pred_check
          %p296 = pneg %p213
        $region42: #{freq_cnn_forward.1} parent=11 // pred_check_branch
          %298 = sbr.rel (%p296) target = $region44
        $region43: #{freq_cnn_forward.1} parent=11 // pred_region
          _
        $region44: #{freq_cnn_forward.1} parent=11 // pred_fallthru
          _
        // Predicated region
        $region45: #{freq_cnn_forward.1} parent=11 // pred_check
          %p299 = pneg %p234
        $region46: #{freq_cnn_forward.1} parent=11 // pred_check_branch
          %301 = sbr.rel (%p299) target = $region48
        $region47: #{freq_cnn_forward.1} parent=11 // pred_region
          _
        $region48: #{freq_cnn_forward.1} parent=11 // pred_fallthru
          _
      $region12: #{freq_cnn_forward.1} parent=5 // pred_fallthru
        _
      %p302 = scmp.lt.s32.totalorder %s19, 2
      // Predicated region
      $region49: #{freq_cnn_forward.1} parent=5 // pred_check
        %p303 = pneg %p302
      $region50: #{freq_cnn_forward.1} parent=5 // pred_check_branch
        %305 = sbr.rel (%p303) target = $region52
      $region51: #{freq_cnn_forward.1} parent=5 // pred_region
        // Predicated region
        $region53: #{freq_cnn_forward.1} parent=51 // pred_check
          %p306 = pneg %p39
        $region54: #{freq_cnn_forward.1} parent=51 // pred_check_branch
          %308 = sbr.rel (%p306) target = $region56
        $region55: #{freq_cnn_forward.1} parent=51 // pred_region
          %p309 = scmp.lt.s32.totalorder %s19, 1
          %s310 = scalar_select %p309, %s19, 1
          %s311 = smul.addr %s310, 64
          %s312 = smul.addr %s311, 8
          %s313 = scalar_lea.vmem %s0, %s312
        $region56: #{freq_cnn_forward.1} parent=51 // pred_fallthru
          _
      $region52: #{freq_cnn_forward.1} parent=5 // pred_fallthru
        _
      %p314 = scmp.le.s32.totalorder 1, %s19
      %p315 = scmp.lt.s32.totalorder %s19, 3
      %p316 = pnand %p314, %p315
      %p317 = pneg %p316
      // Predicated region
      $region57: #{freq_cnn_forward.1} parent=5 // pred_check
        _
      $region58: #{freq_cnn_forward.1} parent=5 // pred_check_branch
        %319 = sbr.rel (%p316) target = $region60
      $region59: #{freq_cnn_forward.1} parent=5 // pred_region
        %s320 = ssub.s32 %s19, 1
        %p321 = scmp.lt.s32.totalorder %s24, 1
        %s322 = scalar_select %p321, %s24, 1
        %s323 = smul.addr %s322, 64
        %s324 = smul.addr %s323, 8
        %s325 = scalar_lea.vmem %s0, %s324
        %p326 = pneg %p45
        %p327 = pneg %p42
        %p328 = pneg %p66
        %p329 = pneg %p63
        %p330 = pneg %p87
        %p331 = pneg %p84
        %p332 = pneg %p108
        %p333 = pneg %p105
        %p334 = pneg %p129
        %p335 = pneg %p126
        %p336 = pneg %p150
        %p337 = pneg %p147
        %p338 = pneg %p171
        %p339 = pneg %p168
        %p340 = pneg %p192
        %p341 = pneg %p189
        %p342 = pneg %p213
        %p343 = pneg %p210
        %p344 = pneg %p234
        %p345 = pneg %p231
        %p346 = pneg %p260
        %p347 = pneg %p257
        %s348 = sand.u32 %s247, 1
        %s349 = scalar_lea.sflag [#allocation5], %s348
        %s350 = sand.u32 %s247, 1
        %s351 = scalar_lea.vmem [#allocation4], %s350
        %p352 = scmp.lt.s32.totalorder %s24, 1
        %s353 = scalar_select %p352, %s24, 1
        %s354 = smul.addr %s353, 64
        %s355 = smul.addr %s354, 8
        %s356 = scalar_lea.vmem %s0, %s355
        %v358 = vld [vmem:[%s1] sm:$0xff]
        %v359 = vld [vmem:[%s1 + $0x8] sm:$0xff]
        %v360 = vld [vmem:[%s1 + $0x10] sm:$0xff]
        %v361 = vld [vmem:[%s1 + $0x18] sm:$0xff]
        %v362 = vld [vmem:[%s1 + $0x20] sm:$0xff]
        %v363 = vld [vmem:[%s1 + $0x28] sm:$0xff]
        %v364 = vld [vmem:[%s1 + $0x30] sm:$0xff]
        %v365 = vld [vmem:[%s1 + $0x38] sm:$0xff]
        %v366 = vld [vmem:[%s1 + $0x40] sm:$0xff]
        %v367 = vld [vmem:[%s1 + $0x48] sm:$0xff]
        %v368 = vld [vmem:[%s1 + $0x50] sm:$0xff]
        %v369 = vld [vmem:[%s1 + $0x58] sm:$0xff]
        %v370 = vld [vmem:[%s1 + $0x60] sm:$0xff]
        %v371 = vld [vmem:[%s1 + $0x68] sm:$0xff]
        %v372 = vld [vmem:[%s1 + $0x70] sm:$0xff]
        %v373 = vld [vmem:[%s1 + $0x78] sm:$0xff]
        %v374 = vld [vmem:[%s1 + $0x80] sm:$0xff]
        %v375 = vld [vmem:[%s1 + $0x88] sm:$0xff]
        %v376 = vld [vmem:[%s1 + $0x90] sm:$0xff]
        %v377 = vld [vmem:[%s1 + $0x98] sm:$0xff]
        %v378 = vld [vmem:[%s1 + $0xa0] sm:$0xff]
        %v379 = vld [vmem:[%s356] sm:$0xff]
        %v380 = vld [vmem:[%s356 + $0x8] sm:$0xff]
        %v381 = vld [vmem:[%s356 + $0x10] sm:$0xff]
        %v382 = vld [vmem:[%s356 + $0x18] sm:$0xff]
        %v383 = vld [vmem:[%s356 + $0x20] sm:$0xff]
        %v384 = vld [vmem:[%s356 + $0x28] sm:$0xff]
        %v385 = vld [vmem:[%s356 + $0x30] sm:$0xff]
        %v386 = vld [vmem:[%s356 + $0x38] sm:$0xff]
        %v387 = vld [vmem:[%s356 + $0x40] sm:$0xff]
        %v388 = vld [vmem:[%s356 + $0x48] sm:$0xff]
        %v389 = vld [vmem:[%s356 + $0x50] sm:$0xff]
        %v390 = vld [vmem:[%s356 + $0x58] sm:$0xff]
        %v391 = vld [vmem:[%s356 + $0x60] sm:$0xff]
        %v392 = vld [vmem:[%s356 + $0x68] sm:$0xff]
        %v393 = vld [vmem:[%s356 + $0x70] sm:$0xff]
        %v394 = vld [vmem:[%s356 + $0x78] sm:$0xff]
        %395 = vmatprep.subr.mxu0 0.0
        %396 = vmatpush1.msra.mxu0 %v379
        %397 = vmatprep.subr.mxu0 0.0
        %398 = vmatpush1.msra.mxu0 %v380
        %399 = vmatprep.subr.mxu0 0.0
        %400 = vmatpush1.msra.mxu0 %v381
        %401 = vmatprep.subr.mxu0 0.0
        %402 = vmatpush1.msra.mxu0 %v382
        %403 = vmatprep.subr.mxu0 0.0
        %404 = vmatpush1.msra.mxu0 %v383
        %405 = vmatprep.subr.mxu0 0.0
        %406 = vmatpush1.msra.mxu0 %v384
        %407 = vmatprep.subr.mxu0 0.0
        %408 = vmatpush1.msra.mxu0 %v385
        %409 = vmatprep.subr.mxu0 0.0
        %410 = vmatpush1.msra.mxu0 %v386
        %411 = vmatprep.subr.mxu0 0.0
        %412 = vmatpush1.msra.mxu0 %v387
        %413 = vmatprep.subr.mxu0 0.0
        %414 = vmatpush1.msra.mxu0 %v388
        %415 = vmatprep.subr.mxu0 0.0
        %416 = vmatpush1.msra.mxu0 %v389
        %417 = vmatprep.subr.mxu0 0.0
        %418 = vmatpush1.msra.mxu0 %v390
        %419 = vmatprep.subr.mxu0 0.0
        %420 = vmatpush1.msra.mxu0 %v391
        %421 = vmatprep.subr.mxu0 0.0
        %422 = vmatpush1.msra.mxu0 %v392
        %423 = vmatprep.subr.mxu0 0.0
        %424 = vmatpush1.msra.mxu0 %v393
        %425 = vmatprep.subr.mxu0 0.0
        %426 = vmatpush1.msra.mxu0 %v394
        %427 = vmatprep.subr.mxu0 0.0
        %428 = vmatpush1.msra.mxu0 0.0
        %429 = vmatprep.subr.mxu0 0.0
        %430 = vmatpush1.msra.mxu0 0.0
        %431 = vmatprep.subr.mxu0 0.0
        %432 = vmatpush1.msra.mxu0 0.0
        %433 = vmatprep.subr.mxu0 0.0
        %434 = vmatpush1.msra.mxu0 0.0
        %435 = vmatprep.subr.mxu0 0.0
        %436 = vmatpush1.msra.mxu0 0.0
        %437 = vmatprep.subr.mxu0 0.0
        %438 = vmatpush1.msra.mxu0 0.0
        %439 = vmatprep.subr.mxu0 0.0
        %440 = vmatpush1.msra.mxu0 0.0
        %441 = vmatprep.subr.mxu0 0.0
        %442 = vmatpush1.msra.mxu0 0.0
        %443 = vmatprep.subr.mxu0 0.0
        %444 = vmatpush1.msra.mxu0 0.0
        %445 = vmatprep.subr.mxu0 0.0
        %446 = vmatpush1.msra.mxu0 0.0
        %447 = vmatprep.subr.mxu0 0.0
        %448 = vmatpush1.msra.mxu0 0.0
        %449 = vmatprep.subr.mxu0 0.0
        %450 = vmatpush1.msra.mxu0 0.0
        %451 = vmatprep.subr.mxu0 0.0
        %452 = vmatpush1.msra.mxu0 0.0
        %453 = vmatprep.subr.mxu0 0.0
        %454 = vmatpush1.msra.mxu0 0.0
        %455 = vmatprep.subr.mxu0 0.0
        %456 = vmatpush1.msra.mxu0 0.0
        %457 = vmatprep.subr.mxu0 0.0
        %458 = vmatpush1.msra.mxu0 0.0
        %459 = vmatprep.mubr.f32.mxu0 0.0
        %460 = vmatmul.mubr.f32.gmra.mrb[0].mxu0 %v358
        %v461 = vpop.f32.mrb[0].mxu0
        %v462 = vadd.f32 0.0, %v461
        %v463 = vpop.f32.mrb[0].mxu0
        %464 = vmatprep.mubr.f32.mxu0 0.0
        %465 = vmatmul.mubr.f32.gmra.mrb[0].mxu0 %v359
        %v466 = vpop.f32.mrb[0].mxu0
        %v467 = vadd.f32 0.0, %v466
        %v468 = vpop.f32.mrb[0].mxu0
        %469 = vmatprep.mubr.f32.mxu0 0.0
        %470 = vmatmul.mubr.f32.gmra.mrb[0].mxu0 %v360
        %v471 = vpop.f32.mrb[0].mxu0
        %v472 = vadd.f32 0.0, %v471
        %v473 = vpop.f32.mrb[0].mxu0
        %474 = vmatprep.mubr.f32.mxu0 0.0
        %475 = vmatmul.mubr.f32.gmra.mrb[0].mxu0 %v361
        %v476 = vpop.f32.mrb[0].mxu0
        %v477 = vadd.f32 0.0, %v476
        %v478 = vpop.f32.mrb[0].mxu0
        %479 = vmatprep.mubr.f32.mxu0 0.0
        %480 = vmatmul.mubr.f32.gmra.mrb[0].mxu0 %v362
        %v481 = vpop.f32.mrb[0].mxu0
        %v482 = vadd.f32 0.0, %v481
        %v483 = vpop.f32.mrb[0].mxu0
        %484 = vmatprep.mubr.f32.mxu0 0.0
        %485 = vmatmul.mubr.f32.gmra.mrb[0].mxu0 %v363
        %v486 = vpop.f32.mrb[0].mxu0
        %v487 = vadd.f32 0.0, %v486
        %v488 = vpop.f32.mrb[0].mxu0
        %489 = vmatprep.mubr.f32.mxu0 0.0
        %490 = vmatmul.mubr.f32.gmra.mrb[0].mxu0 %v364
        %v491 = vpop.f32.mrb[0].mxu0
        %v492 = vadd.f32 0.0, %v491
        %v493 = vpop.f32.mrb[0].mxu0
        %494 = vmatprep.mubr.f32.mxu0 0.0
        %495 = vmatmul.mubr.f32.gmra.mrb[0].mxu0 %v365
        %v496 = vpop.f32.mrb[0].mxu0
        %v497 = vadd.f32 0.0, %v496
        %v498 = vpop.f32.mrb[0].mxu0
        %499 = vmatprep.mubr.f32.mxu0 0.0
        %500 = vmatmul.mubr.f32.gmra.mrb[0].mxu0 %v366
        %v501 = vpop.f32.mrb[0].mxu0
        %v502 = vadd.f32 0.0, %v501
        %v503 = vpop.f32.mrb[0].mxu0
        %504 = vmatprep.mubr.f32.mxu0 0.0
        %505 = vmatmul.mubr.f32.gmra.mrb[0].mxu0 %v367
        %v506 = vpop.f32.mrb[0].mxu0
        %v507 = vadd.f32 0.0, %v506
        %v508 = vpop.f32.mrb[0].mxu0
        %509 = vmatprep.mubr.f32.mxu0 0.0
        %510 = vmatmul.mubr.f32.gmra.mrb[0].mxu0 %v368
        %v511 = vpop.f32.mrb[0].mxu0
        %v512 = vadd.f32 0.0, %v511
        %v513 = vpop.f32.mrb[0].mxu0
        %514 = vmatprep.mubr.f32.mxu0 0.0
        %515 = vmatmul.mubr.f32.gmra.mrb[0].mxu0 %v369
        %v516 = vpop.f32.mrb[0].mxu0
        %v517 = vadd.f32 0.0, %v516
        %v518 = vpop.f32.mrb[0].mxu0
        %519 = vmatprep.mubr.f32.mxu0 0.0
        %520 = vmatmul.mubr.f32.gmra.mrb[0].mxu0 %v370
        %v521 = vpop.f32.mrb[0].mxu0
        %v522 = vadd.f32 0.0, %v521
        %v523 = vpop.f32.mrb[0].mxu0
        %524 = vmatprep.mubr.f32.mxu0 0.0
        %525 = vmatmul.mubr.f32.gmra.mrb[0].mxu0 %v371
        %v526 = vpop.f32.mrb[0].mxu0
        %v527 = vadd.f32 0.0, %v526
        %v528 = vpop.f32.mrb[0].mxu0
        %529 = vmatprep.mubr.f32.mxu0 0.0
        %530 = vmatmul.mubr.f32.gmra.mrb[0].mxu0 %v372
        %v531 = vpop.f32.mrb[0].mxu0
        %v532 = vadd.f32 0.0, %v531
        %v533 = vpop.f32.mrb[0].mxu0
        %534 = vmatprep.mubr.f32.mxu0 0.0
        %535 = vmatmul.mubr.f32.gmra.mrb[0].mxu0 %v373
        %v536 = vpop.f32.mrb[0].mxu0
        %v537 = vadd.f32 0.0, %v536
        %v538 = vpop.f32.mrb[0].mxu0
        %539 = vmatprep.mubr.f32.mxu0 0.0
        %540 = vmatmul.mubr.f32.gmra.mrb[0].mxu0 %v374
        %v541 = vpop.f32.mrb[0].mxu0
        %v542 = vadd.f32 0.0, %v541
        %v543 = vpop.f32.mrb[0].mxu0
        %544 = vmatprep.mubr.f32.mxu0 0.0
        %545 = vmatmul.mubr.f32.gmra.mrb[0].mxu0 %v375
        %v546 = vpop.f32.mrb[0].mxu0
        %v547 = vadd.f32 0.0, %v546
        %v548 = vpop.f32.mrb[0].mxu0
        %549 = vmatprep.mubr.f32.mxu0 0.0
        %550 = vmatmul.mubr.f32.gmra.mrb[0].mxu0 %v376
        %v551 = vpop.f32.mrb[0].mxu0
        %v552 = vadd.f32 0.0, %v551
        %v553 = vpop.f32.mrb[0].mxu0
        %554 = vmatprep.mubr.f32.mxu0 0.0
        %555 = vmatmul.mubr.f32.gmra.mrb[0].mxu0 %v377
        %v556 = vpop.f32.mrb[0].mxu0
        %v557 = vadd.f32 0.0, %v556
        %v558 = vpop.f32.mrb[0].mxu0
        %559 = vmatprep.mubr.f32.mxu0 0.0
        %560 = vmatmul.mubr.f32.gmra.mrb[0].mxu0 %v378
        %v561 = vpop.f32.mrb[0].mxu0
        %v562 = vadd.f32 0.0, %v561
        %v563 = vpop.f32.mrb[0].mxu0
        %564 = vdwg.mxu0
        %vm565 = vcmask 261120
        %566 = vst.msk [vmem:[#allocation2] sm:$0xff] %vm565, %v462
        %567 = vst.msk [vmem:[#allocation2 + $0x38] sm:$0xff] %vm565, %v467
        %568 = vst.msk [vmem:[#allocation2 + $0x70] sm:$0xff] %vm565, %v472
        %572 = vrot.lane.b32.xlu0 %v477, 32
        %v573 = vpop.permute.xlu0 %572
        %574 = vrot.lane.b32.xlu0 %v482, 32
        %v575 = vpop.permute.xlu0 %574
        %576 = vrot.lane.b32.xlu0 %v487, 32
        %v577 = vpop.permute.xlu0 %576
        %vm581 = vcmask 523520
        %582 = vst.msk [vmem:[#allocation2] sm:$0xff] %vm581, %v573
        %583 = vst.msk [vmem:[#allocation2 + $0x38] sm:$0xff] %vm581, %v575
        %584 = vst.msk [vmem:[#allocation2 + $0x70] sm:$0xff] %vm581, %v577
        %588 = vrot.lane.b32.xlu0 %v492, 64
        %v589 = vpop.permute.xlu0 %588
        %590 = vrot.lane.b32.xlu0 %v497, 64
        %v591 = vpop.permute.xlu0 %590
        %592 = vrot.lane.b32.xlu0 %v502, 64
        %v593 = vpop.permute.xlu0 %592
        %vm597 = vcmask 785920
        %598 = vst.msk [vmem:[#allocation2] sm:$0xff] %vm597, %v589
        %599 = vst.msk [vmem:[#allocation2 + $0x38] sm:$0xff] %vm597, %v591
        %600 = vst.msk [vmem:[#allocation2 + $0x70] sm:$0xff] %vm597, %v593
        %604 = vrot.lane.b32.xlu0 %v507, 96
        %v605 = vpop.permute.xlu0 %604
        %606 = vrot.lane.b32.xlu0 %v512, 96
        %v607 = vpop.permute.xlu0 %606
        %608 = vrot.lane.b32.xlu0 %v517, 96
        %v609 = vpop.permute.xlu0 %608
        %vm613 = vcmask 1048320
        %614 = vst.msk [vmem:[#allocation2] sm:$0xff] %vm613, %v605
        %615 = vst.msk [vmem:[#allocation2 + $0x38] sm:$0xff] %vm613, %v607
        %616 = vst.msk [vmem:[#allocation2 + $0x70] sm:$0xff] %vm613, %v609
        %617 = vst.msk [vmem:[#allocation2 + $0x8] sm:$0xff] %vm565, %v522
        %618 = vst.msk [vmem:[#allocation2 + $0x40] sm:$0xff] %vm565, %v527
        %619 = vst.msk [vmem:[#allocation2 + $0x78] sm:$0xff] %vm565, %v532
        %623 = vrot.lane.b32.xlu0 %v537, 32
        %v624 = vpop.permute.xlu0 %623
        %625 = vrot.lane.b32.xlu0 %v542, 32
        %v626 = vpop.permute.xlu0 %625
        %627 = vrot.lane.b32.xlu0 %v547, 32
        %v628 = vpop.permute.xlu0 %627
        %632 = vst.msk [vmem:[#allocation2 + $0x8] sm:$0xff] %vm581, %v624
        %633 = vst.msk [vmem:[#allocation2 + $0x40] sm:$0xff] %vm581, %v626
        %634 = vst.msk [vmem:[#allocation2 + $0x78] sm:$0xff] %vm581, %v628
        %638 = vrot.lane.b32.xlu0 %v552, 64
        %v639 = vpop.permute.xlu0 %638
        %640 = vrot.lane.b32.xlu0 %v557, 64
        %v641 = vpop.permute.xlu0 %640
        %642 = vrot.lane.b32.xlu0 %v562, 64
        %v643 = vpop.permute.xlu0 %642
        %647 = vst.msk [vmem:[#allocation2 + $0x8] sm:$0xff] %vm597, %v639
        %648 = vst.msk [vmem:[#allocation2 + $0x40] sm:$0xff] %vm597, %v641
        %649 = vst.msk [vmem:[#allocation2 + $0x78] sm:$0xff] %vm597, %v643
        %s650 = scalar_lea.vmem %s356, 128
        %v651 = vld [vmem:[%s650] sm:$0xff]
        %v652 = vld [vmem:[%s650 + $0x8] sm:$0xff]
        %v653 = vld [vmem:[%s650 + $0x10] sm:$0xff]
        %v654 = vld [vmem:[%s650 + $0x18] sm:$0xff]
        %v655 = vld [vmem:[%s650 + $0x20] sm:$0xff]
        %v656 = vld [vmem:[%s650 + $0x28] sm:$0xff]
        %v657 = vld [vmem:[%s650 + $0x30] sm:$0xff]
        %v658 = vld [vmem:[%s650 + $0x38] sm:$0xff]
        %v659 = vld [vmem:[%s650 + $0x40] sm:$0xff]
        %v660 = vld [vmem:[%s650 + $0x48] sm:$0xff]
        %v661 = vld [vmem:[%s650 + $0x50] sm:$0xff]
        %v662 = vld [vmem:[%s650 + $0x58] sm:$0xff]
        %v663 = vld [vmem:[%s650 + $0x60] sm:$0xff]
        %v664 = vld [vmem:[%s650 + $0x68] sm:$0xff]
        %v665 = vld [vmem:[%s650 + $0x70] sm:$0xff]
        %v666 = vld [vmem:[%s650 + $0x78] sm:$0xff]
        %667 = vmatprep.subr.mxu0 0.0
        %668 = vmatpush1.msra.mxu0 %v651
        %669 = vmatprep.subr.mxu0 0.0
        %670 = vmatpush1.msra.mxu0 %v652
        %671 = vmatprep.subr.mxu0 0.0
        %672 = vmatpush1.msra.mxu0 %v653
        %673 = vmatprep.subr.mxu0 0.0
        %674 = vmatpush1.msra.mxu0 %v654
        %675 = vmatprep.subr.mxu0 0.0
        %676 = vmatpush1.msra.mxu0 %v655
        %677 = vmatprep.subr.mxu0 0.0
        %678 = vmatpush1.msra.mxu0 %v656
        %679 = vmatprep.subr.mxu0 0.0
        %680 = vmatpush1.msra.mxu0 %v657
        %681 = vmatprep.subr.mxu0 0.0
        %682 = vmatpush1.msra.mxu0 %v658
        %683 = vmatprep.subr.mxu0 0.0
        %684 = vmatpush1.msra.mxu0 %v659
        %685 = vmatprep.subr.mxu0 0.0
        %686 = vmatpush1.msra.mxu0 %v660
        %687 = vmatprep.subr.mxu0 0.0
        %688 = vmatpush1.msra.mxu0 %v661
        %689 = vmatprep.subr.mxu0 0.0
        %690 = vmatpush1.msra.mxu0 %v662
        %691 = vmatprep.subr.mxu0 0.0
        %692 = vmatpush1.msra.mxu0 %v663
        %693 = vmatprep.subr.mxu0 0.0
        %694 = vmatpush1.msra.mxu0 %v664
        %695 = vmatprep.subr.mxu0 0.0
        %696 = vmatpush1.msra.mxu0 %v665
        %697 = vmatprep.subr.mxu0 0.0
        %698 = vmatpush1.msra.mxu0 %v666
        %699 = vmatprep.subr.mxu0 0.0
        %700 = vmatpush1.msra.mxu0 0.0
        %701 = vmatprep.subr.mxu0 0.0
        %702 = vmatpush1.msra.mxu0 0.0
        %703 = vmatprep.subr.mxu0 0.0
        %704 = vmatpush1.msra.mxu0 0.0
        %705 = vmatprep.subr.mxu0 0.0
        %706 = vmatpush1.msra.mxu0 0.0
        %707 = vmatprep.subr.mxu0 0.0
        %708 = vmatpush1.msra.mxu0 0.0
        %709 = vmatprep.subr.mxu0 0.0
        %710 = vmatpush1.msra.mxu0 0.0
        %711 = vmatprep.subr.mxu0 0.0
        %712 = vmatpush1.msra.mxu0 0.0
        %713 = vmatprep.subr.mxu0 0.0
        %714 = vmatpush1.msra.mxu0 0.0
        %715 = vmatprep.subr.mxu0 0.0
        %716 = vmatpush1.msra.mxu0 0.0
        %717 = vmatprep.subr.mxu0 0.0
        %718 = vmatpush1.msra.mxu0 0.0
        %719 = vmatprep.subr.mxu0 0.0
        %720 = vmatpush1.msra.mxu0 0.0
        %721 = vmatprep.subr.mxu0 0.0
        %722 = vmatpush1.msra.mxu0 0.0
        %723 = vmatprep.subr.mxu0 0.0
        %724 = vmatpush1.msra.mxu0 0.0
        %725 = vmatprep.subr.mxu0 0.0
        %726 = vmatpush1.msra.mxu0 0.0
        %727 = vmatprep.subr.mxu0 0.0
        %728 = vmatpush1.msra.mxu0 0.0
        %729 = vmatprep.subr.mxu0 0.0
        %730 = vmatpush1.msra.mxu0 0.0
        %731 = vmatprep.mubr.f32.mxu0 0.0
        %732 = vmatmul.mubr.f32.gmra.mrb[0].mxu0 %v358
        %v733 = vpop.f32.mrb[0].mxu0
        %v734 = vadd.f32 0.0, %v733
        %v735 = vpop.f32.mrb[0].mxu0
        %736 = vmatprep.mubr.f32.mxu0 0.0
        %737 = vmatmul.mubr.f32.gmra.mrb[0].mxu0 %v359
        %v738 = vpop.f32.mrb[0].mxu0
        %v739 = vadd.f32 0.0, %v738
        %v740 = vpop.f32.mrb[0].mxu0
        %741 = vmatprep.mubr.f32.mxu0 0.0
        %742 = vmatmul.mubr.f32.gmra.mrb[0].mxu0 %v360
        %v743 = vpop.f32.mrb[0].mxu0
        %v744 = vadd.f32 0.0, %v743
        %v745 = vpop.f32.mrb[0].mxu0
        %746 = vmatprep.mubr.f32.mxu0 0.0
        %747 = vmatmul.mubr.f32.gmra.mrb[0].mxu0 %v361
        %v748 = vpop.f32.mrb[0].mxu0
        %v749 = vadd.f32 0.0, %v748
        %v750 = vpop.f32.mrb[0].mxu0
        %751 = vmatprep.mubr.f32.mxu0 0.0
        %752 = vmatmul.mubr.f32.gmra.mrb[0].mxu0 %v362
        %v753 = vpop.f32.mrb[0].mxu0
        %v754 = vadd.f32 0.0, %v753
        %v755 = vpop.f32.mrb[0].mxu0
        %756 = vmatprep.mubr.f32.mxu0 0.0
        %757 = vmatmul.mubr.f32.gmra.mrb[0].mxu0 %v363
        %v758 = vpop.f32.mrb[0].mxu0
        %v759 = vadd.f32 0.0, %v758
        %v760 = vpop.f32.mrb[0].mxu0
        %761 = vmatprep.mubr.f32.mxu0 0.0
        %762 = vmatmul.mubr.f32.gmra.mrb[0].mxu0 %v364
        %v763 = vpop.f32.mrb[0].mxu0
        %v764 = vadd.f32 0.0, %v763
        %v765 = vpop.f32.mrb[0].mxu0
        %766 = vmatprep.mubr.f32.mxu0 0.0
        %767 = vmatmul.mubr.f32.gmra.mrb[0].mxu0 %v365
        %v768 = vpop.f32.mrb[0].mxu0
        %v769 = vadd.f32 0.0, %v768
        %v770 = vpop.f32.mrb[0].mxu0
        %771 = vmatprep.mubr.f32.mxu0 0.0
        %772 = vmatmul.mubr.f32.gmra.mrb[0].mxu0 %v366
        %v773 = vpop.f32.mrb[0].mxu0
        %v774 = vadd.f32 0.0, %v773
        %v775 = vpop.f32.mrb[0].mxu0
        %776 = vmatprep.mubr.f32.mxu0 0.0
        %777 = vmatmul.mubr.f32.gmra.mrb[0].mxu0 %v367
        %v778 = vpop.f32.mrb[0].mxu0
        %v779 = vadd.f32 0.0, %v778
        %v780 = vpop.f32.mrb[0].mxu0
        %781 = vmatprep.mubr.f32.mxu0 0.0
        %782 = vmatmul.mubr.f32.gmra.mrb[0].mxu0 %v368
        %v783 = vpop.f32.mrb[0].mxu0
        %v784 = vadd.f32 0.0, %v783
        %v785 = vpop.f32.mrb[0].mxu0
        %786 = vmatprep.mubr.f32.mxu0 0.0
        %787 = vmatmul.mubr.f32.gmra.mrb[0].mxu0 %v369
        %v788 = vpop.f32.mrb[0].mxu0
        %v789 = vadd.f32 0.0, %v788
        %v790 = vpop.f32.mrb[0].mxu0
        %791 = vmatprep.mubr.f32.mxu0 0.0
        %792 = vmatmul.mubr.f32.gmra.mrb[0].mxu0 %v370
        %v793 = vpop.f32.mrb[0].mxu0
        %v794 = vadd.f32 0.0, %v793
        %v795 = vpop.f32.mrb[0].mxu0
        %796 = vmatprep.mubr.f32.mxu0 0.0
        %797 = vmatmul.mubr.f32.gmra.mrb[0].mxu0 %v371
        %v798 = vpop.f32.mrb[0].mxu0
        %v799 = vadd.f32 0.0, %v798
        %v800 = vpop.f32.mrb[0].mxu0
        %801 = vmatprep.mubr.f32.mxu0 0.0
        %802 = vmatmul.mubr.f32.gmra.mrb[0].mxu0 %v372
        %v803 = vpop.f32.mrb[0].mxu0
        %v804 = vadd.f32 0.0, %v803
        %v805 = vpop.f32.mrb[0].mxu0
        %806 = vmatprep.mubr.f32.mxu0 0.0
        %807 = vmatmul.mubr.f32.gmra.mrb[0].mxu0 %v373
        %v808 = vpop.f32.mrb[0].mxu0
        %v809 = vadd.f32 0.0, %v808
        %v810 = vpop.f32.mrb[0].mxu0
        %811 = vmatprep.mubr.f32.mxu0 0.0
        %812 = vmatmul.mubr.f32.gmra.mrb[0].mxu0 %v374
        %v813 = vpop.f32.mrb[0].mxu0
        %v814 = vadd.f32 0.0, %v813
        %v815 = vpop.f32.mrb[0].mxu0
        %816 = vmatprep.mubr.f32.mxu0 0.0
        %817 = vmatmul.mubr.f32.gmra.mrb[0].mxu0 %v375
        %v818 = vpop.f32.mrb[0].mxu0
        %v819 = vadd.f32 0.0, %v818
        %v820 = vpop.f32.mrb[0].mxu0
        %821 = vmatprep.mubr.f32.mxu0 0.0
        %822 = vmatmul.mubr.f32.gmra.mrb[0].mxu0 %v376
        %v823 = vpop.f32.mrb[0].mxu0
        %v824 = vadd.f32 0.0, %v823
        %v825 = vpop.f32.mrb[0].mxu0
        %826 = vmatprep.mubr.f32.mxu0 0.0
        %827 = vmatmul.mubr.f32.gmra.mrb[0].mxu0 %v377
        %v828 = vpop.f32.mrb[0].mxu0
        %v829 = vadd.f32 0.0, %v828
        %v830 = vpop.f32.mrb[0].mxu0
        %831 = vmatprep.mubr.f32.mxu0 0.0
        %832 = vmatmul.mubr.f32.gmra.mrb[0].mxu0 %v378
        %v833 = vpop.f32.mrb[0].mxu0
        %v834 = vadd.f32 0.0, %v833
        %v835 = vpop.f32.mrb[0].mxu0
        %836 = vdwg.mxu0
        %840 = vrot.lane.b32.xlu0 %v734, 96
        %v841 = vpop.permute.xlu0 %840
        %842 = vrot.lane.b32.xlu0 %v739, 96
        %v843 = vpop.permute.xlu0 %842
        %844 = vrot.lane.b32.xlu0 %v744, 96
        %v845 = vpop.permute.xlu0 %844
        %849 = vst.msk [vmem:[#allocation2 + $0x8] sm:$0xff] %vm613, %v841
        %850 = vst.msk [vmem:[#allocation2 + $0x40] sm:$0xff] %vm613, %v843
        %851 = vst.msk [vmem:[#allocation2 + $0x78] sm:$0xff] %vm613, %v845
        %852 = vst.msk [vmem:[#allocation2 + $0x10] sm:$0xff] %vm565, %v749
        %853 = vst.msk [vmem:[#allocation2 + $0x48] sm:$0xff] %vm565, %v754
        %854 = vst.msk [vmem:[#allocation2 + $0x80] sm:$0xff] %vm565, %v759
        %858 = vrot.lane.b32.xlu0 %v764, 32
        %v859 = vpop.permute.xlu0 %858
        %860 = vrot.lane.b32.xlu0 %v769, 32
        %v861 = vpop.permute.xlu0 %860
        %862 = vrot.lane.b32.xlu0 %v774, 32
        %v863 = vpop.permute.xlu0 %862
        %867 = vst.msk [vmem:[#allocation2 + $0x10] sm:$0xff] %vm581, %v859
        %868 = vst.msk [vmem:[#allocation2 + $0x48] sm:$0xff] %vm581, %v861
        %869 = vst.msk [vmem:[#allocation2 + $0x80] sm:$0xff] %vm581, %v863
        %873 = vrot.lane.b32.xlu0 %v779, 64
        %v874 = vpop.permute.xlu0 %873
        %875 = vrot.lane.b32.xlu0 %v784, 64
        %v876 = vpop.permute.xlu0 %875
        %877 = vrot.lane.b32.xlu0 %v789, 64
        %v878 = vpop.permute.xlu0 %877
        %882 = vst.msk [vmem:[#allocation2 + $0x10] sm:$0xff] %vm597, %v874
        %883 = vst.msk [vmem:[#allocation2 + $0x48] sm:$0xff] %vm597, %v876
        %884 = vst.msk [vmem:[#allocation2 + $0x80] sm:$0xff] %vm597, %v878
        %888 = vrot.lane.b32.xlu0 %v794, 96
        %v889 = vpop.permute.xlu0 %888
        %890 = vrot.lane.b32.xlu0 %v799, 96
        %v891 = vpop.permute.xlu0 %890
        %892 = vrot.lane.b32.xlu0 %v804, 96
        %v893 = vpop.permute.xlu0 %892
        %897 = vst.msk [vmem:[#allocation2 + $0x10] sm:$0xff] %vm613, %v889
        %898 = vst.msk [vmem:[#allocation2 + $0x48] sm:$0xff] %vm613, %v891
        %899 = vst.msk [vmem:[#allocation2 + $0x80] sm:$0xff] %vm613, %v893
        %900 = vst.msk [vmem:[#allocation2 + $0x18] sm:$0xff] %vm565, %v809
        %901 = vst.msk [vmem:[#allocation2 + $0x50] sm:$0xff] %vm565, %v814
        %902 = vst.msk [vmem:[#allocation2 + $0x88] sm:$0xff] %vm565, %v819
        %906 = vrot.lane.b32.xlu0 %v824, 32
        %v907 = vpop.permute.xlu0 %906
        %908 = vrot.lane.b32.xlu0 %v829, 32
        %v909 = vpop.permute.xlu0 %908
        %910 = vrot.lane.b32.xlu0 %v834, 32
        %v911 = vpop.permute.xlu0 %910
        %915 = vst.msk [vmem:[#allocation2 + $0x18] sm:$0xff] %vm581, %v907
        %916 = vst.msk [vmem:[#allocation2 + $0x50] sm:$0xff] %vm581, %v909
        %917 = vst.msk [vmem:[#allocation2 + $0x88] sm:$0xff] %vm581, %v911
        %s918 = scalar_lea.vmem %s356, 256
        %v919 = vld [vmem:[%s918] sm:$0xff]
        %v920 = vld [vmem:[%s918 + $0x8] sm:$0xff]
        %v921 = vld [vmem:[%s918 + $0x10] sm:$0xff]
        %v922 = vld [vmem:[%s918 + $0x18] sm:$0xff]
        %v923 = vld [vmem:[%s918 + $0x20] sm:$0xff]
        %v924 = vld [vmem:[%s918 + $0x28] sm:$0xff]
        %v925 = vld [vmem:[%s918 + $0x30] sm:$0xff]
        %v926 = vld [vmem:[%s918 + $0x38] sm:$0xff]
        %v927 = vld [vmem:[%s918 + $0x40] sm:$0xff]
        %v928 = vld [vmem:[%s918 + $0x48] sm:$0xff]
        %v929 = vld [vmem:[%s918 + $0x50] sm:$0xff]
        %v930 = vld [vmem:[%s918 + $0x58] sm:$0xff]
        %v931 = vld [vmem:[%s918 + $0x60] sm:$0xff]
        %v932 = vld [vmem:[%s918 + $0x68] sm:$0xff]
        %v933 = vld [vmem:[%s918 + $0x70] sm:$0xff]
        %v934 = vld [vmem:[%s918 + $0x78] sm:$0xff]
        %935 = vmatprep.subr.mxu0 0.0
        %936 = vmatpush1.msra.mxu0 %v919
        %937 = vmatprep.subr.mxu0 0.0
        %938 = vmatpush1.msra.mxu0 %v920
        %939 = vmatprep.subr.mxu0 0.0
        %940 = vmatpush1.msra.mxu0 %v921
        %941 = vmatprep.subr.mxu0 0.0
        %942 = vmatpush1.msra.mxu0 %v922
        %943 = vmatprep.subr.mxu0 0.0
        %944 = vmatpush1.msra.mxu0 %v923
        %945 = vmatprep.subr.mxu0 0.0
        %946 = vmatpush1.msra.mxu0 %v924
        %947 = vmatprep.subr.mxu0 0.0
        %948 = vmatpush1.msra.mxu0 %v925
        %949 = vmatprep.subr.mxu0 0.0
        %950 = vmatpush1.msra.mxu0 %v926
        %951 = vmatprep.subr.mxu0 0.0
        %952 = vmatpush1.msra.mxu0 %v927
        %953 = vmatprep.subr.mxu0 0.0
        %954 = vmatpush1.msra.mxu0 %v928
        %955 = vmatprep.subr.mxu0 0.0
        %956 = vmatpush1.msra.mxu0 %v929
        %957 = vmatprep.subr.mxu0 0.0
        %958 = vmatpush1.msra.mxu0 %v930
        %959 = vmatprep.subr.mxu0 0.0
        %960 = vmatpush1.msra.mxu0 %v931
        %961 = vmatprep.subr.mxu0 0.0
        %962 = vmatpush1.msra.mxu0 %v932
        %963 = vmatprep.subr.mxu0 0.0
        %964 = vmatpush1.msra.mxu0 %v933
        %965 = vmatprep.subr.mxu0 0.0
        %966 = vmatpush1.msra.mxu0 %v934
        %967 = vmatprep.subr.mxu0 0.0
        %968 = vmatpush1.msra.mxu0 0.0
        %969 = vmatprep.subr.mxu0 0.0
        %970 = vmatpush1.msra.mxu0 0.0
        %971 = vmatprep.subr.mxu0 0.0
        %972 = vmatpush1.msra.mxu0 0.0
        %973 = vmatprep.subr.mxu0 0.0
        %974 = vmatpush1.msra.mxu0 0.0
        %975 = vmatprep.subr.mxu0 0.0
        %976 = vmatpush1.msra.mxu0 0.0
        %977 = vmatprep.subr.mxu0 0.0
        %978 = vmatpush1.msra.mxu0 0.0
        %979 = vmatprep.subr.mxu0 0.0
        %980 = vmatpush1.msra.mxu0 0.0
        %981 = vmatprep.subr.mxu0 0.0
        %982 = vmatpush1.msra.mxu0 0.0
        %983 = vmatprep.subr.mxu0 0.0
        %984 = vmatpush1.msra.mxu0 0.0
        %985 = vmatprep.subr.mxu0 0.0
        %986 = vmatpush1.msra.mxu0 0.0
        %987 = vmatprep.subr.mxu0 0.0
        %988 = vmatpush1.msra.mxu0 0.0
        %989 = vmatprep.subr.mxu0 0.0
        %990 = vmatpush1.msra.mxu0 0.0
        %991 = vmatprep.subr.mxu0 0.0
        %992 = vmatpush1.msra.mxu0 0.0
        %993 = vmatprep.subr.mxu0 0.0
        %994 = vmatpush1.msra.mxu0 0.0
        %995 = vmatprep.subr.mxu0 0.0
        %996 = vmatpush1.msra.mxu0 0.0
        %997 = vmatprep.subr.mxu0 0.0
        %998 = vmatpush1.msra.mxu0 0.0
        %999 = vmatprep.mubr.f32.mxu0 0.0
        %1000 = vmatmul.mubr.f32.gmra.mrb[0].mxu0 %v358
        %v1001 = vpop.f32.mrb[0].mxu0
        %v1002 = vadd.f32 0.0, %v1001
        %v1003 = vpop.f32.mrb[0].mxu0
        %1004 = vmatprep.mubr.f32.mxu0 0.0
        %1005 = vmatmul.mubr.f32.gmra.mrb[0].mxu0 %v359
        %v1006 = vpop.f32.mrb[0].mxu0
        %v1007 = vadd.f32 0.0, %v1006
        %v1008 = vpop.f32.mrb[0].mxu0
        %1009 = vmatprep.mubr.f32.mxu0 0.0
        %1010 = vmatmul.mubr.f32.gmra.mrb[0].mxu0 %v360
        %v1011 = vpop.f32.mrb[0].mxu0
        %v1012 = vadd.f32 0.0, %v1011
        %v1013 = vpop.f32.mrb[0].mxu0
        %1014 = vmatprep.mubr.f32.mxu0 0.0
        %1015 = vmatmul.mubr.f32.gmra.mrb[0].mxu0 %v361
        %v1016 = vpop.f32.mrb[0].mxu0
        %v1017 = vadd.f32 0.0, %v1016
        %v1018 = vpop.f32.mrb[0].mxu0
        %1019 = vmatprep.mubr.f32.mxu0 0.0
        %1020 = vmatmul.mubr.f32.gmra.mrb[0].mxu0 %v362
        %v1021 = vpop.f32.mrb[0].mxu0
        %v1022 = vadd.f32 0.0, %v1021
        %v1023 = vpop.f32.mrb[0].mxu0
        %1024 = vmatprep.mubr.f32.mxu0 0.0
        %1025 = vmatmul.mubr.f32.gmra.mrb[0].mxu0 %v363
        %v1026 = vpop.f32.mrb[0].mxu0
        %v1027 = vadd.f32 0.0, %v1026
        %v1028 = vpop.f32.mrb[0].mxu0
        %1029 = vmatprep.mubr.f32.mxu0 0.0
        %1030 = vmatmul.mubr.f32.gmra.mrb[0].mxu0 %v364
        %v1031 = vpop.f32.mrb[0].mxu0
        %v1032 = vadd.f32 0.0, %v1031
        %v1033 = vpop.f32.mrb[0].mxu0
        %1034 = vmatprep.mubr.f32.mxu0 0.0
        %1035 = vmatmul.mubr.f32.gmra.mrb[0].mxu0 %v365
        %v1036 = vpop.f32.mrb[0].mxu0
        %v1037 = vadd.f32 0.0, %v1036
        %v1038 = vpop.f32.mrb[0].mxu0
        %1039 = vmatprep.mubr.f32.mxu0 0.0
        %1040 = vmatmul.mubr.f32.gmra.mrb[0].mxu0 %v366
        %v1041 = vpop.f32.mrb[0].mxu0
        %v1042 = vadd.f32 0.0, %v1041
        %v1043 = vpop.f32.mrb[0].mxu0
        %1044 = vmatprep.mubr.f32.mxu0 0.0
        %1045 = vmatmul.mubr.f32.gmra.mrb[0].mxu0 %v367
        %v1046 = vpop.f32.mrb[0].mxu0
        %v1047 = vadd.f32 0.0, %v1046
        %v1048 = vpop.f32.mrb[0].mxu0
        %1049 = vmatprep.mubr.f32.mxu0 0.0
        %1050 = vmatmul.mubr.f32.gmra.mrb[0].mxu0 %v368
        %v1051 = vpop.f32.mrb[0].mxu0
        %v1052 = vadd.f32 0.0, %v1051
        %v1053 = vpop.f32.mrb[0].mxu0
        %1054 = vmatprep.mubr.f32.mxu0 0.0
        %1055 = vmatmul.mubr.f32.gmra.mrb[0].mxu0 %v369
        %v1056 = vpop.f32.mrb[0].mxu0
        %v1057 = vadd.f32 0.0, %v1056
        %v1058 = vpop.f32.mrb[0].mxu0
        %1059 = vmatprep.mubr.f32.mxu0 0.0
        %1060 = vmatmul.mubr.f32.gmra.mrb[0].mxu0 %v370
        %v1061 = vpop.f32.mrb[0].mxu0
        %v1062 = vadd.f32 0.0, %v1061
        %v1063 = vpop.f32.mrb[0].mxu0
        %1064 = vmatprep.mubr.f32.mxu0 0.0
        %1065 = vmatmul.mubr.f32.gmra.mrb[0].mxu0 %v371
        %v1066 = vpop.f32.mrb[0].mxu0
        %v1067 = vadd.f32 0.0, %v1066
        %v1068 = vpop.f32.mrb[0].mxu0
        %1069 = vmatprep.mubr.f32.mxu0 0.0
        %1070 = vmatmul.mubr.f32.gmra.mrb[0].mxu0 %v372
        %v1071 = vpop.f32.mrb[0].mxu0
        %v1072 = vadd.f32 0.0, %v1071
        %v1073 = vpop.f32.mrb[0].mxu0
        %1074 = vmatprep.mubr.f32.mxu0 0.0
        %1075 = vmatmul.mubr.f32.gmra.mrb[0].mxu0 %v373
        %v1076 = vpop.f32.mrb[0].mxu0
        %v1077 = vadd.f32 0.0, %v1076
        %v1078 = vpop.f32.mrb[0].mxu0
        %1079 = vmatprep.mubr.f32.mxu0 0.0
        %1080 = vmatmul.mubr.f32.gmra.mrb[0].mxu0 %v374
        %v1081 = vpop.f32.mrb[0].mxu0
        %v1082 = vadd.f32 0.0, %v1081
        %v1083 = vpop.f32.mrb[0].mxu0
        %1084 = vmatprep.mubr.f32.mxu0 0.0
        %1085 = vmatmul.mubr.f32.gmra.mrb[0].mxu0 %v375
        %v1086 = vpop.f32.mrb[0].mxu0
        %v1087 = vadd.f32 0.0, %v1086
        %v1088 = vpop.f32.mrb[0].mxu0
        %1089 = vmatprep.mubr.f32.mxu0 0.0
        %1090 = vmatmul.mubr.f32.gmra.mrb[0].mxu0 %v376
        %v1091 = vpop.f32.mrb[0].mxu0
        %v1092 = vadd.f32 0.0, %v1091
        %v1093 = vpop.f32.mrb[0].mxu0
        %1094 = vmatprep.mubr.f32.mxu0 0.0
        %1095 = vmatmul.mubr.f32.gmra.mrb[0].mxu0 %v377
        %v1096 = vpop.f32.mrb[0].mxu0
        %v1097 = vadd.f32 0.0, %v1096
        %v1098 = vpop.f32.mrb[0].mxu0
        %1099 = vmatprep.mubr.f32.mxu0 0.0
        %1100 = vmatmul.mubr.f32.gmra.mrb[0].mxu0 %v378
        %v1101 = vpop.f32.mrb[0].mxu0
        %v1102 = vadd.f32 0.0, %v1101
        %v1103 = vpop.f32.mrb[0].mxu0
        %1104 = vdwg.mxu0
        %1108 = vrot.lane.b32.xlu0 %v1002, 64
        %v1109 = vpop.permute.xlu0 %1108
        %1110 = vrot.lane.b32.xlu0 %v1007, 64
        %v1111 = vpop.permute.xlu0 %1110
        %1112 = vrot.lane.b32.xlu0 %v1012, 64
        %v1113 = vpop.permute.xlu0 %1112
        %1117 = vst.msk [vmem:[#allocation2 + $0x18] sm:$0xff] %vm597, %v1109
        %1118 = vst.msk [vmem:[#allocation2 + $0x50] sm:$0xff] %vm597, %v1111
        %1119 = vst.msk [vmem:[#allocation2 + $0x88] sm:$0xff] %vm597, %v1113
        %1123 = vrot.lane.b32.xlu0 %v1017, 96
        %v1124 = vpop.permute.xlu0 %1123
        %1125 = vrot.lane.b32.xlu0 %v1022, 96
        %v1126 = vpop.permute.xlu0 %1125
        %1127 = vrot.lane.b32.xlu0 %v1027, 96
        %v1128 = vpop.permute.xlu0 %1127
        %1132 = vst.msk [vmem:[#allocation2 + $0x18] sm:$0xff] %vm613, %v1124
        %1133 = vst.msk [vmem:[#allocation2 + $0x50] sm:$0xff] %vm613, %v1126
        %1134 = vst.msk [vmem:[#allocation2 + $0x88] sm:$0xff] %vm613, %v1128
        %1135 = vst.msk [vmem:[#allocation2 + $0x20] sm:$0xff] %vm565, %v1032
        %1136 = vst.msk [vmem:[#allocation2 + $0x58] sm:$0xff] %vm565, %v1037
        %1137 = vst.msk [vmem:[#allocation2 + $0x90] sm:$0xff] %vm565, %v1042
        %1141 = vrot.lane.b32.xlu0 %v1047, 32
        %v1142 = vpop.permute.xlu0 %1141
        %1143 = vrot.lane.b32.xlu0 %v1052, 32
        %v1144 = vpop.permute.xlu0 %1143
        %1145 = vrot.lane.b32.xlu0 %v1057, 32
        %v1146 = vpop.permute.xlu0 %1145
        %1150 = vst.msk [vmem:[#allocation2 + $0x20] sm:$0xff] %vm581, %v1142
        %1151 = vst.msk [vmem:[#allocation2 + $0x58] sm:$0xff] %vm581, %v1144
        %1152 = vst.msk [vmem:[#allocation2 + $0x90] sm:$0xff] %vm581, %v1146
        %1156 = vrot.lane.b32.xlu0 %v1062, 64
        %v1157 = vpop.permute.xlu0 %1156
        %1158 = vrot.lane.b32.xlu0 %v1067, 64
        %v1159 = vpop.permute.xlu0 %1158
        %1160 = vrot.lane.b32.xlu0 %v1072, 64
        %v1161 = vpop.permute.xlu0 %1160
        %1165 = vst.msk [vmem:[#allocation2 + $0x20] sm:$0xff] %vm597, %v1157
        %1166 = vst.msk [vmem:[#allocation2 + $0x58] sm:$0xff] %vm597, %v1159
        %1167 = vst.msk [vmem:[#allocation2 + $0x90] sm:$0xff] %vm597, %v1161
        %1171 = vrot.lane.b32.xlu0 %v1077, 96
        %v1172 = vpop.permute.xlu0 %1171
        %1173 = vrot.lane.b32.xlu0 %v1082, 96
        %v1174 = vpop.permute.xlu0 %1173
        %1175 = vrot.lane.b32.xlu0 %v1087, 96
        %v1176 = vpop.permute.xlu0 %1175
        %1180 = vst.msk [vmem:[#allocation2 + $0x20] sm:$0xff] %vm613, %v1172
        %1181 = vst.msk [vmem:[#allocation2 + $0x58] sm:$0xff] %vm613, %v1174
        %1182 = vst.msk [vmem:[#allocation2 + $0x90] sm:$0xff] %vm613, %v1176
        %1183 = vst.msk [vmem:[#allocation2 + $0x28] sm:$0xff] %vm565, %v1092
        %1184 = vst.msk [vmem:[#allocation2 + $0x60] sm:$0xff] %vm565, %v1097
        %1185 = vst.msk [vmem:[#allocation2 + $0x98] sm:$0xff] %vm565, %v1102
        %s1186 = scalar_lea.vmem %s356, 384
        %v1187 = vld [vmem:[%s1186] sm:$0xff]
        %v1188 = vld [vmem:[%s1186 + $0x8] sm:$0xff]
        %v1189 = vld [vmem:[%s1186 + $0x10] sm:$0xff]
        %v1190 = vld [vmem:[%s1186 + $0x18] sm:$0xff]
        %v1191 = vld [vmem:[%s1186 + $0x20] sm:$0xff]
        %v1192 = vld [vmem:[%s1186 + $0x28] sm:$0xff]
        %v1193 = vld [vmem:[%s1186 + $0x30] sm:$0xff]
        %v1194 = vld [vmem:[%s1186 + $0x38] sm:$0xff]
        %v1195 = vld [vmem:[%s1186 + $0x40] sm:$0xff]
        %v1196 = vld [vmem:[%s1186 + $0x48] sm:$0xff]
        %v1197 = vld [vmem:[%s1186 + $0x50] sm:$0xff]
        %v1198 = vld [vmem:[%s1186 + $0x58] sm:$0xff]
        %v1199 = vld [vmem:[%s1186 + $0x60] sm:$0xff]
        %v1200 = vld [vmem:[%s1186 + $0x68] sm:$0xff]
        %v1201 = vld [vmem:[%s1186 + $0x70] sm:$0xff]
        %v1202 = vld [vmem:[%s1186 + $0x78] sm:$0xff]
        %1203 = vmatprep.subr.mxu0 0.0
        %1204 = vmatpush1.msra.mxu0 %v1187
        %1205 = vmatprep.subr.mxu0 0.0
        %1206 = vmatpush1.msra.mxu0 %v1188
        %1207 = vmatprep.subr.mxu0 0.0
        %1208 = vmatpush1.msra.mxu0 %v1189
        %1209 = vmatprep.subr.mxu0 0.0
        %1210 = vmatpush1.msra.mxu0 %v1190
        %1211 = vmatprep.subr.mxu0 0.0
        %1212 = vmatpush1.msra.mxu0 %v1191
        %1213 = vmatprep.subr.mxu0 0.0
        %1214 = vmatpush1.msra.mxu0 %v1192
        %1215 = vmatprep.subr.mxu0 0.0
        %1216 = vmatpush1.msra.mxu0 %v1193
        %1217 = vmatprep.subr.mxu0 0.0
        %1218 = vmatpush1.msra.mxu0 %v1194
        %1219 = vmatprep.subr.mxu0 0.0
        %1220 = vmatpush1.msra.mxu0 %v1195
        %1221 = vmatprep.subr.mxu0 0.0
        %1222 = vmatpush1.msra.mxu0 %v1196
        %1223 = vmatprep.subr.mxu0 0.0
        %1224 = vmatpush1.msra.mxu0 %v1197
        %1225 = vmatprep.subr.mxu0 0.0
        %1226 = vmatpush1.msra.mxu0 %v1198
        %1227 = vmatprep.subr.mxu0 0.0
        %1228 = vmatpush1.msra.mxu0 %v1199
        %1229 = vmatprep.subr.mxu0 0.0
        %1230 = vmatpush1.msra.mxu0 %v1200
        %1231 = vmatprep.subr.mxu0 0.0
        %1232 = vmatpush1.msra.mxu0 %v1201
        %1233 = vmatprep.subr.mxu0 0.0
        %1234 = vmatpush1.msra.mxu0 %v1202
        %1235 = vmatprep.subr.mxu0 0.0
        %1236 = vmatpush1.msra.mxu0 0.0
        %1237 = vmatprep.subr.mxu0 0.0
        %1238 = vmatpush1.msra.mxu0 0.0
        %1239 = vmatprep.subr.mxu0 0.0
        %1240 = vmatpush1.msra.mxu0 0.0
        %1241 = vmatprep.subr.mxu0 0.0
        %1242 = vmatpush1.msra.mxu0 0.0
        %1243 = vmatprep.subr.mxu0 0.0
        %1244 = vmatpush1.msra.mxu0 0.0
        %1245 = vmatprep.subr.mxu0 0.0
        %1246 = vmatpush1.msra.mxu0 0.0
        %1247 = vmatprep.subr.mxu0 0.0
        %1248 = vmatpush1.msra.mxu0 0.0
        %1249 = vmatprep.subr.mxu0 0.0
        %1250 = vmatpush1.msra.mxu0 0.0
        %1251 = vmatprep.subr.mxu0 0.0
        %1252 = vmatpush1.msra.mxu0 0.0
        %1253 = vmatprep.subr.mxu0 0.0
        %1254 = vmatpush1.msra.mxu0 0.0
        %1255 = vmatprep.subr.mxu0 0.0
        %1256 = vmatpush1.msra.mxu0 0.0
        %1257 = vmatprep.subr.mxu0 0.0
        %1258 = vmatpush1.msra.mxu0 0.0
        %1259 = vmatprep.subr.mxu0 0.0
        %1260 = vmatpush1.msra.mxu0 0.0
        %1261 = vmatprep.subr.mxu0 0.0
        %1262 = vmatpush1.msra.mxu0 0.0
        %1263 = vmatprep.subr.mxu0 0.0
        %1264 = vmatpush1.msra.mxu0 0.0
        %1265 = vmatprep.subr.mxu0 0.0
        %1266 = vmatpush1.msra.mxu0 0.0
        %1267 = vmatprep.mubr.f32.mxu0 0.0
        %1268 = vmatmul.mubr.f32.gmra.mrb[0].mxu0 %v358
        %v1269 = vpop.f32.mrb[0].mxu0
        %v1270 = vadd.f32 0.0, %v1269
        %v1271 = vpop.f32.mrb[0].mxu0
        %1272 = vmatprep.mubr.f32.mxu0 0.0
        %1273 = vmatmul.mubr.f32.gmra.mrb[0].mxu0 %v359
        %v1274 = vpop.f32.mrb[0].mxu0
        %v1275 = vadd.f32 0.0, %v1274
        %v1276 = vpop.f32.mrb[0].mxu0
        %1277 = vmatprep.mubr.f32.mxu0 0.0
        %1278 = vmatmul.mubr.f32.gmra.mrb[0].mxu0 %v360
        %v1279 = vpop.f32.mrb[0].mxu0
        %v1280 = vadd.f32 0.0, %v1279
        %v1281 = vpop.f32.mrb[0].mxu0
        %1282 = vmatprep.mubr.f32.mxu0 0.0
        %1283 = vmatmul.mubr.f32.gmra.mrb[0].mxu0 %v361
        %v1284 = vpop.f32.mrb[0].mxu0
        %v1285 = vadd.f32 0.0, %v1284
        %v1286 = vpop.f32.mrb[0].mxu0
        %1287 = vmatprep.mubr.f32.mxu0 0.0
        %1288 = vmatmul.mubr.f32.gmra.mrb[0].mxu0 %v362
        %v1289 = vpop.f32.mrb[0].mxu0
        %v1290 = vadd.f32 0.0, %v1289
        %v1291 = vpop.f32.mrb[0].mxu0
        %1292 = vmatprep.mubr.f32.mxu0 0.0
        %1293 = vmatmul.mubr.f32.gmra.mrb[0].mxu0 %v363
        %v1294 = vpop.f32.mrb[0].mxu0
        %v1295 = vadd.f32 0.0, %v1294
        %v1296 = vpop.f32.mrb[0].mxu0
        %1297 = vmatprep.mubr.f32.mxu0 0.0
        %1298 = vmatmul.mubr.f32.gmra.mrb[0].mxu0 %v364
        %v1299 = vpop.f32.mrb[0].mxu0
        %v1300 = vadd.f32 0.0, %v1299
        %v1301 = vpop.f32.mrb[0].mxu0
        %1302 = vmatprep.mubr.f32.mxu0 0.0
        %1303 = vmatmul.mubr.f32.gmra.mrb[0].mxu0 %v365
        %v1304 = vpop.f32.mrb[0].mxu0
        %v1305 = vadd.f32 0.0, %v1304
        %v1306 = vpop.f32.mrb[0].mxu0
        %1307 = vmatprep.mubr.f32.mxu0 0.0
        %1308 = vmatmul.mubr.f32.gmra.mrb[0].mxu0 %v366
        %v1309 = vpop.f32.mrb[0].mxu0
        %v1310 = vadd.f32 0.0, %v1309
        %v1311 = vpop.f32.mrb[0].mxu0
        %1312 = vmatprep.mubr.f32.mxu0 0.0
        %1313 = vmatmul.mubr.f32.gmra.mrb[0].mxu0 %v367
        %v1314 = vpop.f32.mrb[0].mxu0
        %v1315 = vadd.f32 0.0, %v1314
        %v1316 = vpop.f32.mrb[0].mxu0
        %1317 = vmatprep.mubr.f32.mxu0 0.0
        %1318 = vmatmul.mubr.f32.gmra.mrb[0].mxu0 %v368
        %v1319 = vpop.f32.mrb[0].mxu0
        %v1320 = vadd.f32 0.0, %v1319
        %v1321 = vpop.f32.mrb[0].mxu0
        %1322 = vmatprep.mubr.f32.mxu0 0.0
        %1323 = vmatmul.mubr.f32.gmra.mrb[0].mxu0 %v369
        %v1324 = vpop.f32.mrb[0].mxu0
        %v1325 = vadd.f32 0.0, %v1324
        %v1326 = vpop.f32.mrb[0].mxu0
        %1327 = vmatprep.mubr.f32.mxu0 0.0
        %1328 = vmatmul.mubr.f32.gmra.mrb[0].mxu0 %v370
        %v1329 = vpop.f32.mrb[0].mxu0
        %v1330 = vadd.f32 0.0, %v1329
        %v1331 = vpop.f32.mrb[0].mxu0
        %1332 = vmatprep.mubr.f32.mxu0 0.0
        %1333 = vmatmul.mubr.f32.gmra.mrb[0].mxu0 %v371
        %v1334 = vpop.f32.mrb[0].mxu0
        %v1335 = vadd.f32 0.0, %v1334
        %v1336 = vpop.f32.mrb[0].mxu0
        %1337 = vmatprep.mubr.f32.mxu0 0.0
        %1338 = vmatmul.mubr.f32.gmra.mrb[0].mxu0 %v372
        %v1339 = vpop.f32.mrb[0].mxu0
        %v1340 = vadd.f32 0.0, %v1339
        %v1341 = vpop.f32.mrb[0].mxu0
        %1342 = vmatprep.mubr.f32.mxu0 0.0
        %1343 = vmatmul.mubr.f32.gmra.mrb[0].mxu0 %v373
        %v1344 = vpop.f32.mrb[0].mxu0
        %v1345 = vadd.f32 0.0, %v1344
        %v1346 = vpop.f32.mrb[0].mxu0
        %1347 = vmatprep.mubr.f32.mxu0 0.0
        %1348 = vmatmul.mubr.f32.gmra.mrb[0].mxu0 %v374
        %v1349 = vpop.f32.mrb[0].mxu0
        %v1350 = vadd.f32 0.0, %v1349
        %v1351 = vpop.f32.mrb[0].mxu0
        %1352 = vmatprep.mubr.f32.mxu0 0.0
        %1353 = vmatmul.mubr.f32.gmra.mrb[0].mxu0 %v375
        %v1354 = vpop.f32.mrb[0].mxu0
        %v1355 = vadd.f32 0.0, %v1354
        %v1356 = vpop.f32.mrb[0].mxu0
        %1357 = vmatprep.mubr.f32.mxu0 0.0
        %1358 = vmatmul.mubr.f32.gmra.mrb[0].mxu0 %v376
        %v1359 = vpop.f32.mrb[0].mxu0
        %v1360 = vadd.f32 0.0, %v1359
        %v1361 = vpop.f32.mrb[0].mxu0
        %1362 = vmatprep.mubr.f32.mxu0 0.0
        %1363 = vmatmul.mubr.f32.gmra.mrb[0].mxu0 %v377
        %v1364 = vpop.f32.mrb[0].mxu0
        %v1365 = vadd.f32 0.0, %v1364
        %v1366 = vpop.f32.mrb[0].mxu0
        %1367 = vmatprep.mubr.f32.mxu0 0.0
        %1368 = vmatmul.mubr.f32.gmra.mrb[0].mxu0 %v378
        %v1369 = vpop.f32.mrb[0].mxu0
        %v1370 = vadd.f32 0.0, %v1369
        %v1371 = vpop.f32.mrb[0].mxu0
        %1372 = vdwg.mxu0
        %1376 = vrot.lane.b32.xlu0 %v1270, 32
        %v1377 = vpop.permute.xlu0 %1376
        %1378 = vrot.lane.b32.xlu0 %v1275, 32
        %v1379 = vpop.permute.xlu0 %1378
        %1380 = vrot.lane.b32.xlu0 %v1280, 32
        %v1381 = vpop.permute.xlu0 %1380
        %1385 = vst.msk [vmem:[#allocation2 + $0x28] sm:$0xff] %vm581, %v1377
        %1386 = vst.msk [vmem:[#allocation2 + $0x60] sm:$0xff] %vm581, %v1379
        %1387 = vst.msk [vmem:[#allocation2 + $0x98] sm:$0xff] %vm581, %v1381
        %1391 = vrot.lane.b32.xlu0 %v1285, 64
        %v1392 = vpop.permute.xlu0 %1391
        %1393 = vrot.lane.b32.xlu0 %v1290, 64
        %v1394 = vpop.permute.xlu0 %1393
        %1395 = vrot.lane.b32.xlu0 %v1295, 64
        %v1396 = vpop.permute.xlu0 %1395
        %1400 = vst.msk [vmem:[#allocation2 + $0x28] sm:$0xff] %vm597, %v1392
        %1401 = vst.msk [vmem:[#allocation2 + $0x60] sm:$0xff] %vm597, %v1394
        %1402 = vst.msk [vmem:[#allocation2 + $0x98] sm:$0xff] %vm597, %v1396
        %1406 = vrot.lane.b32.xlu0 %v1300, 96
        %v1407 = vpop.permute.xlu0 %1406
        %1408 = vrot.lane.b32.xlu0 %v1305, 96
        %v1409 = vpop.permute.xlu0 %1408
        %1410 = vrot.lane.b32.xlu0 %v1310, 96
        %v1411 = vpop.permute.xlu0 %1410
        %1415 = vst.msk [vmem:[#allocation2 + $0x28] sm:$0xff] %vm613, %v1407
        %1416 = vst.msk [vmem:[#allocation2 + $0x60] sm:$0xff] %vm613, %v1409
        %1417 = vst.msk [vmem:[#allocation2 + $0x98] sm:$0xff] %vm613, %v1411
        %1418 = vst.msk [vmem:[#allocation2 + $0x30] sm:$0xff] %vm565, %v1315
        %1419 = vst.msk [vmem:[#allocation2 + $0x68] sm:$0xff] %vm565, %v1320
        %1420 = vst.msk [vmem:[#allocation2 + $0xa0] sm:$0xff] %vm565, %v1325
        %1424 = vrot.lane.b32.xlu0 %v1330, 32
        %v1425 = vpop.permute.xlu0 %1424
        %1426 = vrot.lane.b32.xlu0 %v1335, 32
        %v1427 = vpop.permute.xlu0 %1426
        %1428 = vrot.lane.b32.xlu0 %v1340, 32
        %v1429 = vpop.permute.xlu0 %1428
        %1433 = vst.msk [vmem:[#allocation2 + $0x30] sm:$0xff] %vm581, %v1425
        %1434 = vst.msk [vmem:[#allocation2 + $0x68] sm:$0xff] %vm581, %v1427
        %1435 = vst.msk [vmem:[#allocation2 + $0xa0] sm:$0xff] %vm581, %v1429
        %1439 = vrot.lane.b32.xlu0 %v1345, 64
        %v1440 = vpop.permute.xlu0 %1439
        %1441 = vrot.lane.b32.xlu0 %v1350, 64
        %v1442 = vpop.permute.xlu0 %1441
        %1443 = vrot.lane.b32.xlu0 %v1355, 64
        %v1444 = vpop.permute.xlu0 %1443
        %1448 = vst.msk [vmem:[#allocation2 + $0x30] sm:$0xff] %vm597, %v1440
        %1449 = vst.msk [vmem:[#allocation2 + $0x68] sm:$0xff] %vm597, %v1442
        %1450 = vst.msk [vmem:[#allocation2 + $0xa0] sm:$0xff] %vm597, %v1444
        %1454 = vrot.lane.b32.xlu0 %v1360, 96
        %v1455 = vpop.permute.xlu0 %1454
        %1456 = vrot.lane.b32.xlu0 %v1365, 96
        %v1457 = vpop.permute.xlu0 %1456
        %1458 = vrot.lane.b32.xlu0 %v1370, 96
        %v1459 = vpop.permute.xlu0 %1458
        %1463 = vst.msk [vmem:[#allocation2 + $0x30] sm:$0xff] %vm613, %v1455
        %1464 = vst.msk [vmem:[#allocation2 + $0x68] sm:$0xff] %vm613, %v1457
        %1465 = vst.msk [vmem:[#allocation2 + $0xa0] sm:$0xff] %vm613, %v1459
        %v1466 = vld [vmem:[#allocation2] sm:$0xff]
        %v1467 = vld [vmem:[#allocation2 + $0x8] sm:$0xff]
        %v1468 = vld [vmem:[#allocation2 + $0x10] sm:$0xff]
        %v1469 = vld [vmem:[#allocation2 + $0x18] sm:$0xff]
        %v1470 = vld [vmem:[#allocation2 + $0x20] sm:$0xff]
        %v1471 = vld [vmem:[#allocation2 + $0x28] sm:$0xff]
        %v1472 = vld [vmem:[#allocation2 + $0x30] sm:$0xff]
        %v1473 = vld [vmem:[#allocation2 + $0x38] sm:$0xff]
        %v1474 = vld [vmem:[#allocation2 + $0x40] sm:$0xff]
        %v1475 = vld [vmem:[#allocation2 + $0x48] sm:$0xff]
        %v1476 = vld [vmem:[#allocation2 + $0x50] sm:$0xff]
        %v1477 = vld [vmem:[#allocation2 + $0x58] sm:$0xff]
        %v1478 = vld [vmem:[#allocation2 + $0x60] sm:$0xff]
        %v1479 = vld [vmem:[#allocation2 + $0x68] sm:$0xff]
        %v1480 = vld [vmem:[#allocation2 + $0x70] sm:$0xff]
        %v1481 = vld [vmem:[#allocation2 + $0x78] sm:$0xff]
        %v1482 = vld [vmem:[#allocation2 + $0x80] sm:$0xff]
        %v1483 = vld [vmem:[#allocation2 + $0x88] sm:$0xff]
        %v1484 = vld [vmem:[#allocation2 + $0x90] sm:$0xff]
        %v1485 = vld [vmem:[#allocation2 + $0x98] sm:$0xff]
        %v1486 = vld [vmem:[#allocation2 + $0xa0] sm:$0xff]
        %v1487 = vpack.c.bf16 %v1473, %v1466
        %v1488 = vpack.c.bf16 %v1474, %v1467
        %v1489 = vpack.c.bf16 %v1475, %v1468
        %v1490 = vpack.c.bf16 %v1476, %v1469
        %v1491 = vpack.c.bf16 %v1477, %v1470
        %v1492 = vpack.c.bf16 %v1478, %v1471
        %v1493 = vpack.c.bf16 %v1479, %v1472
        %v1494 = vpack.c.bf16 %v1480, %v1480
        %v1495 = vpack.c.bf16 %v1481, %v1481
        %v1496 = vpack.c.bf16 %v1482, %v1482
        %v1497 = vpack.c.bf16 %v1483, %v1483
        %v1498 = vpack.c.bf16 %v1484, %v1484
        %v1499 = vpack.c.bf16 %v1485, %v1485
        %v1500 = vpack.c.bf16 %v1486, %v1486
        %v1501 = vld [vmem:[%s2] sm:$0xff]
        %v1502 = vld [vmem:[%s2 + $0x8] sm:$0xff]
        %v1503 = vld [vmem:[%s2 + $0x10] sm:$0xff]
        %v1504 = vld [vmem:[%s2 + $0x18] sm:$0xff]
        %v1505 = vld [vmem:[%s2 + $0x20] sm:$0xff]
        %v1506 = vld [vmem:[%s2 + $0x28] sm:$0xff]
        %v1507 = vld [vmem:[%s2 + $0x30] sm:$0xff]
        %v1508 = vld [vmem:[%s2 + $0x38] sm:$0xff]
        %v1509 = vld [vmem:[%s2 + $0x40] sm:$0xff]
        %v1510 = vld [vmem:[%s2 + $0x48] sm:$0xff]
        %v1511 = vld [vmem:[%s2 + $0x50] sm:$0xff]
        %v1512 = vld [vmem:[%s2 + $0x58] sm:$0xff]
        %v1513 = vld [vmem:[%s2 + $0x60] sm:$0xff]
        %v1514 = vld [vmem:[%s2 + $0x68] sm:$0xff]
        %v1515 = vld [vmem:[%s2 + $0x70] sm:$0xff]
        %v1516 = vld [vmem:[%s2 + $0x78] sm:$0xff]
        %v1517 = vld [vmem:[%s2 + $0x80] sm:$0xff]
        %v1518 = vld [vmem:[%s2 + $0x88] sm:$0xff]
        %v1519 = vld [vmem:[%s2 + $0x90] sm:$0xff]
        %v1520 = vld [vmem:[%s2 + $0x98] sm:$0xff]
        %v1521 = vld [vmem:[%s2 + $0xa0] sm:$0xff]
        %v1522 = vld [vmem:[%s2 + $0xa8] sm:$0xff]
        %v1523 = vld [vmem:[%s2 + $0xb0] sm:$0xff]
        %v1524 = vld [vmem:[%s2 + $0xb8] sm:$0xff]
        %v1525 = vld [vmem:[%s2 + $0xc0] sm:$0xff]
        %v1526 = vld [vmem:[%s2 + $0xc8] sm:$0xff]
        %v1527 = vld [vmem:[%s2 + $0xd0] sm:$0xff]
        %v1528 = vld [vmem:[%s2 + $0xd8] sm:$0xff]
        %v1529 = vld [vmem:[%s2 + $0xe0] sm:$0xff]
        %v1530 = vld [vmem:[%s2 + $0xe8] sm:$0xff]
        %v1531 = vld [vmem:[%s2 + $0xf0] sm:$0xff]
        %v1532 = vld [vmem:[%s2 + $0xf8] sm:$0xff]
        %v1533 = vld [vmem:[%s2 + $0x100] sm:$0xff]
        %v1534 = vld [vmem:[%s2 + $0x108] sm:$0xff]
        %v1535 = vld [vmem:[%s2 + $0x110] sm:$0xff]
        %v1536 = vld [vmem:[%s2 + $0x118] sm:$0xff]
        %v1537 = vld [vmem:[%s2 + $0x120] sm:$0xff]
        %v1538 = vld [vmem:[%s2 + $0x128] sm:$0xff]
        %v1539 = vld [vmem:[%s2 + $0x130] sm:$0xff]
        %v1540 = vld [vmem:[%s2 + $0x138] sm:$0xff]
        %v1541 = vld [vmem:[%s2 + $0x140] sm:$0xff]
        %v1542 = vld [vmem:[%s2 + $0x148] sm:$0xff]
        %v1543 = vld [vmem:[%s2 + $0x150] sm:$0xff]
        %v1544 = vld [vmem:[%s2 + $0x158] sm:$0xff]
        %v1545 = vld [vmem:[%s2 + $0x160] sm:$0xff]
        %v1546 = vld [vmem:[%s2 + $0x168] sm:$0xff]
        %v1547 = vld [vmem:[%s2 + $0x170] sm:$0xff]
        %v1548 = vld [vmem:[%s2 + $0x178] sm:$0xff]
        %v1549 = vld [vmem:[%s2 + $0x180] sm:$0xff]
        %v1550 = vld [vmem:[%s2 + $0x188] sm:$0xff]
        %v1551 = vld [vmem:[%s2 + $0x190] sm:$0xff]
        %v1552 = vld [vmem:[%s2 + $0x198] sm:$0xff]
        %v1553 = vld [vmem:[%s2 + $0x1a0] sm:$0xff]
        %v1554 = vld [vmem:[%s2 + $0x1a8] sm:$0xff]
        %v1555 = vld [vmem:[%s2 + $0x1b0] sm:$0xff]
        %v1556 = vld [vmem:[%s2 + $0x1b8] sm:$0xff]
        %v1557 = vld [vmem:[%s2 + $0x1c0] sm:$0xff]
        %v1558 = vld [vmem:[%s2 + $0x1c8] sm:$0xff]
        %v1559 = vld [vmem:[%s2 + $0x1d0] sm:$0xff]
        %v1560 = vld [vmem:[%s2 + $0x1d8] sm:$0xff]
        %v1561 = vld [vmem:[%s2 + $0x1e0] sm:$0xff]
        %v1562 = vld [vmem:[%s2 + $0x1e8] sm:$0xff]
        %v1563 = vld [vmem:[%s2 + $0x1f0] sm:$0xff]
        %v1564 = vld [vmem:[%s2 + $0x1f8] sm:$0xff]
        %v1565 = vld [vmem:[%s2 + $0x200] sm:$0xff]
        %v1566 = vld [vmem:[%s2 + $0x208] sm:$0xff]
        %v1567 = vld [vmem:[%s2 + $0x210] sm:$0xff]
        %v1568 = vld [vmem:[%s2 + $0x218] sm:$0xff]
        %v1569 = vld [vmem:[%s2 + $0x220] sm:$0xff]
        %v1570 = vld [vmem:[%s2 + $0x228] sm:$0xff]
        %v1571 = vld [vmem:[%s2 + $0x230] sm:$0xff]
        %v1572 = vld [vmem:[%s2 + $0x238] sm:$0xff]
        %v1573 = vld [vmem:[%s2 + $0x240] sm:$0xff]
        %v1574 = vld [vmem:[%s2 + $0x248] sm:$0xff]
        %v1575 = vld [vmem:[%s2 + $0x250] sm:$0xff]
        %v1576 = vld [vmem:[%s2 + $0x258] sm:$0xff]
        %v1577 = vld [vmem:[%s2 + $0x260] sm:$0xff]
        %v1578 = vld [vmem:[%s2 + $0x268] sm:$0xff]
        %v1579 = vld [vmem:[%s2 + $0x270] sm:$0xff]
        %v1580 = vld [vmem:[%s2 + $0x278] sm:$0xff]
        %v1581 = vld [vmem:[%s2 + $0x280] sm:$0xff]
        %v1582 = vld [vmem:[%s2 + $0x288] sm:$0xff]
        %v1583 = vld [vmem:[%s2 + $0x290] sm:$0xff]
        %v1584 = vld [vmem:[%s2 + $0x298] sm:$0xff]
        %v1585 = vld [vmem:[%s2 + $0x2a0] sm:$0xff]
        %v1586 = vld [vmem:[%s2 + $0x2a8] sm:$0xff]
        %v1587 = vld [vmem:[%s2 + $0x2b0] sm:$0xff]
        %v1588 = vld [vmem:[%s2 + $0x2b8] sm:$0xff]
        %v1589 = vld [vmem:[%s2 + $0x2c0] sm:$0xff]
        %v1590 = vld [vmem:[%s2 + $0x2c8] sm:$0xff]
        %v1591 = vld [vmem:[%s2 + $0x2d0] sm:$0xff]
        %v1592 = vld [vmem:[%s2 + $0x2d8] sm:$0xff]
        %v1593 = vld [vmem:[%s2 + $0x2e0] sm:$0xff]
        %v1594 = vld [vmem:[%s2 + $0x2e8] sm:$0xff]
        %v1595 = vld [vmem:[%s2 + $0x2f0] sm:$0xff]
        %v1596 = vld [vmem:[%s2 + $0x2f8] sm:$0xff]
        %v1597 = vld [vmem:[%s2 + $0x300] sm:$0xff]
        %v1598 = vld [vmem:[%s2 + $0x308] sm:$0xff]
        %v1599 = vld [vmem:[%s2 + $0x310] sm:$0xff]
        %v1600 = vld [vmem:[%s2 + $0x318] sm:$0xff]
        %v1601 = vld [vmem:[%s2 + $0x320] sm:$0xff]
        %v1602 = vld [vmem:[%s2 + $0x328] sm:$0xff]
        %v1603 = vld [vmem:[%s2 + $0x330] sm:$0xff]
        %v1604 = vld [vmem:[%s2 + $0x338] sm:$0xff]
        %v1605 = vld [vmem:[%s2 + $0x340] sm:$0xff]
        %v1606 = vld [vmem:[%s2 + $0x348] sm:$0xff]
        %v1607 = vld [vmem:[%s2 + $0x350] sm:$0xff]
        %v1608 = vld [vmem:[%s2 + $0x358] sm:$0xff]
        %v1609 = vld [vmem:[%s2 + $0x360] sm:$0xff]
        %v1610 = vld [vmem:[%s2 + $0x368] sm:$0xff]
        %v1611 = vld [vmem:[%s2 + $0x370] sm:$0xff]
        %v1612 = vld [vmem:[%s2 + $0x378] sm:$0xff]
        %v1613 = vld [vmem:[%s2 + $0x380] sm:$0xff]
        %v1614 = vld [vmem:[%s2 + $0x388] sm:$0xff]
        %v1615 = vld [vmem:[%s2 + $0x390] sm:$0xff]
        %v1616 = vld [vmem:[%s2 + $0x398] sm:$0xff]
        %v1617 = vld [vmem:[%s2 + $0x3a0] sm:$0xff]
        %v1618 = vld [vmem:[%s2 + $0x3a8] sm:$0xff]
        %v1619 = vld [vmem:[%s2 + $0x3b0] sm:$0xff]
        %v1620 = vld [vmem:[%s2 + $0x3b8] sm:$0xff]
        %v1621 = vld [vmem:[%s2 + $0x3c0] sm:$0xff]
        %v1622 = vld [vmem:[%s2 + $0x3c8] sm:$0xff]
        %v1623 = vld [vmem:[%s2 + $0x3d0] sm:$0xff]
        %v1624 = vld [vmem:[%s2 + $0x3d8] sm:$0xff]
        %v1625 = vld [vmem:[%s2 + $0x3e0] sm:$0xff]
        %v1626 = vld [vmem:[%s2 + $0x3e8] sm:$0xff]
        %v1627 = vld [vmem:[%s2 + $0x3f0] sm:$0xff]
        %v1628 = vld [vmem:[%s2 + $0x3f8] sm:$0xff]
        %v1629 = vld [vmem:[%s2 + $0x400] sm:$0xff]
        %v1630 = vld [vmem:[%s2 + $0x408] sm:$0xff]
        %v1631 = vld [vmem:[%s2 + $0x410] sm:$0xff]
        %v1632 = vld [vmem:[%s2 + $0x418] sm:$0xff]
        %v1633 = vld [vmem:[%s2 + $0x420] sm:$0xff]
        %v1634 = vld [vmem:[%s2 + $0x428] sm:$0xff]
        %v1635 = vld [vmem:[%s2 + $0x430] sm:$0xff]
        %v1636 = vld [vmem:[%s2 + $0x438] sm:$0xff]
        %v1637 = vld [vmem:[%s2 + $0x440] sm:$0xff]
        %v1638 = vld [vmem:[%s2 + $0x448] sm:$0xff]
        %v1639 = vld [vmem:[%s2 + $0x450] sm:$0xff]
        %v1640 = vld [vmem:[%s2 + $0x458] sm:$0xff]
        %v1641 = vld [vmem:[%s2 + $0x460] sm:$0xff]
        %v1642 = vld [vmem:[%s2 + $0x468] sm:$0xff]
        %v1643 = vld [vmem:[%s2 + $0x470] sm:$0xff]
        %v1644 = vld [vmem:[%s2 + $0x478] sm:$0xff]
        %v1645 = vld [vmem:[%s2 + $0x480] sm:$0xff]
        %v1646 = vld [vmem:[%s2 + $0x488] sm:$0xff]
        %v1647 = vld [vmem:[%s2 + $0x490] sm:$0xff]
        %v1648 = vld [vmem:[%s2 + $0x498] sm:$0xff]
        %v1649 = vld [vmem:[%s2 + $0x4a0] sm:$0xff]
        %v1650 = vld [vmem:[%s2 + $0x4a8] sm:$0xff]
        %v1651 = vld [vmem:[%s2 + $0x4b0] sm:$0xff]
        %v1652 = vld [vmem:[%s2 + $0x4b8] sm:$0xff]
        %v1653 = vld [vmem:[%s2 + $0x4c0] sm:$0xff]
        %v1654 = vld [vmem:[%s2 + $0x4c8] sm:$0xff]
        %v1655 = vld [vmem:[%s2 + $0x4d0] sm:$0xff]
        %v1656 = vld [vmem:[%s2 + $0x4d8] sm:$0xff]
        %v1657 = vld [vmem:[%s2 + $0x4e0] sm:$0xff]
        %v1658 = vld [vmem:[%s2 + $0x4e8] sm:$0xff]
        %v1659 = vld [vmem:[%s2 + $0x4f0] sm:$0xff]
        %v1660 = vld [vmem:[%s2 + $0x4f8] sm:$0xff]
        %v1661 = vld [vmem:[%s2 + $0x500] sm:$0xff]
        %v1662 = vld [vmem:[%s2 + $0x508] sm:$0xff]
        %v1663 = vld [vmem:[%s2 + $0x510] sm:$0xff]
        %v1664 = vld [vmem:[%s2 + $0x518] sm:$0xff]
        %v1665 = vld [vmem:[%s2 + $0x520] sm:$0xff]
        %v1666 = vld [vmem:[%s2 + $0x528] sm:$0xff]
        %v1667 = vld [vmem:[%s2 + $0x530] sm:$0xff]
        %v1668 = vld [vmem:[%s2 + $0x538] sm:$0xff]
        %v1669 = vld [vmem:[%s2 + $0x540] sm:$0xff]
        %v1670 = vld [vmem:[%s2 + $0x548] sm:$0xff]
        %v1671 = vld [vmem:[%s2 + $0x550] sm:$0xff]
        %v1672 = vld [vmem:[%s2 + $0x558] sm:$0xff]
        %v1673 = vld [vmem:[%s2 + $0x560] sm:$0xff]
        %v1674 = vld [vmem:[%s2 + $0x568] sm:$0xff]
        %v1675 = vld [vmem:[%s2 + $0x570] sm:$0xff]
        %v1676 = vld [vmem:[%s2 + $0x578] sm:$0xff]
        %v1677 = vld [vmem:[%s2 + $0x580] sm:$0xff]
        %v1678 = vld [vmem:[%s2 + $0x588] sm:$0xff]
        %v1679 = vld [vmem:[%s2 + $0x590] sm:$0xff]
        %v1680 = vld [vmem:[%s2 + $0x598] sm:$0xff]
        %v1681 = vld [vmem:[%s2 + $0x5a0] sm:$0xff]
        %v1682 = vld [vmem:[%s2 + $0x5a8] sm:$0xff]
        %v1683 = vld [vmem:[%s2 + $0x5b0] sm:$0xff]
        %v1684 = vld [vmem:[%s2 + $0x5b8] sm:$0xff]
        %v1685 = vld [vmem:[%s2 + $0x5c0] sm:$0xff]
        %v1686 = vld [vmem:[%s2 + $0x5c8] sm:$0xff]
        %v1687 = vld [vmem:[%s2 + $0x5d0] sm:$0xff]
        %v1688 = vld [vmem:[%s2 + $0x5d8] sm:$0xff]
        %v1689 = vld [vmem:[%s2 + $0x5e0] sm:$0xff]
        %v1690 = vld [vmem:[%s2 + $0x5e8] sm:$0xff]
        %v1691 = vld [vmem:[%s2 + $0x5f0] sm:$0xff]
        %v1692 = vld [vmem:[%s2 + $0x5f8] sm:$0xff]
        %v1693 = vld [vmem:[%s2 + $0x600] sm:$0xff]
        %v1694 = vld [vmem:[%s2 + $0x608] sm:$0xff]
        %v1695 = vld [vmem:[%s2 + $0x610] sm:$0xff]
        %v1696 = vld [vmem:[%s2 + $0x618] sm:$0xff]
        %v1697 = vld [vmem:[%s2 + $0x620] sm:$0xff]
        %v1698 = vld [vmem:[%s2 + $0x628] sm:$0xff]
        %v1699 = vld [vmem:[%s2 + $0x630] sm:$0xff]
        %v1700 = vld [vmem:[%s2 + $0x638] sm:$0xff]
        %v1701 = vld [vmem:[%s2 + $0x640] sm:$0xff]
        %v1702 = vld [vmem:[%s2 + $0x648] sm:$0xff]
        %v1703 = vld [vmem:[%s2 + $0x650] sm:$0xff]
        %v1704 = vld [vmem:[%s2 + $0x658] sm:$0xff]
        %v1705 = vld [vmem:[%s2 + $0x660] sm:$0xff]
        %v1706 = vld [vmem:[%s2 + $0x668] sm:$0xff]
        %v1707 = vld [vmem:[%s2 + $0x670] sm:$0xff]
        %v1708 = vld [vmem:[%s2 + $0x678] sm:$0xff]
        %v1709 = vld [vmem:[%s2 + $0x680] sm:$0xff]
        %v1710 = vld [vmem:[%s2 + $0x688] sm:$0xff]
        %v1711 = vld [vmem:[%s2 + $0x690] sm:$0xff]
        %v1712 = vld [vmem:[%s2 + $0x698] sm:$0xff]
        %v1713 = vld [vmem:[%s2 + $0x6a0] sm:$0xff]
        %v1714 = vld [vmem:[%s2 + $0x6a8] sm:$0xff]
        %v1715 = vld [vmem:[%s2 + $0x6b0] sm:$0xff]
        %v1716 = vld [vmem:[%s2 + $0x6b8] sm:$0xff]
        %v1717 = vld [vmem:[%s2 + $0x6c0] sm:$0xff]
        %v1718 = vld [vmem:[%s2 + $0x6c8] sm:$0xff]
        %v1719 = vld [vmem:[%s2 + $0x6d0] sm:$0xff]
        %v1720 = vld [vmem:[%s2 + $0x6d8] sm:$0xff]
        %v1721 = vld [vmem:[%s2 + $0x6e0] sm:$0xff]
        %v1722 = vld [vmem:[%s2 + $0x6e8] sm:$0xff]
        %v1723 = vld [vmem:[%s2 + $0x6f0] sm:$0xff]
        %v1724 = vld [vmem:[%s2 + $0x6f8] sm:$0xff]
        %v1725 = vld [vmem:[%s2 + $0x700] sm:$0xff]
        %v1726 = vld [vmem:[%s2 + $0x708] sm:$0xff]
        %v1727 = vld [vmem:[%s2 + $0x710] sm:$0xff]
        %v1728 = vld [vmem:[%s2 + $0x718] sm:$0xff]
        %v1729 = vld [vmem:[%s2 + $0x720] sm:$0xff]
        %v1730 = vld [vmem:[%s2 + $0x728] sm:$0xff]
        %v1731 = vld [vmem:[%s2 + $0x730] sm:$0xff]
        %v1732 = vld [vmem:[%s2 + $0x738] sm:$0xff]
        %v1733 = vld [vmem:[%s2 + $0x740] sm:$0xff]
        %v1734 = vld [vmem:[%s2 + $0x748] sm:$0xff]
        %v1735 = vld [vmem:[%s2 + $0x750] sm:$0xff]
        %v1736 = vld [vmem:[%s2 + $0x758] sm:$0xff]
        %v1737 = vld [vmem:[%s2 + $0x760] sm:$0xff]
        %v1738 = vld [vmem:[%s2 + $0x768] sm:$0xff]
        %v1739 = vld [vmem:[%s2 + $0x770] sm:$0xff]
        %v1740 = vld [vmem:[%s2 + $0x778] sm:$0xff]
        %v1741 = vld [vmem:[%s2 + $0x780] sm:$0xff]
        %v1742 = vld [vmem:[%s2 + $0x788] sm:$0xff]
        %v1743 = vld [vmem:[%s2 + $0x790] sm:$0xff]
        %v1744 = vld [vmem:[%s2 + $0x798] sm:$0xff]
        %v1745 = vld [vmem:[%s2 + $0x7a0] sm:$0xff]
        %v1746 = vld [vmem:[%s2 + $0x7a8] sm:$0xff]
        %v1747 = vld [vmem:[%s2 + $0x7b0] sm:$0xff]
        %v1748 = vld [vmem:[%s2 + $0x7b8] sm:$0xff]
        %v1749 = vld [vmem:[%s2 + $0x7c0] sm:$0xff]
        %v1750 = vld [vmem:[%s2 + $0x7c8] sm:$0xff]
        %v1751 = vld [vmem:[%s2 + $0x7d0] sm:$0xff]
        %v1752 = vld [vmem:[%s2 + $0x7d8] sm:$0xff]
        %v1753 = vld [vmem:[%s2 + $0x7e0] sm:$0xff]
        %v1754 = vld [vmem:[%s2 + $0x7e8] sm:$0xff]
        %v1755 = vld [vmem:[%s2 + $0x7f0] sm:$0xff]
        %v1756 = vld [vmem:[%s2 + $0x7f8] sm:$0xff]
        %v1757 = vld [vmem:[%s2 + $0x800] sm:$0xff]
        %v1758 = vld [vmem:[%s2 + $0x808] sm:$0xff]
        %v1759 = vld [vmem:[%s2 + $0x810] sm:$0xff]
        %v1760 = vld [vmem:[%s2 + $0x818] sm:$0xff]
        %v1761 = vld [vmem:[%s2 + $0x820] sm:$0xff]
        %v1762 = vld [vmem:[%s2 + $0x828] sm:$0xff]
        %v1763 = vld [vmem:[%s2 + $0x830] sm:$0xff]
        %v1764 = vld [vmem:[%s2 + $0x838] sm:$0xff]
        %v1765 = vld [vmem:[%s2 + $0x840] sm:$0xff]
        %v1766 = vld [vmem:[%s2 + $0x848] sm:$0xff]
        %v1767 = vld [vmem:[%s2 + $0x850] sm:$0xff]
        %v1768 = vld [vmem:[%s2 + $0x858] sm:$0xff]
        %v1769 = vld [vmem:[%s2 + $0x860] sm:$0xff]
        %v1770 = vld [vmem:[%s2 + $0x868] sm:$0xff]
        %v1771 = vld [vmem:[%s2 + $0x870] sm:$0xff]
        %v1772 = vld [vmem:[%s2 + $0x878] sm:$0xff]
        %v1773 = vld [vmem:[%s2 + $0x880] sm:$0xff]
        %v1774 = vld [vmem:[%s2 + $0x888] sm:$0xff]
        %v1775 = vld [vmem:[%s2 + $0x890] sm:$0xff]
        %v1776 = vld [vmem:[%s2 + $0x898] sm:$0xff]
        %v1777 = vld [vmem:[%s2 + $0x8a0] sm:$0xff]
        %v1778 = vld [vmem:[%s2 + $0x8a8] sm:$0xff]
        %v1779 = vld [vmem:[%s2 + $0x8b0] sm:$0xff]
        %v1780 = vld [vmem:[%s2 + $0x8b8] sm:$0xff]
        %v1781 = vld [vmem:[%s2 + $0x8c0] sm:$0xff]
        %v1782 = vld [vmem:[%s2 + $0x8c8] sm:$0xff]
        %v1783 = vld [vmem:[%s2 + $0x8d0] sm:$0xff]
        %v1784 = vld [vmem:[%s2 + $0x8d8] sm:$0xff]
        %v1785 = vld [vmem:[%s2 + $0x8e0] sm:$0xff]
        %v1786 = vld [vmem:[%s2 + $0x8e8] sm:$0xff]
        %v1787 = vld [vmem:[%s2 + $0x8f0] sm:$0xff]
        %v1788 = vld [vmem:[%s2 + $0x8f8] sm:$0xff]
        %v1789 = vld [vmem:[%s2 + $0x900] sm:$0xff]
        %v1790 = vld [vmem:[%s2 + $0x908] sm:$0xff]
        %v1791 = vld [vmem:[%s2 + $0x910] sm:$0xff]
        %v1792 = vld [vmem:[%s2 + $0x918] sm:$0xff]
        %v1793 = vld [vmem:[%s2 + $0x920] sm:$0xff]
        %v1794 = vld [vmem:[%s2 + $0x928] sm:$0xff]
        %v1795 = vld [vmem:[%s2 + $0x930] sm:$0xff]
        %v1796 = vld [vmem:[%s2 + $0x938] sm:$0xff]
        %v1797 = vld [vmem:[%s2 + $0x940] sm:$0xff]
        %v1798 = vld [vmem:[%s2 + $0x948] sm:$0xff]
        %v1799 = vld [vmem:[%s2 + $0x950] sm:$0xff]
        %v1800 = vld [vmem:[%s2 + $0x958] sm:$0xff]
        %v1801 = vld [vmem:[%s2 + $0x960] sm:$0xff]
        %v1802 = vld [vmem:[%s2 + $0x968] sm:$0xff]
        %v1803 = vld [vmem:[%s2 + $0x970] sm:$0xff]
        %v1804 = vld [vmem:[%s2 + $0x978] sm:$0xff]
        %v1805 = vld [vmem:[%s2 + $0x980] sm:$0xff]
        %v1806 = vld [vmem:[%s2 + $0x988] sm:$0xff]
        %v1807 = vld [vmem:[%s2 + $0x990] sm:$0xff]
        %v1808 = vld [vmem:[%s2 + $0x998] sm:$0xff]
        %v1809 = vld [vmem:[%s2 + $0x9a0] sm:$0xff]
        %v1810 = vld [vmem:[%s2 + $0x9a8] sm:$0xff]
        %v1811 = vld [vmem:[%s2 + $0x9b0] sm:$0xff]
        %v1812 = vld [vmem:[%s2 + $0x9b8] sm:$0xff]
        %v1813 = vld [vmem:[%s2 + $0x9c0] sm:$0xff]
        %v1814 = vld [vmem:[%s2 + $0x9c8] sm:$0xff]
        %v1815 = vld [vmem:[%s2 + $0x9d0] sm:$0xff]
        %v1816 = vld [vmem:[%s2 + $0x9d8] sm:$0xff]
        %v1817 = vld [vmem:[%s2 + $0x9e0] sm:$0xff]
        %v1818 = vld [vmem:[%s2 + $0x9e8] sm:$0xff]
        %v1819 = vld [vmem:[%s2 + $0x9f0] sm:$0xff]
        %v1820 = vld [vmem:[%s2 + $0x9f8] sm:$0xff]
        %v1821 = vld [vmem:[%s2 + $0xa00] sm:$0xff]
        %v1822 = vld [vmem:[%s2 + $0xa08] sm:$0xff]
        %v1823 = vld [vmem:[%s2 + $0xa10] sm:$0xff]
        %v1824 = vld [vmem:[%s2 + $0xa18] sm:$0xff]
        %v1825 = vld [vmem:[%s2 + $0xa20] sm:$0xff]
        %v1826 = vld [vmem:[%s2 + $0xa28] sm:$0xff]
        %v1827 = vld [vmem:[%s2 + $0xa30] sm:$0xff]
        %v1828 = vld [vmem:[%s2 + $0xa38] sm:$0xff]
        %v1829 = vld [vmem:[%s2 + $0xa40] sm:$0xff]
        %v1830 = vld [vmem:[%s2 + $0xa48] sm:$0xff]
        %v1831 = vld [vmem:[%s2 + $0xa50] sm:$0xff]
        %v1832 = vld [vmem:[%s2 + $0xa58] sm:$0xff]
        %v1833 = vld [vmem:[%s2 + $0xa60] sm:$0xff]
        %v1834 = vld [vmem:[%s2 + $0xa68] sm:$0xff]
        %v1835 = vld [vmem:[%s2 + $0xa70] sm:$0xff]
        %v1836 = vld [vmem:[%s2 + $0xa78] sm:$0xff]
        %v1837 = vld [vmem:[%s3] sm:$0x3f]
        %v1839 = vlaneseq
        %v1840 = vshrl.u32 %v1839, 7
        %v1841 = vsub.s32 0, %v1840
        %v1842 = vrot.slane %v1837, %v1841
        %v1843 = vlaneseq
        %v1844 = vshrl.u32 %v1843, 7
        %v1845 = vsub.s32 1, %v1844
        %v1846 = vrot.slane %v1837, %v1845
        %v1847 = vlaneseq
        %v1848 = vshrl.u32 %v1847, 7
        %v1849 = vsub.s32 2, %v1848
        %v1850 = vrot.slane %v1837, %v1849
        %v1851 = vlaneseq
        %v1852 = vshrl.u32 %v1851, 7
        %v1853 = vsub.s32 3, %v1852
        %v1854 = vrot.slane %v1837, %v1853
        %v1855 = vlaneseq
        %v1856 = vshrl.u32 %v1855, 7
        %v1857 = vsub.s32 4, %v1856
        %v1858 = vrot.slane %v1837, %v1857
        %v1859 = vlaneseq
        %v1860 = vshrl.u32 %v1859, 7
        %v1861 = vsub.s32 5, %v1860
        %v1862 = vrot.slane %v1837, %v1861
        %v2205 = vunpack.c.l.b16 %v1501
        %v2206 = vunpack.c.h.b16 %v1501
        %v2207 = vunpack.c.l.b16 %v1502
        %v2208 = vunpack.c.h.b16 %v1502
        %v2209 = vunpack.c.l.b16 %v1503
        %v2210 = vunpack.c.h.b16 %v1503
        %v2211 = vunpack.c.l.b16 %v1504
        %v2212 = vunpack.c.h.b16 %v1504
        %v2213 = vunpack.c.l.b16 %v1505
        %v2214 = vunpack.c.h.b16 %v1505
        %v2215 = vunpack.c.l.b16 %v1506
        %v2216 = vunpack.c.h.b16 %v1506
        %v2217 = vunpack.c.l.b16 %v1507
        %v2218 = vunpack.c.h.b16 %v1507
        %v2219 = vunpack.c.l.b16 %v1508
        %v2220 = vunpack.c.h.b16 %v1508
        %v2221 = vunpack.c.l.b16 %v1509
        %v2222 = vunpack.c.h.b16 %v1509
        %v2223 = vunpack.c.l.b16 %v1510
        %v2224 = vunpack.c.h.b16 %v1510
        %v2225 = vunpack.c.l.b16 %v1511
        %v2226 = vunpack.c.h.b16 %v1511
        %v2227 = vunpack.c.l.b16 %v1512
        %v2228 = vunpack.c.h.b16 %v1512
        %v2229 = vunpack.c.l.b16 %v1513
        %v2230 = vunpack.c.h.b16 %v1513
        %v2231 = vunpack.c.l.b16 %v1514
        %v2232 = vunpack.c.h.b16 %v1514
        %v2233 = vunpack.c.l.b16 %v1515
        %v2234 = vunpack.c.h.b16 %v1515
        %v2235 = vunpack.c.l.b16 %v1516
        %v2236 = vunpack.c.h.b16 %v1516
        %v2237 = vunpack.c.l.b16 %v1517
        %v2238 = vunpack.c.h.b16 %v1517
        %v2239 = vunpack.c.l.b16 %v1518
        %v2240 = vunpack.c.h.b16 %v1518
        %v2241 = vunpack.c.l.b16 %v1519
        %v2242 = vunpack.c.h.b16 %v1519
        %v2243 = vunpack.c.l.b16 %v1520
        %v2244 = vunpack.c.h.b16 %v1520
        %v2245 = vunpack.c.l.b16 %v1521
        %v2246 = vunpack.c.h.b16 %v1521
        %v2247 = vunpack.c.l.b16 %v1522
        %v2248 = vunpack.c.h.b16 %v1522
        %v2249 = vunpack.c.l.b16 %v1523
        %v2250 = vunpack.c.h.b16 %v1523
        %v2251 = vunpack.c.l.b16 %v1524
        %v2252 = vunpack.c.h.b16 %v1524
        %v2253 = vunpack.c.l.b16 %v1525
        %v2254 = vunpack.c.h.b16 %v1525
        %v2255 = vunpack.c.l.b16 %v1526
        %v2256 = vunpack.c.h.b16 %v1526
        %v2257 = vunpack.c.l.b16 %v1527
        %v2258 = vunpack.c.h.b16 %v1527
        %v2259 = vunpack.c.l.b16 %v1528
        %v2260 = vunpack.c.h.b16 %v1528
        %v2261 = vunpack.c.l.b16 %v1529
        %v2262 = vunpack.c.h.b16 %v1529
        %v2263 = vunpack.c.l.b16 %v1530
        %v2264 = vunpack.c.h.b16 %v1530
        %v2265 = vunpack.c.l.b16 %v1531
        %v2266 = vunpack.c.h.b16 %v1531
        %v2267 = vunpack.c.l.b16 %v1532
        %v2268 = vunpack.c.h.b16 %v1532
        %v2269 = vunpack.c.l.b16 %v1533
        %v2270 = vunpack.c.h.b16 %v1533
        %v2271 = vunpack.c.l.b16 %v1534
        %v2272 = vunpack.c.h.b16 %v1534
        %v2273 = vunpack.c.l.b16 %v1535
        %v2274 = vunpack.c.h.b16 %v1535
        %v2275 = vunpack.c.l.b16 %v1536
        %v2276 = vunpack.c.h.b16 %v1536
        %v2277 = vunpack.c.l.b16 %v1537
        %v2278 = vunpack.c.h.b16 %v1537
        %v2279 = vunpack.c.l.b16 %v1538
        %v2280 = vunpack.c.h.b16 %v1538
        %v2281 = vunpack.c.l.b16 %v1539
        %v2282 = vunpack.c.h.b16 %v1539
        %v2283 = vunpack.c.l.b16 %v1540
        %v2284 = vunpack.c.h.b16 %v1540
        %v2285 = vunpack.c.l.b16 %v1541
        %v2286 = vunpack.c.h.b16 %v1541
        %v2287 = vunpack.c.l.b16 %v1542
        %v2288 = vunpack.c.h.b16 %v1542
        %v2289 = vunpack.c.l.b16 %v1543
        %v2290 = vunpack.c.h.b16 %v1543
        %v2291 = vunpack.c.l.b16 %v1544
        %v2292 = vunpack.c.h.b16 %v1544
        %v2293 = vunpack.c.l.b16 %v1545
        %v2294 = vunpack.c.h.b16 %v1545
        %v2295 = vunpack.c.l.b16 %v1546
        %v2296 = vunpack.c.h.b16 %v1546
        %v2297 = vunpack.c.l.b16 %v1547
        %v2298 = vunpack.c.h.b16 %v1547
        %v2299 = vunpack.c.l.b16 %v1548
        %v2300 = vunpack.c.h.b16 %v1548
        %v2301 = vunpack.c.l.b16 %v1549
        %v2302 = vunpack.c.h.b16 %v1549
        %v2303 = vunpack.c.l.b16 %v1550
        %v2304 = vunpack.c.h.b16 %v1550
        %v2305 = vunpack.c.l.b16 %v1551
        %v2306 = vunpack.c.h.b16 %v1551
        %v2307 = vunpack.c.l.b16 %v1552
        %v2308 = vunpack.c.h.b16 %v1552
        %v2309 = vunpack.c.l.b16 %v1553
        %v2310 = vunpack.c.h.b16 %v1553
        %v2311 = vunpack.c.l.b16 %v1554
        %v2312 = vunpack.c.h.b16 %v1554
        %v2313 = vunpack.c.l.b16 %v1555
        %v2314 = vunpack.c.h.b16 %v1555
        %v2315 = vunpack.c.l.b16 %v1556
        %v2316 = vunpack.c.h.b16 %v1556
        %v2317 = vunpack.c.l.b16 %v1557
        %v2318 = vunpack.c.h.b16 %v1557
        %v2319 = vunpack.c.l.b16 %v1558
        %v2320 = vunpack.c.h.b16 %v1558
        %v2321 = vunpack.c.l.b16 %v1559
        %v2322 = vunpack.c.h.b16 %v1559
        %v2323 = vunpack.c.l.b16 %v1560
        %v2324 = vunpack.c.h.b16 %v1560
        %v2325 = vunpack.c.l.b16 %v1561
        %v2326 = vunpack.c.h.b16 %v1561
        %v2327 = vunpack.c.l.b16 %v1562
        %v2328 = vunpack.c.h.b16 %v1562
        %v2329 = vunpack.c.l.b16 %v1563
        %v2330 = vunpack.c.h.b16 %v1563
        %v2331 = vunpack.c.l.b16 %v1564
        %v2332 = vunpack.c.h.b16 %v1564
        %v2333 = vunpack.c.l.b16 %v1565
        %v2334 = vunpack.c.h.b16 %v1565
        %v2335 = vunpack.c.l.b16 %v1566
        %v2336 = vunpack.c.h.b16 %v1566
        %v2337 = vunpack.c.l.b16 %v1567
        %v2338 = vunpack.c.h.b16 %v1567
        %v2339 = vunpack.c.l.b16 %v1568
        %v2340 = vunpack.c.h.b16 %v1568
        %v2341 = vunpack.c.l.b16 %v1569
        %v2342 = vunpack.c.h.b16 %v1569
        %v2343 = vunpack.c.l.b16 %v1570
        %v2344 = vunpack.c.h.b16 %v1570
        %v2345 = vunpack.c.l.b16 %v1571
        %v2346 = vunpack.c.h.b16 %v1571
        %v2347 = vunpack.c.l.b16 %v1572
        %v2348 = vunpack.c.h.b16 %v1572
        %v2349 = vunpack.c.l.b16 %v1573
        %v2350 = vunpack.c.h.b16 %v1573
        %v2351 = vunpack.c.l.b16 %v1574
        %v2352 = vunpack.c.h.b16 %v1574
        %v2353 = vunpack.c.l.b16 %v1575
        %v2354 = vunpack.c.h.b16 %v1575
        %v2355 = vunpack.c.l.b16 %v1576
        %v2356 = vunpack.c.h.b16 %v1576
        %v2357 = vunpack.c.l.b16 %v1577
        %v2358 = vunpack.c.h.b16 %v1577
        %v2359 = vunpack.c.l.b16 %v1578
        %v2360 = vunpack.c.h.b16 %v1578
        %v2361 = vunpack.c.l.b16 %v1579
        %v2362 = vunpack.c.h.b16 %v1579
        %v2363 = vunpack.c.l.b16 %v1580
        %v2364 = vunpack.c.h.b16 %v1580
        %v2365 = vunpack.c.l.b16 %v1581
        %v2366 = vunpack.c.h.b16 %v1581
        %v2367 = vunpack.c.l.b16 %v1582
        %v2368 = vunpack.c.h.b16 %v1582
        %v2369 = vunpack.c.l.b16 %v1583
        %v2370 = vunpack.c.h.b16 %v1583
        %v2371 = vunpack.c.l.b16 %v1584
        %v2372 = vunpack.c.h.b16 %v1584
        %v2373 = vunpack.c.l.b16 %v1585
        %v2374 = vunpack.c.h.b16 %v1585
        %v2375 = vunpack.c.l.b16 %v1586
        %v2376 = vunpack.c.h.b16 %v1586
        %v2377 = vunpack.c.l.b16 %v1587
        %v2378 = vunpack.c.h.b16 %v1587
        %v2379 = vunpack.c.l.b16 %v1588
        %v2380 = vunpack.c.h.b16 %v1588
        %v2381 = vunpack.c.l.b16 %v1589
        %v2382 = vunpack.c.h.b16 %v1589
        %v2383 = vunpack.c.l.b16 %v1590
        %v2384 = vunpack.c.h.b16 %v1590
        %v2385 = vunpack.c.l.b16 %v1591
        %v2386 = vunpack.c.h.b16 %v1591
        %v2387 = vunpack.c.l.b16 %v1592
        %v2388 = vunpack.c.h.b16 %v1592
        %v2389 = vunpack.c.l.b16 %v1593
        %v2390 = vunpack.c.h.b16 %v1593
        %v2391 = vunpack.c.l.b16 %v1594
        %v2392 = vunpack.c.h.b16 %v1594
        %v2393 = vunpack.c.l.b16 %v1595
        %v2394 = vunpack.c.h.b16 %v1595
        %v2395 = vunpack.c.l.b16 %v1596
        %v2396 = vunpack.c.h.b16 %v1596
        %v2397 = vunpack.c.l.b16 %v1597
        %v2398 = vunpack.c.h.b16 %v1597
        %v2399 = vunpack.c.l.b16 %v1598
        %v2400 = vunpack.c.h.b16 %v1598
        %v2401 = vunpack.c.l.b16 %v1599
        %v2402 = vunpack.c.h.b16 %v1599
        %v2403 = vunpack.c.l.b16 %v1600
        %v2404 = vunpack.c.h.b16 %v1600
        %v2405 = vunpack.c.l.b16 %v1601
        %v2406 = vunpack.c.h.b16 %v1601
        %v2407 = vunpack.c.l.b16 %v1602
        %v2408 = vunpack.c.h.b16 %v1602
        %v2409 = vunpack.c.l.b16 %v1603
        %v2410 = vunpack.c.h.b16 %v1603
        %v2411 = vunpack.c.l.b16 %v1604
        %v2412 = vunpack.c.h.b16 %v1604
        %v2413 = vunpack.c.l.b16 %v1605
        %v2414 = vunpack.c.h.b16 %v1605
        %v2415 = vunpack.c.l.b16 %v1606
        %v2416 = vunpack.c.h.b16 %v1606
        %v2417 = vunpack.c.l.b16 %v1607
        %v2418 = vunpack.c.h.b16 %v1607
        %v2419 = vunpack.c.l.b16 %v1608
        %v2420 = vunpack.c.h.b16 %v1608
        %v2421 = vunpack.c.l.b16 %v1609
        %v2422 = vunpack.c.h.b16 %v1609
        %v2423 = vunpack.c.l.b16 %v1610
        %v2424 = vunpack.c.h.b16 %v1610
        %v2425 = vunpack.c.l.b16 %v1611
        %v2426 = vunpack.c.h.b16 %v1611
        %v2427 = vunpack.c.l.b16 %v1612
        %v2428 = vunpack.c.h.b16 %v1612
        %v2429 = vunpack.c.l.b16 %v1613
        %v2430 = vunpack.c.h.b16 %v1613
        %v2431 = vunpack.c.l.b16 %v1614
        %v2432 = vunpack.c.h.b16 %v1614
        %v2433 = vunpack.c.l.b16 %v1615
        %v2434 = vunpack.c.h.b16 %v1615
        %v2435 = vunpack.c.l.b16 %v1616
        %v2436 = vunpack.c.h.b16 %v1616
        %v2437 = vunpack.c.l.b16 %v1617
        %v2438 = vunpack.c.h.b16 %v1617
        %v2439 = vunpack.c.l.b16 %v1618
        %v2440 = vunpack.c.h.b16 %v1618
        %v2441 = vunpack.c.l.b16 %v1619
        %v2442 = vunpack.c.h.b16 %v1619
        %v2443 = vunpack.c.l.b16 %v1620
        %v2444 = vunpack.c.h.b16 %v1620
        %v2445 = vunpack.c.l.b16 %v1621
        %v2446 = vunpack.c.h.b16 %v1621
        %v2447 = vunpack.c.l.b16 %v1622
        %v2448 = vunpack.c.h.b16 %v1622
        %v2449 = vunpack.c.l.b16 %v1623
        %v2450 = vunpack.c.h.b16 %v1623
        %v2451 = vunpack.c.l.b16 %v1624
        %v2452 = vunpack.c.h.b16 %v1624
        %v2453 = vunpack.c.l.b16 %v1625
        %v2454 = vunpack.c.h.b16 %v1625
        %v2455 = vunpack.c.l.b16 %v1626
        %v2456 = vunpack.c.h.b16 %v1626
        %v2457 = vunpack.c.l.b16 %v1627
        %v2458 = vunpack.c.h.b16 %v1627
        %v2459 = vunpack.c.l.b16 %v1628
        %v2460 = vunpack.c.h.b16 %v1628
        %v2461 = vunpack.c.l.b16 %v1629
        %v2462 = vunpack.c.h.b16 %v1629
        %v2463 = vunpack.c.l.b16 %v1630
        %v2464 = vunpack.c.h.b16 %v1630
        %v2465 = vunpack.c.l.b16 %v1631
        %v2466 = vunpack.c.h.b16 %v1631
        %v2467 = vunpack.c.l.b16 %v1632
        %v2468 = vunpack.c.h.b16 %v1632
        %v2469 = vunpack.c.l.b16 %v1633
        %v2470 = vunpack.c.h.b16 %v1633
        %v2471 = vunpack.c.l.b16 %v1634
        %v2472 = vunpack.c.h.b16 %v1634
        %v2473 = vunpack.c.l.b16 %v1635
        %v2474 = vunpack.c.h.b16 %v1635
        %v2475 = vunpack.c.l.b16 %v1636
        %v2476 = vunpack.c.h.b16 %v1636
        %v2477 = vunpack.c.l.b16 %v1637
        %v2478 = vunpack.c.h.b16 %v1637
        %v2479 = vunpack.c.l.b16 %v1638
        %v2480 = vunpack.c.h.b16 %v1638
        %v2481 = vunpack.c.l.b16 %v1639
        %v2482 = vunpack.c.h.b16 %v1639
        %v2483 = vunpack.c.l.b16 %v1640
        %v2484 = vunpack.c.h.b16 %v1640
        %v2485 = vunpack.c.l.b16 %v1641
        %v2486 = vunpack.c.h.b16 %v1641
        %v2487 = vunpack.c.l.b16 %v1642
        %v2488 = vunpack.c.h.b16 %v1642
        %v2489 = vunpack.c.l.b16 %v1643
        %v2490 = vunpack.c.h.b16 %v1643
        %v2491 = vunpack.c.l.b16 %v1644
        %v2492 = vunpack.c.h.b16 %v1644
        %v2493 = vunpack.c.l.b16 %v1645
        %v2494 = vunpack.c.h.b16 %v1645
        %v2495 = vunpack.c.l.b16 %v1646
        %v2496 = vunpack.c.h.b16 %v1646
        %v2497 = vunpack.c.l.b16 %v1647
        %v2498 = vunpack.c.h.b16 %v1647
        %v2499 = vunpack.c.l.b16 %v1648
        %v2500 = vunpack.c.h.b16 %v1648
        %v2501 = vunpack.c.l.b16 %v1649
        %v2502 = vunpack.c.h.b16 %v1649
        %v2503 = vunpack.c.l.b16 %v1650
        %v2504 = vunpack.c.h.b16 %v1650
        %v2505 = vunpack.c.l.b16 %v1651
        %v2506 = vunpack.c.h.b16 %v1651
        %v2507 = vunpack.c.l.b16 %v1652
        %v2508 = vunpack.c.h.b16 %v1652
        %v2509 = vunpack.c.l.b16 %v1653
        %v2510 = vunpack.c.h.b16 %v1653
        %v2511 = vunpack.c.l.b16 %v1654
        %v2512 = vunpack.c.h.b16 %v1654
        %v2513 = vunpack.c.l.b16 %v1655
        %v2514 = vunpack.c.h.b16 %v1655
        %v2515 = vunpack.c.l.b16 %v1656
        %v2516 = vunpack.c.h.b16 %v1656
        %v2517 = vunpack.c.l.b16 %v1657
        %v2518 = vunpack.c.h.b16 %v1657
        %v2519 = vunpack.c.l.b16 %v1658
        %v2520 = vunpack.c.h.b16 %v1658
        %v2521 = vunpack.c.l.b16 %v1659
        %v2522 = vunpack.c.h.b16 %v1659
        %v2523 = vunpack.c.l.b16 %v1660
        %v2524 = vunpack.c.h.b16 %v1660
        %v2525 = vunpack.c.l.b16 %v1661
        %v2526 = vunpack.c.h.b16 %v1661
        %v2527 = vunpack.c.l.b16 %v1662
        %v2528 = vunpack.c.h.b16 %v1662
        %v2529 = vunpack.c.l.b16 %v1663
        %v2530 = vunpack.c.h.b16 %v1663
        %v2531 = vunpack.c.l.b16 %v1664
        %v2532 = vunpack.c.h.b16 %v1664
        %v2533 = vunpack.c.l.b16 %v1665
        %v2534 = vunpack.c.h.b16 %v1665
        %v2535 = vunpack.c.l.b16 %v1666
        %v2536 = vunpack.c.h.b16 %v1666
        %v2537 = vunpack.c.l.b16 %v1667
        %v2538 = vunpack.c.h.b16 %v1667
        %v2539 = vunpack.c.l.b16 %v1668
        %v2540 = vunpack.c.h.b16 %v1668
        %v2541 = vunpack.c.l.b16 %v1669
        %v2542 = vunpack.c.h.b16 %v1669
        %v2543 = vunpack.c.l.b16 %v1670
        %v2544 = vunpack.c.h.b16 %v1670
        %v2545 = vunpack.c.l.b16 %v1671
        %v2546 = vunpack.c.h.b16 %v1671
        %v2547 = vunpack.c.l.b16 %v1672
        %v2548 = vunpack.c.h.b16 %v1672
        %v2549 = vunpack.c.l.b16 %v1673
        %v2550 = vunpack.c.h.b16 %v1673
        %v2551 = vunpack.c.l.b16 %v1674
        %v2552 = vunpack.c.h.b16 %v1674
        %v2553 = vunpack.c.l.b16 %v1675
        %v2554 = vunpack.c.h.b16 %v1675
        %v2555 = vunpack.c.l.b16 %v1676
        %v2556 = vunpack.c.h.b16 %v1676
        %v2557 = vunpack.c.l.b16 %v1677
        %v2558 = vunpack.c.h.b16 %v1677
        %v2559 = vunpack.c.l.b16 %v1678
        %v2560 = vunpack.c.h.b16 %v1678
        %v2561 = vunpack.c.l.b16 %v1679
        %v2562 = vunpack.c.h.b16 %v1679
        %v2563 = vunpack.c.l.b16 %v1680
        %v2564 = vunpack.c.h.b16 %v1680
        %v2565 = vunpack.c.l.b16 %v1681
        %v2566 = vunpack.c.h.b16 %v1681
        %v2567 = vunpack.c.l.b16 %v1682
        %v2568 = vunpack.c.h.b16 %v1682
        %v2569 = vunpack.c.l.b16 %v1683
        %v2570 = vunpack.c.h.b16 %v1683
        %v2571 = vunpack.c.l.b16 %v1684
        %v2572 = vunpack.c.h.b16 %v1684
        %v2573 = vunpack.c.l.b16 %v1685
        %v2574 = vunpack.c.h.b16 %v1685
        %v2575 = vunpack.c.l.b16 %v1686
        %v2576 = vunpack.c.h.b16 %v1686
        %v2577 = vunpack.c.l.b16 %v1687
        %v2578 = vunpack.c.h.b16 %v1687
        %v2579 = vunpack.c.l.b16 %v1688
        %v2580 = vunpack.c.h.b16 %v1688
        %v2581 = vunpack.c.l.b16 %v1689
        %v2582 = vunpack.c.h.b16 %v1689
        %v2583 = vunpack.c.l.b16 %v1690
        %v2584 = vunpack.c.h.b16 %v1690
        %v2585 = vunpack.c.l.b16 %v1691
        %v2586 = vunpack.c.h.b16 %v1691
        %v2587 = vunpack.c.l.b16 %v1692
        %v2588 = vunpack.c.h.b16 %v1692
        %v2589 = vunpack.c.l.b16 %v1693
        %v2590 = vunpack.c.h.b16 %v1693
        %v2591 = vunpack.c.l.b16 %v1694
        %v2592 = vunpack.c.h.b16 %v1694
        %v2593 = vunpack.c.l.b16 %v1695
        %v2594 = vunpack.c.h.b16 %v1695
        %v2595 = vunpack.c.l.b16 %v1696
        %v2596 = vunpack.c.h.b16 %v1696
        %v2597 = vunpack.c.l.b16 %v1697
        %v2598 = vunpack.c.h.b16 %v1697
        %v2599 = vunpack.c.l.b16 %v1698
        %v2600 = vunpack.c.h.b16 %v1698
        %v2601 = vunpack.c.l.b16 %v1699
        %v2602 = vunpack.c.h.b16 %v1699
        %v2603 = vunpack.c.l.b16 %v1700
        %v2604 = vunpack.c.h.b16 %v1700
        %v2605 = vunpack.c.l.b16 %v1701
        %v2606 = vunpack.c.h.b16 %v1701
        %v2607 = vunpack.c.l.b16 %v1702
        %v2608 = vunpack.c.h.b16 %v1702
        %v2609 = vunpack.c.l.b16 %v1703
        %v2610 = vunpack.c.h.b16 %v1703
        %v2611 = vunpack.c.l.b16 %v1704
        %v2612 = vunpack.c.h.b16 %v1704
        %v2613 = vunpack.c.l.b16 %v1705
        %v2614 = vunpack.c.h.b16 %v1705
        %v2615 = vunpack.c.l.b16 %v1706
        %v2616 = vunpack.c.h.b16 %v1706
        %v2617 = vunpack.c.l.b16 %v1707
        %v2618 = vunpack.c.h.b16 %v1707
        %v2619 = vunpack.c.l.b16 %v1708
        %v2620 = vunpack.c.h.b16 %v1708
        %v2621 = vunpack.c.l.b16 %v1709
        %v2622 = vunpack.c.h.b16 %v1709
        %v2623 = vunpack.c.l.b16 %v1710
        %v2624 = vunpack.c.h.b16 %v1710
        %v2625 = vunpack.c.l.b16 %v1711
        %v2626 = vunpack.c.h.b16 %v1711
        %v2627 = vunpack.c.l.b16 %v1712
        %v2628 = vunpack.c.h.b16 %v1712
        %v2629 = vunpack.c.l.b16 %v1713
        %v2630 = vunpack.c.h.b16 %v1713
        %v2631 = vunpack.c.l.b16 %v1714
        %v2632 = vunpack.c.h.b16 %v1714
        %v2633 = vunpack.c.l.b16 %v1715
        %v2634 = vunpack.c.h.b16 %v1715
        %v2635 = vunpack.c.l.b16 %v1716
        %v2636 = vunpack.c.h.b16 %v1716
        %v2637 = vunpack.c.l.b16 %v1717
        %v2638 = vunpack.c.h.b16 %v1717
        %v2639 = vunpack.c.l.b16 %v1718
        %v2640 = vunpack.c.h.b16 %v1718
        %v2641 = vunpack.c.l.b16 %v1719
        %v2642 = vunpack.c.h.b16 %v1719
        %v2643 = vunpack.c.l.b16 %v1720
        %v2644 = vunpack.c.h.b16 %v1720
        %v2645 = vunpack.c.l.b16 %v1721
        %v2646 = vunpack.c.h.b16 %v1721
        %v2647 = vunpack.c.l.b16 %v1722
        %v2648 = vunpack.c.h.b16 %v1722
        %v2649 = vunpack.c.l.b16 %v1723
        %v2650 = vunpack.c.h.b16 %v1723
        %v2651 = vunpack.c.l.b16 %v1724
        %v2652 = vunpack.c.h.b16 %v1724
        %v2653 = vunpack.c.l.b16 %v1725
        %v2654 = vunpack.c.h.b16 %v1725
        %v2655 = vunpack.c.l.b16 %v1726
        %v2656 = vunpack.c.h.b16 %v1726
        %v2657 = vunpack.c.l.b16 %v1727
        %v2658 = vunpack.c.h.b16 %v1727
        %v2659 = vunpack.c.l.b16 %v1728
        %v2660 = vunpack.c.h.b16 %v1728
        %v2661 = vunpack.c.l.b16 %v1729
        %v2662 = vunpack.c.h.b16 %v1729
        %v2663 = vunpack.c.l.b16 %v1730
        %v2664 = vunpack.c.h.b16 %v1730
        %v2665 = vunpack.c.l.b16 %v1731
        %v2666 = vunpack.c.h.b16 %v1731
        %v2667 = vunpack.c.l.b16 %v1732
        %v2668 = vunpack.c.h.b16 %v1732
        %v2669 = vunpack.c.l.b16 %v1733
        %v2670 = vunpack.c.h.b16 %v1733
        %v2671 = vunpack.c.l.b16 %v1734
        %v2672 = vunpack.c.h.b16 %v1734
        %v2673 = vunpack.c.l.b16 %v1735
        %v2674 = vunpack.c.h.b16 %v1735
        %v2675 = vunpack.c.l.b16 %v1736
        %v2676 = vunpack.c.h.b16 %v1736
        %v2677 = vunpack.c.l.b16 %v1737
        %v2678 = vunpack.c.h.b16 %v1737
        %v2679 = vunpack.c.l.b16 %v1738
        %v2680 = vunpack.c.h.b16 %v1738
        %v2681 = vunpack.c.l.b16 %v1739
        %v2682 = vunpack.c.h.b16 %v1739
        %v2683 = vunpack.c.l.b16 %v1740
        %v2684 = vunpack.c.h.b16 %v1740
        %v2685 = vunpack.c.l.b16 %v1741
        %v2686 = vunpack.c.h.b16 %v1741
        %v2687 = vunpack.c.l.b16 %v1742
        %v2688 = vunpack.c.h.b16 %v1742
        %v2689 = vunpack.c.l.b16 %v1743
        %v2690 = vunpack.c.h.b16 %v1743
        %v2691 = vunpack.c.l.b16 %v1744
        %v2692 = vunpack.c.h.b16 %v1744
        %v2693 = vunpack.c.l.b16 %v1745
        %v2694 = vunpack.c.h.b16 %v1745
        %v2695 = vunpack.c.l.b16 %v1746
        %v2696 = vunpack.c.h.b16 %v1746
        %v2697 = vunpack.c.l.b16 %v1747
        %v2698 = vunpack.c.h.b16 %v1747
        %v2699 = vunpack.c.l.b16 %v1748
        %v2700 = vunpack.c.h.b16 %v1748
        %v2701 = vunpack.c.l.b16 %v1749
        %v2702 = vunpack.c.h.b16 %v1749
        %v2703 = vunpack.c.l.b16 %v1750
        %v2704 = vunpack.c.h.b16 %v1750
        %v2705 = vunpack.c.l.b16 %v1751
        %v2706 = vunpack.c.h.b16 %v1751
        %v2707 = vunpack.c.l.b16 %v1752
        %v2708 = vunpack.c.h.b16 %v1752
        %v2709 = vunpack.c.l.b16 %v1753
        %v2710 = vunpack.c.h.b16 %v1753
        %v2711 = vunpack.c.l.b16 %v1754
        %v2712 = vunpack.c.h.b16 %v1754
        %v2713 = vunpack.c.l.b16 %v1755
        %v2714 = vunpack.c.h.b16 %v1755
        %v2715 = vunpack.c.l.b16 %v1756
        %v2716 = vunpack.c.h.b16 %v1756
        %v2717 = vunpack.c.l.b16 %v1757
        %v2718 = vunpack.c.h.b16 %v1757
        %v2719 = vunpack.c.l.b16 %v1758
        %v2720 = vunpack.c.h.b16 %v1758
        %v2721 = vunpack.c.l.b16 %v1759
        %v2722 = vunpack.c.h.b16 %v1759
        %v2723 = vunpack.c.l.b16 %v1760
        %v2724 = vunpack.c.h.b16 %v1760
        %v2725 = vunpack.c.l.b16 %v1761
        %v2726 = vunpack.c.h.b16 %v1761
        %v2727 = vunpack.c.l.b16 %v1762
        %v2728 = vunpack.c.h.b16 %v1762
        %v2729 = vunpack.c.l.b16 %v1763
        %v2730 = vunpack.c.h.b16 %v1763
        %v2731 = vunpack.c.l.b16 %v1764
        %v2732 = vunpack.c.h.b16 %v1764
        %v2733 = vunpack.c.l.b16 %v1765
        %v2734 = vunpack.c.h.b16 %v1765
        %v2735 = vunpack.c.l.b16 %v1766
        %v2736 = vunpack.c.h.b16 %v1766
        %v2737 = vunpack.c.l.b16 %v1767
        %v2738 = vunpack.c.h.b16 %v1767
        %v2739 = vunpack.c.l.b16 %v1768
        %v2740 = vunpack.c.h.b16 %v1768
        %v2741 = vunpack.c.l.b16 %v1769
        %v2742 = vunpack.c.h.b16 %v1769
        %v2743 = vunpack.c.l.b16 %v1770
        %v2744 = vunpack.c.h.b16 %v1770
        %v2745 = vunpack.c.l.b16 %v1771
        %v2746 = vunpack.c.h.b16 %v1771
        %v2747 = vunpack.c.l.b16 %v1772
        %v2748 = vunpack.c.h.b16 %v1772
        %v2749 = vunpack.c.l.b16 %v1773
        %v2750 = vunpack.c.h.b16 %v1773
        %v2751 = vunpack.c.l.b16 %v1774
        %v2752 = vunpack.c.h.b16 %v1774
        %v2753 = vunpack.c.l.b16 %v1775
        %v2754 = vunpack.c.h.b16 %v1775
        %v2755 = vunpack.c.l.b16 %v1776
        %v2756 = vunpack.c.h.b16 %v1776
        %v2757 = vunpack.c.l.b16 %v1777
        %v2758 = vunpack.c.h.b16 %v1777
        %v2759 = vunpack.c.l.b16 %v1778
        %v2760 = vunpack.c.h.b16 %v1778
        %v2761 = vunpack.c.l.b16 %v1779
        %v2762 = vunpack.c.h.b16 %v1779
        %v2763 = vunpack.c.l.b16 %v1780
        %v2764 = vunpack.c.h.b16 %v1780
        %v2765 = vunpack.c.l.b16 %v1781
        %v2766 = vunpack.c.h.b16 %v1781
        %v2767 = vunpack.c.l.b16 %v1782
        %v2768 = vunpack.c.h.b16 %v1782
        %v2769 = vunpack.c.l.b16 %v1783
        %v2770 = vunpack.c.h.b16 %v1783
        %v2771 = vunpack.c.l.b16 %v1784
        %v2772 = vunpack.c.h.b16 %v1784
        %v2773 = vunpack.c.l.b16 %v1785
        %v2774 = vunpack.c.h.b16 %v1785
        %v2775 = vunpack.c.l.b16 %v1786
        %v2776 = vunpack.c.h.b16 %v1786
        %v2777 = vunpack.c.l.b16 %v1787
        %v2778 = vunpack.c.h.b16 %v1787
        %v2779 = vunpack.c.l.b16 %v1788
        %v2780 = vunpack.c.h.b16 %v1788
        %v2781 = vunpack.c.l.b16 %v1789
        %v2782 = vunpack.c.h.b16 %v1789
        %v2783 = vunpack.c.l.b16 %v1790
        %v2784 = vunpack.c.h.b16 %v1790
        %v2785 = vunpack.c.l.b16 %v1791
        %v2786 = vunpack.c.h.b16 %v1791
        %v2787 = vunpack.c.l.b16 %v1792
        %v2788 = vunpack.c.h.b16 %v1792
        %v2789 = vunpack.c.l.b16 %v1793
        %v2790 = vunpack.c.h.b16 %v1793
        %v2791 = vunpack.c.l.b16 %v1794
        %v2792 = vunpack.c.h.b16 %v1794
        %v2793 = vunpack.c.l.b16 %v1795
        %v2794 = vunpack.c.h.b16 %v1795
        %v2795 = vunpack.c.l.b16 %v1796
        %v2796 = vunpack.c.h.b16 %v1796
        %v2797 = vunpack.c.l.b16 %v1797
        %v2798 = vunpack.c.h.b16 %v1797
        %v2799 = vunpack.c.l.b16 %v1798
        %v2800 = vunpack.c.h.b16 %v1798
        %v2801 = vunpack.c.l.b16 %v1799
        %v2802 = vunpack.c.h.b16 %v1799
        %v2803 = vunpack.c.l.b16 %v1800
        %v2804 = vunpack.c.h.b16 %v1800
        %v2805 = vunpack.c.l.b16 %v1801
        %v2806 = vunpack.c.h.b16 %v1801
        %v2807 = vunpack.c.l.b16 %v1802
        %v2808 = vunpack.c.h.b16 %v1802
        %v2809 = vunpack.c.l.b16 %v1803
        %v2810 = vunpack.c.h.b16 %v1803
        %v2811 = vunpack.c.l.b16 %v1804
        %v2812 = vunpack.c.h.b16 %v1804
        %v2813 = vunpack.c.l.b16 %v1805
        %v2814 = vunpack.c.h.b16 %v1805
        %v2815 = vunpack.c.l.b16 %v1806
        %v2816 = vunpack.c.h.b16 %v1806
        %v2817 = vunpack.c.l.b16 %v1807
        %v2818 = vunpack.c.h.b16 %v1807
        %v2819 = vunpack.c.l.b16 %v1808
        %v2820 = vunpack.c.h.b16 %v1808
        %v2821 = vunpack.c.l.b16 %v1809
        %v2822 = vunpack.c.h.b16 %v1809
        %v2823 = vunpack.c.l.b16 %v1810
        %v2824 = vunpack.c.h.b16 %v1810
        %v2825 = vunpack.c.l.b16 %v1811
        %v2826 = vunpack.c.h.b16 %v1811
        %v2827 = vunpack.c.l.b16 %v1812
        %v2828 = vunpack.c.h.b16 %v1812
        %v2829 = vunpack.c.l.b16 %v1813
        %v2830 = vunpack.c.h.b16 %v1813
        %v2831 = vunpack.c.l.b16 %v1814
        %v2832 = vunpack.c.h.b16 %v1814
        %v2833 = vunpack.c.l.b16 %v1815
        %v2834 = vunpack.c.h.b16 %v1815
        %v2835 = vunpack.c.l.b16 %v1816
        %v2836 = vunpack.c.h.b16 %v1816
        %v2837 = vunpack.c.l.b16 %v1817
        %v2838 = vunpack.c.h.b16 %v1817
        %v2839 = vunpack.c.l.b16 %v1818
        %v2840 = vunpack.c.h.b16 %v1818
        %v2841 = vunpack.c.l.b16 %v1819
        %v2842 = vunpack.c.h.b16 %v1819
        %v2843 = vunpack.c.l.b16 %v1820
        %v2844 = vunpack.c.h.b16 %v1820
        %v2845 = vunpack.c.l.b16 %v1821
        %v2846 = vunpack.c.h.b16 %v1821
        %v2847 = vunpack.c.l.b16 %v1822
        %v2848 = vunpack.c.h.b16 %v1822
        %v2849 = vunpack.c.l.b16 %v1823
        %v2850 = vunpack.c.h.b16 %v1823
        %v2851 = vunpack.c.l.b16 %v1824
        %v2852 = vunpack.c.h.b16 %v1824
        %v2853 = vunpack.c.l.b16 %v1825
        %v2854 = vunpack.c.h.b16 %v1825
        %v2855 = vunpack.c.l.b16 %v1826
        %v2856 = vunpack.c.h.b16 %v1826
        %v2857 = vunpack.c.l.b16 %v1827
        %v2858 = vunpack.c.h.b16 %v1827
        %v2859 = vunpack.c.l.b16 %v1828
        %v2860 = vunpack.c.h.b16 %v1828
        %v2861 = vunpack.c.l.b16 %v1829
        %v2862 = vunpack.c.h.b16 %v1829
        %v2863 = vunpack.c.l.b16 %v1830
        %v2864 = vunpack.c.h.b16 %v1830
        %v2865 = vunpack.c.l.b16 %v1831
        %v2866 = vunpack.c.h.b16 %v1831
        %v2867 = vunpack.c.l.b16 %v1832
        %v2868 = vunpack.c.h.b16 %v1832
        %v2869 = vunpack.c.l.b16 %v1833
        %v2870 = vunpack.c.h.b16 %v1833
        %v2871 = vunpack.c.l.b16 %v1834
        %v2872 = vunpack.c.h.b16 %v1834
        %v2873 = vunpack.c.l.b16 %v1835
        %v2874 = vunpack.c.h.b16 %v1835
        %v2875 = vunpack.c.l.b16 %v1836
        %v2876 = vunpack.c.h.b16 %v1836
        %v2877 = vpack.c.b16 %v2211, %v2205
        %v2878 = vpack.c.b16 %v2212, %v2206
        %v2879 = vpack.c.b16 %v2213, %v2207
        %v2880 = vpack.c.b16 %v2214, %v2208
        %v2881 = vpack.c.b16 %v2215, %v2209
        %v2882 = vpack.c.b16 %v2216, %v2210
        %v2883 = vpack.c.b16 %v2223, %v2217
        %v2884 = vpack.c.b16 %v2224, %v2218
        %v2885 = vpack.c.b16 %v2225, %v2219
        %v2886 = vpack.c.b16 %v2226, %v2220
        %v2887 = vpack.c.b16 %v2227, %v2221
        %v2888 = vpack.c.b16 %v2228, %v2222
        %v2889 = vpack.c.b16 %v2235, %v2229
        %v2890 = vpack.c.b16 %v2236, %v2230
        %v2891 = vpack.c.b16 %v2237, %v2231
        %v2892 = vpack.c.b16 %v2238, %v2232
        %v2893 = vpack.c.b16 %v2239, %v2233
        %v2894 = vpack.c.b16 %v2240, %v2234
        %v2895 = vpack.c.b16 %v2247, %v2241
        %v2896 = vpack.c.b16 %v2248, %v2242
        %v2897 = vpack.c.b16 %v2249, %v2243
        %v2898 = vpack.c.b16 %v2250, %v2244
        %v2899 = vpack.c.b16 %v2251, %v2245
        %v2900 = vpack.c.b16 %v2252, %v2246
        %v2901 = vpack.c.b16 %v2259, %v2253
        %v2902 = vpack.c.b16 %v2260, %v2254
        %v2903 = vpack.c.b16 %v2261, %v2255
        %v2904 = vpack.c.b16 %v2262, %v2256
        %v2905 = vpack.c.b16 %v2263, %v2257
        %v2906 = vpack.c.b16 %v2264, %v2258
        %v2907 = vpack.c.b16 %v2271, %v2265
        %v2908 = vpack.c.b16 %v2272, %v2266
        %v2909 = vpack.c.b16 %v2273, %v2267
        %v2910 = vpack.c.b16 %v2274, %v2268
        %v2911 = vpack.c.b16 %v2275, %v2269
        %v2912 = vpack.c.b16 %v2276, %v2270
        %v2913 = vpack.c.b16 %v2283, %v2277
        %v2914 = vpack.c.b16 %v2284, %v2278
        %v2915 = vpack.c.b16 %v2285, %v2279
        %v2916 = vpack.c.b16 %v2286, %v2280
        %v2917 = vpack.c.b16 %v2287, %v2281
        %v2918 = vpack.c.b16 %v2288, %v2282
        %v2919 = vpack.c.b16 %v2295, %v2289
        %v2920 = vpack.c.b16 %v2296, %v2290
        %v2921 = vpack.c.b16 %v2297, %v2291
        %v2922 = vpack.c.b16 %v2298, %v2292
        %v2923 = vpack.c.b16 %v2299, %v2293
        %v2924 = vpack.c.b16 %v2300, %v2294
        %v2925 = vpack.c.b16 %v2307, %v2301
        %v2926 = vpack.c.b16 %v2308, %v2302
        %v2927 = vpack.c.b16 %v2309, %v2303
        %v2928 = vpack.c.b16 %v2310, %v2304
        %v2929 = vpack.c.b16 %v2311, %v2305
        %v2930 = vpack.c.b16 %v2312, %v2306
        %v2931 = vpack.c.b16 %v2319, %v2313
        %v2932 = vpack.c.b16 %v2320, %v2314
        %v2933 = vpack.c.b16 %v2321, %v2315
        %v2934 = vpack.c.b16 %v2322, %v2316
        %v2935 = vpack.c.b16 %v2323, %v2317
        %v2936 = vpack.c.b16 %v2324, %v2318
        %v2937 = vpack.c.b16 %v2331, %v2325
        %v2938 = vpack.c.b16 %v2332, %v2326
        %v2939 = vpack.c.b16 %v2333, %v2327
        %v2940 = vpack.c.b16 %v2334, %v2328
        %v2941 = vpack.c.b16 %v2335, %v2329
        %v2942 = vpack.c.b16 %v2336, %v2330
        %v2943 = vpack.c.b16 %v2343, %v2337
        %v2944 = vpack.c.b16 %v2344, %v2338
        %v2945 = vpack.c.b16 %v2345, %v2339
        %v2946 = vpack.c.b16 %v2346, %v2340
        %v2947 = vpack.c.b16 %v2347, %v2341
        %v2948 = vpack.c.b16 %v2348, %v2342
        %v2949 = vpack.c.b16 %v2355, %v2349
        %v2950 = vpack.c.b16 %v2356, %v2350
        %v2951 = vpack.c.b16 %v2357, %v2351
        %v2952 = vpack.c.b16 %v2358, %v2352
        %v2953 = vpack.c.b16 %v2359, %v2353
        %v2954 = vpack.c.b16 %v2360, %v2354
        %v2955 = vpack.c.b16 %v2367, %v2361
        %v2956 = vpack.c.b16 %v2368, %v2362
        %v2957 = vpack.c.b16 %v2369, %v2363
        %v2958 = vpack.c.b16 %v2370, %v2364
        %v2959 = vpack.c.b16 %v2371, %v2365
        %v2960 = vpack.c.b16 %v2372, %v2366
        %v2961 = vpack.c.b16 %v2379, %v2373
        %v2962 = vpack.c.b16 %v2380, %v2374
        %v2963 = vpack.c.b16 %v2381, %v2375
        %v2964 = vpack.c.b16 %v2382, %v2376
        %v2965 = vpack.c.b16 %v2383, %v2377
        %v2966 = vpack.c.b16 %v2384, %v2378
        %v2967 = vpack.c.b16 %v2391, %v2385
        %v2968 = vpack.c.b16 %v2392, %v2386
        %v2969 = vpack.c.b16 %v2393, %v2387
        %v2970 = vpack.c.b16 %v2394, %v2388
        %v2971 = vpack.c.b16 %v2395, %v2389
        %v2972 = vpack.c.b16 %v2396, %v2390
        %v2973 = vpack.c.b16 %v2403, %v2397
        %v2974 = vpack.c.b16 %v2404, %v2398
        %v2975 = vpack.c.b16 %v2405, %v2399
        %v2976 = vpack.c.b16 %v2406, %v2400
        %v2977 = vpack.c.b16 %v2407, %v2401
        %v2978 = vpack.c.b16 %v2408, %v2402
        %v2979 = vpack.c.b16 %v2415, %v2409
        %v2980 = vpack.c.b16 %v2416, %v2410
        %v2981 = vpack.c.b16 %v2417, %v2411
        %v2982 = vpack.c.b16 %v2418, %v2412
        %v2983 = vpack.c.b16 %v2419, %v2413
        %v2984 = vpack.c.b16 %v2420, %v2414
        %v2985 = vpack.c.b16 %v2427, %v2421
        %v2986 = vpack.c.b16 %v2428, %v2422
        %v2987 = vpack.c.b16 %v2429, %v2423
        %v2988 = vpack.c.b16 %v2430, %v2424
        %v2989 = vpack.c.b16 %v2431, %v2425
        %v2990 = vpack.c.b16 %v2432, %v2426
        %v2991 = vpack.c.b16 %v2439, %v2433
        %v2992 = vpack.c.b16 %v2440, %v2434
        %v2993 = vpack.c.b16 %v2441, %v2435
        %v2994 = vpack.c.b16 %v2442, %v2436
        %v2995 = vpack.c.b16 %v2443, %v2437
        %v2996 = vpack.c.b16 %v2444, %v2438
        %v2997 = vpack.c.b16 %v2451, %v2445
        %v2998 = vpack.c.b16 %v2452, %v2446
        %v2999 = vpack.c.b16 %v2453, %v2447
        %v3000 = vpack.c.b16 %v2454, %v2448
        %v3001 = vpack.c.b16 %v2455, %v2449
        %v3002 = vpack.c.b16 %v2456, %v2450
        %v3003 = vpack.c.b16 %v2463, %v2457
        %v3004 = vpack.c.b16 %v2464, %v2458
        %v3005 = vpack.c.b16 %v2465, %v2459
        %v3006 = vpack.c.b16 %v2466, %v2460
        %v3007 = vpack.c.b16 %v2467, %v2461
        %v3008 = vpack.c.b16 %v2468, %v2462
        %v3009 = vpack.c.b16 %v2475, %v2469
        %v3010 = vpack.c.b16 %v2476, %v2470
        %v3011 = vpack.c.b16 %v2477, %v2471
        %v3012 = vpack.c.b16 %v2478, %v2472
        %v3013 = vpack.c.b16 %v2479, %v2473
        %v3014 = vpack.c.b16 %v2480, %v2474
        %v3015 = vpack.c.b16 %v2487, %v2481
        %v3016 = vpack.c.b16 %v2488, %v2482
        %v3017 = vpack.c.b16 %v2489, %v2483
        %v3018 = vpack.c.b16 %v2490, %v2484
        %v3019 = vpack.c.b16 %v2491, %v2485
        %v3020 = vpack.c.b16 %v2492, %v2486
        %v3021 = vpack.c.b16 %v2499, %v2493
        %v3022 = vpack.c.b16 %v2500, %v2494
        %v3023 = vpack.c.b16 %v2501, %v2495
        %v3024 = vpack.c.b16 %v2502, %v2496
        %v3025 = vpack.c.b16 %v2503, %v2497
        %v3026 = vpack.c.b16 %v2504, %v2498
        %v3027 = vpack.c.b16 %v2511, %v2505
        %v3028 = vpack.c.b16 %v2512, %v2506
        %v3029 = vpack.c.b16 %v2513, %v2507
        %v3030 = vpack.c.b16 %v2514, %v2508
        %v3031 = vpack.c.b16 %v2515, %v2509
        %v3032 = vpack.c.b16 %v2516, %v2510
        %v3033 = vpack.c.b16 %v2523, %v2517
        %v3034 = vpack.c.b16 %v2524, %v2518
        %v3035 = vpack.c.b16 %v2525, %v2519
        %v3036 = vpack.c.b16 %v2526, %v2520
        %v3037 = vpack.c.b16 %v2527, %v2521
        %v3038 = vpack.c.b16 %v2528, %v2522
        %v3039 = vpack.c.b16 %v2535, %v2529
        %v3040 = vpack.c.b16 %v2536, %v2530
        %v3041 = vpack.c.b16 %v2537, %v2531
        %v3042 = vpack.c.b16 %v2538, %v2532
        %v3043 = vpack.c.b16 %v2539, %v2533
        %v3044 = vpack.c.b16 %v2540, %v2534
        %v3045 = vpack.c.b16 %v2547, %v2541
        %v3046 = vpack.c.b16 %v2548, %v2542
        %v3047 = vpack.c.b16 %v2549, %v2543
        %v3048 = vpack.c.b16 %v2550, %v2544
        %v3049 = vpack.c.b16 %v2551, %v2545
        %v3050 = vpack.c.b16 %v2552, %v2546
        %v3051 = vpack.c.b16 %v2559, %v2553
        %v3052 = vpack.c.b16 %v2560, %v2554
        %v3053 = vpack.c.b16 %v2561, %v2555
        %v3054 = vpack.c.b16 %v2562, %v2556
        %v3055 = vpack.c.b16 %v2563, %v2557
        %v3056 = vpack.c.b16 %v2564, %v2558
        %v3057 = vpack.c.b16 %v2571, %v2565
        %v3058 = vpack.c.b16 %v2572, %v2566
        %v3059 = vpack.c.b16 %v2573, %v2567
        %v3060 = vpack.c.b16 %v2574, %v2568
        %v3061 = vpack.c.b16 %v2575, %v2569
        %v3062 = vpack.c.b16 %v2576, %v2570
        %v3063 = vpack.c.b16 %v2583, %v2577
        %v3064 = vpack.c.b16 %v2584, %v2578
        %v3065 = vpack.c.b16 %v2585, %v2579
        %v3066 = vpack.c.b16 %v2586, %v2580
        %v3067 = vpack.c.b16 %v2587, %v2581
        %v3068 = vpack.c.b16 %v2588, %v2582
        %v3069 = vpack.c.b16 %v2595, %v2589
        %v3070 = vpack.c.b16 %v2596, %v2590
        %v3071 = vpack.c.b16 %v2597, %v2591
        %v3072 = vpack.c.b16 %v2598, %v2592
        %v3073 = vpack.c.b16 %v2599, %v2593
        %v3074 = vpack.c.b16 %v2600, %v2594
        %v3075 = vpack.c.b16 %v2607, %v2601
        %v3076 = vpack.c.b16 %v2608, %v2602
        %v3077 = vpack.c.b16 %v2609, %v2603
        %v3078 = vpack.c.b16 %v2610, %v2604
        %v3079 = vpack.c.b16 %v2611, %v2605
        %v3080 = vpack.c.b16 %v2612, %v2606
        %v3081 = vpack.c.b16 %v2619, %v2613
        %v3082 = vpack.c.b16 %v2620, %v2614
        %v3083 = vpack.c.b16 %v2621, %v2615
        %v3084 = vpack.c.b16 %v2622, %v2616
        %v3085 = vpack.c.b16 %v2623, %v2617
        %v3086 = vpack.c.b16 %v2624, %v2618
        %v3087 = vpack.c.b16 %v2631, %v2625
        %v3088 = vpack.c.b16 %v2632, %v2626
        %v3089 = vpack.c.b16 %v2633, %v2627
        %v3090 = vpack.c.b16 %v2634, %v2628
        %v3091 = vpack.c.b16 %v2635, %v2629
        %v3092 = vpack.c.b16 %v2636, %v2630
        %v3093 = vpack.c.b16 %v2643, %v2637
        %v3094 = vpack.c.b16 %v2644, %v2638
        %v3095 = vpack.c.b16 %v2645, %v2639
        %v3096 = vpack.c.b16 %v2646, %v2640
        %v3097 = vpack.c.b16 %v2647, %v2641
        %v3098 = vpack.c.b16 %v2648, %v2642
        %v3099 = vpack.c.b16 %v2655, %v2649
        %v3100 = vpack.c.b16 %v2656, %v2650
        %v3101 = vpack.c.b16 %v2657, %v2651
        %v3102 = vpack.c.b16 %v2658, %v2652
        %v3103 = vpack.c.b16 %v2659, %v2653
        %v3104 = vpack.c.b16 %v2660, %v2654
        %v3105 = vpack.c.b16 %v2667, %v2661
        %v3106 = vpack.c.b16 %v2668, %v2662
        %v3107 = vpack.c.b16 %v2669, %v2663
        %v3108 = vpack.c.b16 %v2670, %v2664
        %v3109 = vpack.c.b16 %v2671, %v2665
        %v3110 = vpack.c.b16 %v2672, %v2666
        %v3111 = vpack.c.b16 %v2679, %v2673
        %v3112 = vpack.c.b16 %v2680, %v2674
        %v3113 = vpack.c.b16 %v2681, %v2675
        %v3114 = vpack.c.b16 %v2682, %v2676
        %v3115 = vpack.c.b16 %v2683, %v2677
        %v3116 = vpack.c.b16 %v2684, %v2678
        %v3117 = vpack.c.b16 %v2691, %v2685
        %v3118 = vpack.c.b16 %v2692, %v2686
        %v3119 = vpack.c.b16 %v2693, %v2687
        %v3120 = vpack.c.b16 %v2694, %v2688
        %v3121 = vpack.c.b16 %v2695, %v2689
        %v3122 = vpack.c.b16 %v2696, %v2690
        %v3123 = vpack.c.b16 %v2703, %v2697
        %v3124 = vpack.c.b16 %v2704, %v2698
        %v3125 = vpack.c.b16 %v2705, %v2699
        %v3126 = vpack.c.b16 %v2706, %v2700
        %v3127 = vpack.c.b16 %v2707, %v2701
        %v3128 = vpack.c.b16 %v2708, %v2702
        %v3129 = vpack.c.b16 %v2715, %v2709
        %v3130 = vpack.c.b16 %v2716, %v2710
        %v3131 = vpack.c.b16 %v2717, %v2711
        %v3132 = vpack.c.b16 %v2718, %v2712
        %v3133 = vpack.c.b16 %v2719, %v2713
        %v3134 = vpack.c.b16 %v2720, %v2714
        %v3135 = vpack.c.b16 %v2727, %v2721
        %v3136 = vpack.c.b16 %v2728, %v2722
        %v3137 = vpack.c.b16 %v2729, %v2723
        %v3138 = vpack.c.b16 %v2730, %v2724
        %v3139 = vpack.c.b16 %v2731, %v2725
        %v3140 = vpack.c.b16 %v2732, %v2726
        %v3141 = vpack.c.b16 %v2739, %v2733
        %v3142 = vpack.c.b16 %v2740, %v2734
        %v3143 = vpack.c.b16 %v2741, %v2735
        %v3144 = vpack.c.b16 %v2742, %v2736
        %v3145 = vpack.c.b16 %v2743, %v2737
        %v3146 = vpack.c.b16 %v2744, %v2738
        %v3147 = vpack.c.b16 %v2751, %v2745
        %v3148 = vpack.c.b16 %v2752, %v2746
        %v3149 = vpack.c.b16 %v2753, %v2747
        %v3150 = vpack.c.b16 %v2754, %v2748
        %v3151 = vpack.c.b16 %v2755, %v2749
        %v3152 = vpack.c.b16 %v2756, %v2750
        %v3153 = vpack.c.b16 %v2763, %v2757
        %v3154 = vpack.c.b16 %v2764, %v2758
        %v3155 = vpack.c.b16 %v2765, %v2759
        %v3156 = vpack.c.b16 %v2766, %v2760
        %v3157 = vpack.c.b16 %v2767, %v2761
        %v3158 = vpack.c.b16 %v2768, %v2762
        %v3159 = vpack.c.b16 %v2775, %v2769
        %v3160 = vpack.c.b16 %v2776, %v2770
        %v3161 = vpack.c.b16 %v2777, %v2771
        %v3162 = vpack.c.b16 %v2778, %v2772
        %v3163 = vpack.c.b16 %v2779, %v2773
        %v3164 = vpack.c.b16 %v2780, %v2774
        %v3165 = vpack.c.b16 %v2787, %v2781
        %v3166 = vpack.c.b16 %v2788, %v2782
        %v3167 = vpack.c.b16 %v2789, %v2783
        %v3168 = vpack.c.b16 %v2790, %v2784
        %v3169 = vpack.c.b16 %v2791, %v2785
        %v3170 = vpack.c.b16 %v2792, %v2786
        %v3171 = vpack.c.b16 %v2799, %v2793
        %v3172 = vpack.c.b16 %v2800, %v2794
        %v3173 = vpack.c.b16 %v2801, %v2795
        %v3174 = vpack.c.b16 %v2802, %v2796
        %v3175 = vpack.c.b16 %v2803, %v2797
        %v3176 = vpack.c.b16 %v2804, %v2798
        %v3177 = vpack.c.b16 %v2811, %v2805
        %v3178 = vpack.c.b16 %v2812, %v2806
        %v3179 = vpack.c.b16 %v2813, %v2807
        %v3180 = vpack.c.b16 %v2814, %v2808
        %v3181 = vpack.c.b16 %v2815, %v2809
        %v3182 = vpack.c.b16 %v2816, %v2810
        %v3183 = vpack.c.b16 %v2823, %v2817
        %v3184 = vpack.c.b16 %v2824, %v2818
        %v3185 = vpack.c.b16 %v2825, %v2819
        %v3186 = vpack.c.b16 %v2826, %v2820
        %v3187 = vpack.c.b16 %v2827, %v2821
        %v3188 = vpack.c.b16 %v2828, %v2822
        %v3189 = vpack.c.b16 %v2835, %v2829
        %v3190 = vpack.c.b16 %v2836, %v2830
        %v3191 = vpack.c.b16 %v2837, %v2831
        %v3192 = vpack.c.b16 %v2838, %v2832
        %v3193 = vpack.c.b16 %v2839, %v2833
        %v3194 = vpack.c.b16 %v2840, %v2834
        %v3195 = vpack.c.b16 %v2847, %v2841
        %v3196 = vpack.c.b16 %v2848, %v2842
        %v3197 = vpack.c.b16 %v2849, %v2843
        %v3198 = vpack.c.b16 %v2850, %v2844
        %v3199 = vpack.c.b16 %v2851, %v2845
        %v3200 = vpack.c.b16 %v2852, %v2846
        %v3201 = vpack.c.b16 %v2859, %v2853
        %v3202 = vpack.c.b16 %v2860, %v2854
        %v3203 = vpack.c.b16 %v2861, %v2855
        %v3204 = vpack.c.b16 %v2862, %v2856
        %v3205 = vpack.c.b16 %v2863, %v2857
        %v3206 = vpack.c.b16 %v2864, %v2858
        %v3207 = vpack.c.b16 %v2871, %v2865
        %v3208 = vpack.c.b16 %v2872, %v2866
        %v3209 = vpack.c.b16 %v2873, %v2867
        %v3210 = vpack.c.b16 %v2874, %v2868
        %v3211 = vpack.c.b16 %v2875, %v2869
        %v3212 = vpack.c.b16 %v2876, %v2870
        %3549 = vmatprep.subr.bf16.mxu0 %v2878
        %3550 = vmatpush1.bf16.msra.mxu0 %v2877
        %3551 = vmatprep.subr.bf16.mxu0 %v2884
        %3552 = vmatpush1.bf16.msra.mxu0 %v2883
        %3553 = vmatprep.subr.bf16.mxu0 %v2890
        %3554 = vmatpush1.bf16.msra.mxu0 %v2889
        %3555 = vmatprep.subr.bf16.mxu0 %v2896
        %3556 = vmatpush1.bf16.msra.mxu0 %v2895
        %3557 = vmatprep.subr.bf16.mxu0 %v2902
        %3558 = vmatpush1.bf16.msra.mxu0 %v2901
        %3559 = vmatprep.subr.bf16.mxu0 %v2908
        %3560 = vmatpush1.bf16.msra.mxu0 %v2907
        %3561 = vmatprep.subr.bf16.mxu0 %v2914
        %3562 = vmatpush1.bf16.msra.mxu0 %v2913
        %3563 = vmatprep.subr.bf16.mxu0 %v2920
        %3564 = vmatpush1.bf16.msra.mxu0 %v2919
        %3565 = vmatprep.subr.bf16.mxu0 %v2926
        %3566 = vmatpush1.bf16.msra.mxu0 %v2925
        %3567 = vmatprep.subr.bf16.mxu0 %v2932
        %3568 = vmatpush1.bf16.msra.mxu0 %v2931
        %3569 = vmatprep.subr.bf16.mxu0 %v2938
        %3570 = vmatpush1.bf16.msra.mxu0 %v2937
        %3571 = vmatprep.subr.bf16.mxu0 %v2944
        %3572 = vmatpush1.bf16.msra.mxu0 %v2943
        %3573 = vmatprep.subr.bf16.mxu0 %v2950
        %3574 = vmatpush1.bf16.msra.mxu0 %v2949
        %3575 = vmatprep.subr.bf16.mxu0 %v2956
        %3576 = vmatpush1.bf16.msra.mxu0 %v2955
        %3577 = vmatprep.subr.bf16.mxu0 %v2962
        %3578 = vmatpush1.bf16.msra.mxu0 %v2961
        %3579 = vmatprep.subr.bf16.mxu0 %v2968
        %3580 = vmatpush1.bf16.msra.mxu0 %v2967
        %3581 = vmatprep.mubr.bf16.mxu0 %v1488
        %3582 = vmatmul.mubr.bf16.gmra.mrb[0].mxu0 %v1487
        %v3583 = vpop.f32.mrb[0].mxu0
        %v3584 = vadd.f32 %v1842, %v3583
        %v3585 = vpop.f32.mrb[0].mxu0
        %v3586 = vadd.f32 %v1846, %v3585
        %v3587 = vpop.f32.mrb[0].mxu0
        %v3588 = vadd.f32 %v1842, %v3587
        %v3589 = vpop.f32.mrb[0].mxu0
        %v3590 = vadd.f32 %v1846, %v3589
        %3591 = vmatprep.mubr.bf16.mxu0 %v1495
        %3592 = vmatmul.mubr.bf16.gmra.mrb[0].mxu0 %v1494
        %v3593 = vpop.f32.mrb[0].mxu0
        %v3594 = vadd.f32 %v1842, %v3593
        %v3595 = vpop.f32.mrb[0].mxu0
        %v3596 = vadd.f32 %v1846, %v3595
        %v3597 = vpop.f32.mrb[0].mxu0
        %v3598 = vpop.f32.mrb[0].mxu0
        %3599 = vdwg.mxu0
        %3600 = vmatprep.subr.bf16.mxu0 %v2974
        %3601 = vmatpush1.bf16.msra.mxu0 %v2973
        %3602 = vmatprep.subr.bf16.mxu0 %v2980
        %3603 = vmatpush1.bf16.msra.mxu0 %v2979
        %3604 = vmatprep.subr.bf16.mxu0 %v2986
        %3605 = vmatpush1.bf16.msra.mxu0 %v2985
        %3606 = vmatprep.subr.bf16.mxu0 %v2992
        %3607 = vmatpush1.bf16.msra.mxu0 %v2991
        %3608 = vmatprep.subr.bf16.mxu0 %v2998
        %3609 = vmatpush1.bf16.msra.mxu0 %v2997
        %3610 = vmatprep.subr.bf16.mxu0 %v3004
        %3611 = vmatpush1.bf16.msra.mxu0 %v3003
        %3612 = vmatprep.subr.bf16.mxu0 %v3010
        %3613 = vmatpush1.bf16.msra.mxu0 %v3009
        %3614 = vmatprep.subr.bf16.mxu0 %v3016
        %3615 = vmatpush1.bf16.msra.mxu0 %v3015
        %3616 = vmatprep.subr.bf16.mxu0 %v3022
        %3617 = vmatpush1.bf16.msra.mxu0 %v3021
        %3618 = vmatprep.subr.bf16.mxu0 %v3028
        %3619 = vmatpush1.bf16.msra.mxu0 %v3027
        %3620 = vmatprep.subr.bf16.mxu0 %v3034
        %3621 = vmatpush1.bf16.msra.mxu0 %v3033
        %3622 = vmatprep.subr.bf16.mxu0 %v3040
        %3623 = vmatpush1.bf16.msra.mxu0 %v3039
        %3624 = vmatprep.subr.bf16.mxu0 %v3046
        %3625 = vmatpush1.bf16.msra.mxu0 %v3045
        %3626 = vmatprep.subr.bf16.mxu0 %v3052
        %3627 = vmatpush1.bf16.msra.mxu0 %v3051
        %3628 = vmatprep.subr.bf16.mxu0 %v3058
        %3629 = vmatpush1.bf16.msra.mxu0 %v3057
        %3630 = vmatprep.subr.bf16.mxu0 %v3064
        %3631 = vmatpush1.bf16.msra.mxu0 %v3063
        %3632 = vmatprep.mubr.bf16.mxu0 %v1490
        %3633 = vmatmul.mubr.bf16.gmra.mrb[0].mxu0 %v1489
        %v3634 = vpop.f32.mrb[0].mxu0
        %v3635 = vadd.f32 %v3584, %v3634
        %v3636 = vpop.f32.mrb[0].mxu0
        %v3637 = vadd.f32 %v3586, %v3636
        %v3638 = vpop.f32.mrb[0].mxu0
        %v3639 = vadd.f32 %v3588, %v3638
        %v3640 = vpop.f32.mrb[0].mxu0
        %v3641 = vadd.f32 %v3590, %v3640
        %3642 = vmatprep.mubr.bf16.mxu0 %v1497
        %3643 = vmatmul.mubr.bf16.gmra.mrb[0].mxu0 %v1496
        %v3644 = vpop.f32.mrb[0].mxu0
        %v3645 = vadd.f32 %v3594, %v3644
        %v3646 = vpop.f32.mrb[0].mxu0
        %v3647 = vadd.f32 %v3596, %v3646
        %v3648 = vpop.f32.mrb[0].mxu0
        %v3649 = vpop.f32.mrb[0].mxu0
        %3650 = vdwg.mxu0
        %3651 = vmatprep.subr.bf16.mxu0 %v3070
        %3652 = vmatpush1.bf16.msra.mxu0 %v3069
        %3653 = vmatprep.subr.bf16.mxu0 %v3076
        %3654 = vmatpush1.bf16.msra.mxu0 %v3075
        %3655 = vmatprep.subr.bf16.mxu0 %v3082
        %3656 = vmatpush1.bf16.msra.mxu0 %v3081
        %3657 = vmatprep.subr.bf16.mxu0 %v3088
        %3658 = vmatpush1.bf16.msra.mxu0 %v3087
        %3659 = vmatprep.subr.bf16.mxu0 %v3094
        %3660 = vmatpush1.bf16.msra.mxu0 %v3093
        %3661 = vmatprep.subr.bf16.mxu0 %v3100
        %3662 = vmatpush1.bf16.msra.mxu0 %v3099
        %3663 = vmatprep.subr.bf16.mxu0 %v3106
        %3664 = vmatpush1.bf16.msra.mxu0 %v3105
        %3665 = vmatprep.subr.bf16.mxu0 %v3112
        %3666 = vmatpush1.bf16.msra.mxu0 %v3111
        %3667 = vmatprep.subr.bf16.mxu0 %v3118
        %3668 = vmatpush1.bf16.msra.mxu0 %v3117
        %3669 = vmatprep.subr.bf16.mxu0 %v3124
        %3670 = vmatpush1.bf16.msra.mxu0 %v3123
        %3671 = vmatprep.subr.bf16.mxu0 %v3130
        %3672 = vmatpush1.bf16.msra.mxu0 %v3129
        %3673 = vmatprep.subr.bf16.mxu0 %v3136
        %3674 = vmatpush1.bf16.msra.mxu0 %v3135
        %3675 = vmatprep.subr.bf16.mxu0 %v3142
        %3676 = vmatpush1.bf16.msra.mxu0 %v3141
        %3677 = vmatprep.subr.bf16.mxu0 %v3148
        %3678 = vmatpush1.bf16.msra.mxu0 %v3147
        %3679 = vmatprep.subr.bf16.mxu0 %v3154
        %3680 = vmatpush1.bf16.msra.mxu0 %v3153
        %3681 = vmatprep.subr.bf16.mxu0 %v3160
        %3682 = vmatpush1.bf16.msra.mxu0 %v3159
        %3683 = vmatprep.mubr.bf16.mxu0 %v1492
        %3684 = vmatmul.mubr.bf16.gmra.mrb[0].mxu0 %v1491
        %v3685 = vpop.f32.mrb[0].mxu0
        %v3686 = vadd.f32 %v3635, %v3685
        %v3687 = vpop.f32.mrb[0].mxu0
        %v3688 = vadd.f32 %v3637, %v3687
        %v3689 = vpop.f32.mrb[0].mxu0
        %v3690 = vadd.f32 %v3639, %v3689
        %v3691 = vpop.f32.mrb[0].mxu0
        %v3692 = vadd.f32 %v3641, %v3691
        %3693 = vmatprep.mubr.bf16.mxu0 %v1499
        %3694 = vmatmul.mubr.bf16.gmra.mrb[0].mxu0 %v1498
        %v3695 = vpop.f32.mrb[0].mxu0
        %v3696 = vadd.f32 %v3645, %v3695
        %v3697 = vpop.f32.mrb[0].mxu0
        %v3698 = vadd.f32 %v3647, %v3697
        %v3699 = vpop.f32.mrb[0].mxu0
        %v3700 = vpop.f32.mrb[0].mxu0
        %3701 = vdwg.mxu0
        %3702 = vmatprep.subr.bf16.mxu0 %v3166
        %3703 = vmatpush1.bf16.msra.mxu0 %v3165
        %3704 = vmatprep.subr.bf16.mxu0 %v3172
        %3705 = vmatpush1.bf16.msra.mxu0 %v3171
        %3706 = vmatprep.subr.bf16.mxu0 %v3178
        %3707 = vmatpush1.bf16.msra.mxu0 %v3177
        %3708 = vmatprep.subr.bf16.mxu0 %v3184
        %3709 = vmatpush1.bf16.msra.mxu0 %v3183
        %3710 = vmatprep.subr.bf16.mxu0 %v3190
        %3711 = vmatpush1.bf16.msra.mxu0 %v3189
        %3712 = vmatprep.subr.bf16.mxu0 %v3196
        %3713 = vmatpush1.bf16.msra.mxu0 %v3195
        %3714 = vmatprep.subr.bf16.mxu0 %v3202
        %3715 = vmatpush1.bf16.msra.mxu0 %v3201
        %3716 = vmatprep.subr.bf16.mxu0 %v3208
        %3717 = vmatpush1.bf16.msra.mxu0 %v3207
        %3718 = vmatprep.subr.bf16.mxu0 0
        %3719 = vmatpush1.bf16.msra.mxu0 0
        %3720 = vmatprep.subr.bf16.mxu0 0
        %3721 = vmatpush1.bf16.msra.mxu0 0
        %3722 = vmatprep.subr.bf16.mxu0 0
        %3723 = vmatpush1.bf16.msra.mxu0 0
        %3724 = vmatprep.subr.bf16.mxu0 0
        %3725 = vmatpush1.bf16.msra.mxu0 0
        %3726 = vmatprep.subr.bf16.mxu0 0
        %3727 = vmatpush1.bf16.msra.mxu0 0
        %3728 = vmatprep.subr.bf16.mxu0 0
        %3729 = vmatpush1.bf16.msra.mxu0 0
        %3730 = vmatprep.subr.bf16.mxu0 0
        %3731 = vmatpush1.bf16.msra.mxu0 0
        %3732 = vmatprep.subr.bf16.mxu0 0
        %3733 = vmatpush1.bf16.msra.mxu0 0
        %3734 = vmatprep.mubr.bf16.mxu0 0
        %3735 = vmatmul.mubr.bf16.gmra.mrb[0].mxu0 %v1493
        %v3736 = vpop.f32.mrb[0].mxu0
        %v3737 = vadd.f32 %v3686, %v3736
        %v3738 = vpop.f32.mrb[0].mxu0
        %v3739 = vadd.f32 %v3688, %v3738
        %v3740 = vpop.f32.mrb[0].mxu0
        %v3741 = vadd.f32 %v3690, %v3740
        %v3742 = vpop.f32.mrb[0].mxu0
        %v3743 = vadd.f32 %v3692, %v3742
        %3744 = vmatprep.mubr.bf16.mxu0 0
        %3745 = vmatmul.mubr.bf16.gmra.mrb[0].mxu0 %v1500
        %v3746 = vpop.f32.mrb[0].mxu0
        %v3747 = vadd.f32 %v3696, %v3746
        %v3748 = vpop.f32.mrb[0].mxu0
        %v3749 = vadd.f32 %v3698, %v3748
        %v3750 = vpop.f32.mrb[0].mxu0
        %v3751 = vpop.f32.mrb[0].mxu0
        %3752 = vdwg.mxu0
        %3753 = vmatprep.subr.bf16.mxu0 %v2880
        %3754 = vmatpush1.bf16.msra.mxu0 %v2879
        %3755 = vmatprep.subr.bf16.mxu0 %v2886
        %3756 = vmatpush1.bf16.msra.mxu0 %v2885
        %3757 = vmatprep.subr.bf16.mxu0 %v2892
        %3758 = vmatpush1.bf16.msra.mxu0 %v2891
        %3759 = vmatprep.subr.bf16.mxu0 %v2898
        %3760 = vmatpush1.bf16.msra.mxu0 %v2897
        %3761 = vmatprep.subr.bf16.mxu0 %v2904
        %3762 = vmatpush1.bf16.msra.mxu0 %v2903
        %3763 = vmatprep.subr.bf16.mxu0 %v2910
        %3764 = vmatpush1.bf16.msra.mxu0 %v2909
        %3765 = vmatprep.subr.bf16.mxu0 %v2916
        %3766 = vmatpush1.bf16.msra.mxu0 %v2915
        %3767 = vmatprep.subr.bf16.mxu0 %v2922
        %3768 = vmatpush1.bf16.msra.mxu0 %v2921
        %3769 = vmatprep.subr.bf16.mxu0 %v2928
        %3770 = vmatpush1.bf16.msra.mxu0 %v2927
        %3771 = vmatprep.subr.bf16.mxu0 %v2934
        %3772 = vmatpush1.bf16.msra.mxu0 %v2933
        %3773 = vmatprep.subr.bf16.mxu0 %v2940
        %3774 = vmatpush1.bf16.msra.mxu0 %v2939
        %3775 = vmatprep.subr.bf16.mxu0 %v2946
        %3776 = vmatpush1.bf16.msra.mxu0 %v2945
        %3777 = vmatprep.subr.bf16.mxu0 %v2952
        %3778 = vmatpush1.bf16.msra.mxu0 %v2951
        %3779 = vmatprep.subr.bf16.mxu0 %v2958
        %3780 = vmatpush1.bf16.msra.mxu0 %v2957
        %3781 = vmatprep.subr.bf16.mxu0 %v2964
        %3782 = vmatpush1.bf16.msra.mxu0 %v2963
        %3783 = vmatprep.subr.bf16.mxu0 %v2970
        %3784 = vmatpush1.bf16.msra.mxu0 %v2969
        %3785 = vmatprep.mubr.bf16.mxu0 %v1488
        %3786 = vmatmul.mubr.bf16.gmra.mrb[0].mxu0 %v1487
        %v3787 = vpop.f32.mrb[0].mxu0
        %v3788 = vadd.f32 %v1850, %v3787
        %v3789 = vpop.f32.mrb[0].mxu0
        %v3790 = vadd.f32 %v1854, %v3789
        %v3791 = vpop.f32.mrb[0].mxu0
        %v3792 = vadd.f32 %v1850, %v3791
        %v3793 = vpop.f32.mrb[0].mxu0
        %v3794 = vadd.f32 %v1854, %v3793
        %3795 = vmatprep.mubr.bf16.mxu0 %v1495
        %3796 = vmatmul.mubr.bf16.gmra.mrb[0].mxu0 %v1494
        %v3797 = vpop.f32.mrb[0].mxu0
        %v3798 = vadd.f32 %v1850, %v3797
        %v3799 = vpop.f32.mrb[0].mxu0
        %v3800 = vadd.f32 %v1854, %v3799
        %v3801 = vpop.f32.mrb[0].mxu0
        %v3802 = vpop.f32.mrb[0].mxu0
        %3803 = vdwg.mxu0
        %3804 = vmatprep.subr.bf16.mxu0 %v2976
        %3805 = vmatpush1.bf16.msra.mxu0 %v2975
        %3806 = vmatprep.subr.bf16.mxu0 %v2982
        %3807 = vmatpush1.bf16.msra.mxu0 %v2981
        %3808 = vmatprep.subr.bf16.mxu0 %v2988
        %3809 = vmatpush1.bf16.msra.mxu0 %v2987
        %3810 = vmatprep.subr.bf16.mxu0 %v2994
        %3811 = vmatpush1.bf16.msra.mxu0 %v2993
        %3812 = vmatprep.subr.bf16.mxu0 %v3000
        %3813 = vmatpush1.bf16.msra.mxu0 %v2999
        %3814 = vmatprep.subr.bf16.mxu0 %v3006
        %3815 = vmatpush1.bf16.msra.mxu0 %v3005
        %3816 = vmatprep.subr.bf16.mxu0 %v3012
        %3817 = vmatpush1.bf16.msra.mxu0 %v3011
        %3818 = vmatprep.subr.bf16.mxu0 %v3018
        %3819 = vmatpush1.bf16.msra.mxu0 %v3017
        %3820 = vmatprep.subr.bf16.mxu0 %v3024
        %3821 = vmatpush1.bf16.msra.mxu0 %v3023
        %3822 = vmatprep.subr.bf16.mxu0 %v3030
        %3823 = vmatpush1.bf16.msra.mxu0 %v3029
        %3824 = vmatprep.subr.bf16.mxu0 %v3036
        %3825 = vmatpush1.bf16.msra.mxu0 %v3035
        %3826 = vmatprep.subr.bf16.mxu0 %v3042
        %3827 = vmatpush1.bf16.msra.mxu0 %v3041
        %3828 = vmatprep.subr.bf16.mxu0 %v3048
        %3829 = vmatpush1.bf16.msra.mxu0 %v3047
        %3830 = vmatprep.subr.bf16.mxu0 %v3054
        %3831 = vmatpush1.bf16.msra.mxu0 %v3053
        %3832 = vmatprep.subr.bf16.mxu0 %v3060
        %3833 = vmatpush1.bf16.msra.mxu0 %v3059
        %3834 = vmatprep.subr.bf16.mxu0 %v3066
        %3835 = vmatpush1.bf16.msra.mxu0 %v3065
        %3836 = vmatprep.mubr.bf16.mxu0 %v1490
        %3837 = vmatmul.mubr.bf16.gmra.mrb[0].mxu0 %v1489
        %v3838 = vpop.f32.mrb[0].mxu0
        %v3839 = vadd.f32 %v3788, %v3838
        %v3840 = vpop.f32.mrb[0].mxu0
        %v3841 = vadd.f32 %v3790, %v3840
        %v3842 = vpop.f32.mrb[0].mxu0
        %v3843 = vadd.f32 %v3792, %v3842
        %v3844 = vpop.f32.mrb[0].mxu0
        %v3845 = vadd.f32 %v3794, %v3844
        %3846 = vmatprep.mubr.bf16.mxu0 %v1497
        %3847 = vmatmul.mubr.bf16.gmra.mrb[0].mxu0 %v1496
        %v3848 = vpop.f32.mrb[0].mxu0
        %v3849 = vadd.f32 %v3798, %v3848
        %v3850 = vpop.f32.mrb[0].mxu0
        %v3851 = vadd.f32 %v3800, %v3850
        %v3852 = vpop.f32.mrb[0].mxu0
        %v3853 = vpop.f32.mrb[0].mxu0
        %3854 = vdwg.mxu0
        %3855 = vmatprep.subr.bf16.mxu0 %v3072
        %3856 = vmatpush1.bf16.msra.mxu0 %v3071
        %3857 = vmatprep.subr.bf16.mxu0 %v3078
        %3858 = vmatpush1.bf16.msra.mxu0 %v3077
        %3859 = vmatprep.subr.bf16.mxu0 %v3084
        %3860 = vmatpush1.bf16.msra.mxu0 %v3083
        %3861 = vmatprep.subr.bf16.mxu0 %v3090
        %3862 = vmatpush1.bf16.msra.mxu0 %v3089
        %3863 = vmatprep.subr.bf16.mxu0 %v3096
        %3864 = vmatpush1.bf16.msra.mxu0 %v3095
        %3865 = vmatprep.subr.bf16.mxu0 %v3102
        %3866 = vmatpush1.bf16.msra.mxu0 %v3101
        %3867 = vmatprep.subr.bf16.mxu0 %v3108
        %3868 = vmatpush1.bf16.msra.mxu0 %v3107
        %3869 = vmatprep.subr.bf16.mxu0 %v3114
        %3870 = vmatpush1.bf16.msra.mxu0 %v3113
        %3871 = vmatprep.subr.bf16.mxu0 %v3120
        %3872 = vmatpush1.bf16.msra.mxu0 %v3119
        %3873 = vmatprep.subr.bf16.mxu0 %v3126
        %3874 = vmatpush1.bf16.msra.mxu0 %v3125
        %3875 = vmatprep.subr.bf16.mxu0 %v3132
        %3876 = vmatpush1.bf16.msra.mxu0 %v3131
        %3877 = vmatprep.subr.bf16.mxu0 %v3138
        %3878 = vmatpush1.bf16.msra.mxu0 %v3137
        %3879 = vmatprep.subr.bf16.mxu0 %v3144
        %3880 = vmatpush1.bf16.msra.mxu0 %v3143
        %3881 = vmatprep.subr.bf16.mxu0 %v3150
        %3882 = vmatpush1.bf16.msra.mxu0 %v3149
        %3883 = vmatprep.subr.bf16.mxu0 %v3156
        %3884 = vmatpush1.bf16.msra.mxu0 %v3155
        %3885 = vmatprep.subr.bf16.mxu0 %v3162
        %3886 = vmatpush1.bf16.msra.mxu0 %v3161
        %3887 = vmatprep.mubr.bf16.mxu0 %v1492
        %3888 = vmatmul.mubr.bf16.gmra.mrb[0].mxu0 %v1491
        %v3889 = vpop.f32.mrb[0].mxu0
        %v3890 = vadd.f32 %v3839, %v3889
        %v3891 = vpop.f32.mrb[0].mxu0
        %v3892 = vadd.f32 %v3841, %v3891
        %v3893 = vpop.f32.mrb[0].mxu0
        %v3894 = vadd.f32 %v3843, %v3893
        %v3895 = vpop.f32.mrb[0].mxu0
        %v3896 = vadd.f32 %v3845, %v3895
        %3897 = vmatprep.mubr.bf16.mxu0 %v1499
        %3898 = vmatmul.mubr.bf16.gmra.mrb[0].mxu0 %v1498
        %v3899 = vpop.f32.mrb[0].mxu0
        %v3900 = vadd.f32 %v3849, %v3899
        %v3901 = vpop.f32.mrb[0].mxu0
        %v3902 = vadd.f32 %v3851, %v3901
        %v3903 = vpop.f32.mrb[0].mxu0
        %v3904 = vpop.f32.mrb[0].mxu0
        %3905 = vdwg.mxu0
        %3906 = vmatprep.subr.bf16.mxu0 %v3168
        %3907 = vmatpush1.bf16.msra.mxu0 %v3167
        %3908 = vmatprep.subr.bf16.mxu0 %v3174
        %3909 = vmatpush1.bf16.msra.mxu0 %v3173
        %3910 = vmatprep.subr.bf16.mxu0 %v3180
        %3911 = vmatpush1.bf16.msra.mxu0 %v3179
        %3912 = vmatprep.subr.bf16.mxu0 %v3186
        %3913 = vmatpush1.bf16.msra.mxu0 %v3185
        %3914 = vmatprep.subr.bf16.mxu0 %v3192
        %3915 = vmatpush1.bf16.msra.mxu0 %v3191
        %3916 = vmatprep.subr.bf16.mxu0 %v3198
        %3917 = vmatpush1.bf16.msra.mxu0 %v3197
        %3918 = vmatprep.subr.bf16.mxu0 %v3204
        %3919 = vmatpush1.bf16.msra.mxu0 %v3203
        %3920 = vmatprep.subr.bf16.mxu0 %v3210
        %3921 = vmatpush1.bf16.msra.mxu0 %v3209
        %3922 = vmatprep.subr.bf16.mxu0 0
        %3923 = vmatpush1.bf16.msra.mxu0 0
        %3924 = vmatprep.subr.bf16.mxu0 0
        %3925 = vmatpush1.bf16.msra.mxu0 0
        %3926 = vmatprep.subr.bf16.mxu0 0
        %3927 = vmatpush1.bf16.msra.mxu0 0
        %3928 = vmatprep.subr.bf16.mxu0 0
        %3929 = vmatpush1.bf16.msra.mxu0 0
        %3930 = vmatprep.subr.bf16.mxu0 0
        %3931 = vmatpush1.bf16.msra.mxu0 0
        %3932 = vmatprep.subr.bf16.mxu0 0
        %3933 = vmatpush1.bf16.msra.mxu0 0
        %3934 = vmatprep.subr.bf16.mxu0 0
        %3935 = vmatpush1.bf16.msra.mxu0 0
        %3936 = vmatprep.subr.bf16.mxu0 0
        %3937 = vmatpush1.bf16.msra.mxu0 0
        %3938 = vmatprep.mubr.bf16.mxu0 0
        %3939 = vmatmul.mubr.bf16.gmra.mrb[0].mxu0 %v1493
        %v3940 = vpop.f32.mrb[0].mxu0
        %v3941 = vadd.f32 %v3890, %v3940
        %v3942 = vpop.f32.mrb[0].mxu0
        %v3943 = vadd.f32 %v3892, %v3942
        %v3944 = vpop.f32.mrb[0].mxu0
        %v3945 = vadd.f32 %v3894, %v3944
        %v3946 = vpop.f32.mrb[0].mxu0
        %v3947 = vadd.f32 %v3896, %v3946
        %3948 = vmatprep.mubr.bf16.mxu0 0
        %3949 = vmatmul.mubr.bf16.gmra.mrb[0].mxu0 %v1500
        %v3950 = vpop.f32.mrb[0].mxu0
        %v3951 = vadd.f32 %v3900, %v3950
        %v3952 = vpop.f32.mrb[0].mxu0
        %v3953 = vadd.f32 %v3902, %v3952
        %v3954 = vpop.f32.mrb[0].mxu0
        %v3955 = vpop.f32.mrb[0].mxu0
        %3956 = vdwg.mxu0
        %3957 = vmatprep.subr.bf16.mxu0 %v2882
        %3958 = vmatpush1.bf16.msra.mxu0 %v2881
        %3959 = vmatprep.subr.bf16.mxu0 %v2888
        %3960 = vmatpush1.bf16.msra.mxu0 %v2887
        %3961 = vmatprep.subr.bf16.mxu0 %v2894
        %3962 = vmatpush1.bf16.msra.mxu0 %v2893
        %3963 = vmatprep.subr.bf16.mxu0 %v2900
        %3964 = vmatpush1.bf16.msra.mxu0 %v2899
        %3965 = vmatprep.subr.bf16.mxu0 %v2906
        %3966 = vmatpush1.bf16.msra.mxu0 %v2905
        %3967 = vmatprep.subr.bf16.mxu0 %v2912
        %3968 = vmatpush1.bf16.msra.mxu0 %v2911
        %3969 = vmatprep.subr.bf16.mxu0 %v2918
        %3970 = vmatpush1.bf16.msra.mxu0 %v2917
        %3971 = vmatprep.subr.bf16.mxu0 %v2924
        %3972 = vmatpush1.bf16.msra.mxu0 %v2923
        %3973 = vmatprep.subr.bf16.mxu0 %v2930
        %3974 = vmatpush1.bf16.msra.mxu0 %v2929
        %3975 = vmatprep.subr.bf16.mxu0 %v2936
        %3976 = vmatpush1.bf16.msra.mxu0 %v2935
        %3977 = vmatprep.subr.bf16.mxu0 %v2942
        %3978 = vmatpush1.bf16.msra.mxu0 %v2941
        %3979 = vmatprep.subr.bf16.mxu0 %v2948
        %3980 = vmatpush1.bf16.msra.mxu0 %v2947
        %3981 = vmatprep.subr.bf16.mxu0 %v2954
        %3982 = vmatpush1.bf16.msra.mxu0 %v2953
        %3983 = vmatprep.subr.bf16.mxu0 %v2960
        %3984 = vmatpush1.bf16.msra.mxu0 %v2959
        %3985 = vmatprep.subr.bf16.mxu0 %v2966
        %3986 = vmatpush1.bf16.msra.mxu0 %v2965
        %3987 = vmatprep.subr.bf16.mxu0 %v2972
        %3988 = vmatpush1.bf16.msra.mxu0 %v2971
        %3989 = vmatprep.mubr.bf16.mxu0 %v1488
        %3990 = vmatmul.mubr.bf16.gmra.mrb[0].mxu0 %v1487
        %v3991 = vpop.f32.mrb[0].mxu0
        %v3992 = vadd.f32 %v1858, %v3991
        %v3993 = vpop.f32.mrb[0].mxu0
        %v3994 = vadd.f32 %v1862, %v3993
        %v3995 = vpop.f32.mrb[0].mxu0
        %v3996 = vadd.f32 %v1858, %v3995
        %v3997 = vpop.f32.mrb[0].mxu0
        %v3998 = vadd.f32 %v1862, %v3997
        %3999 = vmatprep.mubr.bf16.mxu0 %v1495
        %4000 = vmatmul.mubr.bf16.gmra.mrb[0].mxu0 %v1494
        %v4001 = vpop.f32.mrb[0].mxu0
        %v4002 = vadd.f32 %v1858, %v4001
        %v4003 = vpop.f32.mrb[0].mxu0
        %v4004 = vadd.f32 %v1862, %v4003
        %v4005 = vpop.f32.mrb[0].mxu0
        %v4006 = vpop.f32.mrb[0].mxu0
        %4007 = vdwg.mxu0
        %4008 = vmatprep.subr.bf16.mxu0 %v2978
        %4009 = vmatpush1.bf16.msra.mxu0 %v2977
        %4010 = vmatprep.subr.bf16.mxu0 %v2984
        %4011 = vmatpush1.bf16.msra.mxu0 %v2983
        %4012 = vmatprep.subr.bf16.mxu0 %v2990
        %4013 = vmatpush1.bf16.msra.mxu0 %v2989
        %4014 = vmatprep.subr.bf16.mxu0 %v2996
        %4015 = vmatpush1.bf16.msra.mxu0 %v2995
        %4016 = vmatprep.subr.bf16.mxu0 %v3002
        %4017 = vmatpush1.bf16.msra.mxu0 %v3001
        %4018 = vmatprep.subr.bf16.mxu0 %v3008
        %4019 = vmatpush1.bf16.msra.mxu0 %v3007
        %4020 = vmatprep.subr.bf16.mxu0 %v3014
        %4021 = vmatpush1.bf16.msra.mxu0 %v3013
        %4022 = vmatprep.subr.bf16.mxu0 %v3020
        %4023 = vmatpush1.bf16.msra.mxu0 %v3019
        %4024 = vmatprep.subr.bf16.mxu0 %v3026
        %4025 = vmatpush1.bf16.msra.mxu0 %v3025
        %4026 = vmatprep.subr.bf16.mxu0 %v3032
        %4027 = vmatpush1.bf16.msra.mxu0 %v3031
        %4028 = vmatprep.subr.bf16.mxu0 %v3038
        %4029 = vmatpush1.bf16.msra.mxu0 %v3037
        %4030 = vmatprep.subr.bf16.mxu0 %v3044
        %4031 = vmatpush1.bf16.msra.mxu0 %v3043
        %4032 = vmatprep.subr.bf16.mxu0 %v3050
        %4033 = vmatpush1.bf16.msra.mxu0 %v3049
        %4034 = vmatprep.subr.bf16.mxu0 %v3056
        %4035 = vmatpush1.bf16.msra.mxu0 %v3055
        %4036 = vmatprep.subr.bf16.mxu0 %v3062
        %4037 = vmatpush1.bf16.msra.mxu0 %v3061
        %4038 = vmatprep.subr.bf16.mxu0 %v3068
        %4039 = vmatpush1.bf16.msra.mxu0 %v3067
        %4040 = vmatprep.mubr.bf16.mxu0 %v1490
        %4041 = vmatmul.mubr.bf16.gmra.mrb[0].mxu0 %v1489
        %v4042 = vpop.f32.mrb[0].mxu0
        %v4043 = vadd.f32 %v3992, %v4042
        %v4044 = vpop.f32.mrb[0].mxu0
        %v4045 = vadd.f32 %v3994, %v4044
        %v4046 = vpop.f32.mrb[0].mxu0
        %v4047 = vadd.f32 %v3996, %v4046
        %v4048 = vpop.f32.mrb[0].mxu0
        %v4049 = vadd.f32 %v3998, %v4048
        %4050 = vmatprep.mubr.bf16.mxu0 %v1497
        %4051 = vmatmul.mubr.bf16.gmra.mrb[0].mxu0 %v1496
        %v4052 = vpop.f32.mrb[0].mxu0
        %v4053 = vadd.f32 %v4002, %v4052
        %v4054 = vpop.f32.mrb[0].mxu0
        %v4055 = vadd.f32 %v4004, %v4054
        %v4056 = vpop.f32.mrb[0].mxu0
        %v4057 = vpop.f32.mrb[0].mxu0
        %4058 = vdwg.mxu0
        %4059 = vmatprep.subr.bf16.mxu0 %v3074
        %4060 = vmatpush1.bf16.msra.mxu0 %v3073
        %4061 = vmatprep.subr.bf16.mxu0 %v3080
        %4062 = vmatpush1.bf16.msra.mxu0 %v3079
        %4063 = vmatprep.subr.bf16.mxu0 %v3086
        %4064 = vmatpush1.bf16.msra.mxu0 %v3085
        %4065 = vmatprep.subr.bf16.mxu0 %v3092
        %4066 = vmatpush1.bf16.msra.mxu0 %v3091
        %4067 = vmatprep.subr.bf16.mxu0 %v3098
        %4068 = vmatpush1.bf16.msra.mxu0 %v3097
        %4069 = vmatprep.subr.bf16.mxu0 %v3104
        %4070 = vmatpush1.bf16.msra.mxu0 %v3103
        %4071 = vmatprep.subr.bf16.mxu0 %v3110
        %4072 = vmatpush1.bf16.msra.mxu0 %v3109
        %4073 = vmatprep.subr.bf16.mxu0 %v3116
        %4074 = vmatpush1.bf16.msra.mxu0 %v3115
        %4075 = vmatprep.subr.bf16.mxu0 %v3122
        %4076 = vmatpush1.bf16.msra.mxu0 %v3121
        %4077 = vmatprep.subr.bf16.mxu0 %v3128
        %4078 = vmatpush1.bf16.msra.mxu0 %v3127
        %4079 = vmatprep.subr.bf16.mxu0 %v3134
        %4080 = vmatpush1.bf16.msra.mxu0 %v3133
        %4081 = vmatprep.subr.bf16.mxu0 %v3140
        %4082 = vmatpush1.bf16.msra.mxu0 %v3139
        %4083 = vmatprep.subr.bf16.mxu0 %v3146
        %4084 = vmatpush1.bf16.msra.mxu0 %v3145
        %4085 = vmatprep.subr.bf16.mxu0 %v3152
        %4086 = vmatpush1.bf16.msra.mxu0 %v3151
        %4087 = vmatprep.subr.bf16.mxu0 %v3158
        %4088 = vmatpush1.bf16.msra.mxu0 %v3157
        %4089 = vmatprep.subr.bf16.mxu0 %v3164
        %4090 = vmatpush1.bf16.msra.mxu0 %v3163
        %4091 = vmatprep.mubr.bf16.mxu0 %v1492
        %4092 = vmatmul.mubr.bf16.gmra.mrb[0].mxu0 %v1491
        %v4093 = vpop.f32.mrb[0].mxu0
        %v4094 = vadd.f32 %v4043, %v4093
        %v4095 = vpop.f32.mrb[0].mxu0
        %v4096 = vadd.f32 %v4045, %v4095
        %v4097 = vpop.f32.mrb[0].mxu0
        %v4098 = vadd.f32 %v4047, %v4097
        %v4099 = vpop.f32.mrb[0].mxu0
        %v4100 = vadd.f32 %v4049, %v4099
        %4101 = vmatprep.mubr.bf16.mxu0 %v1499
        %4102 = vmatmul.mubr.bf16.gmra.mrb[0].mxu0 %v1498
        %v4103 = vpop.f32.mrb[0].mxu0
        %v4104 = vadd.f32 %v4053, %v4103
        %v4105 = vpop.f32.mrb[0].mxu0
        %v4106 = vadd.f32 %v4055, %v4105
        %v4107 = vpop.f32.mrb[0].mxu0
        %v4108 = vpop.f32.mrb[0].mxu0
        %4109 = vdwg.mxu0
        %4110 = vmatprep.subr.bf16.mxu0 %v3170
        %4111 = vmatpush1.bf16.msra.mxu0 %v3169
        %4112 = vmatprep.subr.bf16.mxu0 %v3176
        %4113 = vmatpush1.bf16.msra.mxu0 %v3175
        %4114 = vmatprep.subr.bf16.mxu0 %v3182
        %4115 = vmatpush1.bf16.msra.mxu0 %v3181
        %4116 = vmatprep.subr.bf16.mxu0 %v3188
        %4117 = vmatpush1.bf16.msra.mxu0 %v3187
        %4118 = vmatprep.subr.bf16.mxu0 %v3194
        %4119 = vmatpush1.bf16.msra.mxu0 %v3193
        %4120 = vmatprep.subr.bf16.mxu0 %v3200
        %4121 = vmatpush1.bf16.msra.mxu0 %v3199
        %4122 = vmatprep.subr.bf16.mxu0 %v3206
        %4123 = vmatpush1.bf16.msra.mxu0 %v3205
        %4124 = vmatprep.subr.bf16.mxu0 %v3212
        %4125 = vmatpush1.bf16.msra.mxu0 %v3211
        %4126 = vmatprep.subr.bf16.mxu0 0
        %4127 = vmatpush1.bf16.msra.mxu0 0
        %4128 = vmatprep.subr.bf16.mxu0 0
        %4129 = vmatpush1.bf16.msra.mxu0 0
        %4130 = vmatprep.subr.bf16.mxu0 0
        %4131 = vmatpush1.bf16.msra.mxu0 0
        %4132 = vmatprep.subr.bf16.mxu0 0
        %4133 = vmatpush1.bf16.msra.mxu0 0
        %4134 = vmatprep.subr.bf16.mxu0 0
        %4135 = vmatpush1.bf16.msra.mxu0 0
        %4136 = vmatprep.subr.bf16.mxu0 0
        %4137 = vmatpush1.bf16.msra.mxu0 0
        %4138 = vmatprep.subr.bf16.mxu0 0
        %4139 = vmatpush1.bf16.msra.mxu0 0
        %4140 = vmatprep.subr.bf16.mxu0 0
        %4141 = vmatpush1.bf16.msra.mxu0 0
        %4142 = vmatprep.mubr.bf16.mxu0 0
        %4143 = vmatmul.mubr.bf16.gmra.mrb[0].mxu0 %v1493
        %v4144 = vpop.f32.mrb[0].mxu0
        %v4145 = vadd.f32 %v4094, %v4144
        %v4146 = vpop.f32.mrb[0].mxu0
        %v4147 = vadd.f32 %v4096, %v4146
        %v4148 = vpop.f32.mrb[0].mxu0
        %v4149 = vadd.f32 %v4098, %v4148
        %v4150 = vpop.f32.mrb[0].mxu0
        %v4151 = vadd.f32 %v4100, %v4150
        %4152 = vmatprep.mubr.bf16.mxu0 0
        %4153 = vmatmul.mubr.bf16.gmra.mrb[0].mxu0 %v1500
        %v4154 = vpop.f32.mrb[0].mxu0
        %v4155 = vadd.f32 %v4104, %v4154
        %v4156 = vpop.f32.mrb[0].mxu0
        %v4157 = vadd.f32 %v4106, %v4156
        %v4158 = vpop.f32.mrb[0].mxu0
        %v4159 = vpop.f32.mrb[0].mxu0
        %4160 = vdwg.mxu0
        %v4161 = vmax.f32 %v3737, 0.0
        %v4162 = vmax.f32 %v3739, 0.0
        %v4163 = vmax.f32 %v3941, 0.0
        %v4164 = vmax.f32 %v3943, 0.0
        %v4165 = vmax.f32 %v4145, 0.0
        %v4166 = vmax.f32 %v4147, 0.0
        %v4167 = vmax.f32 %v3741, 0.0
        %v4168 = vmax.f32 %v3743, 0.0
        %v4169 = vmax.f32 %v3945, 0.0
        %v4170 = vmax.f32 %v3947, 0.0
        %v4171 = vmax.f32 %v4149, 0.0
        %v4172 = vmax.f32 %v4151, 0.0
        %v4173 = vmax.f32 %v3747, 0.0
        %v4174 = vmax.f32 %v3749, 0.0
        %v4175 = vmax.f32 %v3951, 0.0
        %v4176 = vmax.f32 %v3953, 0.0
        %v4177 = vmax.f32 %v4155, 0.0
        %v4178 = vmax.f32 %v4157, 0.0
        %4179 = vst [vmem:[#allocation3] sm:$0xff] 0.0
        %vm4180 = vcmask 424960
        %4181 = vst.msk [vmem:[#allocation3 + $0x8] sm:$0xff] %vm4180, 0.0
        %v4188 = vrot.slane %v4161, 1
        %v4189 = vrot.slane %v4162, 1
        %v4190 = vrot.slane %v4163, 1
        %v4191 = vrot.slane %v4164, 1
        %v4192 = vrot.slane %v4165, 1
        %v4193 = vrot.slane %v4166, 1
        %v4200 = vmax.f32 %v4161, %v4188
        %v4201 = vmax.f32 %v4162, %v4189
        %v4202 = vmax.f32 %v4163, %v4190
        %v4203 = vmax.f32 %v4164, %v4191
        %v4204 = vmax.f32 %v4165, %v4192
        %v4205 = vmax.f32 %v4166, %v4193
        %v4212 = vrot.slane %v4200, 2
        %v4213 = vrot.slane %v4201, 2
        %v4214 = vrot.slane %v4202, 2
        %v4215 = vrot.slane %v4203, 2
        %v4216 = vrot.slane %v4204, 2
        %v4217 = vrot.slane %v4205, 2
        %v4224 = vmax.f32 %v4200, %v4212
        %v4225 = vmax.f32 %v4201, %v4213
        %v4226 = vmax.f32 %v4202, %v4214
        %v4227 = vmax.f32 %v4203, %v4215
        %v4228 = vmax.f32 %v4204, %v4216
        %v4229 = vmax.f32 %v4205, %v4217
        %4231 = vrot.lane.b32.xlu0 %v4224, 98
        %v4232 = vpop.permute.xlu0 %4231
        %v4234 = vmax.f32 %v4224, %v4232
        %4235 = vrot.lane.b32.xlu0 %v4224, 68
        %v4236 = vpop.permute.xlu0 %4235
        %v4238 = vmax.f32 %v4234, %v4236
        %4239 = vrot.lane.b32.xlu0 %v4224, 38
        %v4240 = vpop.permute.xlu0 %4239
        %v4242 = vmax.f32 %v4238, %v4240
        %vm4243 = vcmask 237568
        %4244 = vst.msk [vmem:[#allocation3 + $0x1] sm:$0x1] %vm4243, %v4242
        %4246 = vrot.lane.b32.xlu0 %v4225, 98
        %v4247 = vpop.permute.xlu0 %4246
        %v4249 = vmax.f32 %v4224, %v4247
        %v4250 = vmax.f32 %v4225, %v4247
        %4251 = vrot.lane.b32.xlu0 %v4225, 68
        %v4252 = vpop.permute.xlu0 %4251
        %v4254 = vmax.f32 %v4249, %v4252
        %v4255 = vmax.f32 %v4250, %v4252
        %4256 = vrot.lane.b32.xlu0 %v4225, 38
        %v4257 = vpop.permute.xlu0 %4256
        %v4259 = vmax.f32 %v4254, %v4257
        %v4260 = vmax.f32 %v4255, %v4257
        %4263 = vrot.lane.b32.xlu0 %v4259, 38
        %v4264 = vpop.permute.xlu0 %4263
        %4265 = vrot.lane.b32.xlu0 %v4260, 38
        %v4266 = vpop.permute.xlu0 %4265
        %vm4267 = vcmask 310272
        %v4268 = vsel %vm4267, %v4264, %v4266
        %vm4270 = vcmask 483568
        %4271 = vst.msk [vmem:[#allocation3 + $0x1] sm:$0x1] %vm4270, %v4268
        %4273 = vrot.lane.b32.xlu0 %v4226, 98
        %v4274 = vpop.permute.xlu0 %4273
        %v4276 = vmax.f32 %v4225, %v4274
        %v4277 = vmax.f32 %v4226, %v4274
        %4278 = vrot.lane.b32.xlu0 %v4226, 68
        %v4279 = vpop.permute.xlu0 %4278
        %v4281 = vmax.f32 %v4276, %v4279
        %v4282 = vmax.f32 %v4277, %v4279
        %4283 = vrot.lane.b32.xlu0 %v4226, 38
        %v4284 = vpop.permute.xlu0 %4283
        %v4286 = vmax.f32 %v4281, %v4284
        %v4287 = vmax.f32 %v4282, %v4284
        %4290 = vrot.lane.b32.xlu0 %v4286, 76
        %v4291 = vpop.permute.xlu0 %4290
        %4292 = vrot.lane.b32.xlu0 %v4287, 76
        %v4293 = vpop.permute.xlu0 %4292
        %vm4294 = vcmask 621568
        %v4295 = vsel %vm4294, %v4291, %v4293
        %vm4297 = vcmask 729568
        %4298 = vst.msk [vmem:[#allocation3 + $0x1] sm:$0x1] %vm4297, %v4295
        %4300 = vrot.lane.b32.xlu0 %v4227, 98
        %v4301 = vpop.permute.xlu0 %4300
        %v4303 = vmax.f32 %v4226, %v4301
        %v4304 = vmax.f32 %v4227, %v4301
        %4305 = vrot.lane.b32.xlu0 %v4227, 68
        %v4306 = vpop.permute.xlu0 %4305
        %v4308 = vmax.f32 %v4303, %v4306
        %v4309 = vmax.f32 %v4304, %v4306
        %4310 = vrot.lane.b32.xlu0 %v4227, 38
        %v4311 = vpop.permute.xlu0 %4310
        %v4313 = vmax.f32 %v4308, %v4311
        %v4314 = vmax.f32 %v4309, %v4311
        %4317 = vrot.lane.b32.xlu0 %v4313, 114
        %v4318 = vpop.permute.xlu0 %4317
        %4319 = vrot.lane.b32.xlu0 %v4314, 114
        %v4320 = vpop.permute.xlu0 %4319
        %vm4321 = vcmask 932864
        %v4322 = vsel %vm4321, %v4318, %v4320
        %vm4324 = vcmask 975568
        %4325 = vst.msk [vmem:[#allocation3 + $0x1] sm:$0x1] %vm4324, %v4322
        %4327 = vrot.lane.b32.xlu0 %v4228, 98
        %v4328 = vpop.permute.xlu0 %4327
        %vm4329 = vcmask 801792
        %v4330 = vsel %vm4329, %v4301, %v4328
        %v4332 = vmax.f32 %v4227, %v4330
        %4333 = vrot.lane.b32.xlu0 %v4228, 68
        %v4334 = vpop.permute.xlu0 %4333
        %v4336 = vmax.f32 %v4332, %v4334
        %4337 = vrot.lane.b32.xlu0 %v4228, 38
        %v4338 = vpop.permute.xlu0 %4337
        %v4340 = vmax.f32 %v4336, %v4338
        %4342 = vrot.lane.b32.xlu0 %v4340, 24
        %v4343 = vpop.permute.xlu0 %4342
        %vm4345 = vcmask 1041344
        %4346 = vst.msk [vmem:[#allocation3 + $0x1] sm:$0x1] %vm4345, %v4343
        %vm4347 = vcmask 172032
        %4348 = vst.msk [vmem:[#allocation3 + $0x9] sm:$0x1] %vm4347, %v4343
        %4350 = vrot.lane.b32.xlu0 %v4229, 98
        %v4351 = vpop.permute.xlu0 %4350
        %v4352 = vsel %vm4329, %v4328, %v4351
        %v4354 = vmax.f32 %v4228, %v4352
        %4355 = vrot.lane.b32.xlu0 %v4229, 68
        %v4356 = vpop.permute.xlu0 %4355
        %v4358 = vmax.f32 %v4354, %v4356
        %4359 = vrot.lane.b32.xlu0 %v4229, 38
        %v4360 = vpop.permute.xlu0 %4359
        %v4362 = vmax.f32 %v4358, %v4360
        %4364 = vrot.lane.b32.xlu0 %v4362, 62
        %v4365 = vpop.permute.xlu0 %4364
        %vm4367 = vcmask 417968
        %4368 = vst.msk [vmem:[#allocation3 + $0x9] sm:$0x1] %vm4367, %v4365
        %v4370 = vrot.slane %v4242, 4
        %4372 = vst.msk [vmem:[#allocation3 + $0x2] sm:$0x1] %vm4243, %v4370
        %v4373 = vrot.slane %v4259, 4
        %v4374 = vrot.slane %v4260, 4
        %4375 = vrot.lane.b32.xlu0 %v4373, 38
        %v4376 = vpop.permute.xlu0 %4375
        %4377 = vrot.lane.b32.xlu0 %v4374, 38
        %v4378 = vpop.permute.xlu0 %4377
        %v4379 = vsel %vm4267, %v4376, %v4378
        %4381 = vst.msk [vmem:[#allocation3 + $0x2] sm:$0x1] %vm4270, %v4379
        %v4382 = vrot.slane %v4286, 4
        %v4383 = vrot.slane %v4287, 4
        %4384 = vrot.lane.b32.xlu0 %v4382, 76
        %v4385 = vpop.permute.xlu0 %4384
        %4386 = vrot.lane.b32.xlu0 %v4383, 76
        %v4387 = vpop.permute.xlu0 %4386
        %v4388 = vsel %vm4294, %v4385, %v4387
        %4390 = vst.msk [vmem:[#allocation3 + $0x2] sm:$0x1] %vm4297, %v4388
        %v4391 = vrot.slane %v4313, 4
        %v4392 = vrot.slane %v4314, 4
        %4393 = vrot.lane.b32.xlu0 %v4391, 114
        %v4394 = vpop.permute.xlu0 %4393
        %4395 = vrot.lane.b32.xlu0 %v4392, 114
        %v4396 = vpop.permute.xlu0 %4395
        %v4397 = vsel %vm4321, %v4394, %v4396
        %4399 = vst.msk [vmem:[#allocation3 + $0x2] sm:$0x1] %vm4324, %v4397
        %v4400 = vrot.slane %v4340, 4
        %4401 = vrot.lane.b32.xlu0 %v4400, 24
        %v4402 = vpop.permute.xlu0 %4401
        %4404 = vst.msk [vmem:[#allocation3 + $0x2] sm:$0x1] %vm4345, %v4402
        %4405 = vst.msk [vmem:[#allocation3 + $0xa] sm:$0x1] %vm4347, %v4402
        %v4406 = vrot.slane %v4362, 4
        %4407 = vrot.lane.b32.xlu0 %v4406, 62
        %v4408 = vpop.permute.xlu0 %4407
        %4410 = vst.msk [vmem:[#allocation3 + $0xa] sm:$0x1] %vm4367, %v4408
        %v4417 = vrot.slane %v4167, 1
        %v4418 = vrot.slane %v4168, 1
        %v4419 = vrot.slane %v4169, 1
        %v4420 = vrot.slane %v4170, 1
        %v4421 = vrot.slane %v4171, 1
        %v4422 = vrot.slane %v4172, 1
        %v4429 = vmax.f32 %v4167, %v4417
        %v4430 = vmax.f32 %v4168, %v4418
        %v4431 = vmax.f32 %v4169, %v4419
        %v4432 = vmax.f32 %v4170, %v4420
        %v4433 = vmax.f32 %v4171, %v4421
        %v4434 = vmax.f32 %v4172, %v4422
        %v4441 = vrot.slane %v4429, 2
        %v4442 = vrot.slane %v4430, 2
        %v4443 = vrot.slane %v4431, 2
        %v4444 = vrot.slane %v4432, 2
        %v4445 = vrot.slane %v4433, 2
        %v4446 = vrot.slane %v4434, 2
        %v4453 = vmax.f32 %v4429, %v4441
        %v4454 = vmax.f32 %v4430, %v4442
        %v4455 = vmax.f32 %v4431, %v4443
        %v4456 = vmax.f32 %v4432, %v4444
        %v4457 = vmax.f32 %v4433, %v4445
        %v4458 = vmax.f32 %v4434, %v4446
        %4460 = vrot.lane.b32.xlu0 %v4453, 98
        %v4461 = vpop.permute.xlu0 %4460
        %v4463 = vmax.f32 %v4453, %v4461
        %4464 = vrot.lane.b32.xlu0 %v4453, 68
        %v4465 = vpop.permute.xlu0 %4464
        %v4467 = vmax.f32 %v4463, %v4465
        %4468 = vrot.lane.b32.xlu0 %v4453, 38
        %v4469 = vpop.permute.xlu0 %4468
        %v4471 = vmax.f32 %v4467, %v4469
        %4472 = vst.msk [vmem:[#allocation3 + $0x3] sm:$0x1] %vm4243, %v4471
        %4474 = vrot.lane.b32.xlu0 %v4454, 98
        %v4475 = vpop.permute.xlu0 %4474
        %v4477 = vmax.f32 %v4453, %v4475
        %v4478 = vmax.f32 %v4454, %v4475
        %4479 = vrot.lane.b32.xlu0 %v4454, 68
        %v4480 = vpop.permute.xlu0 %4479
        %v4482 = vmax.f32 %v4477, %v4480
        %v4483 = vmax.f32 %v4478, %v4480
        %4484 = vrot.lane.b32.xlu0 %v4454, 38
        %v4485 = vpop.permute.xlu0 %4484
        %v4487 = vmax.f32 %v4482, %v4485
        %v4488 = vmax.f32 %v4483, %v4485
        %4491 = vrot.lane.b32.xlu0 %v4487, 38
        %v4492 = vpop.permute.xlu0 %4491
        %4493 = vrot.lane.b32.xlu0 %v4488, 38
        %v4494 = vpop.permute.xlu0 %4493
        %v4495 = vsel %vm4267, %v4492, %v4494
        %4497 = vst.msk [vmem:[#allocation3 + $0x3] sm:$0x1] %vm4270, %v4495
        %4499 = vrot.lane.b32.xlu0 %v4455, 98
        %v4500 = vpop.permute.xlu0 %4499
        %v4502 = vmax.f32 %v4454, %v4500
        %v4503 = vmax.f32 %v4455, %v4500
        %4504 = vrot.lane.b32.xlu0 %v4455, 68
        %v4505 = vpop.permute.xlu0 %4504
        %v4507 = vmax.f32 %v4502, %v4505
        %v4508 = vmax.f32 %v4503, %v4505
        %4509 = vrot.lane.b32.xlu0 %v4455, 38
        %v4510 = vpop.permute.xlu0 %4509
        %v4512 = vmax.f32 %v4507, %v4510
        %v4513 = vmax.f32 %v4508, %v4510
        %4516 = vrot.lane.b32.xlu0 %v4512, 76
        %v4517 = vpop.permute.xlu0 %4516
        %4518 = vrot.lane.b32.xlu0 %v4513, 76
        %v4519 = vpop.permute.xlu0 %4518
        %v4520 = vsel %vm4294, %v4517, %v4519
        %4522 = vst.msk [vmem:[#allocation3 + $0x3] sm:$0x1] %vm4297, %v4520
        %4524 = vrot.lane.b32.xlu0 %v4456, 98
        %v4525 = vpop.permute.xlu0 %4524
        %v4527 = vmax.f32 %v4455, %v4525
        %v4528 = vmax.f32 %v4456, %v4525
        %4529 = vrot.lane.b32.xlu0 %v4456, 68
        %v4530 = vpop.permute.xlu0 %4529
        %v4532 = vmax.f32 %v4527, %v4530
        %v4533 = vmax.f32 %v4528, %v4530
        %4534 = vrot.lane.b32.xlu0 %v4456, 38
        %v4535 = vpop.permute.xlu0 %4534
        %v4537 = vmax.f32 %v4532, %v4535
        %v4538 = vmax.f32 %v4533, %v4535
        %4541 = vrot.lane.b32.xlu0 %v4537, 114
        %v4542 = vpop.permute.xlu0 %4541
        %4543 = vrot.lane.b32.xlu0 %v4538, 114
        %v4544 = vpop.permute.xlu0 %4543
        %v4545 = vsel %vm4321, %v4542, %v4544
        %4547 = vst.msk [vmem:[#allocation3 + $0x3] sm:$0x1] %vm4324, %v4545
        %4549 = vrot.lane.b32.xlu0 %v4457, 98
        %v4550 = vpop.permute.xlu0 %4549
        %v4551 = vsel %vm4329, %v4525, %v4550
        %v4553 = vmax.f32 %v4456, %v4551
        %4554 = vrot.lane.b32.xlu0 %v4457, 68
        %v4555 = vpop.permute.xlu0 %4554
        %v4557 = vmax.f32 %v4553, %v4555
        %4558 = vrot.lane.b32.xlu0 %v4457, 38
        %v4559 = vpop.permute.xlu0 %4558
        %v4561 = vmax.f32 %v4557, %v4559
        %4563 = vrot.lane.b32.xlu0 %v4561, 24
        %v4564 = vpop.permute.xlu0 %4563
        %4566 = vst.msk [vmem:[#allocation3 + $0x3] sm:$0x1] %vm4345, %v4564
        %4567 = vst.msk [vmem:[#allocation3 + $0xb] sm:$0x1] %vm4347, %v4564
        %4569 = vrot.lane.b32.xlu0 %v4458, 98
        %v4570 = vpop.permute.xlu0 %4569
        %v4571 = vsel %vm4329, %v4550, %v4570
        %v4573 = vmax.f32 %v4457, %v4571
        %4574 = vrot.lane.b32.xlu0 %v4458, 68
        %v4575 = vpop.permute.xlu0 %4574
        %v4577 = vmax.f32 %v4573, %v4575
        %4578 = vrot.lane.b32.xlu0 %v4458, 38
        %v4579 = vpop.permute.xlu0 %4578
        %v4581 = vmax.f32 %v4577, %v4579
        %4583 = vrot.lane.b32.xlu0 %v4581, 62
        %v4584 = vpop.permute.xlu0 %4583
        %4586 = vst.msk [vmem:[#allocation3 + $0xb] sm:$0x1] %vm4367, %v4584
        %v4588 = vrot.slane %v4471, 4
        %4590 = vst.msk [vmem:[#allocation3 + $0x4] sm:$0x1] %vm4243, %v4588
        %v4591 = vrot.slane %v4487, 4
        %v4592 = vrot.slane %v4488, 4
        %4593 = vrot.lane.b32.xlu0 %v4591, 38
        %v4594 = vpop.permute.xlu0 %4593
        %4595 = vrot.lane.b32.xlu0 %v4592, 38
        %v4596 = vpop.permute.xlu0 %4595
        %v4597 = vsel %vm4267, %v4594, %v4596
        %4599 = vst.msk [vmem:[#allocation3 + $0x4] sm:$0x1] %vm4270, %v4597
        %v4600 = vrot.slane %v4512, 4
        %v4601 = vrot.slane %v4513, 4
        %4602 = vrot.lane.b32.xlu0 %v4600, 76
        %v4603 = vpop.permute.xlu0 %4602
        %4604 = vrot.lane.b32.xlu0 %v4601, 76
        %v4605 = vpop.permute.xlu0 %4604
        %v4606 = vsel %vm4294, %v4603, %v4605
        %4608 = vst.msk [vmem:[#allocation3 + $0x4] sm:$0x1] %vm4297, %v4606
        %v4609 = vrot.slane %v4537, 4
        %v4610 = vrot.slane %v4538, 4
        %4611 = vrot.lane.b32.xlu0 %v4609, 114
        %v4612 = vpop.permute.xlu0 %4611
        %4613 = vrot.lane.b32.xlu0 %v4610, 114
        %v4614 = vpop.permute.xlu0 %4613
        %v4615 = vsel %vm4321, %v4612, %v4614
        %4617 = vst.msk [vmem:[#allocation3 + $0x4] sm:$0x1] %vm4324, %v4615
        %v4618 = vrot.slane %v4561, 4
        %4619 = vrot.lane.b32.xlu0 %v4618, 24
        %v4620 = vpop.permute.xlu0 %4619
        %4622 = vst.msk [vmem:[#allocation3 + $0x4] sm:$0x1] %vm4345, %v4620
        %4623 = vst.msk [vmem:[#allocation3 + $0xc] sm:$0x1] %vm4347, %v4620
        %v4624 = vrot.slane %v4581, 4
        %4625 = vrot.lane.b32.xlu0 %v4624, 62
        %v4626 = vpop.permute.xlu0 %4625
        %4628 = vst.msk [vmem:[#allocation3 + $0xc] sm:$0x1] %vm4367, %v4626
        %v4635 = vrot.slane %v4173, 1
        %v4636 = vrot.slane %v4174, 1
        %v4637 = vrot.slane %v4175, 1
        %v4638 = vrot.slane %v4176, 1
        %v4639 = vrot.slane %v4177, 1
        %v4640 = vrot.slane %v4178, 1
        %v4647 = vmax.f32 %v4173, %v4635
        %v4648 = vmax.f32 %v4174, %v4636
        %v4649 = vmax.f32 %v4175, %v4637
        %v4650 = vmax.f32 %v4176, %v4638
        %v4651 = vmax.f32 %v4177, %v4639
        %v4652 = vmax.f32 %v4178, %v4640
        %v4659 = vrot.slane %v4647, 2
        %v4660 = vrot.slane %v4648, 2
        %v4661 = vrot.slane %v4649, 2
        %v4662 = vrot.slane %v4650, 2
        %v4663 = vrot.slane %v4651, 2
        %v4664 = vrot.slane %v4652, 2
        %v4671 = vmax.f32 %v4647, %v4659
        %v4672 = vmax.f32 %v4648, %v4660
        %v4673 = vmax.f32 %v4649, %v4661
        %v4674 = vmax.f32 %v4650, %v4662
        %v4675 = vmax.f32 %v4651, %v4663
        %v4676 = vmax.f32 %v4652, %v4664
        %4678 = vrot.lane.b32.xlu0 %v4671, 98
        %v4679 = vpop.permute.xlu0 %4678
        %v4681 = vmax.f32 %v4671, %v4679
        %4682 = vrot.lane.b32.xlu0 %v4671, 68
        %v4683 = vpop.permute.xlu0 %4682
        %v4685 = vmax.f32 %v4681, %v4683
        %4686 = vrot.lane.b32.xlu0 %v4671, 38
        %v4687 = vpop.permute.xlu0 %4686
        %v4689 = vmax.f32 %v4685, %v4687
        %4690 = vst.msk [vmem:[#allocation3 + $0x5] sm:$0x1] %vm4243, %v4689
        %4692 = vrot.lane.b32.xlu0 %v4672, 98
        %v4693 = vpop.permute.xlu0 %4692
        %v4695 = vmax.f32 %v4671, %v4693
        %v4696 = vmax.f32 %v4672, %v4693
        %4697 = vrot.lane.b32.xlu0 %v4672, 68
        %v4698 = vpop.permute.xlu0 %4697
        %v4700 = vmax.f32 %v4695, %v4698
        %v4701 = vmax.f32 %v4696, %v4698
        %4702 = vrot.lane.b32.xlu0 %v4672, 38
        %v4703 = vpop.permute.xlu0 %4702
        %v4705 = vmax.f32 %v4700, %v4703
        %v4706 = vmax.f32 %v4701, %v4703
        %4709 = vrot.lane.b32.xlu0 %v4705, 38
        %v4710 = vpop.permute.xlu0 %4709
        %4711 = vrot.lane.b32.xlu0 %v4706, 38
        %v4712 = vpop.permute.xlu0 %4711
        %v4713 = vsel %vm4267, %v4710, %v4712
        %4715 = vst.msk [vmem:[#allocation3 + $0x5] sm:$0x1] %vm4270, %v4713
        %4717 = vrot.lane.b32.xlu0 %v4673, 98
        %v4718 = vpop.permute.xlu0 %4717
        %v4720 = vmax.f32 %v4672, %v4718
        %v4721 = vmax.f32 %v4673, %v4718
        %4722 = vrot.lane.b32.xlu0 %v4673, 68
        %v4723 = vpop.permute.xlu0 %4722
        %v4725 = vmax.f32 %v4720, %v4723
        %v4726 = vmax.f32 %v4721, %v4723
        %4727 = vrot.lane.b32.xlu0 %v4673, 38
        %v4728 = vpop.permute.xlu0 %4727
        %v4730 = vmax.f32 %v4725, %v4728
        %v4731 = vmax.f32 %v4726, %v4728
        %4734 = vrot.lane.b32.xlu0 %v4730, 76
        %v4735 = vpop.permute.xlu0 %4734
        %4736 = vrot.lane.b32.xlu0 %v4731, 76
        %v4737 = vpop.permute.xlu0 %4736
        %v4738 = vsel %vm4294, %v4735, %v4737
        %4740 = vst.msk [vmem:[#allocation3 + $0x5] sm:$0x1] %vm4297, %v4738
        %4742 = vrot.lane.b32.xlu0 %v4674, 98
        %v4743 = vpop.permute.xlu0 %4742
        %v4745 = vmax.f32 %v4673, %v4743
        %v4746 = vmax.f32 %v4674, %v4743
        %4747 = vrot.lane.b32.xlu0 %v4674, 68
        %v4748 = vpop.permute.xlu0 %4747
        %v4750 = vmax.f32 %v4745, %v4748
        %v4751 = vmax.f32 %v4746, %v4748
        %4752 = vrot.lane.b32.xlu0 %v4674, 38
        %v4753 = vpop.permute.xlu0 %4752
        %v4755 = vmax.f32 %v4750, %v4753
        %v4756 = vmax.f32 %v4751, %v4753
        %4759 = vrot.lane.b32.xlu0 %v4755, 114
        %v4760 = vpop.permute.xlu0 %4759
        %4761 = vrot.lane.b32.xlu0 %v4756, 114
        %v4762 = vpop.permute.xlu0 %4761
        %v4763 = vsel %vm4321, %v4760, %v4762
        %4765 = vst.msk [vmem:[#allocation3 + $0x5] sm:$0x1] %vm4324, %v4763
        %4767 = vrot.lane.b32.xlu0 %v4675, 98
        %v4768 = vpop.permute.xlu0 %4767
        %v4769 = vsel %vm4329, %v4743, %v4768
        %v4771 = vmax.f32 %v4674, %v4769
        %4772 = vrot.lane.b32.xlu0 %v4675, 68
        %v4773 = vpop.permute.xlu0 %4772
        %v4775 = vmax.f32 %v4771, %v4773
        %4776 = vrot.lane.b32.xlu0 %v4675, 38
        %v4777 = vpop.permute.xlu0 %4776
        %v4779 = vmax.f32 %v4775, %v4777
        %4781 = vrot.lane.b32.xlu0 %v4779, 24
        %v4782 = vpop.permute.xlu0 %4781
        %4784 = vst.msk [vmem:[#allocation3 + $0x5] sm:$0x1] %vm4345, %v4782
        %4785 = vst.msk [vmem:[#allocation3 + $0xd] sm:$0x1] %vm4347, %v4782
        %4787 = vrot.lane.b32.xlu0 %v4676, 98
        %v4788 = vpop.permute.xlu0 %4787
        %v4789 = vsel %vm4329, %v4768, %v4788
        %v4791 = vmax.f32 %v4675, %v4789
        %4792 = vrot.lane.b32.xlu0 %v4676, 68
        %v4793 = vpop.permute.xlu0 %4792
        %v4795 = vmax.f32 %v4791, %v4793
        %4796 = vrot.lane.b32.xlu0 %v4676, 38
        %v4797 = vpop.permute.xlu0 %4796
        %v4799 = vmax.f32 %v4795, %v4797
        %4801 = vrot.lane.b32.xlu0 %v4799, 62
        %v4802 = vpop.permute.xlu0 %4801
        %4804 = vst.msk [vmem:[#allocation3 + $0xd] sm:$0x1] %vm4367, %v4802
        %v4806 = vrot.slane %v4689, 4
        %4808 = vst.msk [vmem:[#allocation3 + $0x6] sm:$0x1] %vm4243, %v4806
        %v4809 = vrot.slane %v4705, 4
        %v4810 = vrot.slane %v4706, 4
        %4811 = vrot.lane.b32.xlu0 %v4809, 38
        %v4812 = vpop.permute.xlu0 %4811
        %4813 = vrot.lane.b32.xlu0 %v4810, 38
        %v4814 = vpop.permute.xlu0 %4813
        %v4815 = vsel %vm4267, %v4812, %v4814
        %4817 = vst.msk [vmem:[#allocation3 + $0x6] sm:$0x1] %vm4270, %v4815
        %v4818 = vrot.slane %v4730, 4
        %v4819 = vrot.slane %v4731, 4
        %4820 = vrot.lane.b32.xlu0 %v4818, 76
        %v4821 = vpop.permute.xlu0 %4820
        %4822 = vrot.lane.b32.xlu0 %v4819, 76
        %v4823 = vpop.permute.xlu0 %4822
        %v4824 = vsel %vm4294, %v4821, %v4823
        %4826 = vst.msk [vmem:[#allocation3 + $0x6] sm:$0x1] %vm4297, %v4824
        %v4827 = vrot.slane %v4755, 4
        %v4828 = vrot.slane %v4756, 4
        %4829 = vrot.lane.b32.xlu0 %v4827, 114
        %v4830 = vpop.permute.xlu0 %4829
        %4831 = vrot.lane.b32.xlu0 %v4828, 114
        %v4832 = vpop.permute.xlu0 %4831
        %v4833 = vsel %vm4321, %v4830, %v4832
        %4835 = vst.msk [vmem:[#allocation3 + $0x6] sm:$0x1] %vm4324, %v4833
        %v4836 = vrot.slane %v4779, 4
        %4837 = vrot.lane.b32.xlu0 %v4836, 24
        %v4838 = vpop.permute.xlu0 %4837
        %4840 = vst.msk [vmem:[#allocation3 + $0x6] sm:$0x1] %vm4345, %v4838
        %4841 = vst.msk [vmem:[#allocation3 + $0xe] sm:$0x1] %vm4347, %v4838
        %v4842 = vrot.slane %v4799, 4
        %4843 = vrot.lane.b32.xlu0 %v4842, 62
        %v4844 = vpop.permute.xlu0 %4843
        %4846 = vst.msk [vmem:[#allocation3 + $0xe] sm:$0x1] %vm4367, %v4844
        %v4847 = vld [vmem:[#allocation3] sm:$0xff]
        %v4848 = vld [vmem:[#allocation3 + $0x8] sm:$0xff]
        %v4849 = vld [vmem:[%s4] sm:$0xff]
        %v4850 = vld [vmem:[%s4 + $0x8] sm:$0xff]
        %v4851 = vld [vmem:[%s4 + $0x10] sm:$0xff]
        %v4852 = vld [vmem:[%s4 + $0x18] sm:$0xff]
        %v4853 = vld [vmem:[%s4 + $0x20] sm:$0xff]
        %v4854 = vld [vmem:[%s4 + $0x28] sm:$0xff]
        %v4855 = vld [vmem:[%s4 + $0x30] sm:$0xff]
        %v4856 = vld [vmem:[%s4 + $0x38] sm:$0xff]
        %v4857 = vld [vmem:[%s4 + $0x40] sm:$0xff]
        %v4858 = vld [vmem:[%s4 + $0x48] sm:$0xff]
        %v4859 = vld [vmem:[%s4 + $0x50] sm:$0xff]
        %v4860 = vld [vmem:[%s4 + $0x58] sm:$0xff]
        %v4861 = vld [vmem:[%s4 + $0x60] sm:$0xff]
        %v4862 = vld [vmem:[%s4 + $0x68] sm:$0xff]
        %v4863 = vld [vmem:[%s4 + $0x70] sm:$0xff]
        %v4864 = vld [vmem:[%s4 + $0x78] sm:$0xff]
        %v4865 = vld [vmem:[%s4 + $0x80] sm:$0xff]
        %v4866 = vld [vmem:[%s4 + $0x88] sm:$0xff]
        %v4867 = vld [vmem:[%s4 + $0x90] sm:$0xff]
        %v4868 = vld [vmem:[%s4 + $0x98] sm:$0xff]
        %v4869 = vld [vmem:[%s4 + $0xa0] sm:$0xff]
        %v4870 = vld [vmem:[%s4 + $0xa8] sm:$0xff]
        %v4871 = vld [vmem:[%s4 + $0xb0] sm:$0xf]
        %s4872 = scalar_lea.vmem %s4, 184
        %v4873 = vld [vmem:[%s4872] sm:$0xff]
        %v4874 = vld [vmem:[%s4872 + $0x8] sm:$0xff]
        %v4875 = vld [vmem:[%s4872 + $0x10] sm:$0xff]
        %v4876 = vld [vmem:[%s4872 + $0x18] sm:$0xff]
        %v4877 = vld [vmem:[%s4872 + $0x20] sm:$0xff]
        %v4878 = vld [vmem:[%s4872 + $0x28] sm:$0xff]
        %v4879 = vld [vmem:[%s4872 + $0x30] sm:$0xff]
        %v4880 = vld [vmem:[%s4872 + $0x38] sm:$0xff]
        %v4881 = vld [vmem:[%s4872 + $0x40] sm:$0xff]
        %v4882 = vld [vmem:[%s4872 + $0x48] sm:$0xff]
        %v4883 = vld [vmem:[%s4872 + $0x50] sm:$0xff]
        %v4884 = vld [vmem:[%s4872 + $0x58] sm:$0xff]
        %v4885 = vld [vmem:[%s4872 + $0x60] sm:$0xff]
        %v4886 = vld [vmem:[%s4872 + $0x68] sm:$0xff]
        %v4887 = vld [vmem:[%s4872 + $0x70] sm:$0xff]
        %v4888 = vld [vmem:[%s4872 + $0x78] sm:$0xff]
        %v4889 = vld [vmem:[%s4872 + $0x80] sm:$0xff]
        %v4890 = vld [vmem:[%s4872 + $0x88] sm:$0xff]
        %v4891 = vld [vmem:[%s4872 + $0x90] sm:$0xff]
        %v4892 = vld [vmem:[%s4872 + $0x98] sm:$0xff]
        %v4893 = vld [vmem:[%s4872 + $0xa0] sm:$0xff]
        %v4894 = vld [vmem:[%s4872 + $0xa8] sm:$0xff]
        %v4895 = vld [vmem:[%s4872 + $0xb0] sm:$0xf]
        %v4898 = vrot.slane %v4847, 1
        %v4899 = vrot.slane %v4848, 1
        %v4901 = vsel %vm4180, %v4899, 0
        %vm4903 = vcmask 1043456
        %v4905 = vsel %vm4903, %v4895, 0
        %4907 = vmatprep.subr.mxu0 0.0
        %4908 = vmatpush1.msra.mxu0 %v4873
        %4909 = vmatprep.subr.mxu0 0.0
        %4910 = vmatpush1.msra.mxu0 %v4874
        %4911 = vmatprep.subr.mxu0 0.0
        %4912 = vmatpush1.msra.mxu0 %v4875
        %4913 = vmatprep.subr.mxu0 0.0
        %4914 = vmatpush1.msra.mxu0 %v4876
        %4915 = vmatprep.subr.mxu0 0.0
        %4916 = vmatpush1.msra.mxu0 %v4877
        %4917 = vmatprep.subr.mxu0 0.0
        %4918 = vmatpush1.msra.mxu0 %v4878
        %4919 = vmatprep.subr.mxu0 0.0
        %4920 = vmatpush1.msra.mxu0 %v4879
        %4921 = vmatprep.subr.mxu0 0.0
        %4922 = vmatpush1.msra.mxu0 %v4880
        %4923 = vmatprep.subr.mxu0 0.0
        %4924 = vmatpush1.msra.mxu0 %v4881
        %4925 = vmatprep.subr.mxu0 0.0
        %4926 = vmatpush1.msra.mxu0 %v4882
        %4927 = vmatprep.subr.mxu0 0.0
        %4928 = vmatpush1.msra.mxu0 %v4883
        %4929 = vmatprep.subr.mxu0 0.0
        %4930 = vmatpush1.msra.mxu0 %v4884
        %4931 = vmatprep.subr.mxu0 0.0
        %4932 = vmatpush1.msra.mxu0 %v4885
        %4933 = vmatprep.subr.mxu0 0.0
        %4934 = vmatpush1.msra.mxu0 %v4886
        %4935 = vmatprep.subr.mxu0 0.0
        %4936 = vmatpush1.msra.mxu0 %v4887
        %4937 = vmatprep.subr.mxu0 0.0
        %4938 = vmatpush1.msra.mxu0 %v4888
        %4939 = vmatprep.subr.mxu0 0.0
        %4940 = vmatpush1.msra.mxu0 %v4889
        %4941 = vmatprep.subr.mxu0 0.0
        %4942 = vmatpush1.msra.mxu0 %v4890
        %4943 = vmatprep.subr.mxu0 0.0
        %4944 = vmatpush1.msra.mxu0 %v4891
        %4945 = vmatprep.subr.mxu0 0.0
        %4946 = vmatpush1.msra.mxu0 %v4892
        %4947 = vmatprep.subr.mxu0 0.0
        %4948 = vmatpush1.msra.mxu0 %v4893
        %4949 = vmatprep.subr.mxu0 0.0
        %4950 = vmatpush1.msra.mxu0 %v4894
        %4951 = vmatprep.subr.mxu0 0.0
        %4952 = vmatpush1.msra.mxu0 %v4905
        %4953 = vmatprep.subr.mxu0 0.0
        %4954 = vmatpush1.msra.mxu0 0.0
        %4955 = vmatprep.subr.mxu0 0.0
        %4956 = vmatpush1.msra.mxu0 0.0
        %4957 = vmatprep.subr.mxu0 0.0
        %4958 = vmatpush1.msra.mxu0 0.0
        %4959 = vmatprep.subr.mxu0 0.0
        %4960 = vmatpush1.msra.mxu0 0.0
        %4961 = vmatprep.subr.mxu0 0.0
        %4962 = vmatpush1.msra.mxu0 0.0
        %4963 = vmatprep.subr.mxu0 0.0
        %4964 = vmatpush1.msra.mxu0 0.0
        %4965 = vmatprep.subr.mxu0 0.0
        %4966 = vmatpush1.msra.mxu0 0.0
        %4967 = vmatprep.subr.mxu0 0.0
        %4968 = vmatpush1.msra.mxu0 0.0
        %4969 = vmatprep.subr.mxu0 0.0
        %4970 = vmatpush1.msra.mxu0 0.0
        %4971 = vmatprep.mubr.f32.mxu0 %v4901
        %4972 = vmatmul.mubr.f32.gmra.mrb[0].mxu0 %v4898
        %v4973 = vpop.f32.mrb[0].mxu0
        %v4974 = vadd.f32 0.0, %v4973
        %v4975 = vpop.f32.mrb[0].mxu0
        %4976 = vdwg.mxu0
        %v4977 = vsel %vm4180, %v4848, 0
        %v4980 = vsel %vm4903, %v4871, 0
        %4982 = vmatprep.subr.mxu0 0.0
        %4983 = vmatpush1.msra.mxu0 %v4849
        %4984 = vmatprep.subr.mxu0 0.0
        %4985 = vmatpush1.msra.mxu0 %v4850
        %4986 = vmatprep.subr.mxu0 0.0
        %4987 = vmatpush1.msra.mxu0 %v4851
        %4988 = vmatprep.subr.mxu0 0.0
        %4989 = vmatpush1.msra.mxu0 %v4852
        %4990 = vmatprep.subr.mxu0 0.0
        %4991 = vmatpush1.msra.mxu0 %v4853
        %4992 = vmatprep.subr.mxu0 0.0
        %4993 = vmatpush1.msra.mxu0 %v4854
        %4994 = vmatprep.subr.mxu0 0.0
        %4995 = vmatpush1.msra.mxu0 %v4855
        %4996 = vmatprep.subr.mxu0 0.0
        %4997 = vmatpush1.msra.mxu0 %v4856
        %4998 = vmatprep.subr.mxu0 0.0
        %4999 = vmatpush1.msra.mxu0 %v4857
        %5000 = vmatprep.subr.mxu0 0.0
        %5001 = vmatpush1.msra.mxu0 %v4858
        %5002 = vmatprep.subr.mxu0 0.0
        %5003 = vmatpush1.msra.mxu0 %v4859
        %5004 = vmatprep.subr.mxu0 0.0
        %5005 = vmatpush1.msra.mxu0 %v4860
        %5006 = vmatprep.subr.mxu0 0.0
        %5007 = vmatpush1.msra.mxu0 %v4861
        %5008 = vmatprep.subr.mxu0 0.0
        %5009 = vmatpush1.msra.mxu0 %v4862
        %5010 = vmatprep.subr.mxu0 0.0
        %5011 = vmatpush1.msra.mxu0 %v4863
        %5012 = vmatprep.subr.mxu0 0.0
        %5013 = vmatpush1.msra.mxu0 %v4864
        %5014 = vmatprep.subr.mxu0 0.0
        %5015 = vmatpush1.msra.mxu0 %v4865
        %5016 = vmatprep.subr.mxu0 0.0
        %5017 = vmatpush1.msra.mxu0 %v4866
        %5018 = vmatprep.subr.mxu0 0.0
        %5019 = vmatpush1.msra.mxu0 %v4867
        %5020 = vmatprep.subr.mxu0 0.0
        %5021 = vmatpush1.msra.mxu0 %v4868
        %5022 = vmatprep.subr.mxu0 0.0
        %5023 = vmatpush1.msra.mxu0 %v4869
        %5024 = vmatprep.subr.mxu0 0.0
        %5025 = vmatpush1.msra.mxu0 %v4870
        %5026 = vmatprep.subr.mxu0 0.0
        %5027 = vmatpush1.msra.mxu0 %v4980
        %5028 = vmatprep.subr.mxu0 0.0
        %5029 = vmatpush1.msra.mxu0 0.0
        %5030 = vmatprep.subr.mxu0 0.0
        %5031 = vmatpush1.msra.mxu0 0.0
        %5032 = vmatprep.subr.mxu0 0.0
        %5033 = vmatpush1.msra.mxu0 0.0
        %5034 = vmatprep.subr.mxu0 0.0
        %5035 = vmatpush1.msra.mxu0 0.0
        %5036 = vmatprep.subr.mxu0 0.0
        %5037 = vmatpush1.msra.mxu0 0.0
        %5038 = vmatprep.subr.mxu0 0.0
        %5039 = vmatpush1.msra.mxu0 0.0
        %5040 = vmatprep.subr.mxu0 0.0
        %5041 = vmatpush1.msra.mxu0 0.0
        %5042 = vmatprep.subr.mxu0 0.0
        %5043 = vmatpush1.msra.mxu0 0.0
        %5044 = vmatprep.subr.mxu0 0.0
        %5045 = vmatpush1.msra.mxu0 0.0
        %5046 = vmatprep.mubr.f32.mxu0 %v4977
        %5047 = vmatmul.mubr.f32.gmra.mrb[0].mxu0 %v4847
        %v5048 = vpop.f32.mrb[0].mxu0
        %v5049 = vadd.f32 %v4974, %v5048
        %v5050 = vpop.f32.mrb[0].mxu0
        %5051 = vdwg.mxu0
        %s5052 = scalar_lea.vmem %s4, 368
        %v5053 = vld [vmem:[%s5052] sm:$0xff]
        %v5054 = vld [vmem:[%s5052 + $0x8] sm:$0xff]
        %v5055 = vld [vmem:[%s5052 + $0x10] sm:$0xff]
        %v5056 = vld [vmem:[%s5052 + $0x18] sm:$0xff]
        %v5057 = vld [vmem:[%s5052 + $0x20] sm:$0xff]
        %v5058 = vld [vmem:[%s5052 + $0x28] sm:$0xff]
        %v5059 = vld [vmem:[%s5052 + $0x30] sm:$0xff]
        %v5060 = vld [vmem:[%s5052 + $0x38] sm:$0xff]
        %v5061 = vld [vmem:[%s5052 + $0x40] sm:$0xff]
        %v5062 = vld [vmem:[%s5052 + $0x48] sm:$0xff]
        %v5063 = vld [vmem:[%s5052 + $0x50] sm:$0xff]
        %v5064 = vld [vmem:[%s5052 + $0x58] sm:$0xff]
        %v5065 = vld [vmem:[%s5052 + $0x60] sm:$0xff]
        %v5066 = vld [vmem:[%s5052 + $0x68] sm:$0xff]
        %v5067 = vld [vmem:[%s5052 + $0x70] sm:$0xff]
        %v5068 = vld [vmem:[%s5052 + $0x78] sm:$0xff]
        %v5069 = vld [vmem:[%s5052 + $0x80] sm:$0xff]
        %v5070 = vld [vmem:[%s5052 + $0x88] sm:$0xff]
        %v5071 = vld [vmem:[%s5052 + $0x90] sm:$0xff]
        %v5072 = vld [vmem:[%s5052 + $0x98] sm:$0xff]
        %v5073 = vld [vmem:[%s5052 + $0xa0] sm:$0xff]
        %v5074 = vld [vmem:[%s5052 + $0xa8] sm:$0xff]
        %v5075 = vld [vmem:[%s5052 + $0xb0] sm:$0xf]
        %v5076 = vrot.slane %v4847, 2
        %v5077 = vrot.slane %v4848, 2
        %v5079 = vsel %vm4180, %v5077, 0
        %v5082 = vsel %vm4903, %v5075, 0
        %5084 = vmatprep.subr.mxu0 0.0
        %5085 = vmatpush1.msra.mxu0 %v5053
        %5086 = vmatprep.subr.mxu0 0.0
        %5087 = vmatpush1.msra.mxu0 %v5054
        %5088 = vmatprep.subr.mxu0 0.0
        %5089 = vmatpush1.msra.mxu0 %v5055
        %5090 = vmatprep.subr.mxu0 0.0
        %5091 = vmatpush1.msra.mxu0 %v5056
        %5092 = vmatprep.subr.mxu0 0.0
        %5093 = vmatpush1.msra.mxu0 %v5057
        %5094 = vmatprep.subr.mxu0 0.0
        %5095 = vmatpush1.msra.mxu0 %v5058
        %5096 = vmatprep.subr.mxu0 0.0
        %5097 = vmatpush1.msra.mxu0 %v5059
        %5098 = vmatprep.subr.mxu0 0.0
        %5099 = vmatpush1.msra.mxu0 %v5060
        %5100 = vmatprep.subr.mxu0 0.0
        %5101 = vmatpush1.msra.mxu0 %v5061
        %5102 = vmatprep.subr.mxu0 0.0
        %5103 = vmatpush1.msra.mxu0 %v5062
        %5104 = vmatprep.subr.mxu0 0.0
        %5105 = vmatpush1.msra.mxu0 %v5063
        %5106 = vmatprep.subr.mxu0 0.0
        %5107 = vmatpush1.msra.mxu0 %v5064
        %5108 = vmatprep.subr.mxu0 0.0
        %5109 = vmatpush1.msra.mxu0 %v5065
        %5110 = vmatprep.subr.mxu0 0.0
        %5111 = vmatpush1.msra.mxu0 %v5066
        %5112 = vmatprep.subr.mxu0 0.0
        %5113 = vmatpush1.msra.mxu0 %v5067
        %5114 = vmatprep.subr.mxu0 0.0
        %5115 = vmatpush1.msra.mxu0 %v5068
        %5116 = vmatprep.subr.mxu0 0.0
        %5117 = vmatpush1.msra.mxu0 %v5069
        %5118 = vmatprep.subr.mxu0 0.0
        %5119 = vmatpush1.msra.mxu0 %v5070
        %5120 = vmatprep.subr.mxu0 0.0
        %5121 = vmatpush1.msra.mxu0 %v5071
        %5122 = vmatprep.subr.mxu0 0.0
        %5123 = vmatpush1.msra.mxu0 %v5072
        %5124 = vmatprep.subr.mxu0 0.0
        %5125 = vmatpush1.msra.mxu0 %v5073
        %5126 = vmatprep.subr.mxu0 0.0
        %5127 = vmatpush1.msra.mxu0 %v5074
        %5128 = vmatprep.subr.mxu0 0.0
        %5129 = vmatpush1.msra.mxu0 %v5082
        %5130 = vmatprep.subr.mxu0 0.0
        %5131 = vmatpush1.msra.mxu0 0.0
        %5132 = vmatprep.subr.mxu0 0.0
        %5133 = vmatpush1.msra.mxu0 0.0
        %5134 = vmatprep.subr.mxu0 0.0
        %5135 = vmatpush1.msra.mxu0 0.0
        %5136 = vmatprep.subr.mxu0 0.0
        %5137 = vmatpush1.msra.mxu0 0.0
        %5138 = vmatprep.subr.mxu0 0.0
        %5139 = vmatpush1.msra.mxu0 0.0
        %5140 = vmatprep.subr.mxu0 0.0
        %5141 = vmatpush1.msra.mxu0 0.0
        %5142 = vmatprep.subr.mxu0 0.0
        %5143 = vmatpush1.msra.mxu0 0.0
        %5144 = vmatprep.subr.mxu0 0.0
        %5145 = vmatpush1.msra.mxu0 0.0
        %5146 = vmatprep.subr.mxu0 0.0
        %5147 = vmatpush1.msra.mxu0 0.0
        %5148 = vmatprep.mubr.f32.mxu0 %v5079
        %5149 = vmatmul.mubr.f32.gmra.mrb[0].mxu0 %v5076
        %v5150 = vpop.f32.mrb[0].mxu0
        %v5151 = vadd.f32 0.0, %v5150
        %v5152 = vpop.f32.mrb[0].mxu0
        %5153 = vdwg.mxu0
        %v5154 = vadd.f32 %v5049, %v5151
        %v5155 = vld [vmem:[%s5] sm:$0x1]
        %v5157 = vlaneseq
        %v5158 = vshrl.u32 %v5157, 7
        %v5159 = vsub.s32 0, %v5158
        %v5160 = vrot.slane %v5155, %v5159
        %v5162 = vadd.f32 %v5154, %v5160
        %v5163 = vmax.f32 %v5162, 0.0
        %v5164 = vld [vmem:[%s7] sm:$0x1]
        %v5166 = vrot.slane %v5163, 1
        %v5168 = vmax.f32 %v5163, %v5166
        %v5169 = vld [vmem:[%s6] sm:$0xff]
        %v5170 = vld [vmem:[%s6 + $0x8] sm:$0xff]
        %v5171 = vld [vmem:[%s6 + $0x10] sm:$0xff]
        %v5172 = vld [vmem:[%s6 + $0x18] sm:$0x3f]
        %5174 = vrot.lane.b32.xlu0 %v5168, 118
        %v5175 = vpop.permute.xlu0 %5174
        %v5177 = vmax.f32 %v5168, %v5175
        %vm5178 = vcmask 80896
        %v5180 = vsel %vm5178, %v5177, 0
        %vm5182 = vcmask 1041408
        %v5184 = vsel %vm5182, %v5170, 0
        %5186 = vmatprep.subr.mxu0 0.0
        %5187 = vmatpush1.msra.mxu0 %v5169
        %5188 = vmatprep.subr.mxu0 0.0
        %5189 = vmatpush1.msra.mxu0 %v5184
        %5190 = vmatprep.subr.mxu0 0.0
        %5191 = vmatpush1.msra.mxu0 0.0
        %5192 = vmatprep.subr.mxu0 0.0
        %5193 = vmatpush1.msra.mxu0 0.0
        %5194 = vmatprep.subr.mxu0 0.0
        %5195 = vmatpush1.msra.mxu0 0.0
        %5196 = vmatprep.subr.mxu0 0.0
        %5197 = vmatpush1.msra.mxu0 0.0
        %5198 = vmatprep.subr.mxu0 0.0
        %5199 = vmatpush1.msra.mxu0 0.0
        %5200 = vmatprep.subr.mxu0 0.0
        %5201 = vmatpush1.msra.mxu0 0.0
        %5202 = vmatprep.subr.mxu0 0.0
        %5203 = vmatpush1.msra.mxu0 0.0
        %5204 = vmatprep.subr.mxu0 0.0
        %5205 = vmatpush1.msra.mxu0 0.0
        %5206 = vmatprep.subr.mxu0 0.0
        %5207 = vmatpush1.msra.mxu0 0.0
        %5208 = vmatprep.subr.mxu0 0.0
        %5209 = vmatpush1.msra.mxu0 0.0
        %5210 = vmatprep.subr.mxu0 0.0
        %5211 = vmatpush1.msra.mxu0 0.0
        %5212 = vmatprep.subr.mxu0 0.0
        %5213 = vmatpush1.msra.mxu0 0.0
        %5214 = vmatprep.subr.mxu0 0.0
        %5215 = vmatpush1.msra.mxu0 0.0
        %5216 = vmatprep.subr.mxu0 0.0
        %5217 = vmatpush1.msra.mxu0 0.0
        %5218 = vmatprep.subr.mxu0 0.0
        %5219 = vmatpush1.msra.mxu0 0.0
        %5220 = vmatprep.subr.mxu0 0.0
        %5221 = vmatpush1.msra.mxu0 0.0
        %5222 = vmatprep.subr.mxu0 0.0
        %5223 = vmatpush1.msra.mxu0 0.0
        %5224 = vmatprep.subr.mxu0 0.0
        %5225 = vmatpush1.msra.mxu0 0.0
        %5226 = vmatprep.subr.mxu0 0.0
        %5227 = vmatpush1.msra.mxu0 0.0
        %5228 = vmatprep.subr.mxu0 0.0
        %5229 = vmatpush1.msra.mxu0 0.0
        %5230 = vmatprep.subr.mxu0 0.0
        %5231 = vmatpush1.msra.mxu0 0.0
        %5232 = vmatprep.subr.mxu0 0.0
        %5233 = vmatpush1.msra.mxu0 0.0
        %5234 = vmatprep.subr.mxu0 0.0
        %5235 = vmatpush1.msra.mxu0 0.0
        %5236 = vmatprep.subr.mxu0 0.0
        %5237 = vmatpush1.msra.mxu0 0.0
        %5238 = vmatprep.subr.mxu0 0.0
        %5239 = vmatpush1.msra.mxu0 0.0
        %5240 = vmatprep.subr.mxu0 0.0
        %5241 = vmatpush1.msra.mxu0 0.0
        %5242 = vmatprep.subr.mxu0 0.0
        %5243 = vmatpush1.msra.mxu0 0.0
        %5244 = vmatprep.subr.mxu0 0.0
        %5245 = vmatpush1.msra.mxu0 0.0
        %5246 = vmatprep.subr.mxu0 0.0
        %5247 = vmatpush1.msra.mxu0 0.0
        %5248 = vmatprep.subr.mxu0 0.0
        %5249 = vmatpush1.msra.mxu0 0.0
        %5250 = vmatprep.mubr.f32.mxu0 0.0
        %5251 = vmatmul.mubr.f32.gmra.mrb[0].mxu0 %v5180
        %v5252 = vpop.f32.mrb[0].mxu0
        %v5253 = vadd.f32 0.0, %v5252
        %v5254 = vpop.f32.mrb[0].mxu0
        %5255 = vdwg.mxu0
        %v5256 = vadd.f32 %v5164, %v5253
        %5257 = vrot.lane.b32.xlu0 %v5177, 108
        %v5258 = vpop.permute.xlu0 %5257
        %vm5260 = vcmask 1045504
        %v5261 = vrot.slane %v5170, 2
        %v5262 = vrot.slane %v5171, 2
        %v5263 = vsel %vm5260, %v5261, %v5262
        %v5265 = vsel %vm5178, %v5258, 0
        %v5267 = vsel %vm5182, %v5262, 0
        %5269 = vmatprep.subr.mxu0 0.0
        %5270 = vmatpush1.msra.mxu0 %v5263
        %5271 = vmatprep.subr.mxu0 0.0
        %5272 = vmatpush1.msra.mxu0 %v5267
        %5273 = vmatprep.subr.mxu0 0.0
        %5274 = vmatpush1.msra.mxu0 0.0
        %5275 = vmatprep.subr.mxu0 0.0
        %5276 = vmatpush1.msra.mxu0 0.0
        %5277 = vmatprep.subr.mxu0 0.0
        %5278 = vmatpush1.msra.mxu0 0.0
        %5279 = vmatprep.subr.mxu0 0.0
        %5280 = vmatpush1.msra.mxu0 0.0
        %5281 = vmatprep.subr.mxu0 0.0
        %5282 = vmatpush1.msra.mxu0 0.0
        %5283 = vmatprep.subr.mxu0 0.0
        %5284 = vmatpush1.msra.mxu0 0.0
        %5285 = vmatprep.subr.mxu0 0.0
        %5286 = vmatpush1.msra.mxu0 0.0
        %5287 = vmatprep.subr.mxu0 0.0
        %5288 = vmatpush1.msra.mxu0 0.0
        %5289 = vmatprep.subr.mxu0 0.0
        %5290 = vmatpush1.msra.mxu0 0.0
        %5291 = vmatprep.subr.mxu0 0.0
        %5292 = vmatpush1.msra.mxu0 0.0
        %5293 = vmatprep.subr.mxu0 0.0
        %5294 = vmatpush1.msra.mxu0 0.0
        %5295 = vmatprep.subr.mxu0 0.0
        %5296 = vmatpush1.msra.mxu0 0.0
        %5297 = vmatprep.subr.mxu0 0.0
        %5298 = vmatpush1.msra.mxu0 0.0
        %5299 = vmatprep.subr.mxu0 0.0
        %5300 = vmatpush1.msra.mxu0 0.0
        %5301 = vmatprep.subr.mxu0 0.0
        %5302 = vmatpush1.msra.mxu0 0.0
        %5303 = vmatprep.subr.mxu0 0.0
        %5304 = vmatpush1.msra.mxu0 0.0
        %5305 = vmatprep.subr.mxu0 0.0
        %5306 = vmatpush1.msra.mxu0 0.0
        %5307 = vmatprep.subr.mxu0 0.0
        %5308 = vmatpush1.msra.mxu0 0.0
        %5309 = vmatprep.subr.mxu0 0.0
        %5310 = vmatpush1.msra.mxu0 0.0
        %5311 = vmatprep.subr.mxu0 0.0
        %5312 = vmatpush1.msra.mxu0 0.0
        %5313 = vmatprep.subr.mxu0 0.0
        %5314 = vmatpush1.msra.mxu0 0.0
        %5315 = vmatprep.subr.mxu0 0.0
        %5316 = vmatpush1.msra.mxu0 0.0
        %5317 = vmatprep.subr.mxu0 0.0
        %5318 = vmatpush1.msra.mxu0 0.0
        %5319 = vmatprep.subr.mxu0 0.0
        %5320 = vmatpush1.msra.mxu0 0.0
        %5321 = vmatprep.subr.mxu0 0.0
        %5322 = vmatpush1.msra.mxu0 0.0
        %5323 = vmatprep.subr.mxu0 0.0
        %5324 = vmatpush1.msra.mxu0 0.0
        %5325 = vmatprep.subr.mxu0 0.0
        %5326 = vmatpush1.msra.mxu0 0.0
        %5327 = vmatprep.subr.mxu0 0.0
        %5328 = vmatpush1.msra.mxu0 0.0
        %5329 = vmatprep.subr.mxu0 0.0
        %5330 = vmatpush1.msra.mxu0 0.0
        %5331 = vmatprep.subr.mxu0 0.0
        %5332 = vmatpush1.msra.mxu0 0.0
        %5333 = vmatprep.mubr.f32.mxu0 0.0
        %5334 = vmatmul.mubr.f32.gmra.mrb[0].mxu0 %v5265
        %v5335 = vpop.f32.mrb[0].mxu0
        %v5336 = vadd.f32 0.0, %v5335
        %v5337 = vpop.f32.mrb[0].mxu0
        %5338 = vdwg.mxu0
        %v5339 = vadd.f32 %v5256, %v5336
        %5340 = vrot.lane.b32.xlu0 %v5177, 88
        %v5341 = vpop.permute.xlu0 %5340
        %v5343 = vrot.slane %v5171, 4
        %v5344 = vrot.slane %v5172, 4
        %v5345 = vsel %vm4903, %v5343, %v5344
        %v5347 = vsel %vm5178, %v5341, 0
        %v5349 = vsel %vm5182, %v5344, 0
        %5351 = vmatprep.subr.mxu0 0.0
        %5352 = vmatpush1.msra.mxu0 %v5345
        %5353 = vmatprep.subr.mxu0 0.0
        %5354 = vmatpush1.msra.mxu0 %v5349
        %5355 = vmatprep.subr.mxu0 0.0
        %5356 = vmatpush1.msra.mxu0 0.0
        %5357 = vmatprep.subr.mxu0 0.0
        %5358 = vmatpush1.msra.mxu0 0.0
        %5359 = vmatprep.subr.mxu0 0.0
        %5360 = vmatpush1.msra.mxu0 0.0
        %5361 = vmatprep.subr.mxu0 0.0
        %5362 = vmatpush1.msra.mxu0 0.0
        %5363 = vmatprep.subr.mxu0 0.0
        %5364 = vmatpush1.msra.mxu0 0.0
        %5365 = vmatprep.subr.mxu0 0.0
        %5366 = vmatpush1.msra.mxu0 0.0
        %5367 = vmatprep.subr.mxu0 0.0
        %5368 = vmatpush1.msra.mxu0 0.0
        %5369 = vmatprep.subr.mxu0 0.0
        %5370 = vmatpush1.msra.mxu0 0.0
        %5371 = vmatprep.subr.mxu0 0.0
        %5372 = vmatpush1.msra.mxu0 0.0
        %5373 = vmatprep.subr.mxu0 0.0
        %5374 = vmatpush1.msra.mxu0 0.0
        %5375 = vmatprep.subr.mxu0 0.0
        %5376 = vmatpush1.msra.mxu0 0.0
        %5377 = vmatprep.subr.mxu0 0.0
        %5378 = vmatpush1.msra.mxu0 0.0
        %5379 = vmatprep.subr.mxu0 0.0
        %5380 = vmatpush1.msra.mxu0 0.0
        %5381 = vmatprep.subr.mxu0 0.0
        %5382 = vmatpush1.msra.mxu0 0.0
        %5383 = vmatprep.subr.mxu0 0.0
        %5384 = vmatpush1.msra.mxu0 0.0
        %5385 = vmatprep.subr.mxu0 0.0
        %5386 = vmatpush1.msra.mxu0 0.0
        %5387 = vmatprep.subr.mxu0 0.0
        %5388 = vmatpush1.msra.mxu0 0.0
        %5389 = vmatprep.subr.mxu0 0.0
        %5390 = vmatpush1.msra.mxu0 0.0
        %5391 = vmatprep.subr.mxu0 0.0
        %5392 = vmatpush1.msra.mxu0 0.0
        %5393 = vmatprep.subr.mxu0 0.0
        %5394 = vmatpush1.msra.mxu0 0.0
        %5395 = vmatprep.subr.mxu0 0.0
        %5396 = vmatpush1.msra.mxu0 0.0
        %5397 = vmatprep.subr.mxu0 0.0
        %5398 = vmatpush1.msra.mxu0 0.0
        %5399 = vmatprep.subr.mxu0 0.0
        %5400 = vmatpush1.msra.mxu0 0.0
        %5401 = vmatprep.subr.mxu0 0.0
        %5402 = vmatpush1.msra.mxu0 0.0
        %5403 = vmatprep.subr.mxu0 0.0
        %5404 = vmatpush1.msra.mxu0 0.0
        %5405 = vmatprep.subr.mxu0 0.0
        %5406 = vmatpush1.msra.mxu0 0.0
        %5407 = vmatprep.subr.mxu0 0.0
        %5408 = vmatpush1.msra.mxu0 0.0
        %5409 = vmatprep.subr.mxu0 0.0
        %5410 = vmatpush1.msra.mxu0 0.0
        %5411 = vmatprep.subr.mxu0 0.0
        %5412 = vmatpush1.msra.mxu0 0.0
        %5413 = vmatprep.subr.mxu0 0.0
        %5414 = vmatpush1.msra.mxu0 0.0
        %5415 = vmatprep.mubr.f32.mxu0 0.0
        %5416 = vmatmul.mubr.f32.gmra.mrb[0].mxu0 %v5347
        %v5417 = vpop.f32.mrb[0].mxu0
        %v5418 = vadd.f32 0.0, %v5417
        %v5419 = vpop.f32.mrb[0].mxu0
        %5420 = vdwg.mxu0
        %v5421 = vadd.f32 %v5339, %v5418
        %s5422 = scalar_lea.vmem %s6, 32
        %v5423 = vld [vmem:[%s5422] sm:$0xff]
        %v5424 = vld [vmem:[%s5422 + $0x8] sm:$0xff]
        %v5425 = vld [vmem:[%s5422 + $0x10] sm:$0xff]
        %v5426 = vld [vmem:[%s5422 + $0x18] sm:$0x3f]
        %v5427 = vrot.slane %v5177, 2
        %v5428 = vsel %vm5178, %v5427, 0
        %v5431 = vsel %vm5182, %v5424, 0
        %5433 = vmatprep.subr.mxu0 0.0
        %5434 = vmatpush1.msra.mxu0 %v5423
        %5435 = vmatprep.subr.mxu0 0.0
        %5436 = vmatpush1.msra.mxu0 %v5431
        %5437 = vmatprep.subr.mxu0 0.0
        %5438 = vmatpush1.msra.mxu0 0.0
        %5439 = vmatprep.subr.mxu0 0.0
        %5440 = vmatpush1.msra.mxu0 0.0
        %5441 = vmatprep.subr.mxu0 0.0
        %5442 = vmatpush1.msra.mxu0 0.0
        %5443 = vmatprep.subr.mxu0 0.0
        %5444 = vmatpush1.msra.mxu0 0.0
        %5445 = vmatprep.subr.mxu0 0.0
        %5446 = vmatpush1.msra.mxu0 0.0
        %5447 = vmatprep.subr.mxu0 0.0
        %5448 = vmatpush1.msra.mxu0 0.0
        %5449 = vmatprep.subr.mxu0 0.0
        %5450 = vmatpush1.msra.mxu0 0.0
        %5451 = vmatprep.subr.mxu0 0.0
        %5452 = vmatpush1.msra.mxu0 0.0
        %5453 = vmatprep.subr.mxu0 0.0
        %5454 = vmatpush1.msra.mxu0 0.0
        %5455 = vmatprep.subr.mxu0 0.0
        %5456 = vmatpush1.msra.mxu0 0.0
        %5457 = vmatprep.subr.mxu0 0.0
        %5458 = vmatpush1.msra.mxu0 0.0
        %5459 = vmatprep.subr.mxu0 0.0
        %5460 = vmatpush1.msra.mxu0 0.0
        %5461 = vmatprep.subr.mxu0 0.0
        %5462 = vmatpush1.msra.mxu0 0.0
        %5463 = vmatprep.subr.mxu0 0.0
        %5464 = vmatpush1.msra.mxu0 0.0
        %5465 = vmatprep.subr.mxu0 0.0
        %5466 = vmatpush1.msra.mxu0 0.0
        %5467 = vmatprep.subr.mxu0 0.0
        %5468 = vmatpush1.msra.mxu0 0.0
        %5469 = vmatprep.subr.mxu0 0.0
        %5470 = vmatpush1.msra.mxu0 0.0
        %5471 = vmatprep.subr.mxu0 0.0
        %5472 = vmatpush1.msra.mxu0 0.0
        %5473 = vmatprep.subr.mxu0 0.0
        %5474 = vmatpush1.msra.mxu0 0.0
        %5475 = vmatprep.subr.mxu0 0.0
        %5476 = vmatpush1.msra.mxu0 0.0
        %5477 = vmatprep.subr.mxu0 0.0
        %5478 = vmatpush1.msra.mxu0 0.0
        %5479 = vmatprep.subr.mxu0 0.0
        %5480 = vmatpush1.msra.mxu0 0.0
        %5481 = vmatprep.subr.mxu0 0.0
        %5482 = vmatpush1.msra.mxu0 0.0
        %5483 = vmatprep.subr.mxu0 0.0
        %5484 = vmatpush1.msra.mxu0 0.0
        %5485 = vmatprep.subr.mxu0 0.0
        %5486 = vmatpush1.msra.mxu0 0.0
        %5487 = vmatprep.subr.mxu0 0.0
        %5488 = vmatpush1.msra.mxu0 0.0
        %5489 = vmatprep.subr.mxu0 0.0
        %5490 = vmatpush1.msra.mxu0 0.0
        %5491 = vmatprep.subr.mxu0 0.0
        %5492 = vmatpush1.msra.mxu0 0.0
        %5493 = vmatprep.subr.mxu0 0.0
        %5494 = vmatpush1.msra.mxu0 0.0
        %5495 = vmatprep.subr.mxu0 0.0
        %5496 = vmatpush1.msra.mxu0 0.0
        %5497 = vmatprep.mubr.f32.mxu0 0.0
        %5498 = vmatmul.mubr.f32.gmra.mrb[0].mxu0 %v5428
        %v5499 = vpop.f32.mrb[0].mxu0
        %v5500 = vadd.f32 0.0, %v5499
        %v5501 = vpop.f32.mrb[0].mxu0
        %5502 = vdwg.mxu0
        %v5503 = vadd.f32 %v5421, %v5500
        %5504 = vrot.lane.b32.xlu0 %v5427, 108
        %v5505 = vpop.permute.xlu0 %5504
        %v5507 = vrot.slane %v5424, 2
        %v5508 = vrot.slane %v5425, 2
        %v5509 = vsel %vm5260, %v5507, %v5508
        %v5511 = vsel %vm5178, %v5505, 0
        %v5513 = vsel %vm5182, %v5508, 0
        %5515 = vmatprep.subr.mxu0 0.0
        %5516 = vmatpush1.msra.mxu0 %v5509
        %5517 = vmatprep.subr.mxu0 0.0
        %5518 = vmatpush1.msra.mxu0 %v5513
        %5519 = vmatprep.subr.mxu0 0.0
        %5520 = vmatpush1.msra.mxu0 0.0
        %5521 = vmatprep.subr.mxu0 0.0
        %5522 = vmatpush1.msra.mxu0 0.0
        %5523 = vmatprep.subr.mxu0 0.0
        %5524 = vmatpush1.msra.mxu0 0.0
        %5525 = vmatprep.subr.mxu0 0.0
        %5526 = vmatpush1.msra.mxu0 0.0
        %5527 = vmatprep.subr.mxu0 0.0
        %5528 = vmatpush1.msra.mxu0 0.0
        %5529 = vmatprep.subr.mxu0 0.0
        %5530 = vmatpush1.msra.mxu0 0.0
        %5531 = vmatprep.subr.mxu0 0.0
        %5532 = vmatpush1.msra.mxu0 0.0
        %5533 = vmatprep.subr.mxu0 0.0
        %5534 = vmatpush1.msra.mxu0 0.0
        %5535 = vmatprep.subr.mxu0 0.0
        %5536 = vmatpush1.msra.mxu0 0.0
        %5537 = vmatprep.subr.mxu0 0.0
        %5538 = vmatpush1.msra.mxu0 0.0
        %5539 = vmatprep.subr.mxu0 0.0
        %5540 = vmatpush1.msra.mxu0 0.0
        %5541 = vmatprep.subr.mxu0 0.0
        %5542 = vmatpush1.msra.mxu0 0.0
        %5543 = vmatprep.subr.mxu0 0.0
        %5544 = vmatpush1.msra.mxu0 0.0
        %5545 = vmatprep.subr.mxu0 0.0
        %5546 = vmatpush1.msra.mxu0 0.0
        %5547 = vmatprep.subr.mxu0 0.0
        %5548 = vmatpush1.msra.mxu0 0.0
        %5549 = vmatprep.subr.mxu0 0.0
        %5550 = vmatpush1.msra.mxu0 0.0
        %5551 = vmatprep.subr.mxu0 0.0
        %5552 = vmatpush1.msra.mxu0 0.0
        %5553 = vmatprep.subr.mxu0 0.0
        %5554 = vmatpush1.msra.mxu0 0.0
        %5555 = vmatprep.subr.mxu0 0.0
        %5556 = vmatpush1.msra.mxu0 0.0
        %5557 = vmatprep.subr.mxu0 0.0
        %5558 = vmatpush1.msra.mxu0 0.0
        %5559 = vmatprep.subr.mxu0 0.0
        %5560 = vmatpush1.msra.mxu0 0.0
        %5561 = vmatprep.subr.mxu0 0.0
        %5562 = vmatpush1.msra.mxu0 0.0
        %5563 = vmatprep.subr.mxu0 0.0
        %5564 = vmatpush1.msra.mxu0 0.0
        %5565 = vmatprep.subr.mxu0 0.0
        %5566 = vmatpush1.msra.mxu0 0.0
        %5567 = vmatprep.subr.mxu0 0.0
        %5568 = vmatpush1.msra.mxu0 0.0
        %5569 = vmatprep.subr.mxu0 0.0
        %5570 = vmatpush1.msra.mxu0 0.0
        %5571 = vmatprep.subr.mxu0 0.0
        %5572 = vmatpush1.msra.mxu0 0.0
        %5573 = vmatprep.subr.mxu0 0.0
        %5574 = vmatpush1.msra.mxu0 0.0
        %5575 = vmatprep.subr.mxu0 0.0
        %5576 = vmatpush1.msra.mxu0 0.0
        %5577 = vmatprep.subr.mxu0 0.0
        %5578 = vmatpush1.msra.mxu0 0.0
        %5579 = vmatprep.mubr.f32.mxu0 0.0
        %5580 = vmatmul.mubr.f32.gmra.mrb[0].mxu0 %v5511
        %v5581 = vpop.f32.mrb[0].mxu0
        %v5582 = vadd.f32 0.0, %v5581
        %v5583 = vpop.f32.mrb[0].mxu0
        %5584 = vdwg.mxu0
        %v5585 = vadd.f32 %v5503, %v5582
        %5586 = vrot.lane.b32.xlu0 %v5427, 88
        %v5587 = vpop.permute.xlu0 %5586
        %v5589 = vrot.slane %v5425, 4
        %v5590 = vrot.slane %v5426, 4
        %v5591 = vsel %vm4903, %v5589, %v5590
        %v5593 = vsel %vm5178, %v5587, 0
        %v5595 = vsel %vm5182, %v5590, 0
        %5597 = vmatprep.subr.mxu0 0.0
        %5598 = vmatpush1.msra.mxu0 %v5591
        %5599 = vmatprep.subr.mxu0 0.0
        %5600 = vmatpush1.msra.mxu0 %v5595
        %5601 = vmatprep.subr.mxu0 0.0
        %5602 = vmatpush1.msra.mxu0 0.0
        %5603 = vmatprep.subr.mxu0 0.0
        %5604 = vmatpush1.msra.mxu0 0.0
        %5605 = vmatprep.subr.mxu0 0.0
        %5606 = vmatpush1.msra.mxu0 0.0
        %5607 = vmatprep.subr.mxu0 0.0
        %5608 = vmatpush1.msra.mxu0 0.0
        %5609 = vmatprep.subr.mxu0 0.0
        %5610 = vmatpush1.msra.mxu0 0.0
        %5611 = vmatprep.subr.mxu0 0.0
        %5612 = vmatpush1.msra.mxu0 0.0
        %5613 = vmatprep.subr.mxu0 0.0
        %5614 = vmatpush1.msra.mxu0 0.0
        %5615 = vmatprep.subr.mxu0 0.0
        %5616 = vmatpush1.msra.mxu0 0.0
        %5617 = vmatprep.subr.mxu0 0.0
        %5618 = vmatpush1.msra.mxu0 0.0
        %5619 = vmatprep.subr.mxu0 0.0
        %5620 = vmatpush1.msra.mxu0 0.0
        %5621 = vmatprep.subr.mxu0 0.0
        %5622 = vmatpush1.msra.mxu0 0.0
        %5623 = vmatprep.subr.mxu0 0.0
        %5624 = vmatpush1.msra.mxu0 0.0
        %5625 = vmatprep.subr.mxu0 0.0
        %5626 = vmatpush1.msra.mxu0 0.0
        %5627 = vmatprep.subr.mxu0 0.0
        %5628 = vmatpush1.msra.mxu0 0.0
        %5629 = vmatprep.subr.mxu0 0.0
        %5630 = vmatpush1.msra.mxu0 0.0
        %5631 = vmatprep.subr.mxu0 0.0
        %5632 = vmatpush1.msra.mxu0 0.0
        %5633 = vmatprep.subr.mxu0 0.0
        %5634 = vmatpush1.msra.mxu0 0.0
        %5635 = vmatprep.subr.mxu0 0.0
        %5636 = vmatpush1.msra.mxu0 0.0
        %5637 = vmatprep.subr.mxu0 0.0
        %5638 = vmatpush1.msra.mxu0 0.0
        %5639 = vmatprep.subr.mxu0 0.0
        %5640 = vmatpush1.msra.mxu0 0.0
        %5641 = vmatprep.subr.mxu0 0.0
        %5642 = vmatpush1.msra.mxu0 0.0
        %5643 = vmatprep.subr.mxu0 0.0
        %5644 = vmatpush1.msra.mxu0 0.0
        %5645 = vmatprep.subr.mxu0 0.0
        %5646 = vmatpush1.msra.mxu0 0.0
        %5647 = vmatprep.subr.mxu0 0.0
        %5648 = vmatpush1.msra.mxu0 0.0
        %5649 = vmatprep.subr.mxu0 0.0
        %5650 = vmatpush1.msra.mxu0 0.0
        %5651 = vmatprep.subr.mxu0 0.0
        %5652 = vmatpush1.msra.mxu0 0.0
        %5653 = vmatprep.subr.mxu0 0.0
        %5654 = vmatpush1.msra.mxu0 0.0
        %5655 = vmatprep.subr.mxu0 0.0
        %5656 = vmatpush1.msra.mxu0 0.0
        %5657 = vmatprep.subr.mxu0 0.0
        %5658 = vmatpush1.msra.mxu0 0.0
        %5659 = vmatprep.subr.mxu0 0.0
        %5660 = vmatpush1.msra.mxu0 0.0
        %5661 = vmatprep.mubr.f32.mxu0 0.0
        %5662 = vmatmul.mubr.f32.gmra.mrb[0].mxu0 %v5593
        %v5663 = vpop.f32.mrb[0].mxu0
        %v5664 = vadd.f32 0.0, %v5663
        %v5665 = vpop.f32.mrb[0].mxu0
        %5666 = vdwg.mxu0
        %v5667 = vadd.f32 %v5585, %v5664
        %s5668 = scalar_lea.vmem %s6, 64
        %v5669 = vld [vmem:[%s5668] sm:$0xff]
        %v5670 = vld [vmem:[%s5668 + $0x8] sm:$0xff]
        %v5671 = vld [vmem:[%s5668 + $0x10] sm:$0xff]
        %v5672 = vld [vmem:[%s5668 + $0x18] sm:$0x3f]
        %v5673 = vrot.slane %v5177, 4
        %v5674 = vsel %vm5178, %v5673, 0
        %v5677 = vsel %vm5182, %v5670, 0
        %5679 = vmatprep.subr.mxu0 0.0
        %5680 = vmatpush1.msra.mxu0 %v5669
        %5681 = vmatprep.subr.mxu0 0.0
        %5682 = vmatpush1.msra.mxu0 %v5677
        %5683 = vmatprep.subr.mxu0 0.0
        %5684 = vmatpush1.msra.mxu0 0.0
        %5685 = vmatprep.subr.mxu0 0.0
        %5686 = vmatpush1.msra.mxu0 0.0
        %5687 = vmatprep.subr.mxu0 0.0
        %5688 = vmatpush1.msra.mxu0 0.0
        %5689 = vmatprep.subr.mxu0 0.0
        %5690 = vmatpush1.msra.mxu0 0.0
        %5691 = vmatprep.subr.mxu0 0.0
        %5692 = vmatpush1.msra.mxu0 0.0
        %5693 = vmatprep.subr.mxu0 0.0
        %5694 = vmatpush1.msra.mxu0 0.0
        %5695 = vmatprep.subr.mxu0 0.0
        %5696 = vmatpush1.msra.mxu0 0.0
        %5697 = vmatprep.subr.mxu0 0.0
        %5698 = vmatpush1.msra.mxu0 0.0
        %5699 = vmatprep.subr.mxu0 0.0
        %5700 = vmatpush1.msra.mxu0 0.0
        %5701 = vmatprep.subr.mxu0 0.0
        %5702 = vmatpush1.msra.mxu0 0.0
        %5703 = vmatprep.subr.mxu0 0.0
        %5704 = vmatpush1.msra.mxu0 0.0
        %5705 = vmatprep.subr.mxu0 0.0
        %5706 = vmatpush1.msra.mxu0 0.0
        %5707 = vmatprep.subr.mxu0 0.0
        %5708 = vmatpush1.msra.mxu0 0.0
        %5709 = vmatprep.subr.mxu0 0.0
        %5710 = vmatpush1.msra.mxu0 0.0
        %5711 = vmatprep.subr.mxu0 0.0
        %5712 = vmatpush1.msra.mxu0 0.0
        %5713 = vmatprep.subr.mxu0 0.0
        %5714 = vmatpush1.msra.mxu0 0.0
        %5715 = vmatprep.subr.mxu0 0.0
        %5716 = vmatpush1.msra.mxu0 0.0
        %5717 = vmatprep.subr.mxu0 0.0
        %5718 = vmatpush1.msra.mxu0 0.0
        %5719 = vmatprep.subr.mxu0 0.0
        %5720 = vmatpush1.msra.mxu0 0.0
        %5721 = vmatprep.subr.mxu0 0.0
        %5722 = vmatpush1.msra.mxu0 0.0
        %5723 = vmatprep.subr.mxu0 0.0
        %5724 = vmatpush1.msra.mxu0 0.0
        %5725 = vmatprep.subr.mxu0 0.0
        %5726 = vmatpush1.msra.mxu0 0.0
        %5727 = vmatprep.subr.mxu0 0.0
        %5728 = vmatpush1.msra.mxu0 0.0
        %5729 = vmatprep.subr.mxu0 0.0
        %5730 = vmatpush1.msra.mxu0 0.0
        %5731 = vmatprep.subr.mxu0 0.0
        %5732 = vmatpush1.msra.mxu0 0.0
        %5733 = vmatprep.subr.mxu0 0.0
        %5734 = vmatpush1.msra.mxu0 0.0
        %5735 = vmatprep.subr.mxu0 0.0
        %5736 = vmatpush1.msra.mxu0 0.0
        %5737 = vmatprep.subr.mxu0 0.0
        %5738 = vmatpush1.msra.mxu0 0.0
        %5739 = vmatprep.subr.mxu0 0.0
        %5740 = vmatpush1.msra.mxu0 0.0
        %5741 = vmatprep.subr.mxu0 0.0
        %5742 = vmatpush1.msra.mxu0 0.0
        %5743 = vmatprep.mubr.f32.mxu0 0.0
        %5744 = vmatmul.mubr.f32.gmra.mrb[0].mxu0 %v5674
        %v5745 = vpop.f32.mrb[0].mxu0
        %v5746 = vadd.f32 0.0, %v5745
        %v5747 = vpop.f32.mrb[0].mxu0
        %5748 = vdwg.mxu0
        %v5749 = vadd.f32 %v5667, %v5746
        %5750 = vrot.lane.b32.xlu0 %v5673, 108
        %v5751 = vpop.permute.xlu0 %5750
        %v5753 = vrot.slane %v5670, 2
        %v5754 = vrot.slane %v5671, 2
        %v5755 = vsel %vm5260, %v5753, %v5754
        %v5757 = vsel %vm5178, %v5751, 0
        %v5759 = vsel %vm5182, %v5754, 0
        %5761 = vmatprep.subr.mxu0 0.0
        %5762 = vmatpush1.msra.mxu0 %v5755
        %5763 = vmatprep.subr.mxu0 0.0
        %5764 = vmatpush1.msra.mxu0 %v5759
        %5765 = vmatprep.subr.mxu0 0.0
        %5766 = vmatpush1.msra.mxu0 0.0
        %5767 = vmatprep.subr.mxu0 0.0
        %5768 = vmatpush1.msra.mxu0 0.0
        %5769 = vmatprep.subr.mxu0 0.0
        %5770 = vmatpush1.msra.mxu0 0.0
        %5771 = vmatprep.subr.mxu0 0.0
        %5772 = vmatpush1.msra.mxu0 0.0
        %5773 = vmatprep.subr.mxu0 0.0
        %5774 = vmatpush1.msra.mxu0 0.0
        %5775 = vmatprep.subr.mxu0 0.0
        %5776 = vmatpush1.msra.mxu0 0.0
        %5777 = vmatprep.subr.mxu0 0.0
        %5778 = vmatpush1.msra.mxu0 0.0
        %5779 = vmatprep.subr.mxu0 0.0
        %5780 = vmatpush1.msra.mxu0 0.0
        %5781 = vmatprep.subr.mxu0 0.0
        %5782 = vmatpush1.msra.mxu0 0.0
        %5783 = vmatprep.subr.mxu0 0.0
        %5784 = vmatpush1.msra.mxu0 0.0
        %5785 = vmatprep.subr.mxu0 0.0
        %5786 = vmatpush1.msra.mxu0 0.0
        %5787 = vmatprep.subr.mxu0 0.0
        %5788 = vmatpush1.msra.mxu0 0.0
        %5789 = vmatprep.subr.mxu0 0.0
        %5790 = vmatpush1.msra.mxu0 0.0
        %5791 = vmatprep.subr.mxu0 0.0
        %5792 = vmatpush1.msra.mxu0 0.0
        %5793 = vmatprep.subr.mxu0 0.0
        %5794 = vmatpush1.msra.mxu0 0.0
        %5795 = vmatprep.subr.mxu0 0.0
        %5796 = vmatpush1.msra.mxu0 0.0
        %5797 = vmatprep.subr.mxu0 0.0
        %5798 = vmatpush1.msra.mxu0 0.0
        %5799 = vmatprep.subr.mxu0 0.0
        %5800 = vmatpush1.msra.mxu0 0.0
        %5801 = vmatprep.subr.mxu0 0.0
        %5802 = vmatpush1.msra.mxu0 0.0
        %5803 = vmatprep.subr.mxu0 0.0
        %5804 = vmatpush1.msra.mxu0 0.0
        %5805 = vmatprep.subr.mxu0 0.0
        %5806 = vmatpush1.msra.mxu0 0.0
        %5807 = vmatprep.subr.mxu0 0.0
        %5808 = vmatpush1.msra.mxu0 0.0
        %5809 = vmatprep.subr.mxu0 0.0
        %5810 = vmatpush1.msra.mxu0 0.0
        %5811 = vmatprep.subr.mxu0 0.0
        %5812 = vmatpush1.msra.mxu0 0.0
        %5813 = vmatprep.subr.mxu0 0.0
        %5814 = vmatpush1.msra.mxu0 0.0
        %5815 = vmatprep.subr.mxu0 0.0
        %5816 = vmatpush1.msra.mxu0 0.0
        %5817 = vmatprep.subr.mxu0 0.0
        %5818 = vmatpush1.msra.mxu0 0.0
        %5819 = vmatprep.subr.mxu0 0.0
        %5820 = vmatpush1.msra.mxu0 0.0
        %5821 = vmatprep.subr.mxu0 0.0
        %5822 = vmatpush1.msra.mxu0 0.0
        %5823 = vmatprep.subr.mxu0 0.0
        %5824 = vmatpush1.msra.mxu0 0.0
        %5825 = vmatprep.mubr.f32.mxu0 0.0
        %5826 = vmatmul.mubr.f32.gmra.mrb[0].mxu0 %v5757
        %v5827 = vpop.f32.mrb[0].mxu0
        %v5828 = vadd.f32 0.0, %v5827
        %v5829 = vpop.f32.mrb[0].mxu0
        %5830 = vdwg.mxu0
        %v5831 = vadd.f32 %v5749, %v5828
        %5832 = vrot.lane.b32.xlu0 %v5673, 88
        %v5833 = vpop.permute.xlu0 %5832
        %v5835 = vrot.slane %v5671, 4
        %v5836 = vrot.slane %v5672, 4
        %v5837 = vsel %vm4903, %v5835, %v5836
        %v5839 = vsel %vm5178, %v5833, 0
        %v5841 = vsel %vm5182, %v5836, 0
        %5843 = vmatprep.subr.mxu0 0.0
        %5844 = vmatpush1.msra.mxu0 %v5837
        %5845 = vmatprep.subr.mxu0 0.0
        %5846 = vmatpush1.msra.mxu0 %v5841
        %5847 = vmatprep.subr.mxu0 0.0
        %5848 = vmatpush1.msra.mxu0 0.0
        %5849 = vmatprep.subr.mxu0 0.0
        %5850 = vmatpush1.msra.mxu0 0.0
        %5851 = vmatprep.subr.mxu0 0.0
        %5852 = vmatpush1.msra.mxu0 0.0
        %5853 = vmatprep.subr.mxu0 0.0
        %5854 = vmatpush1.msra.mxu0 0.0
        %5855 = vmatprep.subr.mxu0 0.0
        %5856 = vmatpush1.msra.mxu0 0.0
        %5857 = vmatprep.subr.mxu0 0.0
        %5858 = vmatpush1.msra.mxu0 0.0
        %5859 = vmatprep.subr.mxu0 0.0
        %5860 = vmatpush1.msra.mxu0 0.0
        %5861 = vmatprep.subr.mxu0 0.0
        %5862 = vmatpush1.msra.mxu0 0.0
        %5863 = vmatprep.subr.mxu0 0.0
        %5864 = vmatpush1.msra.mxu0 0.0
        %5865 = vmatprep.subr.mxu0 0.0
        %5866 = vmatpush1.msra.mxu0 0.0
        %5867 = vmatprep.subr.mxu0 0.0
        %5868 = vmatpush1.msra.mxu0 0.0
        %5869 = vmatprep.subr.mxu0 0.0
        %5870 = vmatpush1.msra.mxu0 0.0
        %5871 = vmatprep.subr.mxu0 0.0
        %5872 = vmatpush1.msra.mxu0 0.0
        %5873 = vmatprep.subr.mxu0 0.0
        %5874 = vmatpush1.msra.mxu0 0.0
        %5875 = vmatprep.subr.mxu0 0.0
        %5876 = vmatpush1.msra.mxu0 0.0
        %5877 = vmatprep.subr.mxu0 0.0
        %5878 = vmatpush1.msra.mxu0 0.0
        %5879 = vmatprep.subr.mxu0 0.0
        %5880 = vmatpush1.msra.mxu0 0.0
        %5881 = vmatprep.subr.mxu0 0.0
        %5882 = vmatpush1.msra.mxu0 0.0
        %5883 = vmatprep.subr.mxu0 0.0
        %5884 = vmatpush1.msra.mxu0 0.0
        %5885 = vmatprep.subr.mxu0 0.0
        %5886 = vmatpush1.msra.mxu0 0.0
        %5887 = vmatprep.subr.mxu0 0.0
        %5888 = vmatpush1.msra.mxu0 0.0
        %5889 = vmatprep.subr.mxu0 0.0
        %5890 = vmatpush1.msra.mxu0 0.0
        %5891 = vmatprep.subr.mxu0 0.0
        %5892 = vmatpush1.msra.mxu0 0.0
        %5893 = vmatprep.subr.mxu0 0.0
        %5894 = vmatpush1.msra.mxu0 0.0
        %5895 = vmatprep.subr.mxu0 0.0
        %5896 = vmatpush1.msra.mxu0 0.0
        %5897 = vmatprep.subr.mxu0 0.0
        %5898 = vmatpush1.msra.mxu0 0.0
        %5899 = vmatprep.subr.mxu0 0.0
        %5900 = vmatpush1.msra.mxu0 0.0
        %5901 = vmatprep.subr.mxu0 0.0
        %5902 = vmatpush1.msra.mxu0 0.0
        %5903 = vmatprep.subr.mxu0 0.0
        %5904 = vmatpush1.msra.mxu0 0.0
        %5905 = vmatprep.subr.mxu0 0.0
        %5906 = vmatpush1.msra.mxu0 0.0
        %5907 = vmatprep.mubr.f32.mxu0 0.0
        %5908 = vmatmul.mubr.f32.gmra.mrb[0].mxu0 %v5839
        %v5909 = vpop.f32.mrb[0].mxu0
        %v5910 = vadd.f32 0.0, %v5909
        %v5911 = vpop.f32.mrb[0].mxu0
        %5912 = vdwg.mxu0
        %v5913 = vadd.f32 %v5831, %v5910
        %v5914 = vld [vmem:[%s8] sm:$0xf]
        %v5915 = vld [vmem:[%s9] sm:$0x1]
        %vm5916 = vcmask 31744
        %v5918 = vsel %vm5916, %v5913, 0
        %v5921 = vsel %vm4903, %v5914, 0
        %5923 = vmatprep.subr.mxu0 0.0
        %5924 = vmatpush1.msra.mxu0 %v5921
        %5925 = vmatprep.subr.mxu0 0.0
        %5926 = vmatpush1.msra.mxu0 0.0
        %5927 = vmatprep.subr.mxu0 0.0
        %5928 = vmatpush1.msra.mxu0 0.0
        %5929 = vmatprep.subr.mxu0 0.0
        %5930 = vmatpush1.msra.mxu0 0.0
        %5931 = vmatprep.subr.mxu0 0.0
        %5932 = vmatpush1.msra.mxu0 0.0
        %5933 = vmatprep.subr.mxu0 0.0
        %5934 = vmatpush1.msra.mxu0 0.0
        %5935 = vmatprep.subr.mxu0 0.0
        %5936 = vmatpush1.msra.mxu0 0.0
        %5937 = vmatprep.subr.mxu0 0.0
        %5938 = vmatpush1.msra.mxu0 0.0
        %5939 = vmatprep.subr.mxu0 0.0
        %5940 = vmatpush1.msra.mxu0 0.0
        %5941 = vmatprep.subr.mxu0 0.0
        %5942 = vmatpush1.msra.mxu0 0.0
        %5943 = vmatprep.subr.mxu0 0.0
        %5944 = vmatpush1.msra.mxu0 0.0
        %5945 = vmatprep.subr.mxu0 0.0
        %5946 = vmatpush1.msra.mxu0 0.0
        %5947 = vmatprep.subr.mxu0 0.0
        %5948 = vmatpush1.msra.mxu0 0.0
        %5949 = vmatprep.subr.mxu0 0.0
        %5950 = vmatpush1.msra.mxu0 0.0
        %5951 = vmatprep.subr.mxu0 0.0
        %5952 = vmatpush1.msra.mxu0 0.0
        %5953 = vmatprep.subr.mxu0 0.0
        %5954 = vmatpush1.msra.mxu0 0.0
        %5955 = vmatprep.subr.mxu0 0.0
        %5956 = vmatpush1.msra.mxu0 0.0
        %5957 = vmatprep.subr.mxu0 0.0
        %5958 = vmatpush1.msra.mxu0 0.0
        %5959 = vmatprep.subr.mxu0 0.0
        %5960 = vmatpush1.msra.mxu0 0.0
        %5961 = vmatprep.subr.mxu0 0.0
        %5962 = vmatpush1.msra.mxu0 0.0
        %5963 = vmatprep.subr.mxu0 0.0
        %5964 = vmatpush1.msra.mxu0 0.0
        %5965 = vmatprep.subr.mxu0 0.0
        %5966 = vmatpush1.msra.mxu0 0.0
        %5967 = vmatprep.subr.mxu0 0.0
        %5968 = vmatpush1.msra.mxu0 0.0
        %5969 = vmatprep.subr.mxu0 0.0
        %5970 = vmatpush1.msra.mxu0 0.0
        %5971 = vmatprep.subr.mxu0 0.0
        %5972 = vmatpush1.msra.mxu0 0.0
        %5973 = vmatprep.subr.mxu0 0.0
        %5974 = vmatpush1.msra.mxu0 0.0
        %5975 = vmatprep.subr.mxu0 0.0
        %5976 = vmatpush1.msra.mxu0 0.0
        %5977 = vmatprep.subr.mxu0 0.0
        %5978 = vmatpush1.msra.mxu0 0.0
        %5979 = vmatprep.subr.mxu0 0.0
        %5980 = vmatpush1.msra.mxu0 0.0
        %5981 = vmatprep.subr.mxu0 0.0
        %5982 = vmatpush1.msra.mxu0 0.0
        %5983 = vmatprep.subr.mxu0 0.0
        %5984 = vmatpush1.msra.mxu0 0.0
        %5985 = vmatprep.subr.mxu0 0.0
        %5986 = vmatpush1.msra.mxu0 0.0
        %5987 = vmatprep.mubr.f32.mxu0 0.0
        %5988 = vmatmul.mubr.f32.gmra.mrb[0].mxu0 %v5918
        %v5989 = vpop.f32.mrb[0].mxu0
        %v5990 = vadd.f32 %v5915, %v5989
        %v5991 = vpop.f32.mrb[0].mxu0
        %5992 = vdwg.mxu0
        %vm5993 = vcmask 16384
        %v5994 = vsel %vm5993, %v5990, -inf
        %5995 = vmax.xlane.f32.xlu0 %v5994
        %v5996 = vpop.xlane.xlu0 %5995
        %v5997 = vsub.f32 %v5990, %v5996
        %v5998 = vmul.f32 %v5997, 1.442695
        %v5999 = vpow.pop %v5998
        %v6000 = vsel %vm5993, %v5999, 0.0
        %6001 = vadd.xlane.f32.xlu0 %v6000
        %v6002 = vpop.xlane.xlu0 %6001
        %v6003 = vlog2.pop %v6002
        %v6004 = vmul.f32 %v6003, 0.6931472
        %v6005 = vadd.f32 %v5996, %v6004
        %v6006 = vsub.f32 %v5990, %v6005
        %6007 = vst.msk [vmem:[%s351] sm:$0x1] %vm5993, %v6006
        %s6008 = sand.u32 %s247, 1
        %s6009 = scalar_lea.sflag [#allocation5], %s6008
        %s6010 = sand.u32 %s247, 1
        %s6011 = scalar_lea.vmem [#allocation4], %s6010
        // Predicated region
        $region61: #{freq_cnn_forward.1} parent=59 // pred_check
          %p6012 = pneg %p257
        $region62: #{freq_cnn_forward.1} parent=59 // pred_check_branch
          %6014 = sbr.rel (%p6012) target = $region64
        $region63: #{freq_cnn_forward.1} parent=59 // pred_region
          %s6016 = ssub.s32 16, 16
          %6017 = vsyncadd %s6009, %s6016
          %s6018 = smul.addr %s24, 16
          %s6019 = scalar_lea.hbm %s10, %s6018
          %s6021 = sshll.u32 %s6011, 4
          %s6022 = int_to_ptr.vmem [resolvable:$true] %s6021
          %6024 = dma.vmem_to_hbm [thread:$0]  %s6022, 16, %s6019, %s6009
        $region64: #{freq_cnn_forward.1} parent=59 // pred_fallthru
          _
      $region60: #{freq_cnn_forward.1} parent=5 // pred_fallthru
        _
      %p6025 = scmp.le.s32.totalorder 2, %s19
      // Predicated region
      $region65: #{freq_cnn_forward.1} parent=5 // pred_check
        %p6026 = pneg %p6025
      $region66: #{freq_cnn_forward.1} parent=5 // pred_check_branch
        %6028 = sbr.rel (%p6026) target = $region68
      $region67: #{freq_cnn_forward.1} parent=5 // pred_region
        %s6029 = ssub.s32 %s19, 2
        // Predicated region
        $region69: #{freq_cnn_forward.1} parent=67 // pred_check
          %p6030 = pneg %p263
        $region70: #{freq_cnn_forward.1} parent=67 // pred_check_branch
          %6032 = sbr.rel (%p6030) target = $region72
        $region71: #{freq_cnn_forward.1} parent=67 // pred_region
          %s6033 = sand.u32 %s248, 1
          %s6034 = scalar_lea.sflag [#allocation5], %s6033
          %s6035 = sand.u32 %s248, 1
          %s6036 = scalar_lea.vmem [#allocation4], %s6035
          %6037 = dma.done %s6034, 16
        $region72: #{freq_cnn_forward.1} parent=67 // pred_fallthru
          _
      $region68: #{freq_cnn_forward.1} parent=5 // pred_fallthru
        _
    $region6: #{freq_cnn_forward.1} parent=1 // loop_footer
      %s23 = sadd.s32 1, %s19
    $region7: #{freq_cnn_forward.1} parent=1 // loop_footer_branch
      %18 = sbr.rel target = $region3
    $region8: #{freq_cnn_forward.1} parent=1 // loop_exit
      _
    %6038 = vsyncpa [#allocation5], 1
    %s6039 = scalar_lea.sflag [#allocation5], 1
    %6040 = vsyncpa %s6039, 1

</llo_original>
